<compile_context>
chip_gen: v6e
topology: v6e:2x2x1
jax: 0.10.0
libtpu: 0.0.40
codegen_flags: <defaults>
</compile_context>

<pallas_src>
import functools

import jax
import jax.numpy as jnp
from jax.experimental import pallas as pl
from jax.experimental.pallas import tpu as pltpu

LATENT_DIM = 20
NUM_CLASSES = 10
INTERMEDIATE_DIM = 256
IMG_DIM = 28

_VMEM_LIMIT = 32 * 1024 * 1024   # safe on v5e/v6e (128 MiB) and v7x (64 MiB physical)
_TM_CAP = 512                    # row-tile cap (multiple of 16)


def _round_up(x, m):
    return (x + m - 1) // m * m


def _pick_tile_m(mp, cap):
    """Largest multiple of 16 <= cap that evenly divides mp (mp is a multiple of 16)."""
    best = 16
    for t in range(16, min(mp, cap) + 1, 16):
        if mp % t == 0:
            best = t
    return best


# ----------------------------------------------------------------------------
# Pallas kernels
# ----------------------------------------------------------------------------
def _linear_kernel(a_ref, w_ref, b_ref, o_ref, *, act):
    """Fused (TM,K)@(K,N) bf16 matmul + f32 bias + activation epilogue."""
    acc = jnp.dot(a_ref[...], w_ref[...], preferred_element_type=jnp.float32)
    acc = acc + b_ref[...]
    if act == "leaky_relu":
        acc = jnp.where(acc > 0, acc, 0.2 * acc)
    elif act == "sigmoid":
        acc = pl.reciprocal(1.0 + jnp.exp(-acc), approx=True)
    o_ref[...] = acc.astype(o_ref.dtype)


def pallas_linear(a, w, b2, act="none", out_dtype=jnp.float32):
    """a: (M,K), w: (K,N) bf16, b2: (1,N) f32 -> (M,N).  Tiled & pipelined over M."""
    M, K = a.shape
    N = w.shape[1]
    Mp = _round_up(M, 16)
    tm = _pick_tile_m(Mp, _TM_CAP)
    if Mp != M:
        a = jnp.pad(a, ((0, Mp - M), (0, 0)))
    out = pl.pallas_call(
        functools.partial(_linear_kernel, act=act),
        out_shape=jax.ShapeDtypeStruct((Mp, N), out_dtype),
        grid=(Mp // tm,),
        in_specs=[
            pl.BlockSpec((tm, K), lambda i: (i, 0)),
            pl.BlockSpec((K, N), lambda i: (0, 0)),
            pl.BlockSpec((1, N), lambda i: (0, 0)),
        ],
        out_specs=pl.BlockSpec((tm, N), lambda i: (i, 0)),
        compiler_params=pltpu.CompilerParams(
            dimension_semantics=("parallel",),       # rows independent -> 2 TCs on v7x
            vmem_limit_bytes=_VMEM_LIMIT),
    )(a.astype(jnp.bfloat16), w.astype(jnp.bfloat16), b2.astype(jnp.float32))
    return out if Mp == M else out[:M]


def _latent_kernel(flat_ref, wm_ref, wl_ref, bm_ref, bl_ref, eps_ref,
                   dw_ref, db_ref, c1w_ref, c1b_ref, c2w_ref, c2b_ref,
                   mean_ref, logvar_ref, z_ref, dec_ref, y_ref):
    """Fused fc_mean + fc_logvar + reparameterize + decoder-fc + classifier.

    One read of `flat`, zero HBM round-trips of z / the classifier hidden layer.
    """
    f = flat_ref[...]
    mean = jnp.dot(f, wm_ref[...], preferred_element_type=jnp.float32) + bm_ref[...]
    logvar = jnp.dot(f, wl_ref[...], preferred_element_type=jnp.float32) + bl_ref[...]
    z = mean + eps_ref[...] * jnp.exp(0.5 * logvar)
    mean_ref[...] = mean
    logvar_ref[...] = logvar
    z_ref[...] = z

    zb = z.astype(jnp.bfloat16)

    # Decoder fc: Linear(20 -> 3136), no activation (matches nn.Linear before view).
    dec = jnp.dot(zb, dw_ref[...], preferred_element_type=jnp.float32) + db_ref[...]
    dec_ref[...] = dec.astype(dec_ref.dtype)

    # Classifier: Linear(20->256) + ReLU + Linear(256->10) + Softmax(dim=1).
    h = jnp.dot(zb, c1w_ref[...], preferred_element_type=jnp.float32) + c1b_ref[...]
    h = jnp.maximum(h, 0.0)
    logits = jnp.dot(h.astype(jnp.bfloat16), c2w_ref[...],
                     preferred_element_type=jnp.float32) + c2b_ref[...]
    m = jnp.max(logits, axis=-1, keepdims=True)
    e = jnp.exp(logits - m)
    y_ref[...] = e * pl.reciprocal(jnp.sum(e, axis=-1, keepdims=True), approx=True)


def pallas_latent(flat, wm, wl, bm, bl, eps, dw, db, c1w, c1b, c2w, c2b):
    """flat: (B,3136) -> (mean, logvar, z, dec_fc_out, y)."""
    B, K = flat.shape
    D = wm.shape[1]       # latent dim
    F = dw.shape[1]       # 64*7*7
    H = c1w.shape[1]      # intermediate dim
    C = c2w.shape[1]      # num classes
    Bp = _round_up(B, 8)
    if Bp != B:
        flat = jnp.pad(flat, ((0, Bp - B), (0, 0)))
        eps = jnp.pad(eps, ((0, Bp - B), (0, 0)))

    def full(r, c):
        return pl.BlockSpec((r, c), lambda i: (0, 0))

    mean, logvar, z, dec, y = pl.pallas_call(
        _latent_kernel,
        out_shape=(
            jax.ShapeDtypeStruct((Bp, D), jnp.float32),
            jax.ShapeDtypeStruct((Bp, D), jnp.float32),
            jax.ShapeDtypeStruct((Bp, D), jnp.float32),
            jax.ShapeDtypeStruct((Bp, F), jnp.bfloat16),
            jax.ShapeDtypeStruct((Bp, C), jnp.float32),
        ),
        grid=(1,),
        in_specs=[
            full(Bp, K),                       # flat (bf16)
            full(K, D), full(K, D),            # wm, wl
            full(1, D), full(1, D),            # bm, bl
            full(Bp, D),                       # eps
            full(D, F), full(1, F),            # decoder fc
            full(D, H), full(1, H),            # classifier l1
            full(H, C), full(1, C),            # classifier l2
        ],
        out_specs=(full(Bp, D), full(Bp, D), full(Bp, D), full(Bp, F), full(Bp, C)),
        compiler_params=pltpu.CompilerParams(
            dimension_semantics=("arbitrary",),
            vmem_limit_bytes=_VMEM_LIMIT),
    )(flat.astype(jnp.bfloat16), wm, wl, bm, bl, eps.astype(jnp.float32),
      dw, db, c1w, c1b, c2w, c2b)
    return mean[:B], logvar[:B], z[:B], dec[:B], y[:B]


# ----------------------------------------------------------------------------
# Glue: im2col / dilation (pure data movement, fused by XLA under jit)
# ----------------------------------------------------------------------------
def _im2col(x, k, stride, pad_lo, pad_hi):
    """x: (N,H,W,C) -> (N*Ho*Wo, k*k*C) with patch order (kh, kw, c)."""
    N, H, W, C = x.shape
    xp = jnp.pad(x, ((0, 0), (pad_lo, pad_hi), (pad_lo, pad_hi), (0, 0)))
    Hp, Wp = H + pad_lo + pad_hi, W + pad_lo + pad_hi
    Ho = (Hp - k) // stride + 1
    Wo = (Wp - k) // stride + 1
    cols = []
    for ki in range(k):
        for kj in range(k):
            cols.append(xp[:, ki:ki + stride * (Ho - 1) + 1:stride,
                           kj:kj + stride * (Wo - 1) + 1:stride, :])
    patches = jnp.stack(cols, axis=3)            # (N,Ho,Wo,k*k,C)
    return patches.reshape(N * Ho * Wo, k * k * C), Ho, Wo


def _dilate(x, s):
    if s == 1:
        return x
    N, H, W, C = x.shape
    out = jnp.zeros((N, (H - 1) * s + 1, (W - 1) * s + 1, C), x.dtype)
    return out.at[:, ::s, ::s, :].set(x)


def conv2d(x, wmat, b2, *, stride, pad, act, out_dtype=jnp.bfloat16):
    """x: (N,H,W,Cin) NHWC, wmat: (9*Cin, Cout) bf16 [kernel-ready], b2: (1,Cout) f32."""
    patches, Ho, Wo = _im2col(x, 3, stride, pad, pad)
    out = pallas_linear(patches, wmat, b2, act=act, out_dtype=out_dtype)
    return out.reshape(x.shape[0], Ho, Wo, wmat.shape[1])


def conv_transpose2d(x, wmat, b2, *, stride, pad, out_pad, act, out_dtype=jnp.bfloat16):
    """x: (N,H,W,Cin) NHWC, wmat: (9*Cin, Cout) bf16 [flipped, kernel-ready]."""
    xd = _dilate(x, stride)
    pad_lo = 3 - 1 - pad
    pad_hi = 3 - 1 - pad + out_pad
    patches, Ho, Wo = _im2col(xd, 3, 1, pad_lo, pad_hi)
    out = pallas_linear(patches, wmat, b2, act=act, out_dtype=out_dtype)
    return out.reshape(x.shape[0], Ho, Wo, wmat.shape[1])


# ----------------------------------------------------------------------------
# Parameter init (PyTorch layouts) + one-time conversion to kernel-ready layout
# ----------------------------------------------------------------------------
def init_params(key):
    def nrm(key, shape, scale=0.05):
        return scale * jax.random.normal(key, shape, dtype=jnp.float32)

    keys = jax.random.split(key, 32)
    ki = iter(range(32))
    p = {}
    # Encoder convs: Conv2d weight (out,in,kh,kw)
    p["enc_c1_w"] = nrm(keys[next(ki)], (32, 1, 3, 3));  p["enc_c1_b"] = nrm(keys[next(ki)], (32,))
    p["enc_c2_w"] = nrm(keys[next(ki)], (32, 32, 3, 3)); p["enc_c2_b"] = nrm(keys[next(ki)], (32,))
    p["enc_c3_w"] = nrm(keys[next(ki)], (64, 32, 3, 3)); p["enc_c3_b"] = nrm(keys[next(ki)], (64,))
    p["enc_c4_w"] = nrm(keys[next(ki)], (64, 64, 3, 3)); p["enc_c4_b"] = nrm(keys[next(ki)], (64,))
    # Encoder fc: Linear weight (out,in)
    p["fc_mean_w"]   = nrm(keys[next(ki)], (LATENT_DIM, 64 * 7 * 7)); p["fc_mean_b"]   = nrm(keys[next(ki)], (LATENT_DIM,))
    p["fc_logvar_w"] = nrm(keys[next(ki)], (LATENT_DIM, 64 * 7 * 7)); p["fc_logvar_b"] = nrm(keys[next(ki)], (LATENT_DIM,))
    # Decoder
    p["dec_fc_w"] = nrm(keys[next(ki)], (64 * 7 * 7, LATENT_DIM)); p["dec_fc_b"] = nrm(keys[next(ki)], (64 * 7 * 7,))
    # ConvTranspose2d weight (in,out,kh,kw)
    p["dec_ct1_w"] = nrm(keys[next(ki)], (64, 64, 3, 3)); p["dec_ct1_b"] = nrm(keys[next(ki)], (64,))
    p["dec_ct2_w"] = nrm(keys[next(ki)], (64, 32, 3, 3)); p["dec_ct2_b"] = nrm(keys[next(ki)], (32,))
    p["dec_ct3_w"] = nrm(keys[next(ki)], (32, 32, 3, 3)); p["dec_ct3_b"] = nrm(keys[next(ki)], (32,))
    p["dec_ct4_w"] = nrm(keys[next(ki)], (32, 1, 3, 3));  p["dec_ct4_b"] = nrm(keys[next(ki)], (1,))
    # Classifier
    p["cls_l1_w"] = nrm(keys[next(ki)], (INTERMEDIATE_DIM, LATENT_DIM)); p["cls_l1_b"] = nrm(keys[next(ki)], (INTERMEDIATE_DIM,))
    p["cls_l2_w"] = nrm(keys[next(ki)], (NUM_CLASSES, INTERMEDIATE_DIM)); p["cls_l2_b"] = nrm(keys[next(ki)], (NUM_CLASSES,))
    # GaussianLayer has a (num_classes, latent_dim) parameter but forward() ignores it.
    p["gaussian_mean"] = jnp.zeros((NUM_CLASSES, LATENT_DIM), jnp.float32)
    return p


def prepare_params(p):
    """One-time conversion of PyTorch-layout params to kernel-ready (K,N) bf16 matrices."""
    def conv_wmat(w):                       # (Cout,Cin,kh,kw) -> (kh*kw*Cin, Cout)
        Cout, Cin, kh, kw = w.shape
        return jnp.transpose(w, (2, 3, 1, 0)).reshape(kh * kw * Cin, Cout).astype(jnp.bfloat16)

    def convT_wmat(w):                      # (Cin,Cout,kh,kw) -> flipped (kh*kw*Cin, Cout)
        Cin, Cout, kh, kw = w.shape
        wf = jnp.flip(w, axis=(2, 3))
        return jnp.transpose(wf, (2, 3, 0, 1)).reshape(kh * kw * Cin, Cout).astype(jnp.bfloat16)

    def lin_w(w):                           # (out,in) -> (in,out)
        return jnp.transpose(w).astype(jnp.bfloat16)

    def bias(b):
        return b.reshape(1, -1).astype(jnp.float32)

    q = {}
    for name in ["enc_c1", "enc_c2", "enc_c3", "enc_c4"]:
        q[name + "_w"] = conv_wmat(p[name + "_w"]); q[name + "_b"] = bias(p[name + "_b"])
    for name in ["dec_ct1", "dec_ct2", "dec_ct3", "dec_ct4"]:
        q[name + "_w"] = convT_wmat(p[name + "_w"]); q[name + "_b"] = bias(p[name + "_b"])
    for name in ["fc_mean", "fc_logvar", "dec_fc", "cls_l1", "cls_l2"]:
        q[name + "_w"] = lin_w(p[name + "_w"]); q[name + "_b"] = bias(p[name + "_b"])
    q["gaussian_mean"] = p["gaussian_mean"]
    return q


# ----------------------------------------------------------------------------
# ClusterVAE forward
# ----------------------------------------------------------------------------
def cluster_vae_forward(params, x_nchw, eps):
    p = params
    B = x_nchw.shape[0]
    x = jnp.transpose(x_nchw, (0, 2, 3, 1)).astype(jnp.float32)     # NCHW -> NHWC

    # --- Encoder conv stack (bf16 activations; GEMM inputs are bf16 either way) ---
    h = conv2d(x, p["enc_c1_w"], p["enc_c1_b"], stride=2, pad=1, act="leaky_relu")  # (B,14,14,32)
    h = conv2d(h, p["enc_c2_w"], p["enc_c2_b"], stride=1, pad=1, act="leaky_relu")  # (B,14,14,32)
    h = conv2d(h, p["enc_c3_w"], p["enc_c3_b"], stride=2, pad=1, act="leaky_relu")  # (B,7,7,64)
    h = conv2d(h, p["enc_c4_w"], p["enc_c4_b"], stride=1, pad=1, act="leaky_relu")  # (B,7,7,64)
    flat = jnp.transpose(h, (0, 3, 1, 2)).reshape(B, 64 * 7 * 7)    # PyTorch (C,H,W) flatten order

    # --- Fused latent stage: fc_mean + fc_logvar + reparameterize + dec_fc + classifier ---
    z_mean, z_logvar, z, d, y = pallas_latent(
        flat,
        p["fc_mean_w"], p["fc_logvar_w"], p["fc_mean_b"], p["fc_logvar_b"], eps,
        p["dec_fc_w"], p["dec_fc_b"],
        p["cls_l1_w"], p["cls_l1_b"], p["cls_l2_w"], p["cls_l2_b"])

    # --- Decoder conv-transpose stack ---
    d = jnp.transpose(d.reshape(B, 64, 7, 7), (0, 2, 3, 1))          # view(-1,64,7,7) -> NHWC
    d = conv_transpose2d(d, p["dec_ct1_w"], p["dec_ct1_b"], stride=1, pad=1, out_pad=0, act="leaky_relu")  # (B,7,7,64)
    d = conv_transpose2d(d, p["dec_ct2_w"], p["dec_ct2_b"], stride=2, pad=1, out_pad=1, act="leaky_relu")  # (B,14,14,32)
    d = conv_transpose2d(d, p["dec_ct3_w"], p["dec_ct3_b"], stride=1, pad=1, out_pad=0, act="leaky_relu")  # (B,14,14,32)
    d = conv_transpose2d(d, p["dec_ct4_w"], p["dec_ct4_b"], stride=2, pad=1, out_pad=1,
                         act="sigmoid", out_dtype=jnp.float32)                                             # (B,28,28,1)
    recon = jnp.transpose(d, (0, 3, 1, 2))                           # NHWC -> NCHW (B,1,28,28)

    # --- GaussianLayer: z.unsqueeze(1) ---
    z_prior = z[:, None, :]

    return {"recon": recon, "z_prior": z_prior, "y": y,
            "z_mean": z_mean, "z_logvar": z_logvar}


if __name__ == "__main__":
    key = jax.random.PRNGKey(0)
    k_param, k_x, k_eps = jax.random.split(key, 3)

    batch = 2
    # Image dim must be 28 (the conv stack 28->14->7 / 7->14->28 is hard-wired).
    x = jax.random.uniform(k_x, (batch, 1, IMG_DIM, IMG_DIM), dtype=jnp.float32)
    eps = jax.random.normal(k_eps, (batch, LATENT_DIM), dtype=jnp.float32)

    params = prepare_params(init_params(k_param))

    forward = jax.jit(cluster_vae_forward)
    out = forward(params, x, eps)
    out = jax.tree_util.tree_map(jax.block_until_ready, out)

    assert out["recon"].shape == (batch, 1, IMG_DIM, IMG_DIM)
    assert out["z_prior"].shape == (batch, 1, LATENT_DIM)
    assert out["y"].shape == (batch, NUM_CLASSES)
    assert out["z_mean"].shape == (batch, LATENT_DIM)
    assert out["z_logvar"].shape == (batch, LATENT_DIM)
    assert bool(jnp.all(jnp.isfinite(out["recon"])))
    assert bool(jnp.all(jnp.isfinite(out["y"])))

    print("KERNEL_OK")
</pallas_src>

<mosaic_0001>
module attributes {stable_mosaic.version = 11 : i64} {
  func.func @_linear_kernel(%arg0: i32, %arg1: memref<400x9xbf16, #tpu.memory_space<vmem>>, %arg2: memref<9x32xbf16, #tpu.memory_space<vmem>>, %arg3: memref<1x32xf32, #tpu.memory_space<vmem>>, %arg4: memref<400x32xbf16, #tpu.memory_space<vmem>>) attributes {dimension_semantics = [#tpu.dimension_semantics<parallel>], iteration_bounds = array<i64: 1>, scalar_prefetch = 0 : i64, scratch_operands = 0 : i64, tpu.core_type = #tpu.core_type<tc>, window_params = [{transform_indices = @transform_0, window_bounds = array<i64: 400, 9>}, {pipeline_mode = #tpu.pipeline_mode<synchronous>, transform_indices = @transform_1, window_bounds = array<i64: 9, 32>}, {pipeline_mode = #tpu.pipeline_mode<synchronous>, transform_indices = @transform_2, window_bounds = array<i64: 1, 32>}, {transform_indices = @transform_3, window_bounds = array<i64: 400, 32>}]} {
    %c0 = arith.constant 0 : index
    %c0_0 = arith.constant 0 : index
    %0 = vector.load %arg1[%c0, %c0_0] : memref<400x9xbf16, #tpu.memory_space<vmem>>, vector<400x9xbf16>
    %c0_1 = arith.constant 0 : index
    %c0_2 = arith.constant 0 : index
    %1 = vector.load %arg2[%c0_1, %c0_2] : memref<9x32xbf16, #tpu.memory_space<vmem>>, vector<9x32xbf16>
    %cst = arith.constant dense<0.000000e+00> : vector<400x32xf32>
    %2 = tpu.matmul %0, %1, %cst {dimension_numbers = #tpu.dot_dimension_numbers<[1], [0], [0], [1], [0, 0, 1, 1], [], []>} : vector<400x9xbf16>, vector<9x32xbf16>, vector<400x32xf32> -> vector<400x32xf32>
    %c0_3 = arith.constant 0 : index
    %c0_4 = arith.constant 0 : index
    %3 = vector.load %arg3[%c0_3, %c0_4] : memref<1x32xf32, #tpu.memory_space<vmem>>, vector<1x32xf32>
    %4 = vector.broadcast %3 : vector<1x32xf32> to vector<400x32xf32>
    %5 = arith.addf %2, %4 : vector<400x32xf32>
    %cst_5 = arith.constant 0.000000e+00 : f32
    %6 = vector.broadcast %cst_5 : f32 to vector<400x32xf32>
    %7 = arith.cmpf ogt, %5, %6 : vector<400x32xf32>
    %cst_6 = arith.constant 2.000000e-01 : f32
    %8 = vector.broadcast %cst_6 : f32 to vector<400x32xf32>
    %9 = arith.mulf %8, %5 : vector<400x32xf32>
    %10 = arith.select %7, %5, %9 : vector<400x32xi1>, vector<400x32xf32>
    %11 = arith.truncf %10 : vector<400x32xf32> to vector<400x32xbf16>
    %c0_7 = arith.constant 0 : index
    %c0_8 = arith.constant 0 : index
    %12 = vector.load %arg4[%c0_7, %c0_8] : memref<400x32xbf16, #tpu.memory_space<vmem>>, vector<400x32xbf16>
    tpu.vector_store %arg4[%c0_7, %c0_8], %11 {strides = array<i32>} : memref<400x32xbf16, #tpu.memory_space<vmem>>, vector<400x32xbf16>,
    return
  }
  func.func @transform_0(%arg0: i32) -> (i32, i32) {
    %c0_i32 = arith.constant 0 : i32
    %c0_i32_0 = arith.constant 0 : i32
    return %arg0, %c0_i32 : i32, i32
  }
  func.func @transform_1(%arg0: i32) -> (i32, i32) {
    %c0_i32 = arith.constant 0 : i32
    %c0_i32_0 = arith.constant 0 : i32
    %c0_i32_1 = arith.constant 0 : i32
    return %c0_i32, %c0_i32_0 : i32, i32
  }
  func.func @transform_2(%arg0: i32) -> (i32, i32) {
    %c0_i32 = arith.constant 0 : i32
    %c0_i32_0 = arith.constant 0 : i32
    %c0_i32_1 = arith.constant 0 : i32
    return %c0_i32, %c0_i32_0 : i32, i32
  }
  func.func @transform_3(%arg0: i32) -> (i32, i32) {
    %c0_i32 = arith.constant 0 : i32
    %c0_i32_0 = arith.constant 0 : i32
    return %arg0, %c0_i32 : i32, i32
  }
}

module attributes {stable_mosaic.version = 11 : i64} {
  func.func @_linear_kernel(%arg0: i32, %arg1: memref<400x288xbf16, #tpu.memory_space<vmem>>, %arg2: memref<288x32xbf16, #tpu.memory_space<vmem>>, %arg3: memref<1x32xf32, #tpu.memory_space<vmem>>, %arg4: memref<400x32xbf16, #tpu.memory_space<vmem>>) attributes {dimension_semantics = [#tpu.dimension_semantics<parallel>], iteration_bounds = array<i64: 1>, scalar_prefetch = 0 : i64, scratch_operands = 0 : i64, tpu.core_type = #tpu.core_type<tc>, window_params = [{transform_indices = @transform_0, window_bounds = array<i64: 400, 288>}, {pipeline_mode = #tpu.pipeline_mode<synchronous>, transform_indices = @transform_1, window_bounds = array<i64: 288, 32>}, {pipeline_mode = #tpu.pipeline_mode<synchronous>, transform_indices = @transform_2, window_bounds = array<i64: 1, 32>}, {transform_indices = @transform_3, window_bounds = array<i64: 400, 32>}]} {
    %c0 = arith.constant 0 : index
    %c0_0 = arith.constant 0 : index
    %0 = vector.load %arg1[%c0, %c0_0] : memref<400x288xbf16, #tpu.memory_space<vmem>>, vector<400x288xbf16>
    %c0_1 = arith.constant 0 : index
    %c0_2 = arith.constant 0 : index
    %1 = vector.load %arg2[%c0_1, %c0_2] : memref<288x32xbf16, #tpu.memory_space<vmem>>, vector<288x32xbf16>
    %cst = arith.constant dense<0.000000e+00> : vector<400x32xf32>
    %2 = tpu.matmul %0, %1, %cst {dimension_numbers = #tpu.dot_dimension_numbers<[1], [0], [0], [1], [0, 0, 1, 1], [], []>} : vector<400x288xbf16>, vector<288x32xbf16>, vector<400x32xf32> -> vector<400x32xf32>
    %c0_3 = arith.constant 0 : index
    %c0_4 = arith.constant 0 : index
    %3 = vector.load %arg3[%c0_3, %c0_4] : memref<1x32xf32, #tpu.memory_space<vmem>>, vector<1x32xf32>
    %4 = vector.broadcast %3 : vector<1x32xf32> to vector<400x32xf32>
    %5 = arith.addf %2, %4 : vector<400x32xf32>
    %cst_5 = arith.constant 0.000000e+00 : f32
    %6 = vector.broadcast %cst_5 : f32 to vector<400x32xf32>
    %7 = arith.cmpf ogt, %5, %6 : vector<400x32xf32>
    %cst_6 = arith.constant 2.000000e-01 : f32
    %8 = vector.broadcast %cst_6 : f32 to vector<400x32xf32>
    %9 = arith.mulf %8, %5 : vector<400x32xf32>
    %10 = arith.select %7, %5, %9 : vector<400x32xi1>, vector<400x32xf32>
    %11 = arith.truncf %10 : vector<400x32xf32> to vector<400x32xbf16>
    %c0_7 = arith.constant 0 : index
    %c0_8 = arith.constant 0 : index
    %12 = vector.load %arg4[%c0_7, %c0_8] : memref<400x32xbf16, #tpu.memory_space<vmem>>, vector<400x32xbf16>
    tpu.vector_store %arg4[%c0_7, %c0_8], %11 {strides = array<i32>} : memref<400x32xbf16, #tpu.memory_space<vmem>>, vector<400x32xbf16>,
    return
  }
  func.func @transform_0(%arg0: i32) -> (i32, i32) {
    %c0_i32 = arith.constant 0 : i32
    %c0_i32_0 = arith.constant 0 : i32
    return %arg0, %c0_i32 : i32, i32
  }
  func.func @transform_1(%arg0: i32) -> (i32, i32) {
    %c0_i32 = arith.constant 0 : i32
    %c0_i32_0 = arith.constant 0 : i32
    %c0_i32_1 = arith.constant 0 : i32
    return %c0_i32, %c0_i32_0 : i32, i32
  }
  func.func @transform_2(%arg0: i32) -> (i32, i32) {
    %c0_i32 = arith.constant 0 : i32
    %c0_i32_0 = arith.constant 0 : i32
    %c0_i32_1 = arith.constant 0 : i32
    return %c0_i32, %c0_i32_0 : i32, i32
  }
  func.func @transform_3(%arg0: i32) -> (i32, i32) {
    %c0_i32 = arith.constant 0 : i32
    %c0_i32_0 = arith.constant 0 : i32
    return %arg0, %c0_i32 : i32, i32
  }
}

module attributes {stable_mosaic.version = 11 : i64} {
  func.func @_linear_kernel(%arg0: i32, %arg1: memref<112x288xbf16, #tpu.memory_space<vmem>>, %arg2: memref<288x64xbf16, #tpu.memory_space<vmem>>, %arg3: memref<1x64xf32, #tpu.memory_space<vmem>>, %arg4: memref<112x64xbf16, #tpu.memory_space<vmem>>) attributes {dimension_semantics = [#tpu.dimension_semantics<parallel>], iteration_bounds = array<i64: 1>, scalar_prefetch = 0 : i64, scratch_operands = 0 : i64, tpu.core_type = #tpu.core_type<tc>, window_params = [{transform_indices = @transform_0, window_bounds = array<i64: 112, 288>}, {pipeline_mode = #tpu.pipeline_mode<synchronous>, transform_indices = @transform_1, window_bounds = array<i64: 288, 64>}, {pipeline_mode = #tpu.pipeline_mode<synchronous>, transform_indices = @transform_2, window_bounds = array<i64: 1, 64>}, {transform_indices = @transform_3, window_bounds = array<i64: 112, 64>}]} {
    %c0 = arith.constant 0 : index
    %c0_0 = arith.constant 0 : index
    %0 = vector.load %arg1[%c0, %c0_0] : memref<112x288xbf16, #tpu.memory_space<vmem>>, vector<112x288xbf16>
    %c0_1 = arith.constant 0 : index
    %c0_2 = arith.constant 0 : index
    %1 = vector.load %arg2[%c0_1, %c0_2] : memref<288x64xbf16, #tpu.memory_space<vmem>>, vector<288x64xbf16>
    %cst = arith.constant dense<0.000000e+00> : vector<112x64xf32>
    %2 = tpu.matmul %0, %1, %cst {dimension_numbers = #tpu.dot_dimension_numbers<[1], [0], [0], [1], [0, 0, 1, 1], [], []>} : vector<112x288xbf16>, vector<288x64xbf16>, vector<112x64xf32> -> vector<112x64xf32>
    %c0_3 = arith.constant 0 : index
    %c0_4 = arith.constant 0 : index
    %3 = vector.load %arg3[%c0_3, %c0_4] : memref<1x64xf32, #tpu.memory_space<vmem>>, vector<1x64xf32>
    %4 = vector.broadcast %3 : vector<1x64xf32> to vector<112x64xf32>
    %5 = arith.addf %2, %4 : vector<112x64xf32>
    %cst_5 = arith.constant 0.000000e+00 : f32
    %6 = vector.broadcast %cst_5 : f32 to vector<112x64xf32>
    %7 = arith.cmpf ogt, %5, %6 : vector<112x64xf32>
    %cst_6 = arith.constant 2.000000e-01 : f32
    %8 = vector.broadcast %cst_6 : f32 to vector<112x64xf32>
    %9 = arith.mulf %8, %5 : vector<112x64xf32>
    %10 = arith.select %7, %5, %9 : vector<112x64xi1>, vector<112x64xf32>
    %11 = arith.truncf %10 : vector<112x64xf32> to vector<112x64xbf16>
    %c0_7 = arith.constant 0 : index
    %c0_8 = arith.constant 0 : index
    %12 = vector.load %arg4[%c0_7, %c0_8] : memref<112x64xbf16, #tpu.memory_space<vmem>>, vector<112x64xbf16>
    tpu.vector_store %arg4[%c0_7, %c0_8], %11 {strides = array<i32>} : memref<112x64xbf16, #tpu.memory_space<vmem>>, vector<112x64xbf16>,
    return
  }
  func.func @transform_0(%arg0: i32) -> (i32, i32) {
    %c0_i32 = arith.constant 0 : i32
    %c0_i32_0 = arith.constant 0 : i32
    return %arg0, %c0_i32 : i32, i32
  }
  func.func @transform_1(%arg0: i32) -> (i32, i32) {
    %c0_i32 = arith.constant 0 : i32
    %c0_i32_0 = arith.constant 0 : i32
    %c0_i32_1 = arith.constant 0 : i32
    return %c0_i32, %c0_i32_0 : i32, i32
  }
  func.func @transform_2(%arg0: i32) -> (i32, i32) {
    %c0_i32 = arith.constant 0 : i32
    %c0_i32_0 = arith.constant 0 : i32
    %c0_i32_1 = arith.constant 0 : i32
    return %c0_i32, %c0_i32_0 : i32, i32
  }
  func.func @transform_3(%arg0: i32) -> (i32, i32) {
    %c0_i32 = arith.constant 0 : i32
    %c0_i32_0 = arith.constant 0 : i32
    return %arg0, %c0_i32 : i32, i32
  }
}

module attributes {stable_mosaic.version = 11 : i64} {
  func.func @_linear_kernel(%arg0: i32, %arg1: memref<112x576xbf16, #tpu.memory_space<vmem>>, %arg2: memref<576x64xbf16, #tpu.memory_space<vmem>>, %arg3: memref<1x64xf32, #tpu.memory_space<vmem>>, %arg4: memref<112x64xbf16, #tpu.memory_space<vmem>>) attributes {dimension_semantics = [#tpu.dimension_semantics<parallel>], iteration_bounds = array<i64: 1>, scalar_prefetch = 0 : i64, scratch_operands = 0 : i64, tpu.core_type = #tpu.core_type<tc>, window_params = [{transform_indices = @transform_0, window_bounds = array<i64: 112, 576>}, {pipeline_mode = #tpu.pipeline_mode<synchronous>, transform_indices = @transform_1, window_bounds = array<i64: 576, 64>}, {pipeline_mode = #tpu.pipeline_mode<synchronous>, transform_indices = @transform_2, window_bounds = array<i64: 1, 64>}, {transform_indices = @transform_3, window_bounds = array<i64: 112, 64>}]} {
    %c0 = arith.constant 0 : index
    %c0_0 = arith.constant 0 : index
    %0 = vector.load %arg1[%c0, %c0_0] : memref<112x576xbf16, #tpu.memory_space<vmem>>, vector<112x576xbf16>
    %c0_1 = arith.constant 0 : index
    %c0_2 = arith.constant 0 : index
    %1 = vector.load %arg2[%c0_1, %c0_2] : memref<576x64xbf16, #tpu.memory_space<vmem>>, vector<576x64xbf16>
    %cst = arith.constant dense<0.000000e+00> : vector<112x64xf32>
    %2 = tpu.matmul %0, %1, %cst {dimension_numbers = #tpu.dot_dimension_numbers<[1], [0], [0], [1], [0, 0, 1, 1], [], []>} : vector<112x576xbf16>, vector<576x64xbf16>, vector<112x64xf32> -> vector<112x64xf32>
    %c0_3 = arith.constant 0 : index
    %c0_4 = arith.constant 0 : index
    %3 = vector.load %arg3[%c0_3, %c0_4] : memref<1x64xf32, #tpu.memory_space<vmem>>, vector<1x64xf32>
    %4 = vector.broadcast %3 : vector<1x64xf32> to vector<112x64xf32>
    %5 = arith.addf %2, %4 : vector<112x64xf32>
    %cst_5 = arith.constant 0.000000e+00 : f32
    %6 = vector.broadcast %cst_5 : f32 to vector<112x64xf32>
    %7 = arith.cmpf ogt, %5, %6 : vector<112x64xf32>
    %cst_6 = arith.constant 2.000000e-01 : f32
    %8 = vector.broadcast %cst_6 : f32 to vector<112x64xf32>
    %9 = arith.mulf %8, %5 : vector<112x64xf32>
    %10 = arith.select %7, %5, %9 : vector<112x64xi1>, vector<112x64xf32>
    %11 = arith.truncf %10 : vector<112x64xf32> to vector<112x64xbf16>
    %c0_7 = arith.constant 0 : index
    %c0_8 = arith.constant 0 : index
    %12 = vector.load %arg4[%c0_7, %c0_8] : memref<112x64xbf16, #tpu.memory_space<vmem>>, vector<112x64xbf16>
    tpu.vector_store %arg4[%c0_7, %c0_8], %11 {strides = array<i32>} : memref<112x64xbf16, #tpu.memory_space<vmem>>, vector<112x64xbf16>,
    return
  }
  func.func @transform_0(%arg0: i32) -> (i32, i32) {
    %c0_i32 = arith.constant 0 : i32
    %c0_i32_0 = arith.constant 0 : i32
    return %arg0, %c0_i32 : i32, i32
  }
  func.func @transform_1(%arg0: i32) -> (i32, i32) {
    %c0_i32 = arith.constant 0 : i32
    %c0_i32_0 = arith.constant 0 : i32
    %c0_i32_1 = arith.constant 0 : i32
    return %c0_i32, %c0_i32_0 : i32, i32
  }
  func.func @transform_2(%arg0: i32) -> (i32, i32) {
    %c0_i32 = arith.constant 0 : i32
    %c0_i32_0 = arith.constant 0 : i32
    %c0_i32_1 = arith.constant 0 : i32
    return %c0_i32, %c0_i32_0 : i32, i32
  }
  func.func @transform_3(%arg0: i32) -> (i32, i32) {
    %c0_i32 = arith.constant 0 : i32
    %c0_i32_0 = arith.constant 0 : i32
    return %arg0, %c0_i32 : i32, i32
  }
}

module attributes {stable_mosaic.version = 11 : i64} {
  func.func @_latent_kernel(%arg0: i32, %arg1: memref<8x3136xbf16, #tpu.memory_space<vmem>>, %arg2: memref<3136x20xbf16, #tpu.memory_space<vmem>>, %arg3: memref<3136x20xbf16, #tpu.memory_space<vmem>>, %arg4: memref<1x20xf32, #tpu.memory_space<vmem>>, %arg5: memref<1x20xf32, #tpu.memory_space<vmem>>, %arg6: memref<8x20xf32, #tpu.memory_space<vmem>>, %arg7: memref<20x3136xbf16, #tpu.memory_space<vmem>>, %arg8: memref<1x3136xf32, #tpu.memory_space<vmem>>, %arg9: memref<20x256xbf16, #tpu.memory_space<vmem>>, %arg10: memref<1x256xf32, #tpu.memory_space<vmem>>, %arg11: memref<256x10xbf16, #tpu.memory_space<vmem>>, %arg12: memref<1x10xf32, #tpu.memory_space<vmem>>, %arg13: memref<8x20xf32, #tpu.memory_space<vmem>>, %arg14: memref<8x20xf32, #tpu.memory_space<vmem>>, %arg15: memref<8x20xf32, #tpu.memory_space<vmem>>, %arg16: memref<8x3136xbf16, #tpu.memory_space<vmem>>, %arg17: memref<8x10xf32, #tpu.memory_space<vmem>>) attributes {dimension_semantics = [#tpu.dimension_semantics<arbitrary>], iteration_bounds = array<i64: 1>, scalar_prefetch = 0 : i64, scratch_operands = 0 : i64, tpu.core_type = #tpu.core_type<tc>, window_params = [{pipeline_mode = #tpu.pipeline_mode<synchronous>, transform_indices = @transform_0, window_bounds = array<i64: 8, 3136>}, {pipeline_mode = #tpu.pipeline_mode<synchronous>, transform_indices = @transform_1, window_bounds = array<i64: 3136, 20>}, {pipeline_mode = #tpu.pipeline_mode<synchronous>, transform_indices = @transform_2, window_bounds = array<i64: 3136, 20>}, {pipeline_mode = #tpu.pipeline_mode<synchronous>, transform_indices = @transform_3, window_bounds = array<i64: 1, 20>}, {pipeline_mode = #tpu.pipeline_mode<synchronous>, transform_indices = @transform_4, window_bounds = array<i64: 1, 20>}, {pipeline_mode = #tpu.pipeline_mode<synchronous>, transform_indices = @transform_5, window_bounds = array<i64: 8, 20>}, {pipeline_mode = #tpu.pipeline_mode<synchronous>, transform_indices = @transform_6, window_bounds = array<i64: 20, 3136>}, {pipeline_mode = #tpu.pipeline_mode<synchronous>, transform_indices = @transform_7, window_bounds = array<i64: 1, 3136>}, {pipeline_mode = #tpu.pipeline_mode<synchronous>, transform_indices = @transform_8, window_bounds = array<i64: 20, 256>}, {pipeline_mode = #tpu.pipeline_mode<synchronous>, transform_indices = @transform_9, window_bounds = array<i64: 1, 256>}, {pipeline_mode = #tpu.pipeline_mode<synchronous>, transform_indices = @transform_10, window_bounds = array<i64: 256, 10>}, {pipeline_mode = #tpu.pipeline_mode<synchronous>, transform_indices = @transform_11, window_bounds = array<i64: 1, 10>}, {pipeline_mode = #tpu.pipeline_mode<synchronous>, transform_indices = @transform_12, window_bounds = array<i64: 8, 20>}, {pipeline_mode = #tpu.pipeline_mode<synchronous>, transform_indices = @transform_13, window_bounds = array<i64: 8, 20>}, {pipeline_mode = #tpu.pipeline_mode<synchronous>, transform_indices = @transform_14, window_bounds = array<i64: 8, 20>}, {pipeline_mode = #tpu.pipeline_mode<synchronous>, transform_indices = @transform_15, window_bounds = array<i64: 8, 3136>}, {pipeline_mode = #tpu.pipeline_mode<synchronous>, transform_indices = @transform_16, window_bounds = array<i64: 8, 10>}]} {
    %c0 = arith.constant 0 : index
    %c0_0 = arith.constant 0 : index
    %0 = vector.load %arg1[%c0, %c0_0] : memref<8x3136xbf16, #tpu.memory_space<vmem>>, vector<8x3136xbf16>
    %c0_1 = arith.constant 0 : index
    %c0_2 = arith.constant 0 : index
    %1 = vector.load %arg2[%c0_1, %c0_2] : memref<3136x20xbf16, #tpu.memory_space<vmem>>, vector<3136x20xbf16>
    %cst = arith.constant dense<0.000000e+00> : vector<8x20xf32>
    %2 = tpu.matmul %0, %1, %cst {dimension_numbers = #tpu.dot_dimension_numbers<[1], [0], [0], [1], [0, 0, 1, 1], [], []>} : vector<8x3136xbf16>, vector<3136x20xbf16>, vector<8x20xf32> -> vector<8x20xf32>
    %c0_3 = arith.constant 0 : index
    %c0_4 = arith.constant 0 : index
    %3 = vector.load %arg4[%c0_3, %c0_4] : memref<1x20xf32, #tpu.memory_space<vmem>>, vector<1x20xf32>
    %4 = vector.broadcast %3 : vector<1x20xf32> to vector<8x20xf32>
    %5 = arith.addf %2, %4 : vector<8x20xf32>
    %c0_5 = arith.constant 0 : index
    %c0_6 = arith.constant 0 : index
    %6 = vector.load %arg3[%c0_5, %c0_6] : memref<3136x20xbf16, #tpu.memory_space<vmem>>, vector<3136x20xbf16>
    %cst_7 = arith.constant dense<0.000000e+00> : vector<8x20xf32>
    %7 = tpu.matmul %0, %6, %cst_7 {dimension_numbers = #tpu.dot_dimension_numbers<[1], [0], [0], [1], [0, 0, 1, 1], [], []>} : vector<8x3136xbf16>, vector<3136x20xbf16>, vector<8x20xf32> -> vector<8x20xf32>
    %c0_8 = arith.constant 0 : index
    %c0_9 = arith.constant 0 : index
    %8 = vector.load %arg5[%c0_8, %c0_9] : memref<1x20xf32, #tpu.memory_space<vmem>>, vector<1x20xf32>
    %9 = vector.broadcast %8 : vector<1x20xf32> to vector<8x20xf32>
    %10 = arith.addf %7, %9 : vector<8x20xf32>
    %c0_10 = arith.constant 0 : index
    %c0_11 = arith.constant 0 : index
    %11 = vector.load %arg6[%c0_10, %c0_11] : memref<8x20xf32, #tpu.memory_space<vmem>>, vector<8x20xf32>
    %cst_12 = arith.constant 5.000000e-01 : f32
    %12 = vector.broadcast %cst_12 : f32 to vector<8x20xf32>
    %13 = arith.mulf %12, %10 : vector<8x20xf32>
    %14 = math.exp %13 : vector<8x20xf32>
    %15 = arith.mulf %11, %14 : vector<8x20xf32>
    %16 = arith.addf %5, %15 : vector<8x20xf32>
    %c0_13 = arith.constant 0 : index
    %c0_14 = arith.constant 0 : index
    %17 = vector.load %arg13[%c0_13, %c0_14] : memref<8x20xf32, #tpu.memory_space<vmem>>, vector<8x20xf32>
    tpu.vector_store %arg13[%c0_13, %c0_14], %5 {strides = array<i32>} : memref<8x20xf32, #tpu.memory_space<vmem>>, vector<8x20xf32>,
    %c0_15 = arith.constant 0 : index
    %c0_16 = arith.constant 0 : index
    %18 = vector.load %arg14[%c0_15, %c0_16] : memref<8x20xf32, #tpu.memory_space<vmem>>, vector<8x20xf32>
    tpu.vector_store %arg14[%c0_15, %c0_16], %10 {strides = array<i32>} : memref<8x20xf32, #tpu.memory_space<vmem>>, vector<8x20xf32>,
    %c0_17 = arith.constant 0 : index
    %c0_18 = arith.constant 0 : index
    %19 = vector.load %arg15[%c0_17, %c0_18] : memref<8x20xf32, #tpu.memory_space<vmem>>, vector<8x20xf32>
    tpu.vector_store %arg15[%c0_17, %c0_18], %16 {strides = array<i32>} : memref<8x20xf32, #tpu.memory_space<vmem>>, vector<8x20xf32>,
    %20 = arith.truncf %16 : vector<8x20xf32> to vector<8x20xbf16>
    %c0_19 = arith.constant 0 : index
    %c0_20 = arith.constant 0 : index
    %21 = vector.load %arg7[%c0_19, %c0_20] : memref<20x3136xbf16, #tpu.memory_space<vmem>>, vector<20x3136xbf16>
    %cst_21 = arith.constant dense<0.000000e+00> : vector<8x3136xf32>
    %22 = tpu.matmul %20, %21, %cst_21 {dimension_numbers = #tpu.dot_dimension_numbers<[1], [0], [0], [1], [0, 0, 1, 1], [], []>} : vector<8x20xbf16>, vector<20x3136xbf16>, vector<8x3136xf32> -> vector<8x3136xf32>
    %c0_22 = arith.constant 0 : index
    %c0_23 = arith.constant 0 : index
    %23 = vector.load %arg8[%c0_22, %c0_23] : memref<1x3136xf32, #tpu.memory_space<vmem>>, vector<1x3136xf32>
    %24 = vector.broadcast %23 : vector<1x3136xf32> to vector<8x3136xf32>
    %25 = arith.addf %22, %24 : vector<8x3136xf32>
    %26 = arith.truncf %25 : vector<8x3136xf32> to vector<8x3136xbf16>
    %c0_24 = arith.constant 0 : index
    %c0_25 = arith.constant 0 : index
    %27 = vector.load %arg16[%c0_24, %c0_25] : memref<8x3136xbf16, #tpu.memory_space<vmem>>, vector<8x3136xbf16>
    tpu.vector_store %arg16[%c0_24, %c0_25], %26 {strides = array<i32>} : memref<8x3136xbf16, #tpu.memory_space<vmem>>, vector<8x3136xbf16>,
    %c0_26 = arith.constant 0 : index
    %c0_27 = arith.constant 0 : index
    %28 = vector.load %arg9[%c0_26, %c0_27] : memref<20x256xbf16, #tpu.memory_space<vmem>>, vector<20x256xbf16>
    %cst_28 = arith.constant dense<0.000000e+00> : vector<8x256xf32>
    %29 = tpu.matmul %20, %28, %cst_28 {dimension_numbers = #tpu.dot_dimension_numbers<[1], [0], [0], [1], [0, 0, 1, 1], [], []>} : vector<8x20xbf16>, vector<20x256xbf16>, vector<8x256xf32> -> vector<8x256xf32>
    %c0_29 = arith.constant 0 : index
    %c0_30 = arith.constant 0 : index
    %30 = vector.load %arg10[%c0_29, %c0_30] : memref<1x256xf32, #tpu.memory_space<vmem>>, vector<1x256xf32>
    %31 = vector.broadcast %30 : vector<1x256xf32> to vector<8x256xf32>
    %32 = arith.addf %29, %31 : vector<8x256xf32>
    %cst_31 = arith.constant 0.000000e+00 : f32
    %33 = vector.broadcast %cst_31 : f32 to vector<8x256xf32>
    %34 = arith.maximumf %32, %33 : vector<8x256xf32>
    %35 = arith.truncf %34 : vector<8x256xf32> to vector<8x256xbf16>
    %c0_32 = arith.constant 0 : index
    %c0_33 = arith.constant 0 : index
    %36 = vector.load %arg11[%c0_32, %c0_33] : memref<256x10xbf16, #tpu.memory_space<vmem>>, vector<256x10xbf16>
    %cst_34 = arith.constant dense<0.000000e+00> : vector<8x10xf32>
    %37 = tpu.matmul %35, %36, %cst_34 {dimension_numbers = #tpu.dot_dimension_numbers<[1], [0], [0], [1], [0, 0, 1, 1], [], []>} : vector<8x256xbf16>, vector<256x10xbf16>, vector<8x10xf32> -> vector<8x10xf32>
    %c0_35 = arith.constant 0 : index
    %c0_36 = arith.constant 0 : index
    %38 = vector.load %arg12[%c0_35, %c0_36] : memref<1x10xf32, #tpu.memory_space<vmem>>, vector<1x10xf32>
    %39 = vector.broadcast %38 : vector<1x10xf32> to vector<8x10xf32>
    %40 = arith.addf %37, %39 : vector<8x10xf32>
    %cst_37 = arith.constant dense<0xFF800000> : vector<8xf32>
    %41 = vector.multi_reduction <maximumf>, %40, %cst_37 [1] : vector<8x10xf32> to vector<8xf32>
    %42 = vector.shape_cast %41 : vector<8xf32> to vector<8x1xf32>
    %43 = vector.broadcast %42 : vector<8x1xf32> to vector<8x10xf32>
    %44 = arith.subf %40, %43 : vector<8x10xf32>
    %45 = math.exp %44 : vector<8x10xf32>
    %cst_38 = arith.constant dense<0.000000e+00> : vector<8xf32>
    %46 = vector.multi_reduction <add>, %45, %cst_38 [1] : vector<8x10xf32> to vector<8xf32>
    %47 = vector.shape_cast %46 : vector<8xf32> to vector<8x1xf32>
    %48 = tpu.reciprocal %47 {approx = true} : vector<8x1xf32> -> vector<8x1xf32>
    %49 = vector.broadcast %48 : vector<8x1xf32> to vector<8x10xf32>
    %50 = arith.mulf %45, %49 : vector<8x10xf32>
    %c0_39 = arith.constant 0 : index
    %c0_40 = arith.constant 0 : index
    %51 = vector.load %arg17[%c0_39, %c0_40] : memref<8x10xf32, #tpu.memory_space<vmem>>, vector<8x10xf32>
    tpu.vector_store %arg17[%c0_39, %c0_40], %50 {strides = array<i32>} : memref<8x10xf32, #tpu.memory_space<vmem>>, vector<8x10xf32>,
    return
  }
  func.func @transform_0(%arg0: i32) -> (i32, i32) {
    %c0_i32 = arith.constant 0 : i32
    %c0_i32_0 = arith.constant 0 : i32
    %c0_i32_1 = arith.constant 0 : i32
    return %c0_i32, %c0_i32_0 : i32, i32
  }
  func.func @transform_1(%arg0: i32) -> (i32, i32) {
    %c0_i32 = arith.constant 0 : i32
    %c0_i32_0 = arith.constant 0 : i32
    %c0_i32_1 = arith.constant 0 : i32
    return %c0_i32, %c0_i32_0 : i32, i32
  }
  func.func @transform_2(%arg0: i32) -> (i32, i32) {
    %c0_i32 = arith.constant 0 : i32
    %c0_i32_0 = arith.constant 0 : i32
    %c0_i32_1 = arith.constant 0 : i32
    return %c0_i32, %c0_i32_0 : i32, i32
  }
  func.func @transform_3(%arg0: i32) -> (i32, i32) {
    %c0_i32 = arith.constant 0 : i32
    %c0_i32_0 = arith.constant 0 : i32
    %c0_i32_1 = arith.constant 0 : i32
    return %c0_i32, %c0_i32_0 : i32, i32
  }
  func.func @transform_4(%arg0: i32) -> (i32, i32) {
    %c0_i32 = arith.constant 0 : i32
    %c0_i32_0 = arith.constant 0 : i32
    %c0_i32_1 = arith.constant 0 : i32
    return %c0_i32, %c0_i32_0 : i32, i32
  }
  func.func @transform_5(%arg0: i32) -> (i32, i32) {
    %c0_i32 = arith.constant 0 : i32
    %c0_i32_0 = arith.constant 0 : i32
    %c0_i32_1 = arith.constant 0 : i32
    return %c0_i32, %c0_i32_0 : i32, i32
  }
  func.func @transform_6(%arg0: i32) -> (i32, i32) {
    %c0_i32 = arith.constant 0 : i32
    %c0_i32_0 = arith.constant 0 : i32
    %c0_i32_1 = arith.constant 0 : i32
    return %c0_i32, %c0_i32_0 : i32, i32
  }
  func.func @transform_7(%arg0: i32) -> (i32, i32) {
    %c0_i32 = arith.constant 0 : i32
    %c0_i32_0 = arith.constant 0 : i32
    %c0_i32_1 = arith.constant 0 : i32
    return %c0_i32, %c0_i32_0 : i32, i32
  }
  func.func @transform_8(%arg0: i32) -> (i32, i32) {
    %c0_i32 = arith.constant 0 : i32
    %c0_i32_0 = arith.constant 0 : i32
    %c0_i32_1 = arith.constant 0 : i32
    return %c0_i32, %c0_i32_0 : i32, i32
  }
  func.func @transform_9(%arg0: i32) -> (i32, i32) {
    %c0_i32 = arith.constant 0 : i32
    %c0_i32_0 = arith.constant 0 : i32
    %c0_i32_1 = arith.constant 0 : i32
    return %c0_i32, %c0_i32_0 : i32, i32
  }
  func.func @transform_10(%arg0: i32) -> (i32, i32) {
    %c0_i32 = arith.constant 0 : i32
    %c0_i32_0 = arith.constant 0 : i32
    %c0_i32_1 = arith.constant 0 : i32
    return %c0_i32, %c0_i32_0 : i32, i32
  }
  func.func @transform_11(%arg0: i32) -> (i32, i32) {
    %c0_i32 = arith.constant 0 : i32
    %c0_i32_0 = arith.constant 0 : i32
    %c0_i32_1 = arith.constant 0 : i32
    return %c0_i32, %c0_i32_0 : i32, i32
  }
  func.func @transform_12(%arg0: i32) -> (i32, i32) {
    %c0_i32 = arith.constant 0 : i32
    %c0_i32_0 = arith.constant 0 : i32
    %c0_i32_1 = arith.constant 0 : i32
    return %c0_i32, %c0_i32_0 : i32, i32
  }
  func.func @transform_13(%arg0: i32) -> (i32, i32) {
    %c0_i32 = arith.constant 0 : i32
    %c0_i32_0 = arith.constant 0 : i32
    %c0_i32_1 = arith.constant 0 : i32
    return %c0_i32, %c0_i32_0 : i32, i32
  }
  func.func @transform_14(%arg0: i32) -> (i32, i32) {
    %c0_i32 = arith.constant 0 : i32
    %c0_i32_0 = arith.constant 0 : i32
    %c0_i32_1 = arith.constant 0 : i32
    return %c0_i32, %c0_i32_0 : i32, i32
  }
  func.func @transform_15(%arg0: i32) -> (i32, i32) {
    %c0_i32 = arith.constant 0 : i32
    %c0_i32_0 = arith.constant 0 : i32
    %c0_i32_1 = arith.constant 0 : i32
    return %c0_i32, %c0_i32_0 : i32, i32
  }
  func.func @transform_16(%arg0: i32) -> (i32, i32) {
    %c0_i32 = arith.constant 0 : i32
    %c0_i32_0 = arith.constant 0 : i32
    %c0_i32_1 = arith.constant 0 : i32
    return %c0_i32, %c0_i32_0 : i32, i32
  }
}

module attributes {stable_mosaic.version = 11 : i64} {
  func.func @_linear_kernel(%arg0: i32, %arg1: memref<400x576xbf16, #tpu.memory_space<vmem>>, %arg2: memref<576x32xbf16, #tpu.memory_space<vmem>>, %arg3: memref<1x32xf32, #tpu.memory_space<vmem>>, %arg4: memref<400x32xbf16, #tpu.memory_space<vmem>>) attributes {dimension_semantics = [#tpu.dimension_semantics<parallel>], iteration_bounds = array<i64: 1>, scalar_prefetch = 0 : i64, scratch_operands = 0 : i64, tpu.core_type = #tpu.core_type<tc>, window_params = [{transform_indices = @transform_0, window_bounds = array<i64: 400, 576>}, {pipeline_mode = #tpu.pipeline_mode<synchronous>, transform_indices = @transform_1, window_bounds = array<i64: 576, 32>}, {pipeline_mode = #tpu.pipeline_mode<synchronous>, transform_indices = @transform_2, window_bounds = array<i64: 1, 32>}, {transform_indices = @transform_3, window_bounds = array<i64: 400, 32>}]} {
    %c0 = arith.constant 0 : index
    %c0_0 = arith.constant 0 : index
    %0 = vector.load %arg1[%c0, %c0_0] : memref<400x576xbf16, #tpu.memory_space<vmem>>, vector<400x576xbf16>
    %c0_1 = arith.constant 0 : index
    %c0_2 = arith.constant 0 : index
    %1 = vector.load %arg2[%c0_1, %c0_2] : memref<576x32xbf16, #tpu.memory_space<vmem>>, vector<576x32xbf16>
    %cst = arith.constant dense<0.000000e+00> : vector<400x32xf32>
    %2 = tpu.matmul %0, %1, %cst {dimension_numbers = #tpu.dot_dimension_numbers<[1], [0], [0], [1], [0, 0, 1, 1], [], []>} : vector<400x576xbf16>, vector<576x32xbf16>, vector<400x32xf32> -> vector<400x32xf32>
    %c0_3 = arith.constant 0 : index
    %c0_4 = arith.constant 0 : index
    %3 = vector.load %arg3[%c0_3, %c0_4] : memref<1x32xf32, #tpu.memory_space<vmem>>, vector<1x32xf32>
    %4 = vector.broadcast %3 : vector<1x32xf32> to vector<400x32xf32>
    %5 = arith.addf %2, %4 : vector<400x32xf32>
    %cst_5 = arith.constant 0.000000e+00 : f32
    %6 = vector.broadcast %cst_5 : f32 to vector<400x32xf32>
    %7 = arith.cmpf ogt, %5, %6 : vector<400x32xf32>
    %cst_6 = arith.constant 2.000000e-01 : f32
    %8 = vector.broadcast %cst_6 : f32 to vector<400x32xf32>
    %9 = arith.mulf %8, %5 : vector<400x32xf32>
    %10 = arith.select %7, %5, %9 : vector<400x32xi1>, vector<400x32xf32>
    %11 = arith.truncf %10 : vector<400x32xf32> to vector<400x32xbf16>
    %c0_7 = arith.constant 0 : index
    %c0_8 = arith.constant 0 : index
    %12 = vector.load %arg4[%c0_7, %c0_8] : memref<400x32xbf16, #tpu.memory_space<vmem>>, vector<400x32xbf16>
    tpu.vector_store %arg4[%c0_7, %c0_8], %11 {strides = array<i32>} : memref<400x32xbf16, #tpu.memory_space<vmem>>, vector<400x32xbf16>,
    return
  }
  func.func @transform_0(%arg0: i32) -> (i32, i32) {
    %c0_i32 = arith.constant 0 : i32
    %c0_i32_0 = arith.constant 0 : i32
    return %arg0, %c0_i32 : i32, i32
  }
  func.func @transform_1(%arg0: i32) -> (i32, i32) {
    %c0_i32 = arith.constant 0 : i32
    %c0_i32_0 = arith.constant 0 : i32
    %c0_i32_1 = arith.constant 0 : i32
    return %c0_i32, %c0_i32_0 : i32, i32
  }
  func.func @transform_2(%arg0: i32) -> (i32, i32) {
    %c0_i32 = arith.constant 0 : i32
    %c0_i32_0 = arith.constant 0 : i32
    %c0_i32_1 = arith.constant 0 : i32
    return %c0_i32, %c0_i32_0 : i32, i32
  }
  func.func @transform_3(%arg0: i32) -> (i32, i32) {
    %c0_i32 = arith.constant 0 : i32
    %c0_i32_0 = arith.constant 0 : i32
    return %arg0, %c0_i32 : i32, i32
  }
}

module attributes {stable_mosaic.version = 11 : i64} {
  func.func @_linear_kernel(%arg0: i32, %arg1: memref<224x288xbf16, #tpu.memory_space<vmem>>, %arg2: memref<288x1xbf16, #tpu.memory_space<vmem>>, %arg3: memref<1x1xf32, #tpu.memory_space<vmem>>, %arg4: memref<224x1xf32, #tpu.memory_space<vmem>>) attributes {dimension_semantics = [#tpu.dimension_semantics<parallel>], iteration_bounds = array<i64: 7>, scalar_prefetch = 0 : i64, scratch_operands = 0 : i64, tpu.core_type = #tpu.core_type<tc>, window_params = [{transform_indices = @transform_0, window_bounds = array<i64: 224, 288>}, {pipeline_mode = #tpu.pipeline_mode<synchronous>, transform_indices = @transform_1, window_bounds = array<i64: 288, 1>}, {pipeline_mode = #tpu.pipeline_mode<synchronous>, transform_indices = @transform_2, window_bounds = array<i64: 1, 1>}, {transform_indices = @transform_3, window_bounds = array<i64: 224, 1>}]} {
    %c0 = arith.constant 0 : index
    %c0_0 = arith.constant 0 : index
    %0 = vector.load %arg1[%c0, %c0_0] : memref<224x288xbf16, #tpu.memory_space<vmem>>, vector<224x288xbf16>
    %c0_1 = arith.constant 0 : index
    %c0_2 = arith.constant 0 : index
    %1 = vector.load %arg2[%c0_1, %c0_2] : memref<288x1xbf16, #tpu.memory_space<vmem>>, vector<288x1xbf16>
    %cst = arith.constant dense<0.000000e+00> : vector<224x1xf32>
    %2 = tpu.matmul %0, %1, %cst {dimension_numbers = #tpu.dot_dimension_numbers<[1], [0], [0], [1], [0, 0, 1, 1], [], []>} : vector<224x288xbf16>, vector<288x1xbf16>, vector<224x1xf32> -> vector<224x1xf32>
    %c0_3 = arith.constant 0 : index
    %c0_4 = arith.constant 0 : index
    %3 = vector.load %arg3[%c0_3, %c0_4] : memref<1x1xf32, #tpu.memory_space<vmem>>, vector<1x1xf32>
    %4 = vector.broadcast %3 : vector<1x1xf32> to vector<224x1xf32>
    %5 = arith.addf %2, %4 : vector<224x1xf32>
    %cst_5 = arith.constant 0.000000e+00 : f32
    %6 = vector.broadcast %cst_5 : f32 to vector<224x1xf32>
    %7 = arith.subf %6, %5 : vector<224x1xf32>
    %8 = math.exp %7 : vector<224x1xf32>
    %cst_6 = arith.constant 1.000000e+00 : f32
    %9 = vector.broadcast %cst_6 : f32 to vector<224x1xf32>
    %10 = arith.addf %9, %8 : vector<224x1xf32>
    %11 = tpu.reciprocal %10 {approx = true} : vector<224x1xf32> -> vector<224x1xf32>
    %c0_7 = arith.constant 0 : index
    %c0_8 = arith.constant 0 : index
    %12 = vector.load %arg4[%c0_7, %c0_8] : memref<224x1xf32, #tpu.memory_space<vmem>>, vector<224x1xf32>
    tpu.vector_store %arg4[%c0_7, %c0_8], %11 {strides = array<i32>} : memref<224x1xf32, #tpu.memory_space<vmem>>, vector<224x1xf32>,
    return
  }
  func.func @transform_0(%arg0: i32) -> (i32, i32) {
    %c0_i32 = arith.constant 0 : i32
    %c0_i32_0 = arith.constant 0 : i32
    return %arg0, %c0_i32 : i32, i32
  }
  func.func @transform_1(%arg0: i32) -> (i32, i32) {
    %c0_i32 = arith.constant 0 : i32
    %c0_i32_0 = arith.constant 0 : i32
    %c0_i32_1 = arith.constant 0 : i32
    return %c0_i32, %c0_i32_0 : i32, i32
  }
  func.func @transform_2(%arg0: i32) -> (i32, i32) {
    %c0_i32 = arith.constant 0 : i32
    %c0_i32_0 = arith.constant 0 : i32
    %c0_i32_1 = arith.constant 0 : i32
    return %c0_i32, %c0_i32_0 : i32, i32
  }
  func.func @transform_3(%arg0: i32) -> (i32, i32) {
    %c0_i32 = arith.constant 0 : i32
    %c0_i32_0 = arith.constant 0 : i32
    return %arg0, %c0_i32 : i32, i32
  }
}

</mosaic_0001>

<llo_original>
// kernel: cluster_vae_forward.9
$region0: #{cluster_vae_forward.9}
  #allocation0 [shape = 'u32[]', space=smem, size = 0x4, offset = 0x4, fixed_abs, tag = 'smem constant byte address 0x4 - core index']
  #allocation1 [shape = 'u32[144,128]{1,0:T(1,128)}', space=vmem, size = 0x12000, scoped, tag = 'internal scratch']
  %s0 = inlined_call_operand.vmem [shape: bf16[400,9], index: 0, kind: input, shape index: {}]
  %s1 = inlined_call_operand.hbm [shape: bf16[9,32], index: 1, kind: input, shape index: {}]
  %s2 = inlined_call_operand.hbm [shape: f32[1,32], index: 2, kind: input, shape index: {}]
  %s3 = inlined_call_operand.vmem [shape: bf16[400,32], index: 3, kind: output, shape index: {}]
  %s4 = sld [smem:[#allocation0]]
  $region30: #{cluster_vae_forward.9} parent=0
    _
  %s6 = ssub.s32 1, %s4
  %s7 = scalar_select 0, %s6, %s4
  $region1: #{cluster_vae_forward.9} parent=0
    #allocation2 [shape = 'u8[4096]{0}', space=vmem, size = 0x1000, scoped, tag = 'input window, operand 1, single buffered']
    #allocation3 [shape = 's32[1]{0}', space=sflag, size = 0x4, scoped, tag = 'scoped memory for cluster_vae_forward.9']
    #allocation4 [shape = 'u8[512]{0}', space=vmem, size = 0x400, scoped, tag = 'input window, operand 2, single buffered']
    #allocation5 [shape = 's32[1]{0}', space=sflag, size = 0x4, scoped, tag = 'scoped memory for cluster_vae_forward.9']
    %8 = vsyncpa [#allocation3], 0
    %9 = vsyncpa [#allocation5], 0
    // Predicated region
    $region2: #{cluster_vae_forward.9} parent=1 // pred_check
      _
    $region3: #{cluster_vae_forward.9} parent=1 // pred_check_branch
      %11 = sbr.rel (0) target = $region5
    $region4: #{cluster_vae_forward.9} parent=1 // pred_region
      _
    $region5: #{cluster_vae_forward.9} parent=1 // pred_fallthru
      _
    // Predicated region
    $region6: #{cluster_vae_forward.9} parent=1 // pred_check
      _
    $region7: #{cluster_vae_forward.9} parent=1 // pred_check_branch
      %13 = sbr.rel (0) target = $region9
    $region8: #{cluster_vae_forward.9} parent=1 // pred_region
      %s15 = ssub.s32 128, 128
      %16 = vsyncadd [#allocation3], %s15
      %s17 = sshll.u32 [#allocation2], 4
      %s18 = int_to_ptr.vmem [resolvable:$true] %s17
      %23 = dma.hbm_to_vmem [thread:$0]  %s1, 128, %s18, [#allocation3], 64, 64, 4
    $region9: #{cluster_vae_forward.9} parent=1 // pred_fallthru
      _
    // Predicated region
    $region10: #{cluster_vae_forward.9} parent=1 // pred_check
      _
    $region11: #{cluster_vae_forward.9} parent=1 // pred_check_branch
      %25 = sbr.rel (0) target = $region13
    $region12: #{cluster_vae_forward.9} parent=1 // pred_region
      %s27 = ssub.s32 16, 16
      %28 = vsyncadd [#allocation5], %s27
      %s30 = sshll.u32 [#allocation4], 4
      %s31 = int_to_ptr.vmem [resolvable:$true] %s30
      %33 = dma.hbm_to_vmem [thread:$0]  %s2, 16, %s31, [#allocation5]
    $region13: #{cluster_vae_forward.9} parent=1 // pred_fallthru
      _
    // Predicated region
    $region14: #{cluster_vae_forward.9} parent=1 // pred_check
      _
    $region15: #{cluster_vae_forward.9} parent=1 // pred_check_branch
      %35 = sbr.rel (0) target = $region17
    $region16: #{cluster_vae_forward.9} parent=1 // pred_region
      %36 = dma.done [#allocation3], 128
    $region17: #{cluster_vae_forward.9} parent=1 // pred_fallthru
      _
    // Predicated region
    $region18: #{cluster_vae_forward.9} parent=1 // pred_check
      _
    $region19: #{cluster_vae_forward.9} parent=1 // pred_check_branch
      %38 = sbr.rel (0) target = $region21
    $region20: #{cluster_vae_forward.9} parent=1 // pred_region
      %39 = dma.done [#allocation5], 16
    $region21: #{cluster_vae_forward.9} parent=1 // pred_fallthru
      _
    %v41 = vld [vmem:[%s0] sm:$0xf]
    %v42 = vld [vmem:[%s0 + $0x4] sm:$0xf]
    %v43 = vld [vmem:[%s0 + $0x8] sm:$0xf]
    %v44 = vld [vmem:[%s0 + $0xc] sm:$0xf]
    %v45 = vld [vmem:[%s0 + $0x10] sm:$0xf]
    %v46 = vld [vmem:[%s0 + $0x14] sm:$0xf]
    %v47 = vld [vmem:[%s0 + $0x18] sm:$0xf]
    %v48 = vld [vmem:[%s0 + $0x1c] sm:$0xf]
    %v49 = vld [vmem:[%s0 + $0x20] sm:$0xf]
    %v50 = vld [vmem:[%s0 + $0x24] sm:$0xf]
    %v51 = vld [vmem:[%s0 + $0x28] sm:$0xf]
    %v52 = vld [vmem:[%s0 + $0x2c] sm:$0xf]
    %v53 = vld [vmem:[%s0 + $0x30] sm:$0xf]
    %v54 = vld [vmem:[%s0 + $0x34] sm:$0xf]
    %v55 = vld [vmem:[%s0 + $0x38] sm:$0xf]
    %v56 = vld [vmem:[%s0 + $0x3c] sm:$0xf]
    %v57 = vld [vmem:[%s0 + $0x40] sm:$0xf]
    %v58 = vld [vmem:[%s0 + $0x44] sm:$0xf]
    %v59 = vld [vmem:[%s0 + $0x48] sm:$0xf]
    %v60 = vld [vmem:[%s0 + $0x4c] sm:$0xf]
    %v61 = vld [vmem:[%s0 + $0x50] sm:$0xf]
    %v62 = vld [vmem:[%s0 + $0x54] sm:$0xf]
    %v63 = vld [vmem:[%s0 + $0x58] sm:$0xf]
    %v64 = vld [vmem:[%s0 + $0x5c] sm:$0xf]
    %v65 = vld [vmem:[%s0 + $0x60] sm:$0xf]
    %v66 = vld [vmem:[%s0 + $0x64] sm:$0xf]
    %v67 = vld [vmem:[%s0 + $0x68] sm:$0xf]
    %v68 = vld [vmem:[%s0 + $0x6c] sm:$0xf]
    %v69 = vld [vmem:[%s0 + $0x70] sm:$0xf]
    %v70 = vld [vmem:[%s0 + $0x74] sm:$0xf]
    %v71 = vld [vmem:[%s0 + $0x78] sm:$0xf]
    %v72 = vld [vmem:[%s0 + $0x7c] sm:$0xf]
    %v73 = vld [vmem:[%s0 + $0x80] sm:$0xf]
    %v74 = vld [vmem:[%s0 + $0x84] sm:$0xf]
    %v75 = vld [vmem:[%s0 + $0x88] sm:$0xf]
    %v76 = vld [vmem:[%s0 + $0x8c] sm:$0xf]
    %v77 = vld [vmem:[%s0 + $0x90] sm:$0xf]
    %v78 = vld [vmem:[%s0 + $0x94] sm:$0xf]
    %v79 = vld [vmem:[%s0 + $0x98] sm:$0xf]
    %v80 = vld [vmem:[%s0 + $0x9c] sm:$0xf]
    %v81 = vld [vmem:[%s0 + $0xa0] sm:$0xf]
    %v82 = vld [vmem:[%s0 + $0xa4] sm:$0xf]
    %v83 = vld [vmem:[%s0 + $0xa8] sm:$0xf]
    %v84 = vld [vmem:[%s0 + $0xac] sm:$0xf]
    %v85 = vld [vmem:[%s0 + $0xb0] sm:$0xf]
    %v86 = vld [vmem:[%s0 + $0xb4] sm:$0xf]
    %v87 = vld [vmem:[%s0 + $0xb8] sm:$0xf]
    %v88 = vld [vmem:[%s0 + $0xbc] sm:$0xf]
    %v89 = vld [vmem:[%s0 + $0xc0] sm:$0xf]
    %v90 = vld [vmem:[%s0 + $0xc4] sm:$0xf]
    %v91 = vld [vmem:[#allocation2] sm:$0xf]
    %v92 = vld [vmem:[#allocation2 + $0x4] sm:$0x1]
    %v93 = vld [vmem:[#allocation4] sm:$0x1]
    %v95 = vlaneseq
    %v96 = vshrl.u32 %v95, 7
    %v97 = vsub.s32 0, %v96
    %v98 = vrot.slane %v93, %v97
    %v150 = vunpack.c.l.b16 %v41
    %v151 = vunpack.c.l.b16 %v42
    %v152 = vunpack.c.l.b16 %v43
    %v153 = vunpack.c.l.b16 %v44
    %v154 = vunpack.c.l.b16 %v45
    %v155 = vunpack.c.l.b16 %v46
    %v156 = vunpack.c.l.b16 %v47
    %v157 = vunpack.c.l.b16 %v48
    %v158 = vunpack.c.l.b16 %v49
    %v159 = vunpack.c.l.b16 %v50
    %v160 = vunpack.c.l.b16 %v51
    %v161 = vunpack.c.l.b16 %v52
    %v162 = vunpack.c.l.b16 %v53
    %v163 = vunpack.c.l.b16 %v54
    %v164 = vunpack.c.l.b16 %v55
    %v165 = vunpack.c.l.b16 %v56
    %v166 = vunpack.c.l.b16 %v57
    %v167 = vunpack.c.l.b16 %v58
    %v168 = vunpack.c.l.b16 %v59
    %v169 = vunpack.c.l.b16 %v60
    %v170 = vunpack.c.l.b16 %v61
    %v171 = vunpack.c.l.b16 %v62
    %v172 = vunpack.c.l.b16 %v63
    %v173 = vunpack.c.l.b16 %v64
    %v174 = vunpack.c.l.b16 %v65
    %v175 = vunpack.c.l.b16 %v66
    %v176 = vunpack.c.l.b16 %v67
    %v177 = vunpack.c.l.b16 %v68
    %v178 = vunpack.c.l.b16 %v69
    %v179 = vunpack.c.l.b16 %v70
    %v180 = vunpack.c.l.b16 %v71
    %v181 = vunpack.c.l.b16 %v72
    %v182 = vunpack.c.l.b16 %v73
    %v183 = vunpack.c.l.b16 %v74
    %v184 = vunpack.c.l.b16 %v75
    %v185 = vunpack.c.l.b16 %v76
    %v186 = vunpack.c.l.b16 %v77
    %v187 = vunpack.c.l.b16 %v78
    %v188 = vunpack.c.l.b16 %v79
    %v189 = vunpack.c.l.b16 %v80
    %v190 = vunpack.c.l.b16 %v81
    %v191 = vunpack.c.l.b16 %v82
    %v192 = vunpack.c.l.b16 %v83
    %v193 = vunpack.c.l.b16 %v84
    %v194 = vunpack.c.l.b16 %v85
    %v195 = vunpack.c.l.b16 %v86
    %v196 = vunpack.c.l.b16 %v87
    %v197 = vunpack.c.l.b16 %v88
    %v198 = vunpack.c.l.b16 %v89
    %v199 = vunpack.c.l.b16 %v90
    %v200 = vpack.c.b16 %v151, %v150
    %v201 = vpack.c.b16 %v153, %v152
    %v202 = vpack.c.b16 %v155, %v154
    %v203 = vpack.c.b16 %v157, %v156
    %v204 = vpack.c.b16 %v159, %v158
    %v205 = vpack.c.b16 %v161, %v160
    %v206 = vpack.c.b16 %v163, %v162
    %v207 = vpack.c.b16 %v165, %v164
    %v208 = vpack.c.b16 %v167, %v166
    %v209 = vpack.c.b16 %v169, %v168
    %v210 = vpack.c.b16 %v171, %v170
    %v211 = vpack.c.b16 %v173, %v172
    %v212 = vpack.c.b16 %v175, %v174
    %v213 = vpack.c.b16 %v177, %v176
    %v214 = vpack.c.b16 %v179, %v178
    %v215 = vpack.c.b16 %v181, %v180
    %v216 = vpack.c.b16 %v183, %v182
    %v217 = vpack.c.b16 %v185, %v184
    %v218 = vpack.c.b16 %v187, %v186
    %v219 = vpack.c.b16 %v189, %v188
    %v220 = vpack.c.b16 %v191, %v190
    %v221 = vpack.c.b16 %v193, %v192
    %v222 = vpack.c.b16 %v195, %v194
    %v223 = vpack.c.b16 %v197, %v196
    %v224 = vpack.c.b16 %v199, %v198
    %v227 = vunpack.c.l.b16 %v91
    %v228 = vunpack.c.l.b16 %v92
    %v229 = vpack.c.b16 %v228, %v227
    %vm230 = vcmask 72704
    %v232 = vsel %vm230, %v200, 0
    %v235 = vsel %vm230, %v201, 0
    %v238 = vsel %vm230, %v202, 0
    %v241 = vsel %vm230, %v203, 0
    %v244 = vsel %vm230, %v204, 0
    %v247 = vsel %vm230, %v205, 0
    %v250 = vsel %vm230, %v206, 0
    %v253 = vsel %vm230, %v207, 0
    %v256 = vsel %vm230, %v208, 0
    %v259 = vsel %vm230, %v209, 0
    %v262 = vsel %vm230, %v210, 0
    %v265 = vsel %vm230, %v211, 0
    %v268 = vsel %vm230, %v212, 0
    %v271 = vsel %vm230, %v213, 0
    %v274 = vsel %vm230, %v214, 0
    %v277 = vsel %vm230, %v215, 0
    %v280 = vsel %vm230, %v216, 0
    %v283 = vsel %vm230, %v217, 0
    %v286 = vsel %vm230, %v218, 0
    %v289 = vsel %vm230, %v219, 0
    %v292 = vsel %vm230, %v220, 0
    %v295 = vsel %vm230, %v221, 0
    %v298 = vsel %vm230, %v222, 0
    %v301 = vsel %vm230, %v223, 0
    %v304 = vsel %vm230, %v224, 0
    %vm306 = vcmask 1043456
    %vm307 = vcmask 1044480
    %v308 = vsel %vm306, 4294967295, 65535
    %v309 = vsel %vm307, %v308, 0
    %v311 = vand.u32 %v229, %v309
    %313 = vmatprep.subr.bf16.mxu0 0
    %314 = vmatpush1.bf16.msra.mxu0 0
    %315 = vmatprep.subr.bf16.mxu0 0
    %316 = vmatpush1.bf16.msra.mxu0 0
    %317 = vmatprep.subr.bf16.mxu0 0
    %318 = vmatpush1.bf16.msra.mxu0 0
    %319 = vmatprep.subr.bf16.mxu0 0
    %320 = vmatpush1.bf16.msra.mxu0 0
    %321 = vmatprep.subr.bf16.mxu0 0
    %322 = vmatpush1.bf16.msra.mxu0 0
    %323 = vmatprep.subr.bf16.mxu0 0
    %324 = vmatpush1.bf16.msra.mxu0 0
    %325 = vmatprep.subr.bf16.mxu0 0
    %326 = vmatpush1.bf16.msra.mxu0 0
    %327 = vmatprep.subr.bf16.mxu0 0
    %328 = vmatpush1.bf16.msra.mxu0 %v311
    %329 = vmatprep.subr.bf16.mxu0 0
    %330 = vmatpush2.bf16.msra.mxu0 0
    %331 = vmatprep.subr.bf16.mxu0 0
    %332 = vmatpush2.bf16.msra.mxu0 0
    %333 = vmatprep.subr.bf16.mxu0 0
    %334 = vmatpush2.bf16.msra.mxu0 0
    %335 = vmatprep.subr.bf16.mxu0 0
    %336 = vmatpush2.bf16.msra.mxu0 0
    %337 = vmatprep.subr.bf16.mxu0 0
    %338 = vmatpush2.bf16.msra.mxu0 0
    %339 = vmatprep.subr.bf16.mxu0 0
    %340 = vmatpush2.bf16.msra.mxu0 0
    %341 = vmatprep.subr.bf16.mxu0 0
    %342 = vmatpush2.bf16.msra.mxu0 0
    %343 = vmatprep.subr.bf16.mxu0 0
    %344 = vmatpush2.bf16.msra.mxu0 0
    %345 = vmatprep.mubr.bf16.mxu0 0
    %346 = vmatmul.mubr.bf16.gmra.mxu0 %v232
    %v347 = vpop.f32.mrf.mxu0
    %v348 = vadd.f32 %v98, %v347
    %v349 = vpop.f32.mrf.mxu0
    %v350 = vpop.f32.mrf.mxu0
    %v351 = vadd.f32 %v98, %v350
    %v352 = vpop.f32.mrf.mxu0
    %353 = vmatprep.mubr.bf16.mxu0 0
    %354 = vmatmul.mubr.bf16.gmra.mxu0 %v235
    %v355 = vpop.f32.mrf.mxu0
    %v356 = vadd.f32 %v98, %v355
    %v357 = vpop.f32.mrf.mxu0
    %v358 = vpop.f32.mrf.mxu0
    %v359 = vadd.f32 %v98, %v358
    %v360 = vpop.f32.mrf.mxu0
    %361 = vmatprep.mubr.bf16.mxu0 0
    %362 = vmatmul.mubr.bf16.gmra.mxu0 %v238
    %v363 = vpop.f32.mrf.mxu0
    %v364 = vadd.f32 %v98, %v363
    %v365 = vpop.f32.mrf.mxu0
    %v366 = vpop.f32.mrf.mxu0
    %v367 = vadd.f32 %v98, %v366
    %v368 = vpop.f32.mrf.mxu0
    %369 = vmatprep.mubr.bf16.mxu0 0
    %370 = vmatmul.mubr.bf16.gmra.mxu0 %v241
    %v371 = vpop.f32.mrf.mxu0
    %v372 = vadd.f32 %v98, %v371
    %v373 = vpop.f32.mrf.mxu0
    %v374 = vpop.f32.mrf.mxu0
    %v375 = vadd.f32 %v98, %v374
    %v376 = vpop.f32.mrf.mxu0
    %377 = vmatprep.mubr.bf16.mxu0 0
    %378 = vmatmul.mubr.bf16.gmra.mxu0 %v244
    %v379 = vpop.f32.mrf.mxu0
    %v380 = vadd.f32 %v98, %v379
    %v381 = vpop.f32.mrf.mxu0
    %v382 = vpop.f32.mrf.mxu0
    %v383 = vadd.f32 %v98, %v382
    %v384 = vpop.f32.mrf.mxu0
    %385 = vmatprep.mubr.bf16.mxu0 0
    %386 = vmatmul.mubr.bf16.gmra.mxu0 %v247
    %v387 = vpop.f32.mrf.mxu0
    %v388 = vadd.f32 %v98, %v387
    %v389 = vpop.f32.mrf.mxu0
    %v390 = vpop.f32.mrf.mxu0
    %v391 = vadd.f32 %v98, %v390
    %v392 = vpop.f32.mrf.mxu0
    %393 = vmatprep.mubr.bf16.mxu0 0
    %394 = vmatmul.mubr.bf16.gmra.mxu0 %v250
    %v395 = vpop.f32.mrf.mxu0
    %v396 = vadd.f32 %v98, %v395
    %v397 = vpop.f32.mrf.mxu0
    %v398 = vpop.f32.mrf.mxu0
    %v399 = vadd.f32 %v98, %v398
    %v400 = vpop.f32.mrf.mxu0
    %401 = vmatprep.mubr.bf16.mxu0 0
    %402 = vmatmul.mubr.bf16.gmra.mxu0 %v253
    %v403 = vpop.f32.mrf.mxu0
    %v404 = vadd.f32 %v98, %v403
    %v405 = vpop.f32.mrf.mxu0
    %v406 = vpop.f32.mrf.mxu0
    %v407 = vadd.f32 %v98, %v406
    %v408 = vpop.f32.mrf.mxu0
    %409 = vmatprep.mubr.bf16.mxu0 0
    %410 = vmatmul.mubr.bf16.gmra.mxu0 %v256
    %v411 = vpop.f32.mrf.mxu0
    %v412 = vadd.f32 %v98, %v411
    %v413 = vpop.f32.mrf.mxu0
    %v414 = vpop.f32.mrf.mxu0
    %v415 = vadd.f32 %v98, %v414
    %v416 = vpop.f32.mrf.mxu0
    %417 = vmatprep.mubr.bf16.mxu0 0
    %418 = vmatmul.mubr.bf16.gmra.mxu0 %v259
    %v419 = vpop.f32.mrf.mxu0
    %v420 = vadd.f32 %v98, %v419
    %v421 = vpop.f32.mrf.mxu0
    %v422 = vpop.f32.mrf.mxu0
    %v423 = vadd.f32 %v98, %v422
    %v424 = vpop.f32.mrf.mxu0
    %425 = vmatprep.mubr.bf16.mxu0 0
    %426 = vmatmul.mubr.bf16.gmra.mxu0 %v262
    %v427 = vpop.f32.mrf.mxu0
    %v428 = vadd.f32 %v98, %v427
    %v429 = vpop.f32.mrf.mxu0
    %v430 = vpop.f32.mrf.mxu0
    %v431 = vadd.f32 %v98, %v430
    %v432 = vpop.f32.mrf.mxu0
    %433 = vmatprep.mubr.bf16.mxu0 0
    %434 = vmatmul.mubr.bf16.gmra.mxu0 %v265
    %v435 = vpop.f32.mrf.mxu0
    %v436 = vadd.f32 %v98, %v435
    %v437 = vpop.f32.mrf.mxu0
    %v438 = vpop.f32.mrf.mxu0
    %v439 = vadd.f32 %v98, %v438
    %v440 = vpop.f32.mrf.mxu0
    %441 = vmatprep.mubr.bf16.mxu0 0
    %442 = vmatmul.mubr.bf16.gmra.mxu0 %v268
    %v443 = vpop.f32.mrf.mxu0
    %v444 = vadd.f32 %v98, %v443
    %v445 = vpop.f32.mrf.mxu0
    %v446 = vpop.f32.mrf.mxu0
    %v447 = vadd.f32 %v98, %v446
    %v448 = vpop.f32.mrf.mxu0
    %449 = vmatprep.mubr.bf16.mxu0 0
    %450 = vmatmul.mubr.bf16.gmra.mxu0 %v271
    %v451 = vpop.f32.mrf.mxu0
    %v452 = vadd.f32 %v98, %v451
    %v453 = vpop.f32.mrf.mxu0
    %v454 = vpop.f32.mrf.mxu0
    %v455 = vadd.f32 %v98, %v454
    %v456 = vpop.f32.mrf.mxu0
    %457 = vmatprep.mubr.bf16.mxu0 0
    %458 = vmatmul.mubr.bf16.gmra.mxu0 %v274
    %v459 = vpop.f32.mrf.mxu0
    %v460 = vadd.f32 %v98, %v459
    %v461 = vpop.f32.mrf.mxu0
    %v462 = vpop.f32.mrf.mxu0
    %v463 = vadd.f32 %v98, %v462
    %v464 = vpop.f32.mrf.mxu0
    %465 = vmatprep.mubr.bf16.mxu0 0
    %466 = vmatmul.mubr.bf16.gmra.mxu0 %v277
    %v467 = vpop.f32.mrf.mxu0
    %v468 = vadd.f32 %v98, %v467
    %v469 = vpop.f32.mrf.mxu0
    %v470 = vpop.f32.mrf.mxu0
    %v471 = vadd.f32 %v98, %v470
    %v472 = vpop.f32.mrf.mxu0
    %473 = vmatprep.mubr.bf16.mxu0 0
    %474 = vmatmul.mubr.bf16.gmra.mxu0 %v280
    %v475 = vpop.f32.mrf.mxu0
    %v476 = vadd.f32 %v98, %v475
    %v477 = vpop.f32.mrf.mxu0
    %v478 = vpop.f32.mrf.mxu0
    %v479 = vadd.f32 %v98, %v478
    %v480 = vpop.f32.mrf.mxu0
    %481 = vmatprep.mubr.bf16.mxu0 0
    %482 = vmatmul.mubr.bf16.gmra.mxu0 %v283
    %v483 = vpop.f32.mrf.mxu0
    %v484 = vadd.f32 %v98, %v483
    %v485 = vpop.f32.mrf.mxu0
    %v486 = vpop.f32.mrf.mxu0
    %v487 = vadd.f32 %v98, %v486
    %v488 = vpop.f32.mrf.mxu0
    %489 = vmatprep.mubr.bf16.mxu0 0
    %490 = vmatmul.mubr.bf16.gmra.mxu0 %v286
    %v491 = vpop.f32.mrf.mxu0
    %v492 = vadd.f32 %v98, %v491
    %v493 = vpop.f32.mrf.mxu0
    %v494 = vpop.f32.mrf.mxu0
    %v495 = vadd.f32 %v98, %v494
    %v496 = vpop.f32.mrf.mxu0
    %497 = vmatprep.mubr.bf16.mxu0 0
    %498 = vmatmul.mubr.bf16.gmra.mxu0 %v289
    %v499 = vpop.f32.mrf.mxu0
    %v500 = vadd.f32 %v98, %v499
    %v501 = vpop.f32.mrf.mxu0
    %v502 = vpop.f32.mrf.mxu0
    %v503 = vadd.f32 %v98, %v502
    %v504 = vpop.f32.mrf.mxu0
    %505 = vmatprep.mubr.bf16.mxu0 0
    %506 = vmatmul.mubr.bf16.gmra.mxu0 %v292
    %v507 = vpop.f32.mrf.mxu0
    %v508 = vadd.f32 %v98, %v507
    %v509 = vpop.f32.mrf.mxu0
    %v510 = vpop.f32.mrf.mxu0
    %v511 = vadd.f32 %v98, %v510
    %v512 = vpop.f32.mrf.mxu0
    %513 = vmatprep.mubr.bf16.mxu0 0
    %514 = vmatmul.mubr.bf16.gmra.mxu0 %v295
    %v515 = vpop.f32.mrf.mxu0
    %v516 = vadd.f32 %v98, %v515
    %v517 = vpop.f32.mrf.mxu0
    %v518 = vpop.f32.mrf.mxu0
    %v519 = vadd.f32 %v98, %v518
    %v520 = vpop.f32.mrf.mxu0
    %521 = vmatprep.mubr.bf16.mxu0 0
    %522 = vmatmul.mubr.bf16.gmra.mxu0 %v298
    %v523 = vpop.f32.mrf.mxu0
    %v524 = vadd.f32 %v98, %v523
    %v525 = vpop.f32.mrf.mxu0
    %v526 = vpop.f32.mrf.mxu0
    %v527 = vadd.f32 %v98, %v526
    %v528 = vpop.f32.mrf.mxu0
    %529 = vmatprep.mubr.bf16.mxu0 0
    %530 = vmatmul.mubr.bf16.gmra.mxu0 %v301
    %v531 = vpop.f32.mrf.mxu0
    %v532 = vadd.f32 %v98, %v531
    %v533 = vpop.f32.mrf.mxu0
    %v534 = vpop.f32.mrf.mxu0
    %v535 = vadd.f32 %v98, %v534
    %v536 = vpop.f32.mrf.mxu0
    %537 = vmatprep.mubr.bf16.mxu0 0
    %538 = vmatmul.mubr.bf16.gmra.mxu0 %v304
    %v539 = vpop.f32.mrf.mxu0
    %v540 = vadd.f32 %v98, %v539
    %v541 = vpop.f32.mrf.mxu0
    %v542 = vpop.f32.mrf.mxu0
    %v543 = vadd.f32 %v98, %v542
    %v544 = vpop.f32.mrf.mxu0
    %545 = vdwg.mxu0
    %vm546 = vcmp.gt.f32.partialorder %v348, 0.0
    %vm547 = vcmp.gt.f32.partialorder %v351, 0.0
    %vm548 = vcmp.gt.f32.partialorder %v356, 0.0
    %vm549 = vcmp.gt.f32.partialorder %v359, 0.0
    %vm550 = vcmp.gt.f32.partialorder %v364, 0.0
    %vm551 = vcmp.gt.f32.partialorder %v367, 0.0
    %vm552 = vcmp.gt.f32.partialorder %v372, 0.0
    %vm553 = vcmp.gt.f32.partialorder %v375, 0.0
    %vm554 = vcmp.gt.f32.partialorder %v380, 0.0
    %vm555 = vcmp.gt.f32.partialorder %v383, 0.0
    %vm556 = vcmp.gt.f32.partialorder %v388, 0.0
    %vm557 = vcmp.gt.f32.partialorder %v391, 0.0
    %vm558 = vcmp.gt.f32.partialorder %v396, 0.0
    %vm559 = vcmp.gt.f32.partialorder %v399, 0.0
    %vm560 = vcmp.gt.f32.partialorder %v404, 0.0
    %vm561 = vcmp.gt.f32.partialorder %v407, 0.0
    %vm562 = vcmp.gt.f32.partialorder %v412, 0.0
    %vm563 = vcmp.gt.f32.partialorder %v415, 0.0
    %vm564 = vcmp.gt.f32.partialorder %v420, 0.0
    %vm565 = vcmp.gt.f32.partialorder %v423, 0.0
    %vm566 = vcmp.gt.f32.partialorder %v428, 0.0
    %vm567 = vcmp.gt.f32.partialorder %v431, 0.0
    %vm568 = vcmp.gt.f32.partialorder %v436, 0.0
    %vm569 = vcmp.gt.f32.partialorder %v439, 0.0
    %vm570 = vcmp.gt.f32.partialorder %v444, 0.0
    %vm571 = vcmp.gt.f32.partialorder %v447, 0.0
    %vm572 = vcmp.gt.f32.partialorder %v452, 0.0
    %vm573 = vcmp.gt.f32.partialorder %v455, 0.0
    %vm574 = vcmp.gt.f32.partialorder %v460, 0.0
    %vm575 = vcmp.gt.f32.partialorder %v463, 0.0
    %vm576 = vcmp.gt.f32.partialorder %v468, 0.0
    %vm577 = vcmp.gt.f32.partialorder %v471, 0.0
    %vm578 = vcmp.gt.f32.partialorder %v476, 0.0
    %vm579 = vcmp.gt.f32.partialorder %v479, 0.0
    %vm580 = vcmp.gt.f32.partialorder %v484, 0.0
    %vm581 = vcmp.gt.f32.partialorder %v487, 0.0
    %vm582 = vcmp.gt.f32.partialorder %v492, 0.0
    %vm583 = vcmp.gt.f32.partialorder %v495, 0.0
    %vm584 = vcmp.gt.f32.partialorder %v500, 0.0
    %vm585 = vcmp.gt.f32.partialorder %v503, 0.0
    %vm586 = vcmp.gt.f32.partialorder %v508, 0.0
    %vm587 = vcmp.gt.f32.partialorder %v511, 0.0
    %vm588 = vcmp.gt.f32.partialorder %v516, 0.0
    %vm589 = vcmp.gt.f32.partialorder %v519, 0.0
    %vm590 = vcmp.gt.f32.partialorder %v524, 0.0
    %vm591 = vcmp.gt.f32.partialorder %v527, 0.0
    %vm592 = vcmp.gt.f32.partialorder %v532, 0.0
    %vm593 = vcmp.gt.f32.partialorder %v535, 0.0
    %vm594 = vcmp.gt.f32.partialorder %v540, 0.0
    %vm595 = vcmp.gt.f32.partialorder %v543, 0.0
    %v596 = vmul.f32 %v348, 0.2
    %v597 = vmul.f32 %v351, 0.2
    %v598 = vmul.f32 %v356, 0.2
    %v599 = vmul.f32 %v359, 0.2
    %v600 = vmul.f32 %v364, 0.2
    %v601 = vmul.f32 %v367, 0.2
    %v602 = vmul.f32 %v372, 0.2
    %v603 = vmul.f32 %v375, 0.2
    %v604 = vmul.f32 %v380, 0.2
    %v605 = vmul.f32 %v383, 0.2
    %v606 = vmul.f32 %v388, 0.2
    %v607 = vmul.f32 %v391, 0.2
    %v608 = vmul.f32 %v396, 0.2
    %v609 = vmul.f32 %v399, 0.2
    %v610 = vmul.f32 %v404, 0.2
    %v611 = vmul.f32 %v407, 0.2
    %v612 = vmul.f32 %v412, 0.2
    %v613 = vmul.f32 %v415, 0.2
    %v614 = vmul.f32 %v420, 0.2
    %v615 = vmul.f32 %v423, 0.2
    %v616 = vmul.f32 %v428, 0.2
    %v617 = vmul.f32 %v431, 0.2
    %v618 = vmul.f32 %v436, 0.2
    %v619 = vmul.f32 %v439, 0.2
    %v620 = vmul.f32 %v444, 0.2
    %v621 = vmul.f32 %v447, 0.2
    %v622 = vmul.f32 %v452, 0.2
    %v623 = vmul.f32 %v455, 0.2
    %v624 = vmul.f32 %v460, 0.2
    %v625 = vmul.f32 %v463, 0.2
    %v626 = vmul.f32 %v468, 0.2
    %v627 = vmul.f32 %v471, 0.2
    %v628 = vmul.f32 %v476, 0.2
    %v629 = vmul.f32 %v479, 0.2
    %v630 = vmul.f32 %v484, 0.2
    %v631 = vmul.f32 %v487, 0.2
    %v632 = vmul.f32 %v492, 0.2
    %v633 = vmul.f32 %v495, 0.2
    %v634 = vmul.f32 %v500, 0.2
    %v635 = vmul.f32 %v503, 0.2
    %v636 = vmul.f32 %v508, 0.2
    %v637 = vmul.f32 %v511, 0.2
    %v638 = vmul.f32 %v516, 0.2
    %v639 = vmul.f32 %v519, 0.2
    %v640 = vmul.f32 %v524, 0.2
    %v641 = vmul.f32 %v527, 0.2
    %v642 = vmul.f32 %v532, 0.2
    %v643 = vmul.f32 %v535, 0.2
    %v644 = vmul.f32 %v540, 0.2
    %v645 = vmul.f32 %v543, 0.2
    %v646 = vsel %vm546, %v348, %v596
    %v647 = vsel %vm547, %v351, %v597
    %v648 = vsel %vm548, %v356, %v598
    %v649 = vsel %vm549, %v359, %v599
    %v650 = vsel %vm550, %v364, %v600
    %v651 = vsel %vm551, %v367, %v601
    %v652 = vsel %vm552, %v372, %v602
    %v653 = vsel %vm553, %v375, %v603
    %v654 = vsel %vm554, %v380, %v604
    %v655 = vsel %vm555, %v383, %v605
    %v656 = vsel %vm556, %v388, %v606
    %v657 = vsel %vm557, %v391, %v607
    %v658 = vsel %vm558, %v396, %v608
    %v659 = vsel %vm559, %v399, %v609
    %v660 = vsel %vm560, %v404, %v610
    %v661 = vsel %vm561, %v407, %v611
    %v662 = vsel %vm562, %v412, %v612
    %v663 = vsel %vm563, %v415, %v613
    %v664 = vsel %vm564, %v420, %v614
    %v665 = vsel %vm565, %v423, %v615
    %v666 = vsel %vm566, %v428, %v616
    %v667 = vsel %vm567, %v431, %v617
    %v668 = vsel %vm568, %v436, %v618
    %v669 = vsel %vm569, %v439, %v619
    %v670 = vsel %vm570, %v444, %v620
    %v671 = vsel %vm571, %v447, %v621
    %v672 = vsel %vm572, %v452, %v622
    %v673 = vsel %vm573, %v455, %v623
    %v674 = vsel %vm574, %v460, %v624
    %v675 = vsel %vm575, %v463, %v625
    %v676 = vsel %vm576, %v468, %v626
    %v677 = vsel %vm577, %v471, %v627
    %v678 = vsel %vm578, %v476, %v628
    %v679 = vsel %vm579, %v479, %v629
    %v680 = vsel %vm580, %v484, %v630
    %v681 = vsel %vm581, %v487, %v631
    %v682 = vsel %vm582, %v492, %v632
    %v683 = vsel %vm583, %v495, %v633
    %v684 = vsel %vm584, %v500, %v634
    %v685 = vsel %vm585, %v503, %v635
    %v686 = vsel %vm586, %v508, %v636
    %v687 = vsel %vm587, %v511, %v637
    %v688 = vsel %vm588, %v516, %v638
    %v689 = vsel %vm589, %v519, %v639
    %v690 = vsel %vm590, %v524, %v640
    %v691 = vsel %vm591, %v527, %v641
    %v692 = vsel %vm592, %v532, %v642
    %v693 = vsel %vm593, %v535, %v643
    %v694 = vsel %vm594, %v540, %v644
    %v695 = vsel %vm595, %v543, %v645
    %v696 = vpack.c.bf16 %v647, %v646
    %v697 = vpack.c.bf16 %v649, %v648
    %v698 = vpack.c.bf16 %v651, %v650
    %v699 = vpack.c.bf16 %v653, %v652
    %v700 = vpack.c.bf16 %v655, %v654
    %v701 = vpack.c.bf16 %v657, %v656
    %v702 = vpack.c.bf16 %v659, %v658
    %v703 = vpack.c.bf16 %v661, %v660
    %v704 = vpack.c.bf16 %v663, %v662
    %v705 = vpack.c.bf16 %v665, %v664
    %v706 = vpack.c.bf16 %v667, %v666
    %v707 = vpack.c.bf16 %v669, %v668
    %v708 = vpack.c.bf16 %v671, %v670
    %v709 = vpack.c.bf16 %v673, %v672
    %v710 = vpack.c.bf16 %v675, %v674
    %v711 = vpack.c.bf16 %v677, %v676
    %v712 = vpack.c.bf16 %v679, %v678
    %v713 = vpack.c.bf16 %v681, %v680
    %v714 = vpack.c.bf16 %v683, %v682
    %v715 = vpack.c.bf16 %v685, %v684
    %v716 = vpack.c.bf16 %v687, %v686
    %v717 = vpack.c.bf16 %v689, %v688
    %v718 = vpack.c.bf16 %v691, %v690
    %v719 = vpack.c.bf16 %v693, %v692
    %v720 = vpack.c.bf16 %v695, %v694
    %v746 = vunpack.c.l.b16 %v696
    %v747 = vunpack.c.h.b16 %v696
    %v748 = vunpack.c.l.b16 %v697
    %v749 = vunpack.c.h.b16 %v697
    %v750 = vunpack.c.l.b16 %v698
    %v751 = vunpack.c.h.b16 %v698
    %v752 = vunpack.c.l.b16 %v699
    %v753 = vunpack.c.h.b16 %v699
    %v754 = vunpack.c.l.b16 %v700
    %v755 = vunpack.c.h.b16 %v700
    %v756 = vunpack.c.l.b16 %v701
    %v757 = vunpack.c.h.b16 %v701
    %v758 = vunpack.c.l.b16 %v702
    %v759 = vunpack.c.h.b16 %v702
    %v760 = vunpack.c.l.b16 %v703
    %v761 = vunpack.c.h.b16 %v703
    %v762 = vunpack.c.l.b16 %v704
    %v763 = vunpack.c.h.b16 %v704
    %v764 = vunpack.c.l.b16 %v705
    %v765 = vunpack.c.h.b16 %v705
    %v766 = vunpack.c.l.b16 %v706
    %v767 = vunpack.c.h.b16 %v706
    %v768 = vunpack.c.l.b16 %v707
    %v769 = vunpack.c.h.b16 %v707
    %v770 = vunpack.c.l.b16 %v708
    %v771 = vunpack.c.h.b16 %v708
    %v772 = vunpack.c.l.b16 %v709
    %v773 = vunpack.c.h.b16 %v709
    %v774 = vunpack.c.l.b16 %v710
    %v775 = vunpack.c.h.b16 %v710
    %v776 = vunpack.c.l.b16 %v711
    %v777 = vunpack.c.h.b16 %v711
    %v778 = vunpack.c.l.b16 %v712
    %v779 = vunpack.c.h.b16 %v712
    %v780 = vunpack.c.l.b16 %v713
    %v781 = vunpack.c.h.b16 %v713
    %v782 = vunpack.c.l.b16 %v714
    %v783 = vunpack.c.h.b16 %v714
    %v784 = vunpack.c.l.b16 %v715
    %v785 = vunpack.c.h.b16 %v715
    %v786 = vunpack.c.l.b16 %v716
    %v787 = vunpack.c.h.b16 %v716
    %v788 = vunpack.c.l.b16 %v717
    %v789 = vunpack.c.h.b16 %v717
    %v790 = vunpack.c.l.b16 %v718
    %v791 = vunpack.c.h.b16 %v718
    %v792 = vunpack.c.l.b16 %v719
    %v793 = vunpack.c.h.b16 %v719
    %v794 = vunpack.c.l.b16 %v720
    %v795 = vunpack.c.h.b16 %v720
    %v796 = vpack.c.b16 %v746, %v746
    %v797 = vpack.c.b16 %v747, %v747
    %v798 = vpack.c.b16 %v748, %v748
    %v799 = vpack.c.b16 %v749, %v749
    %v800 = vpack.c.b16 %v750, %v750
    %v801 = vpack.c.b16 %v751, %v751
    %v802 = vpack.c.b16 %v752, %v752
    %v803 = vpack.c.b16 %v753, %v753
    %v804 = vpack.c.b16 %v754, %v754
    %v805 = vpack.c.b16 %v755, %v755
    %v806 = vpack.c.b16 %v756, %v756
    %v807 = vpack.c.b16 %v757, %v757
    %v808 = vpack.c.b16 %v758, %v758
    %v809 = vpack.c.b16 %v759, %v759
    %v810 = vpack.c.b16 %v760, %v760
    %v811 = vpack.c.b16 %v761, %v761
    %v812 = vpack.c.b16 %v762, %v762
    %v813 = vpack.c.b16 %v763, %v763
    %v814 = vpack.c.b16 %v764, %v764
    %v815 = vpack.c.b16 %v765, %v765
    %v816 = vpack.c.b16 %v766, %v766
    %v817 = vpack.c.b16 %v767, %v767
    %v818 = vpack.c.b16 %v768, %v768
    %v819 = vpack.c.b16 %v769, %v769
    %v820 = vpack.c.b16 %v770, %v770
    %v821 = vpack.c.b16 %v771, %v771
    %v822 = vpack.c.b16 %v772, %v772
    %v823 = vpack.c.b16 %v773, %v773
    %v824 = vpack.c.b16 %v774, %v774
    %v825 = vpack.c.b16 %v775, %v775
    %v826 = vpack.c.b16 %v776, %v776
    %v827 = vpack.c.b16 %v777, %v777
    %v828 = vpack.c.b16 %v778, %v778
    %v829 = vpack.c.b16 %v779, %v779
    %v830 = vpack.c.b16 %v780, %v780
    %v831 = vpack.c.b16 %v781, %v781
    %v832 = vpack.c.b16 %v782, %v782
    %v833 = vpack.c.b16 %v783, %v783
    %v834 = vpack.c.b16 %v784, %v784
    %v835 = vpack.c.b16 %v785, %v785
    %v836 = vpack.c.b16 %v786, %v786
    %v837 = vpack.c.b16 %v787, %v787
    %v838 = vpack.c.b16 %v788, %v788
    %v839 = vpack.c.b16 %v789, %v789
    %v840 = vpack.c.b16 %v790, %v790
    %v841 = vpack.c.b16 %v791, %v791
    %v842 = vpack.c.b16 %v792, %v792
    %v843 = vpack.c.b16 %v793, %v793
    %v844 = vpack.c.b16 %v794, %v794
    %v845 = vpack.c.b16 %v795, %v795
    %vm896 = vcmask 257024
    %897 = vst.msk [vmem:[%s3] sm:$0xf] %vm896, %v796
    %898 = vst.msk [vmem:[%s3 + $0x4] sm:$0xf] %vm896, %v797
    %899 = vst.msk [vmem:[%s3 + $0x8] sm:$0xf] %vm896, %v798
    %900 = vst.msk [vmem:[%s3 + $0xc] sm:$0xf] %vm896, %v799
    %901 = vst.msk [vmem:[%s3 + $0x10] sm:$0xf] %vm896, %v800
    %902 = vst.msk [vmem:[%s3 + $0x14] sm:$0xf] %vm896, %v801
    %903 = vst.msk [vmem:[%s3 + $0x18] sm:$0xf] %vm896, %v802
    %904 = vst.msk [vmem:[%s3 + $0x1c] sm:$0xf] %vm896, %v803
    %905 = vst.msk [vmem:[%s3 + $0x20] sm:$0xf] %vm896, %v804
    %906 = vst.msk [vmem:[%s3 + $0x24] sm:$0xf] %vm896, %v805
    %907 = vst.msk [vmem:[%s3 + $0x28] sm:$0xf] %vm896, %v806
    %908 = vst.msk [vmem:[%s3 + $0x2c] sm:$0xf] %vm896, %v807
    %909 = vst.msk [vmem:[%s3 + $0x30] sm:$0xf] %vm896, %v808
    %910 = vst.msk [vmem:[%s3 + $0x34] sm:$0xf] %vm896, %v809
    %911 = vst.msk [vmem:[%s3 + $0x38] sm:$0xf] %vm896, %v810
    %912 = vst.msk [vmem:[%s3 + $0x3c] sm:$0xf] %vm896, %v811
    %913 = vst.msk [vmem:[%s3 + $0x40] sm:$0xf] %vm896, %v812
    %914 = vst.msk [vmem:[%s3 + $0x44] sm:$0xf] %vm896, %v813
    %915 = vst.msk [vmem:[%s3 + $0x48] sm:$0xf] %vm896, %v814
    %916 = vst.msk [vmem:[%s3 + $0x4c] sm:$0xf] %vm896, %v815
    %917 = vst.msk [vmem:[%s3 + $0x50] sm:$0xf] %vm896, %v816
    %918 = vst.msk [vmem:[%s3 + $0x54] sm:$0xf] %vm896, %v817
    %919 = vst.msk [vmem:[%s3 + $0x58] sm:$0xf] %vm896, %v818
    %920 = vst.msk [vmem:[%s3 + $0x5c] sm:$0xf] %vm896, %v819
    %921 = vst.msk [vmem:[%s3 + $0x60] sm:$0xf] %vm896, %v820
    %922 = vst.msk [vmem:[%s3 + $0x64] sm:$0xf] %vm896, %v821
    %923 = vst.msk [vmem:[%s3 + $0x68] sm:$0xf] %vm896, %v822
    %924 = vst.msk [vmem:[%s3 + $0x6c] sm:$0xf] %vm896, %v823
    %925 = vst.msk [vmem:[%s3 + $0x70] sm:$0xf] %vm896, %v824
    %926 = vst.msk [vmem:[%s3 + $0x74] sm:$0xf] %vm896, %v825
    %927 = vst.msk [vmem:[%s3 + $0x78] sm:$0xf] %vm896, %v826
    %928 = vst.msk [vmem:[%s3 + $0x7c] sm:$0xf] %vm896, %v827
    %929 = vst.msk [vmem:[%s3 + $0x80] sm:$0xf] %vm896, %v828
    %930 = vst.msk [vmem:[%s3 + $0x84] sm:$0xf] %vm896, %v829
    %931 = vst.msk [vmem:[%s3 + $0x88] sm:$0xf] %vm896, %v830
    %932 = vst.msk [vmem:[%s3 + $0x8c] sm:$0xf] %vm896, %v831
    %933 = vst.msk [vmem:[%s3 + $0x90] sm:$0xf] %vm896, %v832
    %934 = vst.msk [vmem:[%s3 + $0x94] sm:$0xf] %vm896, %v833
    %935 = vst.msk [vmem:[%s3 + $0x98] sm:$0xf] %vm896, %v834
    %936 = vst.msk [vmem:[%s3 + $0x9c] sm:$0xf] %vm896, %v835
    %937 = vst.msk [vmem:[%s3 + $0xa0] sm:$0xf] %vm896, %v836
    %938 = vst.msk [vmem:[%s3 + $0xa4] sm:$0xf] %vm896, %v837
    %939 = vst.msk [vmem:[%s3 + $0xa8] sm:$0xf] %vm896, %v838
    %940 = vst.msk [vmem:[%s3 + $0xac] sm:$0xf] %vm896, %v839
    %941 = vst.msk [vmem:[%s3 + $0xb0] sm:$0xf] %vm896, %v840
    %942 = vst.msk [vmem:[%s3 + $0xb4] sm:$0xf] %vm896, %v841
    %943 = vst.msk [vmem:[%s3 + $0xb8] sm:$0xf] %vm896, %v842
    %944 = vst.msk [vmem:[%s3 + $0xbc] sm:$0xf] %vm896, %v843
    %945 = vst.msk [vmem:[%s3 + $0xc0] sm:$0xf] %vm896, %v844
    %946 = vst.msk [vmem:[%s3 + $0xc4] sm:$0xf] %vm896, %v845
    // Predicated region
    $region22: #{cluster_vae_forward.9} parent=1 // pred_check
      _
    $region23: #{cluster_vae_forward.9} parent=1 // pred_check_branch
      %948 = sbr.rel (0) target = $region25
    $region24: #{cluster_vae_forward.9} parent=1 // pred_region
      _
    $region25: #{cluster_vae_forward.9} parent=1 // pred_fallthru
      _
    // Predicated region
    $region26: #{cluster_vae_forward.9} parent=1 // pred_check
      _
    $region27: #{cluster_vae_forward.9} parent=1 // pred_check_branch
      %950 = sbr.rel (0) target = $region29
    $region28: #{cluster_vae_forward.9} parent=1 // pred_region
      _
    $region29: #{cluster_vae_forward.9} parent=1 // pred_fallthru
      _
    %951 = vsyncpa [#allocation3], 1
    %952 = vsyncpa [#allocation5], 1

// kernel: cluster_vae_forward.10
$region0: #{cluster_vae_forward.10}
  #allocation0 [shape = 'u32[]', space=smem, size = 0x4, offset = 0x4, fixed_abs, tag = 'smem constant byte address 0x4 - core index']
  #allocation1 [shape = 'u32[144,128]{1,0:T(1,128)}', space=vmem, size = 0x12000, scoped, tag = 'internal scratch']
  %s0 = inlined_call_operand.vmem [shape: bf16[400,288], index: 0, kind: input, shape index: {}]
  %s1 = inlined_call_operand.vmem [shape: bf16[288,32], index: 1, kind: input, shape index: {}]
  %s2 = inlined_call_operand.vmem [shape: f32[1,32], index: 2, kind: input, shape index: {}]
  %s3 = inlined_call_operand.vmem [shape: bf16[400,32], index: 3, kind: output, shape index: {}]
  %s4 = sld [smem:[#allocation0]]
  $region22: #{cluster_vae_forward.10} parent=0
    _
  %s6 = ssub.s32 1, %s4
  %s7 = scalar_select 0, %s6, %s4
  // Predicated region
  $region2: #{cluster_vae_forward.10} parent=0 // pred_check
    _
  $region3: #{cluster_vae_forward.10} parent=0 // pred_check_branch
    %9 = sbr.rel (0) target = $region5
  $region4: #{cluster_vae_forward.10} parent=0 // pred_region
    _
  $region5: #{cluster_vae_forward.10} parent=0 // pred_fallthru
    _
  // Predicated region
  $region6: #{cluster_vae_forward.10} parent=0 // pred_check
    _
  $region7: #{cluster_vae_forward.10} parent=0 // pred_check_branch
    %11 = sbr.rel (0) target = $region9
  $region8: #{cluster_vae_forward.10} parent=0 // pred_region
    _
  $region9: #{cluster_vae_forward.10} parent=0 // pred_fallthru
    _
  // Predicated region
  $region10: #{cluster_vae_forward.10} parent=0 // pred_check
    _
  $region11: #{cluster_vae_forward.10} parent=0 // pred_check_branch
    %13 = sbr.rel (0) target = $region13
  $region12: #{cluster_vae_forward.10} parent=0 // pred_region
    _
  $region13: #{cluster_vae_forward.10} parent=0 // pred_fallthru
    _
  %v15 = vld [vmem:[%s0] sm:$0xff]
  %v16 = vld [vmem:[%s0 + $0x8] sm:$0xf]
  %v17 = vld [vmem:[%s0 + $0xc] sm:$0xff]
  %v18 = vld [vmem:[%s0 + $0x14] sm:$0xf]
  %v19 = vld [vmem:[%s0 + $0x18] sm:$0xff]
  %v20 = vld [vmem:[%s0 + $0x20] sm:$0xf]
  %v21 = vld [vmem:[%s0 + $0x24] sm:$0xff]
  %v22 = vld [vmem:[%s0 + $0x2c] sm:$0xf]
  %v23 = vld [vmem:[%s0 + $0x30] sm:$0xff]
  %v24 = vld [vmem:[%s0 + $0x38] sm:$0xf]
  %v25 = vld [vmem:[%s0 + $0x3c] sm:$0xff]
  %v26 = vld [vmem:[%s0 + $0x44] sm:$0xf]
  %v27 = vld [vmem:[%s0 + $0x48] sm:$0xff]
  %v28 = vld [vmem:[%s0 + $0x50] sm:$0xf]
  %v29 = vld [vmem:[%s0 + $0x54] sm:$0xff]
  %v30 = vld [vmem:[%s0 + $0x5c] sm:$0xf]
  %v31 = vld [vmem:[%s0 + $0x60] sm:$0xff]
  %v32 = vld [vmem:[%s0 + $0x68] sm:$0xf]
  %v33 = vld [vmem:[%s0 + $0x6c] sm:$0xff]
  %v34 = vld [vmem:[%s0 + $0x74] sm:$0xf]
  %v35 = vld [vmem:[%s0 + $0x78] sm:$0xff]
  %v36 = vld [vmem:[%s0 + $0x80] sm:$0xf]
  %v37 = vld [vmem:[%s0 + $0x84] sm:$0xff]
  %v38 = vld [vmem:[%s0 + $0x8c] sm:$0xf]
  %v39 = vld [vmem:[%s0 + $0x90] sm:$0xff]
  %v40 = vld [vmem:[%s0 + $0x98] sm:$0xf]
  %v41 = vld [vmem:[%s0 + $0x9c] sm:$0xff]
  %v42 = vld [vmem:[%s0 + $0xa4] sm:$0xf]
  %v43 = vld [vmem:[%s0 + $0xa8] sm:$0xff]
  %v44 = vld [vmem:[%s0 + $0xb0] sm:$0xf]
  %v45 = vld [vmem:[%s0 + $0xb4] sm:$0xff]
  %v46 = vld [vmem:[%s0 + $0xbc] sm:$0xf]
  %v47 = vld [vmem:[%s0 + $0xc0] sm:$0xff]
  %v48 = vld [vmem:[%s0 + $0xc8] sm:$0xf]
  %v49 = vld [vmem:[%s0 + $0xcc] sm:$0xff]
  %v50 = vld [vmem:[%s0 + $0xd4] sm:$0xf]
  %v51 = vld [vmem:[%s0 + $0xd8] sm:$0xff]
  %v52 = vld [vmem:[%s0 + $0xe0] sm:$0xf]
  %v53 = vld [vmem:[%s0 + $0xe4] sm:$0xff]
  %v54 = vld [vmem:[%s0 + $0xec] sm:$0xf]
  %v55 = vld [vmem:[%s0 + $0xf0] sm:$0xff]
  %v56 = vld [vmem:[%s0 + $0xf8] sm:$0xf]
  %v57 = vld [vmem:[%s0 + $0xfc] sm:$0xff]
  %v58 = vld [vmem:[%s0 + $0x104] sm:$0xf]
  %v59 = vld [vmem:[%s0 + $0x108] sm:$0xff]
  %v60 = vld [vmem:[%s0 + $0x110] sm:$0xf]
  %v61 = vld [vmem:[%s0 + $0x114] sm:$0xff]
  %v62 = vld [vmem:[%s0 + $0x11c] sm:$0xf]
  %v63 = vld [vmem:[%s0 + $0x120] sm:$0xff]
  %v64 = vld [vmem:[%s0 + $0x128] sm:$0xf]
  %v65 = vld [vmem:[%s0 + $0x12c] sm:$0xff]
  %v66 = vld [vmem:[%s0 + $0x134] sm:$0xf]
  %v67 = vld [vmem:[%s0 + $0x138] sm:$0xff]
  %v68 = vld [vmem:[%s0 + $0x140] sm:$0xf]
  %v69 = vld [vmem:[%s0 + $0x144] sm:$0xff]
  %v70 = vld [vmem:[%s0 + $0x14c] sm:$0xf]
  %v71 = vld [vmem:[%s0 + $0x150] sm:$0xff]
  %v72 = vld [vmem:[%s0 + $0x158] sm:$0xf]
  %v73 = vld [vmem:[%s0 + $0x15c] sm:$0xff]
  %v74 = vld [vmem:[%s0 + $0x164] sm:$0xf]
  %v75 = vld [vmem:[%s0 + $0x168] sm:$0xff]
  %v76 = vld [vmem:[%s0 + $0x170] sm:$0xf]
  %v77 = vld [vmem:[%s0 + $0x174] sm:$0xff]
  %v78 = vld [vmem:[%s0 + $0x17c] sm:$0xf]
  %v79 = vld [vmem:[%s0 + $0x180] sm:$0xff]
  %v80 = vld [vmem:[%s0 + $0x188] sm:$0xf]
  %v81 = vld [vmem:[%s0 + $0x18c] sm:$0xff]
  %v82 = vld [vmem:[%s0 + $0x194] sm:$0xf]
  %v83 = vld [vmem:[%s0 + $0x198] sm:$0xff]
  %v84 = vld [vmem:[%s0 + $0x1a0] sm:$0xf]
  %v85 = vld [vmem:[%s0 + $0x1a4] sm:$0xff]
  %v86 = vld [vmem:[%s0 + $0x1ac] sm:$0xf]
  %v87 = vld [vmem:[%s0 + $0x1b0] sm:$0xff]
  %v88 = vld [vmem:[%s0 + $0x1b8] sm:$0xf]
  %v89 = vld [vmem:[%s0 + $0x1bc] sm:$0xff]
  %v90 = vld [vmem:[%s0 + $0x1c4] sm:$0xf]
  %v91 = vld [vmem:[%s0 + $0x1c8] sm:$0xff]
  %v92 = vld [vmem:[%s0 + $0x1d0] sm:$0xf]
  %v93 = vld [vmem:[%s0 + $0x1d4] sm:$0xff]
  %v94 = vld [vmem:[%s0 + $0x1dc] sm:$0xf]
  %v95 = vld [vmem:[%s0 + $0x1e0] sm:$0xff]
  %v96 = vld [vmem:[%s0 + $0x1e8] sm:$0xf]
  %v97 = vld [vmem:[%s0 + $0x1ec] sm:$0xff]
  %v98 = vld [vmem:[%s0 + $0x1f4] sm:$0xf]
  %v99 = vld [vmem:[%s0 + $0x1f8] sm:$0xff]
  %v100 = vld [vmem:[%s0 + $0x200] sm:$0xf]
  %v101 = vld [vmem:[%s0 + $0x204] sm:$0xff]
  %v102 = vld [vmem:[%s0 + $0x20c] sm:$0xf]
  %v103 = vld [vmem:[%s0 + $0x210] sm:$0xff]
  %v104 = vld [vmem:[%s0 + $0x218] sm:$0xf]
  %v105 = vld [vmem:[%s0 + $0x21c] sm:$0xff]
  %v106 = vld [vmem:[%s0 + $0x224] sm:$0xf]
  %v107 = vld [vmem:[%s0 + $0x228] sm:$0xff]
  %v108 = vld [vmem:[%s0 + $0x230] sm:$0xf]
  %v109 = vld [vmem:[%s0 + $0x234] sm:$0xff]
  %v110 = vld [vmem:[%s0 + $0x23c] sm:$0xf]
  %v111 = vld [vmem:[%s0 + $0x240] sm:$0xff]
  %v112 = vld [vmem:[%s0 + $0x248] sm:$0xf]
  %v113 = vld [vmem:[%s0 + $0x24c] sm:$0xff]
  %v114 = vld [vmem:[%s0 + $0x254] sm:$0xf]
  %v115 = vld [vmem:[%s1] sm:$0xf]
  %v116 = vld [vmem:[%s1 + $0x4] sm:$0xf]
  %v117 = vld [vmem:[%s1 + $0x8] sm:$0xf]
  %v118 = vld [vmem:[%s1 + $0xc] sm:$0xf]
  %v119 = vld [vmem:[%s1 + $0x10] sm:$0xf]
  %v120 = vld [vmem:[%s1 + $0x14] sm:$0xf]
  %v121 = vld [vmem:[%s1 + $0x18] sm:$0xf]
  %v122 = vld [vmem:[%s1 + $0x1c] sm:$0xf]
  %v123 = vld [vmem:[%s1 + $0x20] sm:$0xf]
  %v124 = vld [vmem:[%s1 + $0x24] sm:$0xf]
  %v125 = vld [vmem:[%s1 + $0x28] sm:$0xf]
  %v126 = vld [vmem:[%s1 + $0x2c] sm:$0xf]
  %v127 = vld [vmem:[%s1 + $0x30] sm:$0xf]
  %v128 = vld [vmem:[%s1 + $0x34] sm:$0xf]
  %v129 = vld [vmem:[%s1 + $0x38] sm:$0xf]
  %v130 = vld [vmem:[%s1 + $0x3c] sm:$0xf]
  %v131 = vld [vmem:[%s1 + $0x40] sm:$0xf]
  %v132 = vld [vmem:[%s1 + $0x44] sm:$0xf]
  %v133 = vld [vmem:[%s1 + $0x48] sm:$0xf]
  %v134 = vld [vmem:[%s1 + $0x4c] sm:$0xf]
  %v135 = vld [vmem:[%s1 + $0x50] sm:$0xf]
  %v136 = vld [vmem:[%s1 + $0x54] sm:$0xf]
  %v137 = vld [vmem:[%s1 + $0x58] sm:$0xf]
  %v138 = vld [vmem:[%s1 + $0x5c] sm:$0xf]
  %v139 = vld [vmem:[%s1 + $0x60] sm:$0xf]
  %v140 = vld [vmem:[%s1 + $0x64] sm:$0xf]
  %v141 = vld [vmem:[%s1 + $0x68] sm:$0xf]
  %v142 = vld [vmem:[%s1 + $0x6c] sm:$0xf]
  %v143 = vld [vmem:[%s1 + $0x70] sm:$0xf]
  %v144 = vld [vmem:[%s1 + $0x74] sm:$0xf]
  %v145 = vld [vmem:[%s1 + $0x78] sm:$0xf]
  %v146 = vld [vmem:[%s1 + $0x7c] sm:$0xf]
  %v147 = vld [vmem:[%s1 + $0x80] sm:$0xf]
  %v148 = vld [vmem:[%s1 + $0x84] sm:$0xf]
  %v149 = vld [vmem:[%s1 + $0x88] sm:$0xf]
  %v150 = vld [vmem:[%s1 + $0x8c] sm:$0xf]
  %v151 = vld [vmem:[%s2] sm:$0x1]
  %v153 = vlaneseq
  %v154 = vshrl.u32 %v153, 7
  %v155 = vsub.s32 0, %v154
  %v156 = vrot.slane %v151, %v155
  %v258 = vunpack.c.l.b16 %v15
  %v259 = vunpack.c.h.b16 %v15
  %v260 = vunpack.c.l.b16 %v16
  %v261 = vunpack.c.l.b16 %v17
  %v262 = vunpack.c.h.b16 %v17
  %v263 = vunpack.c.l.b16 %v18
  %v264 = vunpack.c.l.b16 %v19
  %v265 = vunpack.c.h.b16 %v19
  %v266 = vunpack.c.l.b16 %v20
  %v267 = vunpack.c.l.b16 %v21
  %v268 = vunpack.c.h.b16 %v21
  %v269 = vunpack.c.l.b16 %v22
  %v270 = vunpack.c.l.b16 %v23
  %v271 = vunpack.c.h.b16 %v23
  %v272 = vunpack.c.l.b16 %v24
  %v273 = vunpack.c.l.b16 %v25
  %v274 = vunpack.c.h.b16 %v25
  %v275 = vunpack.c.l.b16 %v26
  %v276 = vunpack.c.l.b16 %v27
  %v277 = vunpack.c.h.b16 %v27
  %v278 = vunpack.c.l.b16 %v28
  %v279 = vunpack.c.l.b16 %v29
  %v280 = vunpack.c.h.b16 %v29
  %v281 = vunpack.c.l.b16 %v30
  %v282 = vunpack.c.l.b16 %v31
  %v283 = vunpack.c.h.b16 %v31
  %v284 = vunpack.c.l.b16 %v32
  %v285 = vunpack.c.l.b16 %v33
  %v286 = vunpack.c.h.b16 %v33
  %v287 = vunpack.c.l.b16 %v34
  %v288 = vunpack.c.l.b16 %v35
  %v289 = vunpack.c.h.b16 %v35
  %v290 = vunpack.c.l.b16 %v36
  %v291 = vunpack.c.l.b16 %v37
  %v292 = vunpack.c.h.b16 %v37
  %v293 = vunpack.c.l.b16 %v38
  %v294 = vunpack.c.l.b16 %v39
  %v295 = vunpack.c.h.b16 %v39
  %v296 = vunpack.c.l.b16 %v40
  %v297 = vunpack.c.l.b16 %v41
  %v298 = vunpack.c.h.b16 %v41
  %v299 = vunpack.c.l.b16 %v42
  %v300 = vunpack.c.l.b16 %v43
  %v301 = vunpack.c.h.b16 %v43
  %v302 = vunpack.c.l.b16 %v44
  %v303 = vunpack.c.l.b16 %v45
  %v304 = vunpack.c.h.b16 %v45
  %v305 = vunpack.c.l.b16 %v46
  %v306 = vunpack.c.l.b16 %v47
  %v307 = vunpack.c.h.b16 %v47
  %v308 = vunpack.c.l.b16 %v48
  %v309 = vunpack.c.l.b16 %v49
  %v310 = vunpack.c.h.b16 %v49
  %v311 = vunpack.c.l.b16 %v50
  %v312 = vunpack.c.l.b16 %v51
  %v313 = vunpack.c.h.b16 %v51
  %v314 = vunpack.c.l.b16 %v52
  %v315 = vunpack.c.l.b16 %v53
  %v316 = vunpack.c.h.b16 %v53
  %v317 = vunpack.c.l.b16 %v54
  %v318 = vunpack.c.l.b16 %v55
  %v319 = vunpack.c.h.b16 %v55
  %v320 = vunpack.c.l.b16 %v56
  %v321 = vunpack.c.l.b16 %v57
  %v322 = vunpack.c.h.b16 %v57
  %v323 = vunpack.c.l.b16 %v58
  %v324 = vunpack.c.l.b16 %v59
  %v325 = vunpack.c.h.b16 %v59
  %v326 = vunpack.c.l.b16 %v60
  %v327 = vunpack.c.l.b16 %v61
  %v328 = vunpack.c.h.b16 %v61
  %v329 = vunpack.c.l.b16 %v62
  %v330 = vunpack.c.l.b16 %v63
  %v331 = vunpack.c.h.b16 %v63
  %v332 = vunpack.c.l.b16 %v64
  %v333 = vunpack.c.l.b16 %v65
  %v334 = vunpack.c.h.b16 %v65
  %v335 = vunpack.c.l.b16 %v66
  %v336 = vunpack.c.l.b16 %v67
  %v337 = vunpack.c.h.b16 %v67
  %v338 = vunpack.c.l.b16 %v68
  %v339 = vunpack.c.l.b16 %v69
  %v340 = vunpack.c.h.b16 %v69
  %v341 = vunpack.c.l.b16 %v70
  %v342 = vunpack.c.l.b16 %v71
  %v343 = vunpack.c.h.b16 %v71
  %v344 = vunpack.c.l.b16 %v72
  %v345 = vunpack.c.l.b16 %v73
  %v346 = vunpack.c.h.b16 %v73
  %v347 = vunpack.c.l.b16 %v74
  %v348 = vunpack.c.l.b16 %v75
  %v349 = vunpack.c.h.b16 %v75
  %v350 = vunpack.c.l.b16 %v76
  %v351 = vunpack.c.l.b16 %v77
  %v352 = vunpack.c.h.b16 %v77
  %v353 = vunpack.c.l.b16 %v78
  %v354 = vunpack.c.l.b16 %v79
  %v355 = vunpack.c.h.b16 %v79
  %v356 = vunpack.c.l.b16 %v80
  %v357 = vunpack.c.l.b16 %v81
  %v358 = vunpack.c.h.b16 %v81
  %v359 = vunpack.c.l.b16 %v82
  %v360 = vunpack.c.l.b16 %v83
  %v361 = vunpack.c.h.b16 %v83
  %v362 = vunpack.c.l.b16 %v84
  %v363 = vunpack.c.l.b16 %v85
  %v364 = vunpack.c.h.b16 %v85
  %v365 = vunpack.c.l.b16 %v86
  %v366 = vunpack.c.l.b16 %v87
  %v367 = vunpack.c.h.b16 %v87
  %v368 = vunpack.c.l.b16 %v88
  %v369 = vunpack.c.l.b16 %v89
  %v370 = vunpack.c.h.b16 %v89
  %v371 = vunpack.c.l.b16 %v90
  %v372 = vunpack.c.l.b16 %v91
  %v373 = vunpack.c.h.b16 %v91
  %v374 = vunpack.c.l.b16 %v92
  %v375 = vunpack.c.l.b16 %v93
  %v376 = vunpack.c.h.b16 %v93
  %v377 = vunpack.c.l.b16 %v94
  %v378 = vunpack.c.l.b16 %v95
  %v379 = vunpack.c.h.b16 %v95
  %v380 = vunpack.c.l.b16 %v96
  %v381 = vunpack.c.l.b16 %v97
  %v382 = vunpack.c.h.b16 %v97
  %v383 = vunpack.c.l.b16 %v98
  %v384 = vunpack.c.l.b16 %v99
  %v385 = vunpack.c.h.b16 %v99
  %v386 = vunpack.c.l.b16 %v100
  %v387 = vunpack.c.l.b16 %v101
  %v388 = vunpack.c.h.b16 %v101
  %v389 = vunpack.c.l.b16 %v102
  %v390 = vunpack.c.l.b16 %v103
  %v391 = vunpack.c.h.b16 %v103
  %v392 = vunpack.c.l.b16 %v104
  %v393 = vunpack.c.l.b16 %v105
  %v394 = vunpack.c.h.b16 %v105
  %v395 = vunpack.c.l.b16 %v106
  %v396 = vunpack.c.l.b16 %v107
  %v397 = vunpack.c.h.b16 %v107
  %v398 = vunpack.c.l.b16 %v108
  %v399 = vunpack.c.l.b16 %v109
  %v400 = vunpack.c.h.b16 %v109
  %v401 = vunpack.c.l.b16 %v110
  %v402 = vunpack.c.l.b16 %v111
  %v403 = vunpack.c.h.b16 %v111
  %v404 = vunpack.c.l.b16 %v112
  %v405 = vunpack.c.l.b16 %v113
  %v406 = vunpack.c.h.b16 %v113
  %v407 = vunpack.c.l.b16 %v114
  %v408 = vpack.c.b16 %v261, %v258
  %v409 = vpack.c.b16 %v262, %v259
  %v410 = vpack.c.b16 %v263, %v260
  %v411 = vpack.c.b16 %v267, %v264
  %v412 = vpack.c.b16 %v268, %v265
  %v413 = vpack.c.b16 %v269, %v266
  %v414 = vpack.c.b16 %v273, %v270
  %v415 = vpack.c.b16 %v274, %v271
  %v416 = vpack.c.b16 %v275, %v272
  %v417 = vpack.c.b16 %v279, %v276
  %v418 = vpack.c.b16 %v280, %v277
  %v419 = vpack.c.b16 %v281, %v278
  %v420 = vpack.c.b16 %v285, %v282
  %v421 = vpack.c.b16 %v286, %v283
  %v422 = vpack.c.b16 %v287, %v284
  %v423 = vpack.c.b16 %v291, %v288
  %v424 = vpack.c.b16 %v292, %v289
  %v425 = vpack.c.b16 %v293, %v290
  %v426 = vpack.c.b16 %v297, %v294
  %v427 = vpack.c.b16 %v298, %v295
  %v428 = vpack.c.b16 %v299, %v296
  %v429 = vpack.c.b16 %v303, %v300
  %v430 = vpack.c.b16 %v304, %v301
  %v431 = vpack.c.b16 %v305, %v302
  %v432 = vpack.c.b16 %v309, %v306
  %v433 = vpack.c.b16 %v310, %v307
  %v434 = vpack.c.b16 %v311, %v308
  %v435 = vpack.c.b16 %v315, %v312
  %v436 = vpack.c.b16 %v316, %v313
  %v437 = vpack.c.b16 %v317, %v314
  %v438 = vpack.c.b16 %v321, %v318
  %v439 = vpack.c.b16 %v322, %v319
  %v440 = vpack.c.b16 %v323, %v320
  %v441 = vpack.c.b16 %v327, %v324
  %v442 = vpack.c.b16 %v328, %v325
  %v443 = vpack.c.b16 %v329, %v326
  %v444 = vpack.c.b16 %v333, %v330
  %v445 = vpack.c.b16 %v334, %v331
  %v446 = vpack.c.b16 %v335, %v332
  %v447 = vpack.c.b16 %v339, %v336
  %v448 = vpack.c.b16 %v340, %v337
  %v449 = vpack.c.b16 %v341, %v338
  %v450 = vpack.c.b16 %v345, %v342
  %v451 = vpack.c.b16 %v346, %v343
  %v452 = vpack.c.b16 %v347, %v344
  %v453 = vpack.c.b16 %v351, %v348
  %v454 = vpack.c.b16 %v352, %v349
  %v455 = vpack.c.b16 %v353, %v350
  %v456 = vpack.c.b16 %v357, %v354
  %v457 = vpack.c.b16 %v358, %v355
  %v458 = vpack.c.b16 %v359, %v356
  %v459 = vpack.c.b16 %v363, %v360
  %v460 = vpack.c.b16 %v364, %v361
  %v461 = vpack.c.b16 %v365, %v362
  %v462 = vpack.c.b16 %v369, %v366
  %v463 = vpack.c.b16 %v370, %v367
  %v464 = vpack.c.b16 %v371, %v368
  %v465 = vpack.c.b16 %v375, %v372
  %v466 = vpack.c.b16 %v376, %v373
  %v467 = vpack.c.b16 %v377, %v374
  %v468 = vpack.c.b16 %v381, %v378
  %v469 = vpack.c.b16 %v382, %v379
  %v470 = vpack.c.b16 %v383, %v380
  %v471 = vpack.c.b16 %v387, %v384
  %v472 = vpack.c.b16 %v388, %v385
  %v473 = vpack.c.b16 %v389, %v386
  %v474 = vpack.c.b16 %v393, %v390
  %v475 = vpack.c.b16 %v394, %v391
  %v476 = vpack.c.b16 %v395, %v392
  %v477 = vpack.c.b16 %v399, %v396
  %v478 = vpack.c.b16 %v400, %v397
  %v479 = vpack.c.b16 %v401, %v398
  %v480 = vpack.c.b16 %v405, %v402
  %v481 = vpack.c.b16 %v406, %v403
  %v482 = vpack.c.b16 %v407, %v404
  %v569 = vunpack.c.l.b16 %v115
  %v570 = vunpack.c.l.b16 %v116
  %v571 = vunpack.c.l.b16 %v117
  %v572 = vunpack.c.l.b16 %v118
  %v573 = vunpack.c.l.b16 %v119
  %v574 = vunpack.c.l.b16 %v120
  %v575 = vunpack.c.l.b16 %v121
  %v576 = vunpack.c.l.b16 %v122
  %v577 = vunpack.c.l.b16 %v123
  %v578 = vunpack.c.l.b16 %v124
  %v579 = vunpack.c.l.b16 %v125
  %v580 = vunpack.c.l.b16 %v126
  %v581 = vunpack.c.l.b16 %v127
  %v582 = vunpack.c.l.b16 %v128
  %v583 = vunpack.c.l.b16 %v129
  %v584 = vunpack.c.l.b16 %v130
  %v585 = vunpack.c.l.b16 %v131
  %v586 = vunpack.c.l.b16 %v132
  %v587 = vunpack.c.l.b16 %v133
  %v588 = vunpack.c.l.b16 %v134
  %v589 = vunpack.c.l.b16 %v135
  %v590 = vunpack.c.l.b16 %v136
  %v591 = vunpack.c.l.b16 %v137
  %v592 = vunpack.c.l.b16 %v138
  %v593 = vunpack.c.l.b16 %v139
  %v594 = vunpack.c.l.b16 %v140
  %v595 = vunpack.c.l.b16 %v141
  %v596 = vunpack.c.l.b16 %v142
  %v597 = vunpack.c.l.b16 %v143
  %v598 = vunpack.c.l.b16 %v144
  %v599 = vunpack.c.l.b16 %v145
  %v600 = vunpack.c.l.b16 %v146
  %v601 = vunpack.c.l.b16 %v147
  %v602 = vunpack.c.l.b16 %v148
  %v603 = vunpack.c.l.b16 %v149
  %v604 = vunpack.c.l.b16 %v150
  %v605 = vpack.c.b16 %v570, %v569
  %v606 = vpack.c.b16 %v572, %v571
  %v607 = vpack.c.b16 %v574, %v573
  %v608 = vpack.c.b16 %v576, %v575
  %v609 = vpack.c.b16 %v578, %v577
  %v610 = vpack.c.b16 %v580, %v579
  %v611 = vpack.c.b16 %v582, %v581
  %v612 = vpack.c.b16 %v584, %v583
  %v613 = vpack.c.b16 %v586, %v585
  %v614 = vpack.c.b16 %v588, %v587
  %v615 = vpack.c.b16 %v590, %v589
  %v616 = vpack.c.b16 %v592, %v591
  %v617 = vpack.c.b16 %v594, %v593
  %v618 = vpack.c.b16 %v596, %v595
  %v619 = vpack.c.b16 %v598, %v597
  %v620 = vpack.c.b16 %v600, %v599
  %v621 = vpack.c.b16 %v602, %v601
  %v622 = vpack.c.b16 %v604, %v603
  %vm641 = vcmask 261120
  %v643 = vsel %vm641, %v410, 0
  %v646 = vsel %vm641, %v413, 0
  %v649 = vsel %vm641, %v416, 0
  %v652 = vsel %vm641, %v419, 0
  %v655 = vsel %vm641, %v422, 0
  %v658 = vsel %vm641, %v425, 0
  %v661 = vsel %vm641, %v428, 0
  %v664 = vsel %vm641, %v431, 0
  %v667 = vsel %vm641, %v434, 0
  %v670 = vsel %vm641, %v437, 0
  %v673 = vsel %vm641, %v440, 0
  %v676 = vsel %vm641, %v443, 0
  %v679 = vsel %vm641, %v446, 0
  %v682 = vsel %vm641, %v449, 0
  %v685 = vsel %vm641, %v452, 0
  %v688 = vsel %vm641, %v455, 0
  %v691 = vsel %vm641, %v458, 0
  %v694 = vsel %vm641, %v461, 0
  %v697 = vsel %vm641, %v464, 0
  %v700 = vsel %vm641, %v467, 0
  %v703 = vsel %vm641, %v470, 0
  %v706 = vsel %vm641, %v473, 0
  %v709 = vsel %vm641, %v476, 0
  %v712 = vsel %vm641, %v479, 0
  %v715 = vsel %vm641, %v482, 0
  %717 = vmatprep.subr.bf16.mxu0 0
  %718 = vmatpush1.bf16.msra.mxu0 %v612
  %719 = vmatprep.subr.bf16.mxu0 0
  %720 = vmatpush1.bf16.msra.mxu0 %v611
  %721 = vmatprep.subr.bf16.mxu0 0
  %722 = vmatpush1.bf16.msra.mxu0 %v610
  %723 = vmatprep.subr.bf16.mxu0 0
  %724 = vmatpush1.bf16.msra.mxu0 %v609
  %725 = vmatprep.subr.bf16.mxu0 0
  %726 = vmatpush1.bf16.msra.mxu0 %v608
  %727 = vmatprep.subr.bf16.mxu0 0
  %728 = vmatpush1.bf16.msra.mxu0 %v607
  %729 = vmatprep.subr.bf16.mxu0 0
  %730 = vmatpush1.bf16.msra.mxu0 %v606
  %731 = vmatprep.subr.bf16.mxu0 0
  %732 = vmatpush1.bf16.msra.mxu0 %v605
  %733 = vmatprep.subr.bf16.mxu0 0
  %734 = vmatpush2.bf16.msra.mxu0 %v620
  %735 = vmatprep.subr.bf16.mxu0 0
  %736 = vmatpush2.bf16.msra.mxu0 %v619
  %737 = vmatprep.subr.bf16.mxu0 0
  %738 = vmatpush2.bf16.msra.mxu0 %v618
  %739 = vmatprep.subr.bf16.mxu0 0
  %740 = vmatpush2.bf16.msra.mxu0 %v617
  %741 = vmatprep.subr.bf16.mxu0 0
  %742 = vmatpush2.bf16.msra.mxu0 %v616
  %743 = vmatprep.subr.bf16.mxu0 0
  %744 = vmatpush2.bf16.msra.mxu0 %v615
  %745 = vmatprep.subr.bf16.mxu0 0
  %746 = vmatpush2.bf16.msra.mxu0 %v614
  %747 = vmatprep.subr.bf16.mxu0 0
  %748 = vmatpush2.bf16.msra.mxu0 %v613
  %749 = vmatprep.mubr.bf16.mxu0 %v409
  %750 = vmatmul.mubr.bf16.gmra.mxu0 %v408
  %v751 = vpop.f32.mrf.mxu0
  %v752 = vadd.f32 %v156, %v751
  %v753 = vpop.f32.mrf.mxu0
  %v754 = vpop.f32.mrf.mxu0
  %v755 = vadd.f32 %v156, %v754
  %v756 = vpop.f32.mrf.mxu0
  %757 = vmatprep.mubr.bf16.mxu0 %v412
  %758 = vmatmul.mubr.bf16.gmra.mxu0 %v411
  %v759 = vpop.f32.mrf.mxu0
  %v760 = vadd.f32 %v156, %v759
  %v761 = vpop.f32.mrf.mxu0
  %v762 = vpop.f32.mrf.mxu0
  %v763 = vadd.f32 %v156, %v762
  %v764 = vpop.f32.mrf.mxu0
  %765 = vmatprep.mubr.bf16.mxu0 %v415
  %766 = vmatmul.mubr.bf16.gmra.mxu0 %v414
  %v767 = vpop.f32.mrf.mxu0
  %v768 = vadd.f32 %v156, %v767
  %v769 = vpop.f32.mrf.mxu0
  %v770 = vpop.f32.mrf.mxu0
  %v771 = vadd.f32 %v156, %v770
  %v772 = vpop.f32.mrf.mxu0
  %773 = vmatprep.mubr.bf16.mxu0 %v418
  %774 = vmatmul.mubr.bf16.gmra.mxu0 %v417
  %v775 = vpop.f32.mrf.mxu0
  %v776 = vadd.f32 %v156, %v775
  %v777 = vpop.f32.mrf.mxu0
  %v778 = vpop.f32.mrf.mxu0
  %v779 = vadd.f32 %v156, %v778
  %v780 = vpop.f32.mrf.mxu0
  %781 = vmatprep.mubr.bf16.mxu0 %v421
  %782 = vmatmul.mubr.bf16.gmra.mxu0 %v420
  %v783 = vpop.f32.mrf.mxu0
  %v784 = vadd.f32 %v156, %v783
  %v785 = vpop.f32.mrf.mxu0
  %v786 = vpop.f32.mrf.mxu0
  %v787 = vadd.f32 %v156, %v786
  %v788 = vpop.f32.mrf.mxu0
  %789 = vmatprep.mubr.bf16.mxu0 %v424
  %790 = vmatmul.mubr.bf16.gmra.mxu0 %v423
  %v791 = vpop.f32.mrf.mxu0
  %v792 = vadd.f32 %v156, %v791
  %v793 = vpop.f32.mrf.mxu0
  %v794 = vpop.f32.mrf.mxu0
  %v795 = vadd.f32 %v156, %v794
  %v796 = vpop.f32.mrf.mxu0
  %797 = vmatprep.mubr.bf16.mxu0 %v427
  %798 = vmatmul.mubr.bf16.gmra.mxu0 %v426
  %v799 = vpop.f32.mrf.mxu0
  %v800 = vadd.f32 %v156, %v799
  %v801 = vpop.f32.mrf.mxu0
  %v802 = vpop.f32.mrf.mxu0
  %v803 = vadd.f32 %v156, %v802
  %v804 = vpop.f32.mrf.mxu0
  %805 = vmatprep.mubr.bf16.mxu0 %v430
  %806 = vmatmul.mubr.bf16.gmra.mxu0 %v429
  %v807 = vpop.f32.mrf.mxu0
  %v808 = vadd.f32 %v156, %v807
  %v809 = vpop.f32.mrf.mxu0
  %v810 = vpop.f32.mrf.mxu0
  %v811 = vadd.f32 %v156, %v810
  %v812 = vpop.f32.mrf.mxu0
  %813 = vmatprep.mubr.bf16.mxu0 %v433
  %814 = vmatmul.mubr.bf16.gmra.mxu0 %v432
  %v815 = vpop.f32.mrf.mxu0
  %v816 = vadd.f32 %v156, %v815
  %v817 = vpop.f32.mrf.mxu0
  %v818 = vpop.f32.mrf.mxu0
  %v819 = vadd.f32 %v156, %v818
  %v820 = vpop.f32.mrf.mxu0
  %821 = vmatprep.mubr.bf16.mxu0 %v436
  %822 = vmatmul.mubr.bf16.gmra.mxu0 %v435
  %v823 = vpop.f32.mrf.mxu0
  %v824 = vadd.f32 %v156, %v823
  %v825 = vpop.f32.mrf.mxu0
  %v826 = vpop.f32.mrf.mxu0
  %v827 = vadd.f32 %v156, %v826
  %v828 = vpop.f32.mrf.mxu0
  %829 = vmatprep.mubr.bf16.mxu0 %v439
  %830 = vmatmul.mubr.bf16.gmra.mxu0 %v438
  %v831 = vpop.f32.mrf.mxu0
  %v832 = vadd.f32 %v156, %v831
  %v833 = vpop.f32.mrf.mxu0
  %v834 = vpop.f32.mrf.mxu0
  %v835 = vadd.f32 %v156, %v834
  %v836 = vpop.f32.mrf.mxu0
  %837 = vmatprep.mubr.bf16.mxu0 %v442
  %838 = vmatmul.mubr.bf16.gmra.mxu0 %v441
  %v839 = vpop.f32.mrf.mxu0
  %v840 = vadd.f32 %v156, %v839
  %v841 = vpop.f32.mrf.mxu0
  %v842 = vpop.f32.mrf.mxu0
  %v843 = vadd.f32 %v156, %v842
  %v844 = vpop.f32.mrf.mxu0
  %845 = vmatprep.mubr.bf16.mxu0 %v445
  %846 = vmatmul.mubr.bf16.gmra.mxu0 %v444
  %v847 = vpop.f32.mrf.mxu0
  %v848 = vadd.f32 %v156, %v847
  %v849 = vpop.f32.mrf.mxu0
  %v850 = vpop.f32.mrf.mxu0
  %v851 = vadd.f32 %v156, %v850
  %v852 = vpop.f32.mrf.mxu0
  %853 = vmatprep.mubr.bf16.mxu0 %v448
  %854 = vmatmul.mubr.bf16.gmra.mxu0 %v447
  %v855 = vpop.f32.mrf.mxu0
  %v856 = vadd.f32 %v156, %v855
  %v857 = vpop.f32.mrf.mxu0
  %v858 = vpop.f32.mrf.mxu0
  %v859 = vadd.f32 %v156, %v858
  %v860 = vpop.f32.mrf.mxu0
  %861 = vmatprep.mubr.bf16.mxu0 %v451
  %862 = vmatmul.mubr.bf16.gmra.mxu0 %v450
  %v863 = vpop.f32.mrf.mxu0
  %v864 = vadd.f32 %v156, %v863
  %v865 = vpop.f32.mrf.mxu0
  %v866 = vpop.f32.mrf.mxu0
  %v867 = vadd.f32 %v156, %v866
  %v868 = vpop.f32.mrf.mxu0
  %869 = vmatprep.mubr.bf16.mxu0 %v454
  %870 = vmatmul.mubr.bf16.gmra.mxu0 %v453
  %v871 = vpop.f32.mrf.mxu0
  %v872 = vadd.f32 %v156, %v871
  %v873 = vpop.f32.mrf.mxu0
  %v874 = vpop.f32.mrf.mxu0
  %v875 = vadd.f32 %v156, %v874
  %v876 = vpop.f32.mrf.mxu0
  %877 = vmatprep.mubr.bf16.mxu0 %v457
  %878 = vmatmul.mubr.bf16.gmra.mxu0 %v456
  %v879 = vpop.f32.mrf.mxu0
  %v880 = vadd.f32 %v156, %v879
  %v881 = vpop.f32.mrf.mxu0
  %v882 = vpop.f32.mrf.mxu0
  %v883 = vadd.f32 %v156, %v882
  %v884 = vpop.f32.mrf.mxu0
  %885 = vmatprep.mubr.bf16.mxu0 %v460
  %886 = vmatmul.mubr.bf16.gmra.mxu0 %v459
  %v887 = vpop.f32.mrf.mxu0
  %v888 = vadd.f32 %v156, %v887
  %v889 = vpop.f32.mrf.mxu0
  %v890 = vpop.f32.mrf.mxu0
  %v891 = vadd.f32 %v156, %v890
  %v892 = vpop.f32.mrf.mxu0
  %893 = vmatprep.mubr.bf16.mxu0 %v463
  %894 = vmatmul.mubr.bf16.gmra.mxu0 %v462
  %v895 = vpop.f32.mrf.mxu0
  %v896 = vadd.f32 %v156, %v895
  %v897 = vpop.f32.mrf.mxu0
  %v898 = vpop.f32.mrf.mxu0
  %v899 = vadd.f32 %v156, %v898
  %v900 = vpop.f32.mrf.mxu0
  %901 = vmatprep.mubr.bf16.mxu0 %v466
  %902 = vmatmul.mubr.bf16.gmra.mxu0 %v465
  %v903 = vpop.f32.mrf.mxu0
  %v904 = vadd.f32 %v156, %v903
  %v905 = vpop.f32.mrf.mxu0
  %v906 = vpop.f32.mrf.mxu0
  %v907 = vadd.f32 %v156, %v906
  %v908 = vpop.f32.mrf.mxu0
  %909 = vmatprep.mubr.bf16.mxu0 %v469
  %910 = vmatmul.mubr.bf16.gmra.mxu0 %v468
  %v911 = vpop.f32.mrf.mxu0
  %v912 = vadd.f32 %v156, %v911
  %v913 = vpop.f32.mrf.mxu0
  %v914 = vpop.f32.mrf.mxu0
  %v915 = vadd.f32 %v156, %v914
  %v916 = vpop.f32.mrf.mxu0
  %917 = vmatprep.mubr.bf16.mxu0 %v472
  %918 = vmatmul.mubr.bf16.gmra.mxu0 %v471
  %v919 = vpop.f32.mrf.mxu0
  %v920 = vadd.f32 %v156, %v919
  %v921 = vpop.f32.mrf.mxu0
  %v922 = vpop.f32.mrf.mxu0
  %v923 = vadd.f32 %v156, %v922
  %v924 = vpop.f32.mrf.mxu0
  %925 = vmatprep.mubr.bf16.mxu0 %v475
  %926 = vmatmul.mubr.bf16.gmra.mxu0 %v474
  %v927 = vpop.f32.mrf.mxu0
  %v928 = vadd.f32 %v156, %v927
  %v929 = vpop.f32.mrf.mxu0
  %v930 = vpop.f32.mrf.mxu0
  %v931 = vadd.f32 %v156, %v930
  %v932 = vpop.f32.mrf.mxu0
  %933 = vmatprep.mubr.bf16.mxu0 %v478
  %934 = vmatmul.mubr.bf16.gmra.mxu0 %v477
  %v935 = vpop.f32.mrf.mxu0
  %v936 = vadd.f32 %v156, %v935
  %v937 = vpop.f32.mrf.mxu0
  %v938 = vpop.f32.mrf.mxu0
  %v939 = vadd.f32 %v156, %v938
  %v940 = vpop.f32.mrf.mxu0
  %941 = vmatprep.mubr.bf16.mxu0 %v481
  %942 = vmatmul.mubr.bf16.gmra.mxu0 %v480
  %v943 = vpop.f32.mrf.mxu0
  %v944 = vadd.f32 %v156, %v943
  %v945 = vpop.f32.mrf.mxu0
  %v946 = vpop.f32.mrf.mxu0
  %v947 = vadd.f32 %v156, %v946
  %v948 = vpop.f32.mrf.mxu0
  %949 = vdwg.mxu0
  %950 = vmatprep.subr.bf16.mxu0 0
  %951 = vmatpush1.bf16.msra.mxu0 0
  %952 = vmatprep.subr.bf16.mxu0 0
  %953 = vmatpush1.bf16.msra.mxu0 0
  %954 = vmatprep.subr.bf16.mxu0 0
  %955 = vmatpush1.bf16.msra.mxu0 0
  %956 = vmatprep.subr.bf16.mxu0 0
  %957 = vmatpush1.bf16.msra.mxu0 0
  %958 = vmatprep.subr.bf16.mxu0 0
  %959 = vmatpush1.bf16.msra.mxu0 0
  %960 = vmatprep.subr.bf16.mxu0 0
  %961 = vmatpush1.bf16.msra.mxu0 0
  %962 = vmatprep.subr.bf16.mxu0 0
  %963 = vmatpush1.bf16.msra.mxu0 %v622
  %964 = vmatprep.subr.bf16.mxu0 0
  %965 = vmatpush1.bf16.msra.mxu0 %v621
  %966 = vmatprep.subr.bf16.mxu0 0
  %967 = vmatpush2.bf16.msra.mxu0 0
  %968 = vmatprep.subr.bf16.mxu0 0
  %969 = vmatpush2.bf16.msra.mxu0 0
  %970 = vmatprep.subr.bf16.mxu0 0
  %971 = vmatpush2.bf16.msra.mxu0 0
  %972 = vmatprep.subr.bf16.mxu0 0
  %973 = vmatpush2.bf16.msra.mxu0 0
  %974 = vmatprep.subr.bf16.mxu0 0
  %975 = vmatpush2.bf16.msra.mxu0 0
  %976 = vmatprep.subr.bf16.mxu0 0
  %977 = vmatpush2.bf16.msra.mxu0 0
  %978 = vmatprep.subr.bf16.mxu0 0
  %979 = vmatpush2.bf16.msra.mxu0 0
  %980 = vmatprep.subr.bf16.mxu0 0
  %981 = vmatpush2.bf16.msra.mxu0 0
  %982 = vmatprep.mubr.bf16.mxu0 0
  %983 = vmatmul.mubr.bf16.gmra.mxu0 %v643
  %v984 = vpop.f32.mrf.mxu0
  %v985 = vadd.f32 %v752, %v984
  %v986 = vpop.f32.mrf.mxu0
  %v987 = vpop.f32.mrf.mxu0
  %v988 = vadd.f32 %v755, %v987
  %v989 = vpop.f32.mrf.mxu0
  %990 = vmatprep.mubr.bf16.mxu0 0
  %991 = vmatmul.mubr.bf16.gmra.mxu0 %v646
  %v992 = vpop.f32.mrf.mxu0
  %v993 = vadd.f32 %v760, %v992
  %v994 = vpop.f32.mrf.mxu0
  %v995 = vpop.f32.mrf.mxu0
  %v996 = vadd.f32 %v763, %v995
  %v997 = vpop.f32.mrf.mxu0
  %998 = vmatprep.mubr.bf16.mxu0 0
  %999 = vmatmul.mubr.bf16.gmra.mxu0 %v649
  %v1000 = vpop.f32.mrf.mxu0
  %v1001 = vadd.f32 %v768, %v1000
  %v1002 = vpop.f32.mrf.mxu0
  %v1003 = vpop.f32.mrf.mxu0
  %v1004 = vadd.f32 %v771, %v1003
  %v1005 = vpop.f32.mrf.mxu0
  %1006 = vmatprep.mubr.bf16.mxu0 0
  %1007 = vmatmul.mubr.bf16.gmra.mxu0 %v652
  %v1008 = vpop.f32.mrf.mxu0
  %v1009 = vadd.f32 %v776, %v1008
  %v1010 = vpop.f32.mrf.mxu0
  %v1011 = vpop.f32.mrf.mxu0
  %v1012 = vadd.f32 %v779, %v1011
  %v1013 = vpop.f32.mrf.mxu0
  %1014 = vmatprep.mubr.bf16.mxu0 0
  %1015 = vmatmul.mubr.bf16.gmra.mxu0 %v655
  %v1016 = vpop.f32.mrf.mxu0
  %v1017 = vadd.f32 %v784, %v1016
  %v1018 = vpop.f32.mrf.mxu0
  %v1019 = vpop.f32.mrf.mxu0
  %v1020 = vadd.f32 %v787, %v1019
  %v1021 = vpop.f32.mrf.mxu0
  %1022 = vmatprep.mubr.bf16.mxu0 0
  %1023 = vmatmul.mubr.bf16.gmra.mxu0 %v658
  %v1024 = vpop.f32.mrf.mxu0
  %v1025 = vadd.f32 %v792, %v1024
  %v1026 = vpop.f32.mrf.mxu0
  %v1027 = vpop.f32.mrf.mxu0
  %v1028 = vadd.f32 %v795, %v1027
  %v1029 = vpop.f32.mrf.mxu0
  %1030 = vmatprep.mubr.bf16.mxu0 0
  %1031 = vmatmul.mubr.bf16.gmra.mxu0 %v661
  %v1032 = vpop.f32.mrf.mxu0
  %v1033 = vadd.f32 %v800, %v1032
  %v1034 = vpop.f32.mrf.mxu0
  %v1035 = vpop.f32.mrf.mxu0
  %v1036 = vadd.f32 %v803, %v1035
  %v1037 = vpop.f32.mrf.mxu0
  %1038 = vmatprep.mubr.bf16.mxu0 0
  %1039 = vmatmul.mubr.bf16.gmra.mxu0 %v664
  %v1040 = vpop.f32.mrf.mxu0
  %v1041 = vadd.f32 %v808, %v1040
  %v1042 = vpop.f32.mrf.mxu0
  %v1043 = vpop.f32.mrf.mxu0
  %v1044 = vadd.f32 %v811, %v1043
  %v1045 = vpop.f32.mrf.mxu0
  %1046 = vmatprep.mubr.bf16.mxu0 0
  %1047 = vmatmul.mubr.bf16.gmra.mxu0 %v667
  %v1048 = vpop.f32.mrf.mxu0
  %v1049 = vadd.f32 %v816, %v1048
  %v1050 = vpop.f32.mrf.mxu0
  %v1051 = vpop.f32.mrf.mxu0
  %v1052 = vadd.f32 %v819, %v1051
  %v1053 = vpop.f32.mrf.mxu0
  %1054 = vmatprep.mubr.bf16.mxu0 0
  %1055 = vmatmul.mubr.bf16.gmra.mxu0 %v670
  %v1056 = vpop.f32.mrf.mxu0
  %v1057 = vadd.f32 %v824, %v1056
  %v1058 = vpop.f32.mrf.mxu0
  %v1059 = vpop.f32.mrf.mxu0
  %v1060 = vadd.f32 %v827, %v1059
  %v1061 = vpop.f32.mrf.mxu0
  %1062 = vmatprep.mubr.bf16.mxu0 0
  %1063 = vmatmul.mubr.bf16.gmra.mxu0 %v673
  %v1064 = vpop.f32.mrf.mxu0
  %v1065 = vadd.f32 %v832, %v1064
  %v1066 = vpop.f32.mrf.mxu0
  %v1067 = vpop.f32.mrf.mxu0
  %v1068 = vadd.f32 %v835, %v1067
  %v1069 = vpop.f32.mrf.mxu0
  %1070 = vmatprep.mubr.bf16.mxu0 0
  %1071 = vmatmul.mubr.bf16.gmra.mxu0 %v676
  %v1072 = vpop.f32.mrf.mxu0
  %v1073 = vadd.f32 %v840, %v1072
  %v1074 = vpop.f32.mrf.mxu0
  %v1075 = vpop.f32.mrf.mxu0
  %v1076 = vadd.f32 %v843, %v1075
  %v1077 = vpop.f32.mrf.mxu0
  %1078 = vmatprep.mubr.bf16.mxu0 0
  %1079 = vmatmul.mubr.bf16.gmra.mxu0 %v679
  %v1080 = vpop.f32.mrf.mxu0
  %v1081 = vadd.f32 %v848, %v1080
  %v1082 = vpop.f32.mrf.mxu0
  %v1083 = vpop.f32.mrf.mxu0
  %v1084 = vadd.f32 %v851, %v1083
  %v1085 = vpop.f32.mrf.mxu0
  %1086 = vmatprep.mubr.bf16.mxu0 0
  %1087 = vmatmul.mubr.bf16.gmra.mxu0 %v682
  %v1088 = vpop.f32.mrf.mxu0
  %v1089 = vadd.f32 %v856, %v1088
  %v1090 = vpop.f32.mrf.mxu0
  %v1091 = vpop.f32.mrf.mxu0
  %v1092 = vadd.f32 %v859, %v1091
  %v1093 = vpop.f32.mrf.mxu0
  %1094 = vmatprep.mubr.bf16.mxu0 0
  %1095 = vmatmul.mubr.bf16.gmra.mxu0 %v685
  %v1096 = vpop.f32.mrf.mxu0
  %v1097 = vadd.f32 %v864, %v1096
  %v1098 = vpop.f32.mrf.mxu0
  %v1099 = vpop.f32.mrf.mxu0
  %v1100 = vadd.f32 %v867, %v1099
  %v1101 = vpop.f32.mrf.mxu0
  %1102 = vmatprep.mubr.bf16.mxu0 0
  %1103 = vmatmul.mubr.bf16.gmra.mxu0 %v688
  %v1104 = vpop.f32.mrf.mxu0
  %v1105 = vadd.f32 %v872, %v1104
  %v1106 = vpop.f32.mrf.mxu0
  %v1107 = vpop.f32.mrf.mxu0
  %v1108 = vadd.f32 %v875, %v1107
  %v1109 = vpop.f32.mrf.mxu0
  %1110 = vmatprep.mubr.bf16.mxu0 0
  %1111 = vmatmul.mubr.bf16.gmra.mxu0 %v691
  %v1112 = vpop.f32.mrf.mxu0
  %v1113 = vadd.f32 %v880, %v1112
  %v1114 = vpop.f32.mrf.mxu0
  %v1115 = vpop.f32.mrf.mxu0
  %v1116 = vadd.f32 %v883, %v1115
  %v1117 = vpop.f32.mrf.mxu0
  %1118 = vmatprep.mubr.bf16.mxu0 0
  %1119 = vmatmul.mubr.bf16.gmra.mxu0 %v694
  %v1120 = vpop.f32.mrf.mxu0
  %v1121 = vadd.f32 %v888, %v1120
  %v1122 = vpop.f32.mrf.mxu0
  %v1123 = vpop.f32.mrf.mxu0
  %v1124 = vadd.f32 %v891, %v1123
  %v1125 = vpop.f32.mrf.mxu0
  %1126 = vmatprep.mubr.bf16.mxu0 0
  %1127 = vmatmul.mubr.bf16.gmra.mxu0 %v697
  %v1128 = vpop.f32.mrf.mxu0
  %v1129 = vadd.f32 %v896, %v1128
  %v1130 = vpop.f32.mrf.mxu0
  %v1131 = vpop.f32.mrf.mxu0
  %v1132 = vadd.f32 %v899, %v1131
  %v1133 = vpop.f32.mrf.mxu0
  %1134 = vmatprep.mubr.bf16.mxu0 0
  %1135 = vmatmul.mubr.bf16.gmra.mxu0 %v700
  %v1136 = vpop.f32.mrf.mxu0
  %v1137 = vadd.f32 %v904, %v1136
  %v1138 = vpop.f32.mrf.mxu0
  %v1139 = vpop.f32.mrf.mxu0
  %v1140 = vadd.f32 %v907, %v1139
  %v1141 = vpop.f32.mrf.mxu0
  %1142 = vmatprep.mubr.bf16.mxu0 0
  %1143 = vmatmul.mubr.bf16.gmra.mxu0 %v703
  %v1144 = vpop.f32.mrf.mxu0
  %v1145 = vadd.f32 %v912, %v1144
  %v1146 = vpop.f32.mrf.mxu0
  %v1147 = vpop.f32.mrf.mxu0
  %v1148 = vadd.f32 %v915, %v1147
  %v1149 = vpop.f32.mrf.mxu0
  %1150 = vmatprep.mubr.bf16.mxu0 0
  %1151 = vmatmul.mubr.bf16.gmra.mxu0 %v706
  %v1152 = vpop.f32.mrf.mxu0
  %v1153 = vadd.f32 %v920, %v1152
  %v1154 = vpop.f32.mrf.mxu0
  %v1155 = vpop.f32.mrf.mxu0
  %v1156 = vadd.f32 %v923, %v1155
  %v1157 = vpop.f32.mrf.mxu0
  %1158 = vmatprep.mubr.bf16.mxu0 0
  %1159 = vmatmul.mubr.bf16.gmra.mxu0 %v709
  %v1160 = vpop.f32.mrf.mxu0
  %v1161 = vadd.f32 %v928, %v1160
  %v1162 = vpop.f32.mrf.mxu0
  %v1163 = vpop.f32.mrf.mxu0
  %v1164 = vadd.f32 %v931, %v1163
  %v1165 = vpop.f32.mrf.mxu0
  %1166 = vmatprep.mubr.bf16.mxu0 0
  %1167 = vmatmul.mubr.bf16.gmra.mxu0 %v712
  %v1168 = vpop.f32.mrf.mxu0
  %v1169 = vadd.f32 %v936, %v1168
  %v1170 = vpop.f32.mrf.mxu0
  %v1171 = vpop.f32.mrf.mxu0
  %v1172 = vadd.f32 %v939, %v1171
  %v1173 = vpop.f32.mrf.mxu0
  %1174 = vmatprep.mubr.bf16.mxu0 0
  %1175 = vmatmul.mubr.bf16.gmra.mxu0 %v715
  %v1176 = vpop.f32.mrf.mxu0
  %v1177 = vadd.f32 %v944, %v1176
  %v1178 = vpop.f32.mrf.mxu0
  %v1179 = vpop.f32.mrf.mxu0
  %v1180 = vadd.f32 %v947, %v1179
  %v1181 = vpop.f32.mrf.mxu0
  %1182 = vdwg.mxu0
  %vm1183 = vcmp.gt.f32.partialorder %v985, 0.0
  %vm1184 = vcmp.gt.f32.partialorder %v988, 0.0
  %vm1185 = vcmp.gt.f32.partialorder %v993, 0.0
  %vm1186 = vcmp.gt.f32.partialorder %v996, 0.0
  %vm1187 = vcmp.gt.f32.partialorder %v1001, 0.0
  %vm1188 = vcmp.gt.f32.partialorder %v1004, 0.0
  %vm1189 = vcmp.gt.f32.partialorder %v1009, 0.0
  %vm1190 = vcmp.gt.f32.partialorder %v1012, 0.0
  %vm1191 = vcmp.gt.f32.partialorder %v1017, 0.0
  %vm1192 = vcmp.gt.f32.partialorder %v1020, 0.0
  %vm1193 = vcmp.gt.f32.partialorder %v1025, 0.0
  %vm1194 = vcmp.gt.f32.partialorder %v1028, 0.0
  %vm1195 = vcmp.gt.f32.partialorder %v1033, 0.0
  %vm1196 = vcmp.gt.f32.partialorder %v1036, 0.0
  %vm1197 = vcmp.gt.f32.partialorder %v1041, 0.0
  %vm1198 = vcmp.gt.f32.partialorder %v1044, 0.0
  %vm1199 = vcmp.gt.f32.partialorder %v1049, 0.0
  %vm1200 = vcmp.gt.f32.partialorder %v1052, 0.0
  %vm1201 = vcmp.gt.f32.partialorder %v1057, 0.0
  %vm1202 = vcmp.gt.f32.partialorder %v1060, 0.0
  %vm1203 = vcmp.gt.f32.partialorder %v1065, 0.0
  %vm1204 = vcmp.gt.f32.partialorder %v1068, 0.0
  %vm1205 = vcmp.gt.f32.partialorder %v1073, 0.0
  %vm1206 = vcmp.gt.f32.partialorder %v1076, 0.0
  %vm1207 = vcmp.gt.f32.partialorder %v1081, 0.0
  %vm1208 = vcmp.gt.f32.partialorder %v1084, 0.0
  %vm1209 = vcmp.gt.f32.partialorder %v1089, 0.0
  %vm1210 = vcmp.gt.f32.partialorder %v1092, 0.0
  %vm1211 = vcmp.gt.f32.partialorder %v1097, 0.0
  %vm1212 = vcmp.gt.f32.partialorder %v1100, 0.0
  %vm1213 = vcmp.gt.f32.partialorder %v1105, 0.0
  %vm1214 = vcmp.gt.f32.partialorder %v1108, 0.0
  %vm1215 = vcmp.gt.f32.partialorder %v1113, 0.0
  %vm1216 = vcmp.gt.f32.partialorder %v1116, 0.0
  %vm1217 = vcmp.gt.f32.partialorder %v1121, 0.0
  %vm1218 = vcmp.gt.f32.partialorder %v1124, 0.0
  %vm1219 = vcmp.gt.f32.partialorder %v1129, 0.0
  %vm1220 = vcmp.gt.f32.partialorder %v1132, 0.0
  %vm1221 = vcmp.gt.f32.partialorder %v1137, 0.0
  %vm1222 = vcmp.gt.f32.partialorder %v1140, 0.0
  %vm1223 = vcmp.gt.f32.partialorder %v1145, 0.0
  %vm1224 = vcmp.gt.f32.partialorder %v1148, 0.0
  %vm1225 = vcmp.gt.f32.partialorder %v1153, 0.0
  %vm1226 = vcmp.gt.f32.partialorder %v1156, 0.0
  %vm1227 = vcmp.gt.f32.partialorder %v1161, 0.0
  %vm1228 = vcmp.gt.f32.partialorder %v1164, 0.0
  %vm1229 = vcmp.gt.f32.partialorder %v1169, 0.0
  %vm1230 = vcmp.gt.f32.partialorder %v1172, 0.0
  %vm1231 = vcmp.gt.f32.partialorder %v1177, 0.0
  %vm1232 = vcmp.gt.f32.partialorder %v1180, 0.0
  %v1233 = vmul.f32 %v985, 0.2
  %v1234 = vmul.f32 %v988, 0.2
  %v1235 = vmul.f32 %v993, 0.2
  %v1236 = vmul.f32 %v996, 0.2
  %v1237 = vmul.f32 %v1001, 0.2
  %v1238 = vmul.f32 %v1004, 0.2
  %v1239 = vmul.f32 %v1009, 0.2
  %v1240 = vmul.f32 %v1012, 0.2
  %v1241 = vmul.f32 %v1017, 0.2
  %v1242 = vmul.f32 %v1020, 0.2
  %v1243 = vmul.f32 %v1025, 0.2
  %v1244 = vmul.f32 %v1028, 0.2
  %v1245 = vmul.f32 %v1033, 0.2
  %v1246 = vmul.f32 %v1036, 0.2
  %v1247 = vmul.f32 %v1041, 0.2
  %v1248 = vmul.f32 %v1044, 0.2
  %v1249 = vmul.f32 %v1049, 0.2
  %v1250 = vmul.f32 %v1052, 0.2
  %v1251 = vmul.f32 %v1057, 0.2
  %v1252 = vmul.f32 %v1060, 0.2
  %v1253 = vmul.f32 %v1065, 0.2
  %v1254 = vmul.f32 %v1068, 0.2
  %v1255 = vmul.f32 %v1073, 0.2
  %v1256 = vmul.f32 %v1076, 0.2
  %v1257 = vmul.f32 %v1081, 0.2
  %v1258 = vmul.f32 %v1084, 0.2
  %v1259 = vmul.f32 %v1089, 0.2
  %v1260 = vmul.f32 %v1092, 0.2
  %v1261 = vmul.f32 %v1097, 0.2
  %v1262 = vmul.f32 %v1100, 0.2
  %v1263 = vmul.f32 %v1105, 0.2
  %v1264 = vmul.f32 %v1108, 0.2
  %v1265 = vmul.f32 %v1113, 0.2
  %v1266 = vmul.f32 %v1116, 0.2
  %v1267 = vmul.f32 %v1121, 0.2
  %v1268 = vmul.f32 %v1124, 0.2
  %v1269 = vmul.f32 %v1129, 0.2
  %v1270 = vmul.f32 %v1132, 0.2
  %v1271 = vmul.f32 %v1137, 0.2
  %v1272 = vmul.f32 %v1140, 0.2
  %v1273 = vmul.f32 %v1145, 0.2
  %v1274 = vmul.f32 %v1148, 0.2
  %v1275 = vmul.f32 %v1153, 0.2
  %v1276 = vmul.f32 %v1156, 0.2
  %v1277 = vmul.f32 %v1161, 0.2
  %v1278 = vmul.f32 %v1164, 0.2
  %v1279 = vmul.f32 %v1169, 0.2
  %v1280 = vmul.f32 %v1172, 0.2
  %v1281 = vmul.f32 %v1177, 0.2
  %v1282 = vmul.f32 %v1180, 0.2
  %v1283 = vsel %vm1183, %v985, %v1233
  %v1284 = vsel %vm1184, %v988, %v1234
  %v1285 = vsel %vm1185, %v993, %v1235
  %v1286 = vsel %vm1186, %v996, %v1236
  %v1287 = vsel %vm1187, %v1001, %v1237
  %v1288 = vsel %vm1188, %v1004, %v1238
  %v1289 = vsel %vm1189, %v1009, %v1239
  %v1290 = vsel %vm1190, %v1012, %v1240
  %v1291 = vsel %vm1191, %v1017, %v1241
  %v1292 = vsel %vm1192, %v1020, %v1242
  %v1293 = vsel %vm1193, %v1025, %v1243
  %v1294 = vsel %vm1194, %v1028, %v1244
  %v1295 = vsel %vm1195, %v1033, %v1245
  %v1296 = vsel %vm1196, %v1036, %v1246
  %v1297 = vsel %vm1197, %v1041, %v1247
  %v1298 = vsel %vm1198, %v1044, %v1248
  %v1299 = vsel %vm1199, %v1049, %v1249
  %v1300 = vsel %vm1200, %v1052, %v1250
  %v1301 = vsel %vm1201, %v1057, %v1251
  %v1302 = vsel %vm1202, %v1060, %v1252
  %v1303 = vsel %vm1203, %v1065, %v1253
  %v1304 = vsel %vm1204, %v1068, %v1254
  %v1305 = vsel %vm1205, %v1073, %v1255
  %v1306 = vsel %vm1206, %v1076, %v1256
  %v1307 = vsel %vm1207, %v1081, %v1257
  %v1308 = vsel %vm1208, %v1084, %v1258
  %v1309 = vsel %vm1209, %v1089, %v1259
  %v1310 = vsel %vm1210, %v1092, %v1260
  %v1311 = vsel %vm1211, %v1097, %v1261
  %v1312 = vsel %vm1212, %v1100, %v1262
  %v1313 = vsel %vm1213, %v1105, %v1263
  %v1314 = vsel %vm1214, %v1108, %v1264
  %v1315 = vsel %vm1215, %v1113, %v1265
  %v1316 = vsel %vm1216, %v1116, %v1266
  %v1317 = vsel %vm1217, %v1121, %v1267
  %v1318 = vsel %vm1218, %v1124, %v1268
  %v1319 = vsel %vm1219, %v1129, %v1269
  %v1320 = vsel %vm1220, %v1132, %v1270
  %v1321 = vsel %vm1221, %v1137, %v1271
  %v1322 = vsel %vm1222, %v1140, %v1272
  %v1323 = vsel %vm1223, %v1145, %v1273
  %v1324 = vsel %vm1224, %v1148, %v1274
  %v1325 = vsel %vm1225, %v1153, %v1275
  %v1326 = vsel %vm1226, %v1156, %v1276
  %v1327 = vsel %vm1227, %v1161, %v1277
  %v1328 = vsel %vm1228, %v1164, %v1278
  %v1329 = vsel %vm1229, %v1169, %v1279
  %v1330 = vsel %vm1230, %v1172, %v1280
  %v1331 = vsel %vm1231, %v1177, %v1281
  %v1332 = vsel %vm1232, %v1180, %v1282
  %v1333 = vpack.c.bf16 %v1284, %v1283
  %v1334 = vpack.c.bf16 %v1286, %v1285
  %v1335 = vpack.c.bf16 %v1288, %v1287
  %v1336 = vpack.c.bf16 %v1290, %v1289
  %v1337 = vpack.c.bf16 %v1292, %v1291
  %v1338 = vpack.c.bf16 %v1294, %v1293
  %v1339 = vpack.c.bf16 %v1296, %v1295
  %v1340 = vpack.c.bf16 %v1298, %v1297
  %v1341 = vpack.c.bf16 %v1300, %v1299
  %v1342 = vpack.c.bf16 %v1302, %v1301
  %v1343 = vpack.c.bf16 %v1304, %v1303
  %v1344 = vpack.c.bf16 %v1306, %v1305
  %v1345 = vpack.c.bf16 %v1308, %v1307
  %v1346 = vpack.c.bf16 %v1310, %v1309
  %v1347 = vpack.c.bf16 %v1312, %v1311
  %v1348 = vpack.c.bf16 %v1314, %v1313
  %v1349 = vpack.c.bf16 %v1316, %v1315
  %v1350 = vpack.c.bf16 %v1318, %v1317
  %v1351 = vpack.c.bf16 %v1320, %v1319
  %v1352 = vpack.c.bf16 %v1322, %v1321
  %v1353 = vpack.c.bf16 %v1324, %v1323
  %v1354 = vpack.c.bf16 %v1326, %v1325
  %v1355 = vpack.c.bf16 %v1328, %v1327
  %v1356 = vpack.c.bf16 %v1330, %v1329
  %v1357 = vpack.c.bf16 %v1332, %v1331
  %v1383 = vunpack.c.l.b16 %v1333
  %v1384 = vunpack.c.h.b16 %v1333
  %v1385 = vunpack.c.l.b16 %v1334
  %v1386 = vunpack.c.h.b16 %v1334
  %v1387 = vunpack.c.l.b16 %v1335
  %v1388 = vunpack.c.h.b16 %v1335
  %v1389 = vunpack.c.l.b16 %v1336
  %v1390 = vunpack.c.h.b16 %v1336
  %v1391 = vunpack.c.l.b16 %v1337
  %v1392 = vunpack.c.h.b16 %v1337
  %v1393 = vunpack.c.l.b16 %v1338
  %v1394 = vunpack.c.h.b16 %v1338
  %v1395 = vunpack.c.l.b16 %v1339
  %v1396 = vunpack.c.h.b16 %v1339
  %v1397 = vunpack.c.l.b16 %v1340
  %v1398 = vunpack.c.h.b16 %v1340
  %v1399 = vunpack.c.l.b16 %v1341
  %v1400 = vunpack.c.h.b16 %v1341
  %v1401 = vunpack.c.l.b16 %v1342
  %v1402 = vunpack.c.h.b16 %v1342
  %v1403 = vunpack.c.l.b16 %v1343
  %v1404 = vunpack.c.h.b16 %v1343
  %v1405 = vunpack.c.l.b16 %v1344
  %v1406 = vunpack.c.h.b16 %v1344
  %v1407 = vunpack.c.l.b16 %v1345
  %v1408 = vunpack.c.h.b16 %v1345
  %v1409 = vunpack.c.l.b16 %v1346
  %v1410 = vunpack.c.h.b16 %v1346
  %v1411 = vunpack.c.l.b16 %v1347
  %v1412 = vunpack.c.h.b16 %v1347
  %v1413 = vunpack.c.l.b16 %v1348
  %v1414 = vunpack.c.h.b16 %v1348
  %v1415 = vunpack.c.l.b16 %v1349
  %v1416 = vunpack.c.h.b16 %v1349
  %v1417 = vunpack.c.l.b16 %v1350
  %v1418 = vunpack.c.h.b16 %v1350
  %v1419 = vunpack.c.l.b16 %v1351
  %v1420 = vunpack.c.h.b16 %v1351
  %v1421 = vunpack.c.l.b16 %v1352
  %v1422 = vunpack.c.h.b16 %v1352
  %v1423 = vunpack.c.l.b16 %v1353
  %v1424 = vunpack.c.h.b16 %v1353
  %v1425 = vunpack.c.l.b16 %v1354
  %v1426 = vunpack.c.h.b16 %v1354
  %v1427 = vunpack.c.l.b16 %v1355
  %v1428 = vunpack.c.h.b16 %v1355
  %v1429 = vunpack.c.l.b16 %v1356
  %v1430 = vunpack.c.h.b16 %v1356
  %v1431 = vunpack.c.l.b16 %v1357
  %v1432 = vunpack.c.h.b16 %v1357
  %v1433 = vpack.c.b16 %v1383, %v1383
  %v1434 = vpack.c.b16 %v1384, %v1384
  %v1435 = vpack.c.b16 %v1385, %v1385
  %v1436 = vpack.c.b16 %v1386, %v1386
  %v1437 = vpack.c.b16 %v1387, %v1387
  %v1438 = vpack.c.b16 %v1388, %v1388
  %v1439 = vpack.c.b16 %v1389, %v1389
  %v1440 = vpack.c.b16 %v1390, %v1390
  %v1441 = vpack.c.b16 %v1391, %v1391
  %v1442 = vpack.c.b16 %v1392, %v1392
  %v1443 = vpack.c.b16 %v1393, %v1393
  %v1444 = vpack.c.b16 %v1394, %v1394
  %v1445 = vpack.c.b16 %v1395, %v1395
  %v1446 = vpack.c.b16 %v1396, %v1396
  %v1447 = vpack.c.b16 %v1397, %v1397
  %v1448 = vpack.c.b16 %v1398, %v1398
  %v1449 = vpack.c.b16 %v1399, %v1399
  %v1450 = vpack.c.b16 %v1400, %v1400
  %v1451 = vpack.c.b16 %v1401, %v1401
  %v1452 = vpack.c.b16 %v1402, %v1402
  %v1453 = vpack.c.b16 %v1403, %v1403
  %v1454 = vpack.c.b16 %v1404, %v1404
  %v1455 = vpack.c.b16 %v1405, %v1405
  %v1456 = vpack.c.b16 %v1406, %v1406
  %v1457 = vpack.c.b16 %v1407, %v1407
  %v1458 = vpack.c.b16 %v1408, %v1408
  %v1459 = vpack.c.b16 %v1409, %v1409
  %v1460 = vpack.c.b16 %v1410, %v1410
  %v1461 = vpack.c.b16 %v1411, %v1411
  %v1462 = vpack.c.b16 %v1412, %v1412
  %v1463 = vpack.c.b16 %v1413, %v1413
  %v1464 = vpack.c.b16 %v1414, %v1414
  %v1465 = vpack.c.b16 %v1415, %v1415
  %v1466 = vpack.c.b16 %v1416, %v1416
  %v1467 = vpack.c.b16 %v1417, %v1417
  %v1468 = vpack.c.b16 %v1418, %v1418
  %v1469 = vpack.c.b16 %v1419, %v1419
  %v1470 = vpack.c.b16 %v1420, %v1420
  %v1471 = vpack.c.b16 %v1421, %v1421
  %v1472 = vpack.c.b16 %v1422, %v1422
  %v1473 = vpack.c.b16 %v1423, %v1423
  %v1474 = vpack.c.b16 %v1424, %v1424
  %v1475 = vpack.c.b16 %v1425, %v1425
  %v1476 = vpack.c.b16 %v1426, %v1426
  %v1477 = vpack.c.b16 %v1427, %v1427
  %v1478 = vpack.c.b16 %v1428, %v1428
  %v1479 = vpack.c.b16 %v1429, %v1429
  %v1480 = vpack.c.b16 %v1430, %v1430
  %v1481 = vpack.c.b16 %v1431, %v1431
  %v1482 = vpack.c.b16 %v1432, %v1432
  %vm1533 = vcmask 257024
  %1534 = vst.msk [vmem:[%s3] sm:$0xf] %vm1533, %v1433
  %1535 = vst.msk [vmem:[%s3 + $0x4] sm:$0xf] %vm1533, %v1434
  %1536 = vst.msk [vmem:[%s3 + $0x8] sm:$0xf] %vm1533, %v1435
  %1537 = vst.msk [vmem:[%s3 + $0xc] sm:$0xf] %vm1533, %v1436
  %1538 = vst.msk [vmem:[%s3 + $0x10] sm:$0xf] %vm1533, %v1437
  %1539 = vst.msk [vmem:[%s3 + $0x14] sm:$0xf] %vm1533, %v1438
  %1540 = vst.msk [vmem:[%s3 + $0x18] sm:$0xf] %vm1533, %v1439
  %1541 = vst.msk [vmem:[%s3 + $0x1c] sm:$0xf] %vm1533, %v1440
  %1542 = vst.msk [vmem:[%s3 + $0x20] sm:$0xf] %vm1533, %v1441
  %1543 = vst.msk [vmem:[%s3 + $0x24] sm:$0xf] %vm1533, %v1442
  %1544 = vst.msk [vmem:[%s3 + $0x28] sm:$0xf] %vm1533, %v1443
  %1545 = vst.msk [vmem:[%s3 + $0x2c] sm:$0xf] %vm1533, %v1444
  %1546 = vst.msk [vmem:[%s3 + $0x30] sm:$0xf] %vm1533, %v1445
  %1547 = vst.msk [vmem:[%s3 + $0x34] sm:$0xf] %vm1533, %v1446
  %1548 = vst.msk [vmem:[%s3 + $0x38] sm:$0xf] %vm1533, %v1447
  %1549 = vst.msk [vmem:[%s3 + $0x3c] sm:$0xf] %vm1533, %v1448
  %1550 = vst.msk [vmem:[%s3 + $0x40] sm:$0xf] %vm1533, %v1449
  %1551 = vst.msk [vmem:[%s3 + $0x44] sm:$0xf] %vm1533, %v1450
  %1552 = vst.msk [vmem:[%s3 + $0x48] sm:$0xf] %vm1533, %v1451
  %1553 = vst.msk [vmem:[%s3 + $0x4c] sm:$0xf] %vm1533, %v1452
  %1554 = vst.msk [vmem:[%s3 + $0x50] sm:$0xf] %vm1533, %v1453
  %1555 = vst.msk [vmem:[%s3 + $0x54] sm:$0xf] %vm1533, %v1454
  %1556 = vst.msk [vmem:[%s3 + $0x58] sm:$0xf] %vm1533, %v1455
  %1557 = vst.msk [vmem:[%s3 + $0x5c] sm:$0xf] %vm1533, %v1456
  %1558 = vst.msk [vmem:[%s3 + $0x60] sm:$0xf] %vm1533, %v1457
  %1559 = vst.msk [vmem:[%s3 + $0x64] sm:$0xf] %vm1533, %v1458
  %1560 = vst.msk [vmem:[%s3 + $0x68] sm:$0xf] %vm1533, %v1459
  %1561 = vst.msk [vmem:[%s3 + $0x6c] sm:$0xf] %vm1533, %v1460
  %1562 = vst.msk [vmem:[%s3 + $0x70] sm:$0xf] %vm1533, %v1461
  %1563 = vst.msk [vmem:[%s3 + $0x74] sm:$0xf] %vm1533, %v1462
  %1564 = vst.msk [vmem:[%s3 + $0x78] sm:$0xf] %vm1533, %v1463
  %1565 = vst.msk [vmem:[%s3 + $0x7c] sm:$0xf] %vm1533, %v1464
  %1566 = vst.msk [vmem:[%s3 + $0x80] sm:$0xf] %vm1533, %v1465
  %1567 = vst.msk [vmem:[%s3 + $0x84] sm:$0xf] %vm1533, %v1466
  %1568 = vst.msk [vmem:[%s3 + $0x88] sm:$0xf] %vm1533, %v1467
  %1569 = vst.msk [vmem:[%s3 + $0x8c] sm:$0xf] %vm1533, %v1468
  %1570 = vst.msk [vmem:[%s3 + $0x90] sm:$0xf] %vm1533, %v1469
  %1571 = vst.msk [vmem:[%s3 + $0x94] sm:$0xf] %vm1533, %v1470
  %1572 = vst.msk [vmem:[%s3 + $0x98] sm:$0xf] %vm1533, %v1471
  %1573 = vst.msk [vmem:[%s3 + $0x9c] sm:$0xf] %vm1533, %v1472
  %1574 = vst.msk [vmem:[%s3 + $0xa0] sm:$0xf] %vm1533, %v1473
  %1575 = vst.msk [vmem:[%s3 + $0xa4] sm:$0xf] %vm1533, %v1474
  %1576 = vst.msk [vmem:[%s3 + $0xa8] sm:$0xf] %vm1533, %v1475
  %1577 = vst.msk [vmem:[%s3 + $0xac] sm:$0xf] %vm1533, %v1476
  %1578 = vst.msk [vmem:[%s3 + $0xb0] sm:$0xf] %vm1533, %v1477
  %1579 = vst.msk [vmem:[%s3 + $0xb4] sm:$0xf] %vm1533, %v1478
  %1580 = vst.msk [vmem:[%s3 + $0xb8] sm:$0xf] %vm1533, %v1479
  %1581 = vst.msk [vmem:[%s3 + $0xbc] sm:$0xf] %vm1533, %v1480
  %1582 = vst.msk [vmem:[%s3 + $0xc0] sm:$0xf] %vm1533, %v1481
  %1583 = vst.msk [vmem:[%s3 + $0xc4] sm:$0xf] %vm1533, %v1482
  // Predicated region
  $region14: #{cluster_vae_forward.10} parent=0 // pred_check
    _
  $region15: #{cluster_vae_forward.10} parent=0 // pred_check_branch
    %1585 = sbr.rel (0) target = $region17
  $region16: #{cluster_vae_forward.10} parent=0 // pred_region
    _
  $region17: #{cluster_vae_forward.10} parent=0 // pred_fallthru
    _
  // Predicated region
  $region18: #{cluster_vae_forward.10} parent=0 // pred_check
    _
  $region19: #{cluster_vae_forward.10} parent=0 // pred_check_branch
    %1587 = sbr.rel (0) target = $region21
  $region20: #{cluster_vae_forward.10} parent=0 // pred_region
    _
  $region21: #{cluster_vae_forward.10} parent=0 // pred_fallthru
    _

// kernel: cluster_vae_forward.11
$region0: #{cluster_vae_forward.11}
  #allocation0 [shape = 'u32[]', space=smem, size = 0x4, offset = 0x4, fixed_abs, tag = 'smem constant byte address 0x4 - core index']
  #allocation1 [shape = 'u32[144,128]{1,0:T(1,128)}', space=vmem, size = 0x12000, scoped, tag = 'internal scratch']
  %s0 = inlined_call_operand.vmem [shape: bf16[112,288], index: 0, kind: input, shape index: {}]
  %s1 = inlined_call_operand.vmem [shape: bf16[288,64], index: 1, kind: input, shape index: {}]
  %s2 = inlined_call_operand.vmem [shape: f32[1,64], index: 2, kind: input, shape index: {}]
  %s3 = inlined_call_operand.vmem [shape: bf16[112,64], index: 3, kind: output, shape index: {}]
  %s4 = sld [smem:[#allocation0]]
  $region22: #{cluster_vae_forward.11} parent=0
    _
  %s6 = ssub.s32 1, %s4
  %s7 = scalar_select 0, %s6, %s4
  // Predicated region
  $region2: #{cluster_vae_forward.11} parent=0 // pred_check
    _
  $region3: #{cluster_vae_forward.11} parent=0 // pred_check_branch
    %9 = sbr.rel (0) target = $region5
  $region4: #{cluster_vae_forward.11} parent=0 // pred_region
    _
  $region5: #{cluster_vae_forward.11} parent=0 // pred_fallthru
    _
  // Predicated region
  $region6: #{cluster_vae_forward.11} parent=0 // pred_check
    _
  $region7: #{cluster_vae_forward.11} parent=0 // pred_check_branch
    %11 = sbr.rel (0) target = $region9
  $region8: #{cluster_vae_forward.11} parent=0 // pred_region
    _
  $region9: #{cluster_vae_forward.11} parent=0 // pred_fallthru
    _
  // Predicated region
  $region10: #{cluster_vae_forward.11} parent=0 // pred_check
    _
  $region11: #{cluster_vae_forward.11} parent=0 // pred_check_branch
    %13 = sbr.rel (0) target = $region13
  $region12: #{cluster_vae_forward.11} parent=0 // pred_region
    _
  $region13: #{cluster_vae_forward.11} parent=0 // pred_fallthru
    _
  %v15 = vld [vmem:[%s0] sm:$0xff]
  %v16 = vld [vmem:[%s0 + $0x8] sm:$0xf]
  %v17 = vld [vmem:[%s0 + $0xc] sm:$0xff]
  %v18 = vld [vmem:[%s0 + $0x14] sm:$0xf]
  %v19 = vld [vmem:[%s0 + $0x18] sm:$0xff]
  %v20 = vld [vmem:[%s0 + $0x20] sm:$0xf]
  %v21 = vld [vmem:[%s0 + $0x24] sm:$0xff]
  %v22 = vld [vmem:[%s0 + $0x2c] sm:$0xf]
  %v23 = vld [vmem:[%s0 + $0x30] sm:$0xff]
  %v24 = vld [vmem:[%s0 + $0x38] sm:$0xf]
  %v25 = vld [vmem:[%s0 + $0x3c] sm:$0xff]
  %v26 = vld [vmem:[%s0 + $0x44] sm:$0xf]
  %v27 = vld [vmem:[%s0 + $0x48] sm:$0xff]
  %v28 = vld [vmem:[%s0 + $0x50] sm:$0xf]
  %v29 = vld [vmem:[%s0 + $0x54] sm:$0xff]
  %v30 = vld [vmem:[%s0 + $0x5c] sm:$0xf]
  %v31 = vld [vmem:[%s0 + $0x60] sm:$0xff]
  %v32 = vld [vmem:[%s0 + $0x68] sm:$0xf]
  %v33 = vld [vmem:[%s0 + $0x6c] sm:$0xff]
  %v34 = vld [vmem:[%s0 + $0x74] sm:$0xf]
  %v35 = vld [vmem:[%s0 + $0x78] sm:$0xff]
  %v36 = vld [vmem:[%s0 + $0x80] sm:$0xf]
  %v37 = vld [vmem:[%s0 + $0x84] sm:$0xff]
  %v38 = vld [vmem:[%s0 + $0x8c] sm:$0xf]
  %v39 = vld [vmem:[%s0 + $0x90] sm:$0xff]
  %v40 = vld [vmem:[%s0 + $0x98] sm:$0xf]
  %v41 = vld [vmem:[%s0 + $0x9c] sm:$0xff]
  %v42 = vld [vmem:[%s0 + $0xa4] sm:$0xf]
  %v43 = vld [vmem:[%s1] sm:$0xf]
  %v44 = vld [vmem:[%s1 + $0x4] sm:$0xf]
  %v45 = vld [vmem:[%s1 + $0x8] sm:$0xf]
  %v46 = vld [vmem:[%s1 + $0xc] sm:$0xf]
  %v47 = vld [vmem:[%s1 + $0x10] sm:$0xf]
  %v48 = vld [vmem:[%s1 + $0x14] sm:$0xf]
  %v49 = vld [vmem:[%s1 + $0x18] sm:$0xf]
  %v50 = vld [vmem:[%s1 + $0x1c] sm:$0xf]
  %v51 = vld [vmem:[%s1 + $0x20] sm:$0xf]
  %v52 = vld [vmem:[%s1 + $0x24] sm:$0xf]
  %v53 = vld [vmem:[%s1 + $0x28] sm:$0xf]
  %v54 = vld [vmem:[%s1 + $0x2c] sm:$0xf]
  %v55 = vld [vmem:[%s1 + $0x30] sm:$0xf]
  %v56 = vld [vmem:[%s1 + $0x34] sm:$0xf]
  %v57 = vld [vmem:[%s1 + $0x38] sm:$0xf]
  %v58 = vld [vmem:[%s1 + $0x3c] sm:$0xf]
  %v59 = vld [vmem:[%s1 + $0x40] sm:$0xf]
  %v60 = vld [vmem:[%s1 + $0x44] sm:$0xf]
  %v61 = vld [vmem:[%s1 + $0x48] sm:$0xf]
  %v62 = vld [vmem:[%s1 + $0x4c] sm:$0xf]
  %v63 = vld [vmem:[%s1 + $0x50] sm:$0xf]
  %v64 = vld [vmem:[%s1 + $0x54] sm:$0xf]
  %v65 = vld [vmem:[%s1 + $0x58] sm:$0xf]
  %v66 = vld [vmem:[%s1 + $0x5c] sm:$0xf]
  %v67 = vld [vmem:[%s1 + $0x60] sm:$0xf]
  %v68 = vld [vmem:[%s1 + $0x64] sm:$0xf]
  %v69 = vld [vmem:[%s1 + $0x68] sm:$0xf]
  %v70 = vld [vmem:[%s1 + $0x6c] sm:$0xf]
  %v71 = vld [vmem:[%s1 + $0x70] sm:$0xf]
  %v72 = vld [vmem:[%s1 + $0x74] sm:$0xf]
  %v73 = vld [vmem:[%s1 + $0x78] sm:$0xf]
  %v74 = vld [vmem:[%s1 + $0x7c] sm:$0xf]
  %v75 = vld [vmem:[%s1 + $0x80] sm:$0xf]
  %v76 = vld [vmem:[%s1 + $0x84] sm:$0xf]
  %v77 = vld [vmem:[%s1 + $0x88] sm:$0xf]
  %v78 = vld [vmem:[%s1 + $0x8c] sm:$0xf]
  %v79 = vld [vmem:[%s2] sm:$0x1]
  %v81 = vlaneseq
  %v82 = vshrl.u32 %v81, 7
  %v83 = vsub.s32 0, %v82
  %v84 = vrot.slane %v79, %v83
  %v114 = vunpack.c.l.b16 %v15
  %v115 = vunpack.c.h.b16 %v15
  %v116 = vunpack.c.l.b16 %v16
  %v117 = vunpack.c.l.b16 %v17
  %v118 = vunpack.c.h.b16 %v17
  %v119 = vunpack.c.l.b16 %v18
  %v120 = vunpack.c.l.b16 %v19
  %v121 = vunpack.c.h.b16 %v19
  %v122 = vunpack.c.l.b16 %v20
  %v123 = vunpack.c.l.b16 %v21
  %v124 = vunpack.c.h.b16 %v21
  %v125 = vunpack.c.l.b16 %v22
  %v126 = vunpack.c.l.b16 %v23
  %v127 = vunpack.c.h.b16 %v23
  %v128 = vunpack.c.l.b16 %v24
  %v129 = vunpack.c.l.b16 %v25
  %v130 = vunpack.c.h.b16 %v25
  %v131 = vunpack.c.l.b16 %v26
  %v132 = vunpack.c.l.b16 %v27
  %v133 = vunpack.c.h.b16 %v27
  %v134 = vunpack.c.l.b16 %v28
  %v135 = vunpack.c.l.b16 %v29
  %v136 = vunpack.c.h.b16 %v29
  %v137 = vunpack.c.l.b16 %v30
  %v138 = vunpack.c.l.b16 %v31
  %v139 = vunpack.c.h.b16 %v31
  %v140 = vunpack.c.l.b16 %v32
  %v141 = vunpack.c.l.b16 %v33
  %v142 = vunpack.c.h.b16 %v33
  %v143 = vunpack.c.l.b16 %v34
  %v144 = vunpack.c.l.b16 %v35
  %v145 = vunpack.c.h.b16 %v35
  %v146 = vunpack.c.l.b16 %v36
  %v147 = vunpack.c.l.b16 %v37
  %v148 = vunpack.c.h.b16 %v37
  %v149 = vunpack.c.l.b16 %v38
  %v150 = vunpack.c.l.b16 %v39
  %v151 = vunpack.c.h.b16 %v39
  %v152 = vunpack.c.l.b16 %v40
  %v153 = vunpack.c.l.b16 %v41
  %v154 = vunpack.c.h.b16 %v41
  %v155 = vunpack.c.l.b16 %v42
  %v156 = vpack.c.b16 %v117, %v114
  %v157 = vpack.c.b16 %v118, %v115
  %v158 = vpack.c.b16 %v119, %v116
  %v159 = vpack.c.b16 %v123, %v120
  %v160 = vpack.c.b16 %v124, %v121
  %v161 = vpack.c.b16 %v125, %v122
  %v162 = vpack.c.b16 %v129, %v126
  %v163 = vpack.c.b16 %v130, %v127
  %v164 = vpack.c.b16 %v131, %v128
  %v165 = vpack.c.b16 %v135, %v132
  %v166 = vpack.c.b16 %v136, %v133
  %v167 = vpack.c.b16 %v137, %v134
  %v168 = vpack.c.b16 %v141, %v138
  %v169 = vpack.c.b16 %v142, %v139
  %v170 = vpack.c.b16 %v143, %v140
  %v171 = vpack.c.b16 %v147, %v144
  %v172 = vpack.c.b16 %v148, %v145
  %v173 = vpack.c.b16 %v149, %v146
  %v174 = vpack.c.b16 %v153, %v150
  %v175 = vpack.c.b16 %v154, %v151
  %v176 = vpack.c.b16 %v155, %v152
  %v227 = vunpack.c.l.b16 %v43
  %v228 = vunpack.c.l.b16 %v44
  %v229 = vunpack.c.l.b16 %v45
  %v230 = vunpack.c.l.b16 %v46
  %v231 = vunpack.c.l.b16 %v47
  %v232 = vunpack.c.l.b16 %v48
  %v233 = vunpack.c.l.b16 %v49
  %v234 = vunpack.c.l.b16 %v50
  %v235 = vunpack.c.l.b16 %v51
  %v236 = vunpack.c.l.b16 %v52
  %v237 = vunpack.c.l.b16 %v53
  %v238 = vunpack.c.l.b16 %v54
  %v239 = vunpack.c.l.b16 %v55
  %v240 = vunpack.c.l.b16 %v56
  %v241 = vunpack.c.l.b16 %v57
  %v242 = vunpack.c.l.b16 %v58
  %v243 = vunpack.c.l.b16 %v59
  %v244 = vunpack.c.l.b16 %v60
  %v245 = vunpack.c.l.b16 %v61
  %v246 = vunpack.c.l.b16 %v62
  %v247 = vunpack.c.l.b16 %v63
  %v248 = vunpack.c.l.b16 %v64
  %v249 = vunpack.c.l.b16 %v65
  %v250 = vunpack.c.l.b16 %v66
  %v251 = vunpack.c.l.b16 %v67
  %v252 = vunpack.c.l.b16 %v68
  %v253 = vunpack.c.l.b16 %v69
  %v254 = vunpack.c.l.b16 %v70
  %v255 = vunpack.c.l.b16 %v71
  %v256 = vunpack.c.l.b16 %v72
  %v257 = vunpack.c.l.b16 %v73
  %v258 = vunpack.c.l.b16 %v74
  %v259 = vunpack.c.l.b16 %v75
  %v260 = vunpack.c.l.b16 %v76
  %v261 = vunpack.c.l.b16 %v77
  %v262 = vunpack.c.l.b16 %v78
  %v263 = vpack.c.b16 %v228, %v227
  %v264 = vpack.c.b16 %v230, %v229
  %v265 = vpack.c.b16 %v232, %v231
  %v266 = vpack.c.b16 %v234, %v233
  %v267 = vpack.c.b16 %v236, %v235
  %v268 = vpack.c.b16 %v238, %v237
  %v269 = vpack.c.b16 %v240, %v239
  %v270 = vpack.c.b16 %v242, %v241
  %v271 = vpack.c.b16 %v244, %v243
  %v272 = vpack.c.b16 %v246, %v245
  %v273 = vpack.c.b16 %v248, %v247
  %v274 = vpack.c.b16 %v250, %v249
  %v275 = vpack.c.b16 %v252, %v251
  %v276 = vpack.c.b16 %v254, %v253
  %v277 = vpack.c.b16 %v256, %v255
  %v278 = vpack.c.b16 %v258, %v257
  %v279 = vpack.c.b16 %v260, %v259
  %v280 = vpack.c.b16 %v262, %v261
  %vm299 = vcmask 261120
  %v301 = vsel %vm299, %v158, 0
  %v304 = vsel %vm299, %v161, 0
  %v307 = vsel %vm299, %v164, 0
  %v310 = vsel %vm299, %v167, 0
  %v313 = vsel %vm299, %v170, 0
  %v316 = vsel %vm299, %v173, 0
  %v319 = vsel %vm299, %v176, 0
  %321 = vmatprep.subr.bf16.mxu0 0
  %322 = vmatpush1.bf16.msra.mxu0 %v270
  %323 = vmatprep.subr.bf16.mxu0 0
  %324 = vmatpush1.bf16.msra.mxu0 %v269
  %325 = vmatprep.subr.bf16.mxu0 0
  %326 = vmatpush1.bf16.msra.mxu0 %v268
  %327 = vmatprep.subr.bf16.mxu0 0
  %328 = vmatpush1.bf16.msra.mxu0 %v267
  %329 = vmatprep.subr.bf16.mxu0 0
  %330 = vmatpush1.bf16.msra.mxu0 %v266
  %331 = vmatprep.subr.bf16.mxu0 0
  %332 = vmatpush1.bf16.msra.mxu0 %v265
  %333 = vmatprep.subr.bf16.mxu0 0
  %334 = vmatpush1.bf16.msra.mxu0 %v264
  %335 = vmatprep.subr.bf16.mxu0 0
  %336 = vmatpush1.bf16.msra.mxu0 %v263
  %337 = vmatprep.subr.bf16.mxu0 0
  %338 = vmatpush2.bf16.msra.mxu0 %v278
  %339 = vmatprep.subr.bf16.mxu0 0
  %340 = vmatpush2.bf16.msra.mxu0 %v277
  %341 = vmatprep.subr.bf16.mxu0 0
  %342 = vmatpush2.bf16.msra.mxu0 %v276
  %343 = vmatprep.subr.bf16.mxu0 0
  %344 = vmatpush2.bf16.msra.mxu0 %v275
  %345 = vmatprep.subr.bf16.mxu0 0
  %346 = vmatpush2.bf16.msra.mxu0 %v274
  %347 = vmatprep.subr.bf16.mxu0 0
  %348 = vmatpush2.bf16.msra.mxu0 %v273
  %349 = vmatprep.subr.bf16.mxu0 0
  %350 = vmatpush2.bf16.msra.mxu0 %v272
  %351 = vmatprep.subr.bf16.mxu0 0
  %352 = vmatpush2.bf16.msra.mxu0 %v271
  %353 = vmatprep.mubr.bf16.mxu0 %v157
  %354 = vmatmul.mubr.bf16.gmra.mxu0 %v156
  %v355 = vpop.f32.mrf.mxu0
  %v356 = vadd.f32 %v84, %v355
  %v357 = vpop.f32.mrf.mxu0
  %v358 = vpop.f32.mrf.mxu0
  %v359 = vadd.f32 %v84, %v358
  %v360 = vpop.f32.mrf.mxu0
  %361 = vmatprep.mubr.bf16.mxu0 %v160
  %362 = vmatmul.mubr.bf16.gmra.mxu0 %v159
  %v363 = vpop.f32.mrf.mxu0
  %v364 = vadd.f32 %v84, %v363
  %v365 = vpop.f32.mrf.mxu0
  %v366 = vpop.f32.mrf.mxu0
  %v367 = vadd.f32 %v84, %v366
  %v368 = vpop.f32.mrf.mxu0
  %369 = vmatprep.mubr.bf16.mxu0 %v163
  %370 = vmatmul.mubr.bf16.gmra.mxu0 %v162
  %v371 = vpop.f32.mrf.mxu0
  %v372 = vadd.f32 %v84, %v371
  %v373 = vpop.f32.mrf.mxu0
  %v374 = vpop.f32.mrf.mxu0
  %v375 = vadd.f32 %v84, %v374
  %v376 = vpop.f32.mrf.mxu0
  %377 = vmatprep.mubr.bf16.mxu0 %v166
  %378 = vmatmul.mubr.bf16.gmra.mxu0 %v165
  %v379 = vpop.f32.mrf.mxu0
  %v380 = vadd.f32 %v84, %v379
  %v381 = vpop.f32.mrf.mxu0
  %v382 = vpop.f32.mrf.mxu0
  %v383 = vadd.f32 %v84, %v382
  %v384 = vpop.f32.mrf.mxu0
  %385 = vmatprep.mubr.bf16.mxu0 %v169
  %386 = vmatmul.mubr.bf16.gmra.mxu0 %v168
  %v387 = vpop.f32.mrf.mxu0
  %v388 = vadd.f32 %v84, %v387
  %v389 = vpop.f32.mrf.mxu0
  %v390 = vpop.f32.mrf.mxu0
  %v391 = vadd.f32 %v84, %v390
  %v392 = vpop.f32.mrf.mxu0
  %393 = vmatprep.mubr.bf16.mxu0 %v172
  %394 = vmatmul.mubr.bf16.gmra.mxu0 %v171
  %v395 = vpop.f32.mrf.mxu0
  %v396 = vadd.f32 %v84, %v395
  %v397 = vpop.f32.mrf.mxu0
  %v398 = vpop.f32.mrf.mxu0
  %v399 = vadd.f32 %v84, %v398
  %v400 = vpop.f32.mrf.mxu0
  %401 = vmatprep.mubr.bf16.mxu0 %v175
  %402 = vmatmul.mubr.bf16.gmra.mxu0 %v174
  %v403 = vpop.f32.mrf.mxu0
  %v404 = vadd.f32 %v84, %v403
  %v405 = vpop.f32.mrf.mxu0
  %v406 = vpop.f32.mrf.mxu0
  %v407 = vadd.f32 %v84, %v406
  %v408 = vpop.f32.mrf.mxu0
  %409 = vdwg.mxu0
  %410 = vmatprep.subr.bf16.mxu0 0
  %411 = vmatpush1.bf16.msra.mxu0 0
  %412 = vmatprep.subr.bf16.mxu0 0
  %413 = vmatpush1.bf16.msra.mxu0 0
  %414 = vmatprep.subr.bf16.mxu0 0
  %415 = vmatpush1.bf16.msra.mxu0 0
  %416 = vmatprep.subr.bf16.mxu0 0
  %417 = vmatpush1.bf16.msra.mxu0 0
  %418 = vmatprep.subr.bf16.mxu0 0
  %419 = vmatpush1.bf16.msra.mxu0 0
  %420 = vmatprep.subr.bf16.mxu0 0
  %421 = vmatpush1.bf16.msra.mxu0 0
  %422 = vmatprep.subr.bf16.mxu0 0
  %423 = vmatpush1.bf16.msra.mxu0 %v280
  %424 = vmatprep.subr.bf16.mxu0 0
  %425 = vmatpush1.bf16.msra.mxu0 %v279
  %426 = vmatprep.subr.bf16.mxu0 0
  %427 = vmatpush2.bf16.msra.mxu0 0
  %428 = vmatprep.subr.bf16.mxu0 0
  %429 = vmatpush2.bf16.msra.mxu0 0
  %430 = vmatprep.subr.bf16.mxu0 0
  %431 = vmatpush2.bf16.msra.mxu0 0
  %432 = vmatprep.subr.bf16.mxu0 0
  %433 = vmatpush2.bf16.msra.mxu0 0
  %434 = vmatprep.subr.bf16.mxu0 0
  %435 = vmatpush2.bf16.msra.mxu0 0
  %436 = vmatprep.subr.bf16.mxu0 0
  %437 = vmatpush2.bf16.msra.mxu0 0
  %438 = vmatprep.subr.bf16.mxu0 0
  %439 = vmatpush2.bf16.msra.mxu0 0
  %440 = vmatprep.subr.bf16.mxu0 0
  %441 = vmatpush2.bf16.msra.mxu0 0
  %442 = vmatprep.mubr.bf16.mxu0 0
  %443 = vmatmul.mubr.bf16.gmra.mxu0 %v301
  %v444 = vpop.f32.mrf.mxu0
  %v445 = vadd.f32 %v356, %v444
  %v446 = vpop.f32.mrf.mxu0
  %v447 = vpop.f32.mrf.mxu0
  %v448 = vadd.f32 %v359, %v447
  %v449 = vpop.f32.mrf.mxu0
  %450 = vmatprep.mubr.bf16.mxu0 0
  %451 = vmatmul.mubr.bf16.gmra.mxu0 %v304
  %v452 = vpop.f32.mrf.mxu0
  %v453 = vadd.f32 %v364, %v452
  %v454 = vpop.f32.mrf.mxu0
  %v455 = vpop.f32.mrf.mxu0
  %v456 = vadd.f32 %v367, %v455
  %v457 = vpop.f32.mrf.mxu0
  %458 = vmatprep.mubr.bf16.mxu0 0
  %459 = vmatmul.mubr.bf16.gmra.mxu0 %v307
  %v460 = vpop.f32.mrf.mxu0
  %v461 = vadd.f32 %v372, %v460
  %v462 = vpop.f32.mrf.mxu0
  %v463 = vpop.f32.mrf.mxu0
  %v464 = vadd.f32 %v375, %v463
  %v465 = vpop.f32.mrf.mxu0
  %466 = vmatprep.mubr.bf16.mxu0 0
  %467 = vmatmul.mubr.bf16.gmra.mxu0 %v310
  %v468 = vpop.f32.mrf.mxu0
  %v469 = vadd.f32 %v380, %v468
  %v470 = vpop.f32.mrf.mxu0
  %v471 = vpop.f32.mrf.mxu0
  %v472 = vadd.f32 %v383, %v471
  %v473 = vpop.f32.mrf.mxu0
  %474 = vmatprep.mubr.bf16.mxu0 0
  %475 = vmatmul.mubr.bf16.gmra.mxu0 %v313
  %v476 = vpop.f32.mrf.mxu0
  %v477 = vadd.f32 %v388, %v476
  %v478 = vpop.f32.mrf.mxu0
  %v479 = vpop.f32.mrf.mxu0
  %v480 = vadd.f32 %v391, %v479
  %v481 = vpop.f32.mrf.mxu0
  %482 = vmatprep.mubr.bf16.mxu0 0
  %483 = vmatmul.mubr.bf16.gmra.mxu0 %v316
  %v484 = vpop.f32.mrf.mxu0
  %v485 = vadd.f32 %v396, %v484
  %v486 = vpop.f32.mrf.mxu0
  %v487 = vpop.f32.mrf.mxu0
  %v488 = vadd.f32 %v399, %v487
  %v489 = vpop.f32.mrf.mxu0
  %490 = vmatprep.mubr.bf16.mxu0 0
  %491 = vmatmul.mubr.bf16.gmra.mxu0 %v319
  %v492 = vpop.f32.mrf.mxu0
  %v493 = vadd.f32 %v404, %v492
  %v494 = vpop.f32.mrf.mxu0
  %v495 = vpop.f32.mrf.mxu0
  %v496 = vadd.f32 %v407, %v495
  %v497 = vpop.f32.mrf.mxu0
  %498 = vdwg.mxu0
  %vm499 = vcmp.gt.f32.partialorder %v445, 0.0
  %vm500 = vcmp.gt.f32.partialorder %v448, 0.0
  %vm501 = vcmp.gt.f32.partialorder %v453, 0.0
  %vm502 = vcmp.gt.f32.partialorder %v456, 0.0
  %vm503 = vcmp.gt.f32.partialorder %v461, 0.0
  %vm504 = vcmp.gt.f32.partialorder %v464, 0.0
  %vm505 = vcmp.gt.f32.partialorder %v469, 0.0
  %vm506 = vcmp.gt.f32.partialorder %v472, 0.0
  %vm507 = vcmp.gt.f32.partialorder %v477, 0.0
  %vm508 = vcmp.gt.f32.partialorder %v480, 0.0
  %vm509 = vcmp.gt.f32.partialorder %v485, 0.0
  %vm510 = vcmp.gt.f32.partialorder %v488, 0.0
  %vm511 = vcmp.gt.f32.partialorder %v493, 0.0
  %vm512 = vcmp.gt.f32.partialorder %v496, 0.0
  %v513 = vmul.f32 %v445, 0.2
  %v514 = vmul.f32 %v448, 0.2
  %v515 = vmul.f32 %v453, 0.2
  %v516 = vmul.f32 %v456, 0.2
  %v517 = vmul.f32 %v461, 0.2
  %v518 = vmul.f32 %v464, 0.2
  %v519 = vmul.f32 %v469, 0.2
  %v520 = vmul.f32 %v472, 0.2
  %v521 = vmul.f32 %v477, 0.2
  %v522 = vmul.f32 %v480, 0.2
  %v523 = vmul.f32 %v485, 0.2
  %v524 = vmul.f32 %v488, 0.2
  %v525 = vmul.f32 %v493, 0.2
  %v526 = vmul.f32 %v496, 0.2
  %v527 = vsel %vm499, %v445, %v513
  %v528 = vsel %vm500, %v448, %v514
  %v529 = vsel %vm501, %v453, %v515
  %v530 = vsel %vm502, %v456, %v516
  %v531 = vsel %vm503, %v461, %v517
  %v532 = vsel %vm504, %v464, %v518
  %v533 = vsel %vm505, %v469, %v519
  %v534 = vsel %vm506, %v472, %v520
  %v535 = vsel %vm507, %v477, %v521
  %v536 = vsel %vm508, %v480, %v522
  %v537 = vsel %vm509, %v485, %v523
  %v538 = vsel %vm510, %v488, %v524
  %v539 = vsel %vm511, %v493, %v525
  %v540 = vsel %vm512, %v496, %v526
  %v541 = vpack.c.bf16 %v528, %v527
  %v542 = vpack.c.bf16 %v530, %v529
  %v543 = vpack.c.bf16 %v532, %v531
  %v544 = vpack.c.bf16 %v534, %v533
  %v545 = vpack.c.bf16 %v536, %v535
  %v546 = vpack.c.bf16 %v538, %v537
  %v547 = vpack.c.bf16 %v540, %v539
  %v555 = vunpack.c.l.b16 %v541
  %v556 = vunpack.c.h.b16 %v541
  %v557 = vunpack.c.l.b16 %v542
  %v558 = vunpack.c.h.b16 %v542
  %v559 = vunpack.c.l.b16 %v543
  %v560 = vunpack.c.h.b16 %v543
  %v561 = vunpack.c.l.b16 %v544
  %v562 = vunpack.c.h.b16 %v544
  %v563 = vunpack.c.l.b16 %v545
  %v564 = vunpack.c.h.b16 %v545
  %v565 = vunpack.c.l.b16 %v546
  %v566 = vunpack.c.h.b16 %v546
  %v567 = vunpack.c.l.b16 %v547
  %v568 = vunpack.c.h.b16 %v547
  %v569 = vpack.c.b16 %v555, %v555
  %v570 = vpack.c.b16 %v556, %v556
  %v571 = vpack.c.b16 %v557, %v557
  %v572 = vpack.c.b16 %v558, %v558
  %v573 = vpack.c.b16 %v559, %v559
  %v574 = vpack.c.b16 %v560, %v560
  %v575 = vpack.c.b16 %v561, %v561
  %v576 = vpack.c.b16 %v562, %v562
  %v577 = vpack.c.b16 %v563, %v563
  %v578 = vpack.c.b16 %v564, %v564
  %v579 = vpack.c.b16 %v565, %v565
  %v580 = vpack.c.b16 %v566, %v566
  %v581 = vpack.c.b16 %v567, %v567
  %v582 = vpack.c.b16 %v568, %v568
  %vm597 = vcmask 519168
  %598 = vst.msk [vmem:[%s3] sm:$0xf] %vm597, %v569
  %599 = vst.msk [vmem:[%s3 + $0x4] sm:$0xf] %vm597, %v570
  %600 = vst.msk [vmem:[%s3 + $0x8] sm:$0xf] %vm597, %v571
  %601 = vst.msk [vmem:[%s3 + $0xc] sm:$0xf] %vm597, %v572
  %602 = vst.msk [vmem:[%s3 + $0x10] sm:$0xf] %vm597, %v573
  %603 = vst.msk [vmem:[%s3 + $0x14] sm:$0xf] %vm597, %v574
  %604 = vst.msk [vmem:[%s3 + $0x18] sm:$0xf] %vm597, %v575
  %605 = vst.msk [vmem:[%s3 + $0x1c] sm:$0xf] %vm597, %v576
  %606 = vst.msk [vmem:[%s3 + $0x20] sm:$0xf] %vm597, %v577
  %607 = vst.msk [vmem:[%s3 + $0x24] sm:$0xf] %vm597, %v578
  %608 = vst.msk [vmem:[%s3 + $0x28] sm:$0xf] %vm597, %v579
  %609 = vst.msk [vmem:[%s3 + $0x2c] sm:$0xf] %vm597, %v580
  %610 = vst.msk [vmem:[%s3 + $0x30] sm:$0xf] %vm597, %v581
  %611 = vst.msk [vmem:[%s3 + $0x34] sm:$0xf] %vm597, %v582
  // Predicated region
  $region14: #{cluster_vae_forward.11} parent=0 // pred_check
    _
  $region15: #{cluster_vae_forward.11} parent=0 // pred_check_branch
    %613 = sbr.rel (0) target = $region17
  $region16: #{cluster_vae_forward.11} parent=0 // pred_region
    _
  $region17: #{cluster_vae_forward.11} parent=0 // pred_fallthru
    _
  // Predicated region
  $region18: #{cluster_vae_forward.11} parent=0 // pred_check
    _
  $region19: #{cluster_vae_forward.11} parent=0 // pred_check_branch
    %615 = sbr.rel (0) target = $region21
  $region20: #{cluster_vae_forward.11} parent=0 // pred_region
    _
  $region21: #{cluster_vae_forward.11} parent=0 // pred_fallthru
    _

// kernel: cluster_vae_forward.12
$region0: #{cluster_vae_forward.12}
  #allocation0 [shape = 'u32[]', space=smem, size = 0x4, offset = 0x4, fixed_abs, tag = 'smem constant byte address 0x4 - core index']
  #allocation1 [shape = 'u32[144,128]{1,0:T(1,128)}', space=vmem, size = 0x12000, scoped, tag = 'internal scratch']
  %s0 = inlined_call_operand.vmem [shape: bf16[112,576], index: 0, kind: input, shape index: {}]
  %s1 = inlined_call_operand.vmem [shape: bf16[576,64], index: 1, kind: input, shape index: {}]
  %s2 = inlined_call_operand.vmem [shape: f32[1,64], index: 2, kind: input, shape index: {}]
  %s3 = inlined_call_operand.vmem [shape: bf16[112,64], index: 3, kind: output, shape index: {}]
  %s4 = sld [smem:[#allocation0]]
  $region22: #{cluster_vae_forward.12} parent=0
    _
  %s6 = ssub.s32 1, %s4
  %s7 = scalar_select 0, %s6, %s4
  // Predicated region
  $region2: #{cluster_vae_forward.12} parent=0 // pred_check
    _
  $region3: #{cluster_vae_forward.12} parent=0 // pred_check_branch
    %9 = sbr.rel (0) target = $region5
  $region4: #{cluster_vae_forward.12} parent=0 // pred_region
    _
  $region5: #{cluster_vae_forward.12} parent=0 // pred_fallthru
    _
  // Predicated region
  $region6: #{cluster_vae_forward.12} parent=0 // pred_check
    _
  $region7: #{cluster_vae_forward.12} parent=0 // pred_check_branch
    %11 = sbr.rel (0) target = $region9
  $region8: #{cluster_vae_forward.12} parent=0 // pred_region
    _
  $region9: #{cluster_vae_forward.12} parent=0 // pred_fallthru
    _
  // Predicated region
  $region10: #{cluster_vae_forward.12} parent=0 // pred_check
    _
  $region11: #{cluster_vae_forward.12} parent=0 // pred_check_branch
    %13 = sbr.rel (0) target = $region13
  $region12: #{cluster_vae_forward.12} parent=0 // pred_region
    _
  $region13: #{cluster_vae_forward.12} parent=0 // pred_fallthru
    _
  %v15 = vld [vmem:[%s0] sm:$0xff]
  %v16 = vld [vmem:[%s0 + $0x8] sm:$0xff]
  %v17 = vld [vmem:[%s0 + $0x10] sm:$0xf]
  %v18 = vld [vmem:[%s0 + $0x14] sm:$0xff]
  %v19 = vld [vmem:[%s0 + $0x1c] sm:$0xff]
  %v20 = vld [vmem:[%s0 + $0x24] sm:$0xf]
  %v21 = vld [vmem:[%s0 + $0x28] sm:$0xff]
  %v22 = vld [vmem:[%s0 + $0x30] sm:$0xff]
  %v23 = vld [vmem:[%s0 + $0x38] sm:$0xf]
  %v24 = vld [vmem:[%s0 + $0x3c] sm:$0xff]
  %v25 = vld [vmem:[%s0 + $0x44] sm:$0xff]
  %v26 = vld [vmem:[%s0 + $0x4c] sm:$0xf]
  %v27 = vld [vmem:[%s0 + $0x50] sm:$0xff]
  %v28 = vld [vmem:[%s0 + $0x58] sm:$0xff]
  %v29 = vld [vmem:[%s0 + $0x60] sm:$0xf]
  %v30 = vld [vmem:[%s0 + $0x64] sm:$0xff]
  %v31 = vld [vmem:[%s0 + $0x6c] sm:$0xff]
  %v32 = vld [vmem:[%s0 + $0x74] sm:$0xf]
  %v33 = vld [vmem:[%s0 + $0x78] sm:$0xff]
  %v34 = vld [vmem:[%s0 + $0x80] sm:$0xff]
  %v35 = vld [vmem:[%s0 + $0x88] sm:$0xf]
  %v36 = vld [vmem:[%s0 + $0x8c] sm:$0xff]
  %v37 = vld [vmem:[%s0 + $0x94] sm:$0xff]
  %v38 = vld [vmem:[%s0 + $0x9c] sm:$0xf]
  %v39 = vld [vmem:[%s0 + $0xa0] sm:$0xff]
  %v40 = vld [vmem:[%s0 + $0xa8] sm:$0xff]
  %v41 = vld [vmem:[%s0 + $0xb0] sm:$0xf]
  %v42 = vld [vmem:[%s0 + $0xb4] sm:$0xff]
  %v43 = vld [vmem:[%s0 + $0xbc] sm:$0xff]
  %v44 = vld [vmem:[%s0 + $0xc4] sm:$0xf]
  %v45 = vld [vmem:[%s0 + $0xc8] sm:$0xff]
  %v46 = vld [vmem:[%s0 + $0xd0] sm:$0xff]
  %v47 = vld [vmem:[%s0 + $0xd8] sm:$0xf]
  %v48 = vld [vmem:[%s0 + $0xdc] sm:$0xff]
  %v49 = vld [vmem:[%s0 + $0xe4] sm:$0xff]
  %v50 = vld [vmem:[%s0 + $0xec] sm:$0xf]
  %v51 = vld [vmem:[%s0 + $0xf0] sm:$0xff]
  %v52 = vld [vmem:[%s0 + $0xf8] sm:$0xff]
  %v53 = vld [vmem:[%s0 + $0x100] sm:$0xf]
  %v54 = vld [vmem:[%s0 + $0x104] sm:$0xff]
  %v55 = vld [vmem:[%s0 + $0x10c] sm:$0xff]
  %v56 = vld [vmem:[%s0 + $0x114] sm:$0xf]
  %v57 = vld [vmem:[%s1] sm:$0xf]
  %v58 = vld [vmem:[%s1 + $0x4] sm:$0xf]
  %v59 = vld [vmem:[%s1 + $0x8] sm:$0xf]
  %v60 = vld [vmem:[%s1 + $0xc] sm:$0xf]
  %v61 = vld [vmem:[%s1 + $0x10] sm:$0xf]
  %v62 = vld [vmem:[%s1 + $0x14] sm:$0xf]
  %v63 = vld [vmem:[%s1 + $0x18] sm:$0xf]
  %v64 = vld [vmem:[%s1 + $0x1c] sm:$0xf]
  %v65 = vld [vmem:[%s1 + $0x20] sm:$0xf]
  %v66 = vld [vmem:[%s1 + $0x24] sm:$0xf]
  %v67 = vld [vmem:[%s1 + $0x28] sm:$0xf]
  %v68 = vld [vmem:[%s1 + $0x2c] sm:$0xf]
  %v69 = vld [vmem:[%s1 + $0x30] sm:$0xf]
  %v70 = vld [vmem:[%s1 + $0x34] sm:$0xf]
  %v71 = vld [vmem:[%s1 + $0x38] sm:$0xf]
  %v72 = vld [vmem:[%s1 + $0x3c] sm:$0xf]
  %v73 = vld [vmem:[%s1 + $0x40] sm:$0xf]
  %v74 = vld [vmem:[%s1 + $0x44] sm:$0xf]
  %v75 = vld [vmem:[%s1 + $0x48] sm:$0xf]
  %v76 = vld [vmem:[%s1 + $0x4c] sm:$0xf]
  %v77 = vld [vmem:[%s1 + $0x50] sm:$0xf]
  %v78 = vld [vmem:[%s1 + $0x54] sm:$0xf]
  %v79 = vld [vmem:[%s1 + $0x58] sm:$0xf]
  %v80 = vld [vmem:[%s1 + $0x5c] sm:$0xf]
  %v81 = vld [vmem:[%s1 + $0x60] sm:$0xf]
  %v82 = vld [vmem:[%s1 + $0x64] sm:$0xf]
  %v83 = vld [vmem:[%s1 + $0x68] sm:$0xf]
  %v84 = vld [vmem:[%s1 + $0x6c] sm:$0xf]
  %v85 = vld [vmem:[%s1 + $0x70] sm:$0xf]
  %v86 = vld [vmem:[%s1 + $0x74] sm:$0xf]
  %v87 = vld [vmem:[%s1 + $0x78] sm:$0xf]
  %v88 = vld [vmem:[%s1 + $0x7c] sm:$0xf]
  %v89 = vld [vmem:[%s1 + $0x80] sm:$0xf]
  %v90 = vld [vmem:[%s1 + $0x84] sm:$0xf]
  %v91 = vld [vmem:[%s1 + $0x88] sm:$0xf]
  %v92 = vld [vmem:[%s1 + $0x8c] sm:$0xf]
  %v93 = vld [vmem:[%s1 + $0x90] sm:$0xf]
  %v94 = vld [vmem:[%s1 + $0x94] sm:$0xf]
  %v95 = vld [vmem:[%s1 + $0x98] sm:$0xf]
  %v96 = vld [vmem:[%s1 + $0x9c] sm:$0xf]
  %v97 = vld [vmem:[%s1 + $0xa0] sm:$0xf]
  %v98 = vld [vmem:[%s1 + $0xa4] sm:$0xf]
  %v99 = vld [vmem:[%s1 + $0xa8] sm:$0xf]
  %v100 = vld [vmem:[%s1 + $0xac] sm:$0xf]
  %v101 = vld [vmem:[%s1 + $0xb0] sm:$0xf]
  %v102 = vld [vmem:[%s1 + $0xb4] sm:$0xf]
  %v103 = vld [vmem:[%s1 + $0xb8] sm:$0xf]
  %v104 = vld [vmem:[%s1 + $0xbc] sm:$0xf]
  %v105 = vld [vmem:[%s1 + $0xc0] sm:$0xf]
  %v106 = vld [vmem:[%s1 + $0xc4] sm:$0xf]
  %v107 = vld [vmem:[%s1 + $0xc8] sm:$0xf]
  %v108 = vld [vmem:[%s1 + $0xcc] sm:$0xf]
  %v109 = vld [vmem:[%s1 + $0xd0] sm:$0xf]
  %v110 = vld [vmem:[%s1 + $0xd4] sm:$0xf]
  %v111 = vld [vmem:[%s1 + $0xd8] sm:$0xf]
  %v112 = vld [vmem:[%s1 + $0xdc] sm:$0xf]
  %v113 = vld [vmem:[%s1 + $0xe0] sm:$0xf]
  %v114 = vld [vmem:[%s1 + $0xe4] sm:$0xf]
  %v115 = vld [vmem:[%s1 + $0xe8] sm:$0xf]
  %v116 = vld [vmem:[%s1 + $0xec] sm:$0xf]
  %v117 = vld [vmem:[%s1 + $0xf0] sm:$0xf]
  %v118 = vld [vmem:[%s1 + $0xf4] sm:$0xf]
  %v119 = vld [vmem:[%s1 + $0xf8] sm:$0xf]
  %v120 = vld [vmem:[%s1 + $0xfc] sm:$0xf]
  %v121 = vld [vmem:[%s1 + $0x100] sm:$0xf]
  %v122 = vld [vmem:[%s1 + $0x104] sm:$0xf]
  %v123 = vld [vmem:[%s1 + $0x108] sm:$0xf]
  %v124 = vld [vmem:[%s1 + $0x10c] sm:$0xf]
  %v125 = vld [vmem:[%s1 + $0x110] sm:$0xf]
  %v126 = vld [vmem:[%s1 + $0x114] sm:$0xf]
  %v127 = vld [vmem:[%s1 + $0x118] sm:$0xf]
  %v128 = vld [vmem:[%s1 + $0x11c] sm:$0xf]
  %v129 = vld [vmem:[%s2] sm:$0x1]
  %v131 = vlaneseq
  %v132 = vshrl.u32 %v131, 7
  %v133 = vsub.s32 0, %v132
  %v134 = vrot.slane %v129, %v133
  %v178 = vunpack.c.l.b16 %v15
  %v179 = vunpack.c.h.b16 %v15
  %v180 = vunpack.c.l.b16 %v16
  %v181 = vunpack.c.h.b16 %v16
  %v182 = vunpack.c.l.b16 %v17
  %v183 = vunpack.c.l.b16 %v18
  %v184 = vunpack.c.h.b16 %v18
  %v185 = vunpack.c.l.b16 %v19
  %v186 = vunpack.c.h.b16 %v19
  %v187 = vunpack.c.l.b16 %v20
  %v188 = vunpack.c.l.b16 %v21
  %v189 = vunpack.c.h.b16 %v21
  %v190 = vunpack.c.l.b16 %v22
  %v191 = vunpack.c.h.b16 %v22
  %v192 = vunpack.c.l.b16 %v23
  %v193 = vunpack.c.l.b16 %v24
  %v194 = vunpack.c.h.b16 %v24
  %v195 = vunpack.c.l.b16 %v25
  %v196 = vunpack.c.h.b16 %v25
  %v197 = vunpack.c.l.b16 %v26
  %v198 = vunpack.c.l.b16 %v27
  %v199 = vunpack.c.h.b16 %v27
  %v200 = vunpack.c.l.b16 %v28
  %v201 = vunpack.c.h.b16 %v28
  %v202 = vunpack.c.l.b16 %v29
  %v203 = vunpack.c.l.b16 %v30
  %v204 = vunpack.c.h.b16 %v30
  %v205 = vunpack.c.l.b16 %v31
  %v206 = vunpack.c.h.b16 %v31
  %v207 = vunpack.c.l.b16 %v32
  %v208 = vunpack.c.l.b16 %v33
  %v209 = vunpack.c.h.b16 %v33
  %v210 = vunpack.c.l.b16 %v34
  %v211 = vunpack.c.h.b16 %v34
  %v212 = vunpack.c.l.b16 %v35
  %v213 = vunpack.c.l.b16 %v36
  %v214 = vunpack.c.h.b16 %v36
  %v215 = vunpack.c.l.b16 %v37
  %v216 = vunpack.c.h.b16 %v37
  %v217 = vunpack.c.l.b16 %v38
  %v218 = vunpack.c.l.b16 %v39
  %v219 = vunpack.c.h.b16 %v39
  %v220 = vunpack.c.l.b16 %v40
  %v221 = vunpack.c.h.b16 %v40
  %v222 = vunpack.c.l.b16 %v41
  %v223 = vunpack.c.l.b16 %v42
  %v224 = vunpack.c.h.b16 %v42
  %v225 = vunpack.c.l.b16 %v43
  %v226 = vunpack.c.h.b16 %v43
  %v227 = vunpack.c.l.b16 %v44
  %v228 = vunpack.c.l.b16 %v45
  %v229 = vunpack.c.h.b16 %v45
  %v230 = vunpack.c.l.b16 %v46
  %v231 = vunpack.c.h.b16 %v46
  %v232 = vunpack.c.l.b16 %v47
  %v233 = vunpack.c.l.b16 %v48
  %v234 = vunpack.c.h.b16 %v48
  %v235 = vunpack.c.l.b16 %v49
  %v236 = vunpack.c.h.b16 %v49
  %v237 = vunpack.c.l.b16 %v50
  %v238 = vunpack.c.l.b16 %v51
  %v239 = vunpack.c.h.b16 %v51
  %v240 = vunpack.c.l.b16 %v52
  %v241 = vunpack.c.h.b16 %v52
  %v242 = vunpack.c.l.b16 %v53
  %v243 = vunpack.c.l.b16 %v54
  %v244 = vunpack.c.h.b16 %v54
  %v245 = vunpack.c.l.b16 %v55
  %v246 = vunpack.c.h.b16 %v55
  %v247 = vunpack.c.l.b16 %v56
  %v248 = vpack.c.b16 %v183, %v178
  %v249 = vpack.c.b16 %v184, %v179
  %v250 = vpack.c.b16 %v185, %v180
  %v251 = vpack.c.b16 %v186, %v181
  %v252 = vpack.c.b16 %v187, %v182
  %v253 = vpack.c.b16 %v193, %v188
  %v254 = vpack.c.b16 %v194, %v189
  %v255 = vpack.c.b16 %v195, %v190
  %v256 = vpack.c.b16 %v196, %v191
  %v257 = vpack.c.b16 %v197, %v192
  %v258 = vpack.c.b16 %v203, %v198
  %v259 = vpack.c.b16 %v204, %v199
  %v260 = vpack.c.b16 %v205, %v200
  %v261 = vpack.c.b16 %v206, %v201
  %v262 = vpack.c.b16 %v207, %v202
  %v263 = vpack.c.b16 %v213, %v208
  %v264 = vpack.c.b16 %v214, %v209
  %v265 = vpack.c.b16 %v215, %v210
  %v266 = vpack.c.b16 %v216, %v211
  %v267 = vpack.c.b16 %v217, %v212
  %v268 = vpack.c.b16 %v223, %v218
  %v269 = vpack.c.b16 %v224, %v219
  %v270 = vpack.c.b16 %v225, %v220
  %v271 = vpack.c.b16 %v226, %v221
  %v272 = vpack.c.b16 %v227, %v222
  %v273 = vpack.c.b16 %v233, %v228
  %v274 = vpack.c.b16 %v234, %v229
  %v275 = vpack.c.b16 %v235, %v230
  %v276 = vpack.c.b16 %v236, %v231
  %v277 = vpack.c.b16 %v237, %v232
  %v278 = vpack.c.b16 %v243, %v238
  %v279 = vpack.c.b16 %v244, %v239
  %v280 = vpack.c.b16 %v245, %v240
  %v281 = vpack.c.b16 %v246, %v241
  %v282 = vpack.c.b16 %v247, %v242
  %v383 = vunpack.c.l.b16 %v57
  %v384 = vunpack.c.l.b16 %v58
  %v385 = vunpack.c.l.b16 %v59
  %v386 = vunpack.c.l.b16 %v60
  %v387 = vunpack.c.l.b16 %v61
  %v388 = vunpack.c.l.b16 %v62
  %v389 = vunpack.c.l.b16 %v63
  %v390 = vunpack.c.l.b16 %v64
  %v391 = vunpack.c.l.b16 %v65
  %v392 = vunpack.c.l.b16 %v66
  %v393 = vunpack.c.l.b16 %v67
  %v394 = vunpack.c.l.b16 %v68
  %v395 = vunpack.c.l.b16 %v69
  %v396 = vunpack.c.l.b16 %v70
  %v397 = vunpack.c.l.b16 %v71
  %v398 = vunpack.c.l.b16 %v72
  %v399 = vunpack.c.l.b16 %v73
  %v400 = vunpack.c.l.b16 %v74
  %v401 = vunpack.c.l.b16 %v75
  %v402 = vunpack.c.l.b16 %v76
  %v403 = vunpack.c.l.b16 %v77
  %v404 = vunpack.c.l.b16 %v78
  %v405 = vunpack.c.l.b16 %v79
  %v406 = vunpack.c.l.b16 %v80
  %v407 = vunpack.c.l.b16 %v81
  %v408 = vunpack.c.l.b16 %v82
  %v409 = vunpack.c.l.b16 %v83
  %v410 = vunpack.c.l.b16 %v84
  %v411 = vunpack.c.l.b16 %v85
  %v412 = vunpack.c.l.b16 %v86
  %v413 = vunpack.c.l.b16 %v87
  %v414 = vunpack.c.l.b16 %v88
  %v415 = vunpack.c.l.b16 %v89
  %v416 = vunpack.c.l.b16 %v90
  %v417 = vunpack.c.l.b16 %v91
  %v418 = vunpack.c.l.b16 %v92
  %v419 = vunpack.c.l.b16 %v93
  %v420 = vunpack.c.l.b16 %v94
  %v421 = vunpack.c.l.b16 %v95
  %v422 = vunpack.c.l.b16 %v96
  %v423 = vunpack.c.l.b16 %v97
  %v424 = vunpack.c.l.b16 %v98
  %v425 = vunpack.c.l.b16 %v99
  %v426 = vunpack.c.l.b16 %v100
  %v427 = vunpack.c.l.b16 %v101
  %v428 = vunpack.c.l.b16 %v102
  %v429 = vunpack.c.l.b16 %v103
  %v430 = vunpack.c.l.b16 %v104
  %v431 = vunpack.c.l.b16 %v105
  %v432 = vunpack.c.l.b16 %v106
  %v433 = vunpack.c.l.b16 %v107
  %v434 = vunpack.c.l.b16 %v108
  %v435 = vunpack.c.l.b16 %v109
  %v436 = vunpack.c.l.b16 %v110
  %v437 = vunpack.c.l.b16 %v111
  %v438 = vunpack.c.l.b16 %v112
  %v439 = vunpack.c.l.b16 %v113
  %v440 = vunpack.c.l.b16 %v114
  %v441 = vunpack.c.l.b16 %v115
  %v442 = vunpack.c.l.b16 %v116
  %v443 = vunpack.c.l.b16 %v117
  %v444 = vunpack.c.l.b16 %v118
  %v445 = vunpack.c.l.b16 %v119
  %v446 = vunpack.c.l.b16 %v120
  %v447 = vunpack.c.l.b16 %v121
  %v448 = vunpack.c.l.b16 %v122
  %v449 = vunpack.c.l.b16 %v123
  %v450 = vunpack.c.l.b16 %v124
  %v451 = vunpack.c.l.b16 %v125
  %v452 = vunpack.c.l.b16 %v126
  %v453 = vunpack.c.l.b16 %v127
  %v454 = vunpack.c.l.b16 %v128
  %v455 = vpack.c.b16 %v384, %v383
  %v456 = vpack.c.b16 %v386, %v385
  %v457 = vpack.c.b16 %v388, %v387
  %v458 = vpack.c.b16 %v390, %v389
  %v459 = vpack.c.b16 %v392, %v391
  %v460 = vpack.c.b16 %v394, %v393
  %v461 = vpack.c.b16 %v396, %v395
  %v462 = vpack.c.b16 %v398, %v397
  %v463 = vpack.c.b16 %v400, %v399
  %v464 = vpack.c.b16 %v402, %v401
  %v465 = vpack.c.b16 %v404, %v403
  %v466 = vpack.c.b16 %v406, %v405
  %v467 = vpack.c.b16 %v408, %v407
  %v468 = vpack.c.b16 %v410, %v409
  %v469 = vpack.c.b16 %v412, %v411
  %v470 = vpack.c.b16 %v414, %v413
  %v471 = vpack.c.b16 %v416, %v415
  %v472 = vpack.c.b16 %v418, %v417
  %v473 = vpack.c.b16 %v420, %v419
  %v474 = vpack.c.b16 %v422, %v421
  %v475 = vpack.c.b16 %v424, %v423
  %v476 = vpack.c.b16 %v426, %v425
  %v477 = vpack.c.b16 %v428, %v427
  %v478 = vpack.c.b16 %v430, %v429
  %v479 = vpack.c.b16 %v432, %v431
  %v480 = vpack.c.b16 %v434, %v433
  %v481 = vpack.c.b16 %v436, %v435
  %v482 = vpack.c.b16 %v438, %v437
  %v483 = vpack.c.b16 %v440, %v439
  %v484 = vpack.c.b16 %v442, %v441
  %v485 = vpack.c.b16 %v444, %v443
  %v486 = vpack.c.b16 %v446, %v445
  %v487 = vpack.c.b16 %v448, %v447
  %v488 = vpack.c.b16 %v450, %v449
  %v489 = vpack.c.b16 %v452, %v451
  %v490 = vpack.c.b16 %v454, %v453
  %vm527 = vcmask 523264
  %v529 = vsel %vm527, %v252, 0
  %v532 = vsel %vm527, %v257, 0
  %v535 = vsel %vm527, %v262, 0
  %v538 = vsel %vm527, %v267, 0
  %v541 = vsel %vm527, %v272, 0
  %v544 = vsel %vm527, %v277, 0
  %v547 = vsel %vm527, %v282, 0
  %549 = vmatprep.subr.bf16.mxu0 0
  %550 = vmatpush1.bf16.msra.mxu0 %v462
  %551 = vmatprep.subr.bf16.mxu0 0
  %552 = vmatpush1.bf16.msra.mxu0 %v461
  %553 = vmatprep.subr.bf16.mxu0 0
  %554 = vmatpush1.bf16.msra.mxu0 %v460
  %555 = vmatprep.subr.bf16.mxu0 0
  %556 = vmatpush1.bf16.msra.mxu0 %v459
  %557 = vmatprep.subr.bf16.mxu0 0
  %558 = vmatpush1.bf16.msra.mxu0 %v458
  %559 = vmatprep.subr.bf16.mxu0 0
  %560 = vmatpush1.bf16.msra.mxu0 %v457
  %561 = vmatprep.subr.bf16.mxu0 0
  %562 = vmatpush1.bf16.msra.mxu0 %v456
  %563 = vmatprep.subr.bf16.mxu0 0
  %564 = vmatpush1.bf16.msra.mxu0 %v455
  %565 = vmatprep.subr.bf16.mxu0 0
  %566 = vmatpush2.bf16.msra.mxu0 %v470
  %567 = vmatprep.subr.bf16.mxu0 0
  %568 = vmatpush2.bf16.msra.mxu0 %v469
  %569 = vmatprep.subr.bf16.mxu0 0
  %570 = vmatpush2.bf16.msra.mxu0 %v468
  %571 = vmatprep.subr.bf16.mxu0 0
  %572 = vmatpush2.bf16.msra.mxu0 %v467
  %573 = vmatprep.subr.bf16.mxu0 0
  %574 = vmatpush2.bf16.msra.mxu0 %v466
  %575 = vmatprep.subr.bf16.mxu0 0
  %576 = vmatpush2.bf16.msra.mxu0 %v465
  %577 = vmatprep.subr.bf16.mxu0 0
  %578 = vmatpush2.bf16.msra.mxu0 %v464
  %579 = vmatprep.subr.bf16.mxu0 0
  %580 = vmatpush2.bf16.msra.mxu0 %v463
  %581 = vmatprep.mubr.bf16.mxu0 %v249
  %582 = vmatmul.mubr.bf16.gmra.mxu0 %v248
  %v583 = vpop.f32.mrf.mxu0
  %v584 = vadd.f32 %v134, %v583
  %v585 = vpop.f32.mrf.mxu0
  %v586 = vpop.f32.mrf.mxu0
  %v587 = vadd.f32 %v134, %v586
  %v588 = vpop.f32.mrf.mxu0
  %589 = vmatprep.mubr.bf16.mxu0 %v254
  %590 = vmatmul.mubr.bf16.gmra.mxu0 %v253
  %v591 = vpop.f32.mrf.mxu0
  %v592 = vadd.f32 %v134, %v591
  %v593 = vpop.f32.mrf.mxu0
  %v594 = vpop.f32.mrf.mxu0
  %v595 = vadd.f32 %v134, %v594
  %v596 = vpop.f32.mrf.mxu0
  %597 = vmatprep.mubr.bf16.mxu0 %v259
  %598 = vmatmul.mubr.bf16.gmra.mxu0 %v258
  %v599 = vpop.f32.mrf.mxu0
  %v600 = vadd.f32 %v134, %v599
  %v601 = vpop.f32.mrf.mxu0
  %v602 = vpop.f32.mrf.mxu0
  %v603 = vadd.f32 %v134, %v602
  %v604 = vpop.f32.mrf.mxu0
  %605 = vmatprep.mubr.bf16.mxu0 %v264
  %606 = vmatmul.mubr.bf16.gmra.mxu0 %v263
  %v607 = vpop.f32.mrf.mxu0
  %v608 = vadd.f32 %v134, %v607
  %v609 = vpop.f32.mrf.mxu0
  %v610 = vpop.f32.mrf.mxu0
  %v611 = vadd.f32 %v134, %v610
  %v612 = vpop.f32.mrf.mxu0
  %613 = vmatprep.mubr.bf16.mxu0 %v269
  %614 = vmatmul.mubr.bf16.gmra.mxu0 %v268
  %v615 = vpop.f32.mrf.mxu0
  %v616 = vadd.f32 %v134, %v615
  %v617 = vpop.f32.mrf.mxu0
  %v618 = vpop.f32.mrf.mxu0
  %v619 = vadd.f32 %v134, %v618
  %v620 = vpop.f32.mrf.mxu0
  %621 = vmatprep.mubr.bf16.mxu0 %v274
  %622 = vmatmul.mubr.bf16.gmra.mxu0 %v273
  %v623 = vpop.f32.mrf.mxu0
  %v624 = vadd.f32 %v134, %v623
  %v625 = vpop.f32.mrf.mxu0
  %v626 = vpop.f32.mrf.mxu0
  %v627 = vadd.f32 %v134, %v626
  %v628 = vpop.f32.mrf.mxu0
  %629 = vmatprep.mubr.bf16.mxu0 %v279
  %630 = vmatmul.mubr.bf16.gmra.mxu0 %v278
  %v631 = vpop.f32.mrf.mxu0
  %v632 = vadd.f32 %v134, %v631
  %v633 = vpop.f32.mrf.mxu0
  %v634 = vpop.f32.mrf.mxu0
  %v635 = vadd.f32 %v134, %v634
  %v636 = vpop.f32.mrf.mxu0
  %637 = vdwg.mxu0
  %638 = vmatprep.subr.bf16.mxu0 0
  %639 = vmatpush1.bf16.msra.mxu0 %v478
  %640 = vmatprep.subr.bf16.mxu0 0
  %641 = vmatpush1.bf16.msra.mxu0 %v477
  %642 = vmatprep.subr.bf16.mxu0 0
  %643 = vmatpush1.bf16.msra.mxu0 %v476
  %644 = vmatprep.subr.bf16.mxu0 0
  %645 = vmatpush1.bf16.msra.mxu0 %v475
  %646 = vmatprep.subr.bf16.mxu0 0
  %647 = vmatpush1.bf16.msra.mxu0 %v474
  %648 = vmatprep.subr.bf16.mxu0 0
  %649 = vmatpush1.bf16.msra.mxu0 %v473
  %650 = vmatprep.subr.bf16.mxu0 0
  %651 = vmatpush1.bf16.msra.mxu0 %v472
  %652 = vmatprep.subr.bf16.mxu0 0
  %653 = vmatpush1.bf16.msra.mxu0 %v471
  %654 = vmatprep.subr.bf16.mxu0 0
  %655 = vmatpush2.bf16.msra.mxu0 %v486
  %656 = vmatprep.subr.bf16.mxu0 0
  %657 = vmatpush2.bf16.msra.mxu0 %v485
  %658 = vmatprep.subr.bf16.mxu0 0
  %659 = vmatpush2.bf16.msra.mxu0 %v484
  %660 = vmatprep.subr.bf16.mxu0 0
  %661 = vmatpush2.bf16.msra.mxu0 %v483
  %662 = vmatprep.subr.bf16.mxu0 0
  %663 = vmatpush2.bf16.msra.mxu0 %v482
  %664 = vmatprep.subr.bf16.mxu0 0
  %665 = vmatpush2.bf16.msra.mxu0 %v481
  %666 = vmatprep.subr.bf16.mxu0 0
  %667 = vmatpush2.bf16.msra.mxu0 %v480
  %668 = vmatprep.subr.bf16.mxu0 0
  %669 = vmatpush2.bf16.msra.mxu0 %v479
  %670 = vmatprep.mubr.bf16.mxu0 %v251
  %671 = vmatmul.mubr.bf16.gmra.mxu0 %v250
  %v672 = vpop.f32.mrf.mxu0
  %v673 = vadd.f32 %v584, %v672
  %v674 = vpop.f32.mrf.mxu0
  %v675 = vpop.f32.mrf.mxu0
  %v676 = vadd.f32 %v587, %v675
  %v677 = vpop.f32.mrf.mxu0
  %678 = vmatprep.mubr.bf16.mxu0 %v256
  %679 = vmatmul.mubr.bf16.gmra.mxu0 %v255
  %v680 = vpop.f32.mrf.mxu0
  %v681 = vadd.f32 %v592, %v680
  %v682 = vpop.f32.mrf.mxu0
  %v683 = vpop.f32.mrf.mxu0
  %v684 = vadd.f32 %v595, %v683
  %v685 = vpop.f32.mrf.mxu0
  %686 = vmatprep.mubr.bf16.mxu0 %v261
  %687 = vmatmul.mubr.bf16.gmra.mxu0 %v260
  %v688 = vpop.f32.mrf.mxu0
  %v689 = vadd.f32 %v600, %v688
  %v690 = vpop.f32.mrf.mxu0
  %v691 = vpop.f32.mrf.mxu0
  %v692 = vadd.f32 %v603, %v691
  %v693 = vpop.f32.mrf.mxu0
  %694 = vmatprep.mubr.bf16.mxu0 %v266
  %695 = vmatmul.mubr.bf16.gmra.mxu0 %v265
  %v696 = vpop.f32.mrf.mxu0
  %v697 = vadd.f32 %v608, %v696
  %v698 = vpop.f32.mrf.mxu0
  %v699 = vpop.f32.mrf.mxu0
  %v700 = vadd.f32 %v611, %v699
  %v701 = vpop.f32.mrf.mxu0
  %702 = vmatprep.mubr.bf16.mxu0 %v271
  %703 = vmatmul.mubr.bf16.gmra.mxu0 %v270
  %v704 = vpop.f32.mrf.mxu0
  %v705 = vadd.f32 %v616, %v704
  %v706 = vpop.f32.mrf.mxu0
  %v707 = vpop.f32.mrf.mxu0
  %v708 = vadd.f32 %v619, %v707
  %v709 = vpop.f32.mrf.mxu0
  %710 = vmatprep.mubr.bf16.mxu0 %v276
  %711 = vmatmul.mubr.bf16.gmra.mxu0 %v275
  %v712 = vpop.f32.mrf.mxu0
  %v713 = vadd.f32 %v624, %v712
  %v714 = vpop.f32.mrf.mxu0
  %v715 = vpop.f32.mrf.mxu0
  %v716 = vadd.f32 %v627, %v715
  %v717 = vpop.f32.mrf.mxu0
  %718 = vmatprep.mubr.bf16.mxu0 %v281
  %719 = vmatmul.mubr.bf16.gmra.mxu0 %v280
  %v720 = vpop.f32.mrf.mxu0
  %v721 = vadd.f32 %v632, %v720
  %v722 = vpop.f32.mrf.mxu0
  %v723 = vpop.f32.mrf.mxu0
  %v724 = vadd.f32 %v635, %v723
  %v725 = vpop.f32.mrf.mxu0
  %726 = vdwg.mxu0
  %727 = vmatprep.subr.bf16.mxu0 0
  %728 = vmatpush1.bf16.msra.mxu0 0
  %729 = vmatprep.subr.bf16.mxu0 0
  %730 = vmatpush1.bf16.msra.mxu0 0
  %731 = vmatprep.subr.bf16.mxu0 0
  %732 = vmatpush1.bf16.msra.mxu0 0
  %733 = vmatprep.subr.bf16.mxu0 0
  %734 = vmatpush1.bf16.msra.mxu0 0
  %735 = vmatprep.subr.bf16.mxu0 0
  %736 = vmatpush1.bf16.msra.mxu0 %v490
  %737 = vmatprep.subr.bf16.mxu0 0
  %738 = vmatpush1.bf16.msra.mxu0 %v489
  %739 = vmatprep.subr.bf16.mxu0 0
  %740 = vmatpush1.bf16.msra.mxu0 %v488
  %741 = vmatprep.subr.bf16.mxu0 0
  %742 = vmatpush1.bf16.msra.mxu0 %v487
  %743 = vmatprep.subr.bf16.mxu0 0
  %744 = vmatpush2.bf16.msra.mxu0 0
  %745 = vmatprep.subr.bf16.mxu0 0
  %746 = vmatpush2.bf16.msra.mxu0 0
  %747 = vmatprep.subr.bf16.mxu0 0
  %748 = vmatpush2.bf16.msra.mxu0 0
  %749 = vmatprep.subr.bf16.mxu0 0
  %750 = vmatpush2.bf16.msra.mxu0 0
  %751 = vmatprep.subr.bf16.mxu0 0
  %752 = vmatpush2.bf16.msra.mxu0 0
  %753 = vmatprep.subr.bf16.mxu0 0
  %754 = vmatpush2.bf16.msra.mxu0 0
  %755 = vmatprep.subr.bf16.mxu0 0
  %756 = vmatpush2.bf16.msra.mxu0 0
  %757 = vmatprep.subr.bf16.mxu0 0
  %758 = vmatpush2.bf16.msra.mxu0 0
  %759 = vmatprep.mubr.bf16.mxu0 0
  %760 = vmatmul.mubr.bf16.gmra.mxu0 %v529
  %v761 = vpop.f32.mrf.mxu0
  %v762 = vadd.f32 %v673, %v761
  %v763 = vpop.f32.mrf.mxu0
  %v764 = vpop.f32.mrf.mxu0
  %v765 = vadd.f32 %v676, %v764
  %v766 = vpop.f32.mrf.mxu0
  %767 = vmatprep.mubr.bf16.mxu0 0
  %768 = vmatmul.mubr.bf16.gmra.mxu0 %v532
  %v769 = vpop.f32.mrf.mxu0
  %v770 = vadd.f32 %v681, %v769
  %v771 = vpop.f32.mrf.mxu0
  %v772 = vpop.f32.mrf.mxu0
  %v773 = vadd.f32 %v684, %v772
  %v774 = vpop.f32.mrf.mxu0
  %775 = vmatprep.mubr.bf16.mxu0 0
  %776 = vmatmul.mubr.bf16.gmra.mxu0 %v535
  %v777 = vpop.f32.mrf.mxu0
  %v778 = vadd.f32 %v689, %v777
  %v779 = vpop.f32.mrf.mxu0
  %v780 = vpop.f32.mrf.mxu0
  %v781 = vadd.f32 %v692, %v780
  %v782 = vpop.f32.mrf.mxu0
  %783 = vmatprep.mubr.bf16.mxu0 0
  %784 = vmatmul.mubr.bf16.gmra.mxu0 %v538
  %v785 = vpop.f32.mrf.mxu0
  %v786 = vadd.f32 %v697, %v785
  %v787 = vpop.f32.mrf.mxu0
  %v788 = vpop.f32.mrf.mxu0
  %v789 = vadd.f32 %v700, %v788
  %v790 = vpop.f32.mrf.mxu0
  %791 = vmatprep.mubr.bf16.mxu0 0
  %792 = vmatmul.mubr.bf16.gmra.mxu0 %v541
  %v793 = vpop.f32.mrf.mxu0
  %v794 = vadd.f32 %v705, %v793
  %v795 = vpop.f32.mrf.mxu0
  %v796 = vpop.f32.mrf.mxu0
  %v797 = vadd.f32 %v708, %v796
  %v798 = vpop.f32.mrf.mxu0
  %799 = vmatprep.mubr.bf16.mxu0 0
  %800 = vmatmul.mubr.bf16.gmra.mxu0 %v544
  %v801 = vpop.f32.mrf.mxu0
  %v802 = vadd.f32 %v713, %v801
  %v803 = vpop.f32.mrf.mxu0
  %v804 = vpop.f32.mrf.mxu0
  %v805 = vadd.f32 %v716, %v804
  %v806 = vpop.f32.mrf.mxu0
  %807 = vmatprep.mubr.bf16.mxu0 0
  %808 = vmatmul.mubr.bf16.gmra.mxu0 %v547
  %v809 = vpop.f32.mrf.mxu0
  %v810 = vadd.f32 %v721, %v809
  %v811 = vpop.f32.mrf.mxu0
  %v812 = vpop.f32.mrf.mxu0
  %v813 = vadd.f32 %v724, %v812
  %v814 = vpop.f32.mrf.mxu0
  %815 = vdwg.mxu0
  %vm816 = vcmp.gt.f32.partialorder %v762, 0.0
  %vm817 = vcmp.gt.f32.partialorder %v765, 0.0
  %vm818 = vcmp.gt.f32.partialorder %v770, 0.0
  %vm819 = vcmp.gt.f32.partialorder %v773, 0.0
  %vm820 = vcmp.gt.f32.partialorder %v778, 0.0
  %vm821 = vcmp.gt.f32.partialorder %v781, 0.0
  %vm822 = vcmp.gt.f32.partialorder %v786, 0.0
  %vm823 = vcmp.gt.f32.partialorder %v789, 0.0
  %vm824 = vcmp.gt.f32.partialorder %v794, 0.0
  %vm825 = vcmp.gt.f32.partialorder %v797, 0.0
  %vm826 = vcmp.gt.f32.partialorder %v802, 0.0
  %vm827 = vcmp.gt.f32.partialorder %v805, 0.0
  %vm828 = vcmp.gt.f32.partialorder %v810, 0.0
  %vm829 = vcmp.gt.f32.partialorder %v813, 0.0
  %v830 = vmul.f32 %v762, 0.2
  %v831 = vmul.f32 %v765, 0.2
  %v832 = vmul.f32 %v770, 0.2
  %v833 = vmul.f32 %v773, 0.2
  %v834 = vmul.f32 %v778, 0.2
  %v835 = vmul.f32 %v781, 0.2
  %v836 = vmul.f32 %v786, 0.2
  %v837 = vmul.f32 %v789, 0.2
  %v838 = vmul.f32 %v794, 0.2
  %v839 = vmul.f32 %v797, 0.2
  %v840 = vmul.f32 %v802, 0.2
  %v841 = vmul.f32 %v805, 0.2
  %v842 = vmul.f32 %v810, 0.2
  %v843 = vmul.f32 %v813, 0.2
  %v844 = vsel %vm816, %v762, %v830
  %v845 = vsel %vm817, %v765, %v831
  %v846 = vsel %vm818, %v770, %v832
  %v847 = vsel %vm819, %v773, %v833
  %v848 = vsel %vm820, %v778, %v834
  %v849 = vsel %vm821, %v781, %v835
  %v850 = vsel %vm822, %v786, %v836
  %v851 = vsel %vm823, %v789, %v837
  %v852 = vsel %vm824, %v794, %v838
  %v853 = vsel %vm825, %v797, %v839
  %v854 = vsel %vm826, %v802, %v840
  %v855 = vsel %vm827, %v805, %v841
  %v856 = vsel %vm828, %v810, %v842
  %v857 = vsel %vm829, %v813, %v843
  %v858 = vpack.c.bf16 %v845, %v844
  %v859 = vpack.c.bf16 %v847, %v846
  %v860 = vpack.c.bf16 %v849, %v848
  %v861 = vpack.c.bf16 %v851, %v850
  %v862 = vpack.c.bf16 %v853, %v852
  %v863 = vpack.c.bf16 %v855, %v854
  %v864 = vpack.c.bf16 %v857, %v856
  %v872 = vunpack.c.l.b16 %v858
  %v873 = vunpack.c.h.b16 %v858
  %v874 = vunpack.c.l.b16 %v859
  %v875 = vunpack.c.h.b16 %v859
  %v876 = vunpack.c.l.b16 %v860
  %v877 = vunpack.c.h.b16 %v860
  %v878 = vunpack.c.l.b16 %v861
  %v879 = vunpack.c.h.b16 %v861
  %v880 = vunpack.c.l.b16 %v862
  %v881 = vunpack.c.h.b16 %v862
  %v882 = vunpack.c.l.b16 %v863
  %v883 = vunpack.c.h.b16 %v863
  %v884 = vunpack.c.l.b16 %v864
  %v885 = vunpack.c.h.b16 %v864
  %v886 = vpack.c.b16 %v872, %v872
  %v887 = vpack.c.b16 %v873, %v873
  %v888 = vpack.c.b16 %v874, %v874
  %v889 = vpack.c.b16 %v875, %v875
  %v890 = vpack.c.b16 %v876, %v876
  %v891 = vpack.c.b16 %v877, %v877
  %v892 = vpack.c.b16 %v878, %v878
  %v893 = vpack.c.b16 %v879, %v879
  %v894 = vpack.c.b16 %v880, %v880
  %v895 = vpack.c.b16 %v881, %v881
  %v896 = vpack.c.b16 %v882, %v882
  %v897 = vpack.c.b16 %v883, %v883
  %v898 = vpack.c.b16 %v884, %v884
  %v899 = vpack.c.b16 %v885, %v885
  %vm914 = vcmask 519168
  %915 = vst.msk [vmem:[%s3] sm:$0xf] %vm914, %v886
  %916 = vst.msk [vmem:[%s3 + $0x4] sm:$0xf] %vm914, %v887
  %917 = vst.msk [vmem:[%s3 + $0x8] sm:$0xf] %vm914, %v888
  %918 = vst.msk [vmem:[%s3 + $0xc] sm:$0xf] %vm914, %v889
  %919 = vst.msk [vmem:[%s3 + $0x10] sm:$0xf] %vm914, %v890
  %920 = vst.msk [vmem:[%s3 + $0x14] sm:$0xf] %vm914, %v891
  %921 = vst.msk [vmem:[%s3 + $0x18] sm:$0xf] %vm914, %v892
  %922 = vst.msk [vmem:[%s3 + $0x1c] sm:$0xf] %vm914, %v893
  %923 = vst.msk [vmem:[%s3 + $0x20] sm:$0xf] %vm914, %v894
  %924 = vst.msk [vmem:[%s3 + $0x24] sm:$0xf] %vm914, %v895
  %925 = vst.msk [vmem:[%s3 + $0x28] sm:$0xf] %vm914, %v896
  %926 = vst.msk [vmem:[%s3 + $0x2c] sm:$0xf] %vm914, %v897
  %927 = vst.msk [vmem:[%s3 + $0x30] sm:$0xf] %vm914, %v898
  %928 = vst.msk [vmem:[%s3 + $0x34] sm:$0xf] %vm914, %v899
  // Predicated region
  $region14: #{cluster_vae_forward.12} parent=0 // pred_check
    _
  $region15: #{cluster_vae_forward.12} parent=0 // pred_check_branch
    %930 = sbr.rel (0) target = $region17
  $region16: #{cluster_vae_forward.12} parent=0 // pred_region
    _
  $region17: #{cluster_vae_forward.12} parent=0 // pred_fallthru
    _
  // Predicated region
  $region18: #{cluster_vae_forward.12} parent=0 // pred_check
    _
  $region19: #{cluster_vae_forward.12} parent=0 // pred_check_branch
    %932 = sbr.rel (0) target = $region21
  $region20: #{cluster_vae_forward.12} parent=0 // pred_region
    _
  $region21: #{cluster_vae_forward.12} parent=0 // pred_fallthru
    _

// kernel: cluster_vae_forward.13
$region0: #{cluster_vae_forward.13}
  #allocation0 [shape = 'u32[]', space=smem, size = 0x4, offset = 0x4, fixed_abs, tag = 'smem constant byte address 0x4 - core index']
  #allocation1 [shape = 'u32[144,128]{1,0:T(1,128)}', space=vmem, size = 0x12000, scoped, tag = 'internal scratch']
  %s0 = inlined_call_operand.vmem [shape: bf16[8,3136], index: 0, kind: input, shape index: {}]
  %s1 = inlined_call_operand.vmem [shape: bf16[3136,20], index: 1, kind: input, shape index: {}]
  %s2 = inlined_call_operand.vmem [shape: bf16[3136,20], index: 2, kind: input, shape index: {}]
  %s3 = inlined_call_operand.vmem [shape: f32[1,20], index: 3, kind: input, shape index: {}]
  %s4 = inlined_call_operand.vmem [shape: f32[1,20], index: 4, kind: input, shape index: {}]
  %s5 = inlined_call_operand.vmem [shape: f32[8,20], index: 5, kind: input, shape index: {}]
  %s6 = inlined_call_operand.vmem [shape: bf16[20,3136], index: 6, kind: input, shape index: {}]
  %s7 = inlined_call_operand.vmem [shape: f32[1,3136], index: 7, kind: input, shape index: {}]
  %s8 = inlined_call_operand.vmem [shape: bf16[20,256], index: 8, kind: input, shape index: {}]
  %s9 = inlined_call_operand.vmem [shape: f32[1,256], index: 9, kind: input, shape index: {}]
  %s10 = inlined_call_operand.vmem [shape: bf16[256,10], index: 10, kind: input, shape index: {}]
  %s11 = inlined_call_operand.vmem [shape: f32[1,10], index: 11, kind: input, shape index: {}]
  %s12 = inlined_call_operand.vmem [shape: f32[8,20], index: 12, kind: output, shape index: {0}]
  %s13 = inlined_call_operand.vmem [shape: f32[8,20], index: 13, kind: output, shape index: {1}]
  %s14 = inlined_call_operand.vmem [shape: f32[8,20], index: 14, kind: output, shape index: {2}]
  %s15 = inlined_call_operand.vmem [shape: bf16[8,3136], index: 15, kind: output, shape index: {3}]
  %s16 = inlined_call_operand.vmem [shape: f32[8,10], index: 16, kind: output, shape index: {4}]
  %17 = xla_tuple %s12, %s13, %s14, %s15, %s16
  %s18 = sld [smem:[#allocation0]]
  $region90: #{cluster_vae_forward.13} parent=0
    _
  %s20 = ssub.s32 1, %s18
  %s21 = scalar_select 0, %s20, %s18
  // Predicated region
  $region2: #{cluster_vae_forward.13} parent=0 // pred_check
    _
  $region3: #{cluster_vae_forward.13} parent=0 // pred_check_branch
    %23 = sbr.rel (0) target = $region5
  $region4: #{cluster_vae_forward.13} parent=0 // pred_region
    _
  $region5: #{cluster_vae_forward.13} parent=0 // pred_fallthru
    _
  // Predicated region
  $region6: #{cluster_vae_forward.13} parent=0 // pred_check
    _
  $region7: #{cluster_vae_forward.13} parent=0 // pred_check_branch
    %25 = sbr.rel (0) target = $region9
  $region8: #{cluster_vae_forward.13} parent=0 // pred_region
    _
  $region9: #{cluster_vae_forward.13} parent=0 // pred_fallthru
    _
  // Predicated region
  $region10: #{cluster_vae_forward.13} parent=0 // pred_check
    _
  $region11: #{cluster_vae_forward.13} parent=0 // pred_check_branch
    %27 = sbr.rel (0) target = $region13
  $region12: #{cluster_vae_forward.13} parent=0 // pred_region
    _
  $region13: #{cluster_vae_forward.13} parent=0 // pred_fallthru
    _
  // Predicated region
  $region14: #{cluster_vae_forward.13} parent=0 // pred_check
    _
  $region15: #{cluster_vae_forward.13} parent=0 // pred_check_branch
    %29 = sbr.rel (0) target = $region17
  $region16: #{cluster_vae_forward.13} parent=0 // pred_region
    _
  $region17: #{cluster_vae_forward.13} parent=0 // pred_fallthru
    _
  // Predicated region
  $region18: #{cluster_vae_forward.13} parent=0 // pred_check
    _
  $region19: #{cluster_vae_forward.13} parent=0 // pred_check_branch
    %31 = sbr.rel (0) target = $region21
  $region20: #{cluster_vae_forward.13} parent=0 // pred_region
    _
  $region21: #{cluster_vae_forward.13} parent=0 // pred_fallthru
    _
  // Predicated region
  $region22: #{cluster_vae_forward.13} parent=0 // pred_check
    _
  $region23: #{cluster_vae_forward.13} parent=0 // pred_check_branch
    %33 = sbr.rel (0) target = $region25
  $region24: #{cluster_vae_forward.13} parent=0 // pred_region
    _
  $region25: #{cluster_vae_forward.13} parent=0 // pred_fallthru
    _
  // Predicated region
  $region26: #{cluster_vae_forward.13} parent=0 // pred_check
    _
  $region27: #{cluster_vae_forward.13} parent=0 // pred_check_branch
    %35 = sbr.rel (0) target = $region29
  $region28: #{cluster_vae_forward.13} parent=0 // pred_region
    _
  $region29: #{cluster_vae_forward.13} parent=0 // pred_fallthru
    _
  // Predicated region
  $region30: #{cluster_vae_forward.13} parent=0 // pred_check
    _
  $region31: #{cluster_vae_forward.13} parent=0 // pred_check_branch
    %37 = sbr.rel (0) target = $region33
  $region32: #{cluster_vae_forward.13} parent=0 // pred_region
    _
  $region33: #{cluster_vae_forward.13} parent=0 // pred_fallthru
    _
  // Predicated region
  $region34: #{cluster_vae_forward.13} parent=0 // pred_check
    _
  $region35: #{cluster_vae_forward.13} parent=0 // pred_check_branch
    %39 = sbr.rel (0) target = $region37
  $region36: #{cluster_vae_forward.13} parent=0 // pred_region
    _
  $region37: #{cluster_vae_forward.13} parent=0 // pred_fallthru
    _
  // Predicated region
  $region38: #{cluster_vae_forward.13} parent=0 // pred_check
    _
  $region39: #{cluster_vae_forward.13} parent=0 // pred_check_branch
    %41 = sbr.rel (0) target = $region41
  $region40: #{cluster_vae_forward.13} parent=0 // pred_region
    _
  $region41: #{cluster_vae_forward.13} parent=0 // pred_fallthru
    _
  // Predicated region
  $region42: #{cluster_vae_forward.13} parent=0 // pred_check
    _
  $region43: #{cluster_vae_forward.13} parent=0 // pred_check_branch
    %43 = sbr.rel (0) target = $region45
  $region44: #{cluster_vae_forward.13} parent=0 // pred_region
    _
  $region45: #{cluster_vae_forward.13} parent=0 // pred_fallthru
    _
  // Predicated region
  $region46: #{cluster_vae_forward.13} parent=0 // pred_check
    _
  $region47: #{cluster_vae_forward.13} parent=0 // pred_check_branch
    %45 = sbr.rel (0) target = $region49
  $region48: #{cluster_vae_forward.13} parent=0 // pred_region
    _
  $region49: #{cluster_vae_forward.13} parent=0 // pred_fallthru
    _
  %v47 = vld [vmem:[%s0] sm:$0xff]
  %v48 = vld [vmem:[%s0 + $0x8] sm:$0xff]
  %v49 = vld [vmem:[%s0 + $0x10] sm:$0xff]
  %v50 = vld [vmem:[%s0 + $0x18] sm:$0xff]
  %v51 = vld [vmem:[%s0 + $0x20] sm:$0xff]
  %v52 = vld [vmem:[%s0 + $0x28] sm:$0xff]
  %v53 = vld [vmem:[%s0 + $0x30] sm:$0xff]
  %v54 = vld [vmem:[%s0 + $0x38] sm:$0xff]
  %v55 = vld [vmem:[%s0 + $0x40] sm:$0xff]
  %v56 = vld [vmem:[%s0 + $0x48] sm:$0xff]
  %v57 = vld [vmem:[%s0 + $0x50] sm:$0xff]
  %v58 = vld [vmem:[%s0 + $0x58] sm:$0xff]
  %v59 = vld [vmem:[%s0 + $0x60] sm:$0xf]
  %v60 = vld [vmem:[%s1] sm:$0xf]
  %v61 = vld [vmem:[%s1 + $0x4] sm:$0xf]
  %v62 = vld [vmem:[%s1 + $0x8] sm:$0xf]
  %v63 = vld [vmem:[%s1 + $0xc] sm:$0xf]
  %v64 = vld [vmem:[%s1 + $0x10] sm:$0xf]
  %v65 = vld [vmem:[%s1 + $0x14] sm:$0xf]
  %v66 = vld [vmem:[%s1 + $0x18] sm:$0xf]
  %v67 = vld [vmem:[%s1 + $0x1c] sm:$0xf]
  %v68 = vld [vmem:[%s1 + $0x20] sm:$0xf]
  %v69 = vld [vmem:[%s1 + $0x24] sm:$0xf]
  %v70 = vld [vmem:[%s1 + $0x28] sm:$0xf]
  %v71 = vld [vmem:[%s1 + $0x2c] sm:$0xf]
  %v72 = vld [vmem:[%s1 + $0x30] sm:$0xf]
  %v73 = vld [vmem:[%s1 + $0x34] sm:$0xf]
  %v74 = vld [vmem:[%s1 + $0x38] sm:$0xf]
  %v75 = vld [vmem:[%s1 + $0x3c] sm:$0xf]
  %v76 = vld [vmem:[%s1 + $0x40] sm:$0xf]
  %v77 = vld [vmem:[%s1 + $0x44] sm:$0xf]
  %v78 = vld [vmem:[%s1 + $0x48] sm:$0xf]
  %v79 = vld [vmem:[%s1 + $0x4c] sm:$0xf]
  %v80 = vld [vmem:[%s1 + $0x50] sm:$0xf]
  %v81 = vld [vmem:[%s1 + $0x54] sm:$0xf]
  %v82 = vld [vmem:[%s1 + $0x58] sm:$0xf]
  %v83 = vld [vmem:[%s1 + $0x5c] sm:$0xf]
  %v84 = vld [vmem:[%s1 + $0x60] sm:$0xf]
  %v85 = vld [vmem:[%s1 + $0x64] sm:$0xf]
  %v86 = vld [vmem:[%s1 + $0x68] sm:$0xf]
  %v87 = vld [vmem:[%s1 + $0x6c] sm:$0xf]
  %v88 = vld [vmem:[%s1 + $0x70] sm:$0xf]
  %v89 = vld [vmem:[%s1 + $0x74] sm:$0xf]
  %v90 = vld [vmem:[%s1 + $0x78] sm:$0xf]
  %v91 = vld [vmem:[%s1 + $0x7c] sm:$0xf]
  %v92 = vld [vmem:[%s1 + $0x80] sm:$0xf]
  %v93 = vld [vmem:[%s1 + $0x84] sm:$0xf]
  %v94 = vld [vmem:[%s1 + $0x88] sm:$0xf]
  %v95 = vld [vmem:[%s1 + $0x8c] sm:$0xf]
  %v96 = vld [vmem:[%s1 + $0x90] sm:$0xf]
  %v97 = vld [vmem:[%s1 + $0x94] sm:$0xf]
  %v98 = vld [vmem:[%s1 + $0x98] sm:$0xf]
  %v99 = vld [vmem:[%s1 + $0x9c] sm:$0xf]
  %v100 = vld [vmem:[%s1 + $0xa0] sm:$0xf]
  %v101 = vld [vmem:[%s1 + $0xa4] sm:$0xf]
  %v102 = vld [vmem:[%s1 + $0xa8] sm:$0xf]
  %v103 = vld [vmem:[%s1 + $0xac] sm:$0xf]
  %v104 = vld [vmem:[%s1 + $0xb0] sm:$0xf]
  %v105 = vld [vmem:[%s1 + $0xb4] sm:$0xf]
  %v106 = vld [vmem:[%s1 + $0xb8] sm:$0xf]
  %v107 = vld [vmem:[%s1 + $0xbc] sm:$0xf]
  %v108 = vld [vmem:[%s1 + $0xc0] sm:$0xf]
  %v109 = vld [vmem:[%s1 + $0xc4] sm:$0xf]
  %v110 = vld [vmem:[%s1 + $0xc8] sm:$0xf]
  %v111 = vld [vmem:[%s1 + $0xcc] sm:$0xf]
  %v112 = vld [vmem:[%s1 + $0xd0] sm:$0xf]
  %v113 = vld [vmem:[%s1 + $0xd4] sm:$0xf]
  %v114 = vld [vmem:[%s1 + $0xd8] sm:$0xf]
  %v115 = vld [vmem:[%s1 + $0xdc] sm:$0xf]
  %v116 = vld [vmem:[%s1 + $0xe0] sm:$0xf]
  %v117 = vld [vmem:[%s1 + $0xe4] sm:$0xf]
  %v118 = vld [vmem:[%s1 + $0xe8] sm:$0xf]
  %v119 = vld [vmem:[%s1 + $0xec] sm:$0xf]
  %v120 = vld [vmem:[%s1 + $0xf0] sm:$0xf]
  %v121 = vld [vmem:[%s1 + $0xf4] sm:$0xf]
  %v122 = vld [vmem:[%s1 + $0xf8] sm:$0xf]
  %v123 = vld [vmem:[%s1 + $0xfc] sm:$0xf]
  %v124 = vld [vmem:[%s1 + $0x100] sm:$0xf]
  %v125 = vld [vmem:[%s1 + $0x104] sm:$0xf]
  %v126 = vld [vmem:[%s1 + $0x108] sm:$0xf]
  %v127 = vld [vmem:[%s1 + $0x10c] sm:$0xf]
  %v128 = vld [vmem:[%s1 + $0x110] sm:$0xf]
  %v129 = vld [vmem:[%s1 + $0x114] sm:$0xf]
  %v130 = vld [vmem:[%s1 + $0x118] sm:$0xf]
  %v131 = vld [vmem:[%s1 + $0x11c] sm:$0xf]
  %v132 = vld [vmem:[%s1 + $0x120] sm:$0xf]
  %v133 = vld [vmem:[%s1 + $0x124] sm:$0xf]
  %v134 = vld [vmem:[%s1 + $0x128] sm:$0xf]
  %v135 = vld [vmem:[%s1 + $0x12c] sm:$0xf]
  %v136 = vld [vmem:[%s1 + $0x130] sm:$0xf]
  %v137 = vld [vmem:[%s1 + $0x134] sm:$0xf]
  %v138 = vld [vmem:[%s1 + $0x138] sm:$0xf]
  %v139 = vld [vmem:[%s1 + $0x13c] sm:$0xf]
  %v140 = vld [vmem:[%s1 + $0x140] sm:$0xf]
  %v141 = vld [vmem:[%s1 + $0x144] sm:$0xf]
  %v142 = vld [vmem:[%s1 + $0x148] sm:$0xf]
  %v143 = vld [vmem:[%s1 + $0x14c] sm:$0xf]
  %v144 = vld [vmem:[%s1 + $0x150] sm:$0xf]
  %v145 = vld [vmem:[%s1 + $0x154] sm:$0xf]
  %v146 = vld [vmem:[%s1 + $0x158] sm:$0xf]
  %v147 = vld [vmem:[%s1 + $0x15c] sm:$0xf]
  %v148 = vld [vmem:[%s1 + $0x160] sm:$0xf]
  %v149 = vld [vmem:[%s1 + $0x164] sm:$0xf]
  %v150 = vld [vmem:[%s1 + $0x168] sm:$0xf]
  %v151 = vld [vmem:[%s1 + $0x16c] sm:$0xf]
  %v152 = vld [vmem:[%s1 + $0x170] sm:$0xf]
  %v153 = vld [vmem:[%s1 + $0x174] sm:$0xf]
  %v154 = vld [vmem:[%s1 + $0x178] sm:$0xf]
  %v155 = vld [vmem:[%s1 + $0x17c] sm:$0xf]
  %v156 = vld [vmem:[%s1 + $0x180] sm:$0xf]
  %v157 = vld [vmem:[%s1 + $0x184] sm:$0xf]
  %v158 = vld [vmem:[%s1 + $0x188] sm:$0xf]
  %v159 = vld [vmem:[%s1 + $0x18c] sm:$0xf]
  %v160 = vld [vmem:[%s1 + $0x190] sm:$0xf]
  %v161 = vld [vmem:[%s1 + $0x194] sm:$0xf]
  %v162 = vld [vmem:[%s1 + $0x198] sm:$0xf]
  %v163 = vld [vmem:[%s1 + $0x19c] sm:$0xf]
  %v164 = vld [vmem:[%s1 + $0x1a0] sm:$0xf]
  %v165 = vld [vmem:[%s1 + $0x1a4] sm:$0xf]
  %v166 = vld [vmem:[%s1 + $0x1a8] sm:$0xf]
  %v167 = vld [vmem:[%s1 + $0x1ac] sm:$0xf]
  %v168 = vld [vmem:[%s1 + $0x1b0] sm:$0xf]
  %v169 = vld [vmem:[%s1 + $0x1b4] sm:$0xf]
  %v170 = vld [vmem:[%s1 + $0x1b8] sm:$0xf]
  %v171 = vld [vmem:[%s1 + $0x1bc] sm:$0xf]
  %v172 = vld [vmem:[%s1 + $0x1c0] sm:$0xf]
  %v173 = vld [vmem:[%s1 + $0x1c4] sm:$0xf]
  %v174 = vld [vmem:[%s1 + $0x1c8] sm:$0xf]
  %v175 = vld [vmem:[%s1 + $0x1cc] sm:$0xf]
  %v176 = vld [vmem:[%s1 + $0x1d0] sm:$0xf]
  %v177 = vld [vmem:[%s1 + $0x1d4] sm:$0xf]
  %v178 = vld [vmem:[%s1 + $0x1d8] sm:$0xf]
  %v179 = vld [vmem:[%s1 + $0x1dc] sm:$0xf]
  %v180 = vld [vmem:[%s1 + $0x1e0] sm:$0xf]
  %v181 = vld [vmem:[%s1 + $0x1e4] sm:$0xf]
  %v182 = vld [vmem:[%s1 + $0x1e8] sm:$0xf]
  %v183 = vld [vmem:[%s1 + $0x1ec] sm:$0xf]
  %v184 = vld [vmem:[%s1 + $0x1f0] sm:$0xf]
  %v185 = vld [vmem:[%s1 + $0x1f4] sm:$0xf]
  %v186 = vld [vmem:[%s1 + $0x1f8] sm:$0xf]
  %v187 = vld [vmem:[%s1 + $0x1fc] sm:$0xf]
  %v188 = vld [vmem:[%s1 + $0x200] sm:$0xf]
  %v189 = vld [vmem:[%s1 + $0x204] sm:$0xf]
  %v190 = vld [vmem:[%s1 + $0x208] sm:$0xf]
  %v191 = vld [vmem:[%s1 + $0x20c] sm:$0xf]
  %v192 = vld [vmem:[%s1 + $0x210] sm:$0xf]
  %v193 = vld [vmem:[%s1 + $0x214] sm:$0xf]
  %v194 = vld [vmem:[%s1 + $0x218] sm:$0xf]
  %v195 = vld [vmem:[%s1 + $0x21c] sm:$0xf]
  %v196 = vld [vmem:[%s1 + $0x220] sm:$0xf]
  %v197 = vld [vmem:[%s1 + $0x224] sm:$0xf]
  %v198 = vld [vmem:[%s1 + $0x228] sm:$0xf]
  %v199 = vld [vmem:[%s1 + $0x22c] sm:$0xf]
  %v200 = vld [vmem:[%s1 + $0x230] sm:$0xf]
  %v201 = vld [vmem:[%s1 + $0x234] sm:$0xf]
  %v202 = vld [vmem:[%s1 + $0x238] sm:$0xf]
  %v203 = vld [vmem:[%s1 + $0x23c] sm:$0xf]
  %v204 = vld [vmem:[%s1 + $0x240] sm:$0xf]
  %v205 = vld [vmem:[%s1 + $0x244] sm:$0xf]
  %v206 = vld [vmem:[%s1 + $0x248] sm:$0xf]
  %v207 = vld [vmem:[%s1 + $0x24c] sm:$0xf]
  %v208 = vld [vmem:[%s1 + $0x250] sm:$0xf]
  %v209 = vld [vmem:[%s1 + $0x254] sm:$0xf]
  %v210 = vld [vmem:[%s1 + $0x258] sm:$0xf]
  %v211 = vld [vmem:[%s1 + $0x25c] sm:$0xf]
  %v212 = vld [vmem:[%s1 + $0x260] sm:$0xf]
  %v213 = vld [vmem:[%s1 + $0x264] sm:$0xf]
  %v214 = vld [vmem:[%s1 + $0x268] sm:$0xf]
  %v215 = vld [vmem:[%s1 + $0x26c] sm:$0xf]
  %v216 = vld [vmem:[%s1 + $0x270] sm:$0xf]
  %v217 = vld [vmem:[%s1 + $0x274] sm:$0xf]
  %v218 = vld [vmem:[%s1 + $0x278] sm:$0xf]
  %v219 = vld [vmem:[%s1 + $0x27c] sm:$0xf]
  %v220 = vld [vmem:[%s1 + $0x280] sm:$0xf]
  %v221 = vld [vmem:[%s1 + $0x284] sm:$0xf]
  %v222 = vld [vmem:[%s1 + $0x288] sm:$0xf]
  %v223 = vld [vmem:[%s1 + $0x28c] sm:$0xf]
  %v224 = vld [vmem:[%s1 + $0x290] sm:$0xf]
  %v225 = vld [vmem:[%s1 + $0x294] sm:$0xf]
  %v226 = vld [vmem:[%s1 + $0x298] sm:$0xf]
  %v227 = vld [vmem:[%s1 + $0x29c] sm:$0xf]
  %v228 = vld [vmem:[%s1 + $0x2a0] sm:$0xf]
  %v229 = vld [vmem:[%s1 + $0x2a4] sm:$0xf]
  %v230 = vld [vmem:[%s1 + $0x2a8] sm:$0xf]
  %v231 = vld [vmem:[%s1 + $0x2ac] sm:$0xf]
  %v232 = vld [vmem:[%s1 + $0x2b0] sm:$0xf]
  %v233 = vld [vmem:[%s1 + $0x2b4] sm:$0xf]
  %v234 = vld [vmem:[%s1 + $0x2b8] sm:$0xf]
  %v235 = vld [vmem:[%s1 + $0x2bc] sm:$0xf]
  %v236 = vld [vmem:[%s1 + $0x2c0] sm:$0xf]
  %v237 = vld [vmem:[%s1 + $0x2c4] sm:$0xf]
  %v238 = vld [vmem:[%s1 + $0x2c8] sm:$0xf]
  %v239 = vld [vmem:[%s1 + $0x2cc] sm:$0xf]
  %v240 = vld [vmem:[%s1 + $0x2d0] sm:$0xf]
  %v241 = vld [vmem:[%s1 + $0x2d4] sm:$0xf]
  %v242 = vld [vmem:[%s1 + $0x2d8] sm:$0xf]
  %v243 = vld [vmem:[%s1 + $0x2dc] sm:$0xf]
  %v244 = vld [vmem:[%s1 + $0x2e0] sm:$0xf]
  %v245 = vld [vmem:[%s1 + $0x2e4] sm:$0xf]
  %v246 = vld [vmem:[%s1 + $0x2e8] sm:$0xf]
  %v247 = vld [vmem:[%s1 + $0x2ec] sm:$0xf]
  %v248 = vld [vmem:[%s1 + $0x2f0] sm:$0xf]
  %v249 = vld [vmem:[%s1 + $0x2f4] sm:$0xf]
  %v250 = vld [vmem:[%s1 + $0x2f8] sm:$0xf]
  %v251 = vld [vmem:[%s1 + $0x2fc] sm:$0xf]
  %v252 = vld [vmem:[%s1 + $0x300] sm:$0xf]
  %v253 = vld [vmem:[%s1 + $0x304] sm:$0xf]
  %v254 = vld [vmem:[%s1 + $0x308] sm:$0xf]
  %v255 = vld [vmem:[%s1 + $0x30c] sm:$0xf]
  %v256 = vld [vmem:[%s1 + $0x310] sm:$0xf]
  %v257 = vld [vmem:[%s1 + $0x314] sm:$0xf]
  %v258 = vld [vmem:[%s1 + $0x318] sm:$0xf]
  %v259 = vld [vmem:[%s1 + $0x31c] sm:$0xf]
  %v260 = vld [vmem:[%s1 + $0x320] sm:$0xf]
  %v261 = vld [vmem:[%s1 + $0x324] sm:$0xf]
  %v262 = vld [vmem:[%s1 + $0x328] sm:$0xf]
  %v263 = vld [vmem:[%s1 + $0x32c] sm:$0xf]
  %v264 = vld [vmem:[%s1 + $0x330] sm:$0xf]
  %v265 = vld [vmem:[%s1 + $0x334] sm:$0xf]
  %v266 = vld [vmem:[%s1 + $0x338] sm:$0xf]
  %v267 = vld [vmem:[%s1 + $0x33c] sm:$0xf]
  %v268 = vld [vmem:[%s1 + $0x340] sm:$0xf]
  %v269 = vld [vmem:[%s1 + $0x344] sm:$0xf]
  %v270 = vld [vmem:[%s1 + $0x348] sm:$0xf]
  %v271 = vld [vmem:[%s1 + $0x34c] sm:$0xf]
  %v272 = vld [vmem:[%s1 + $0x350] sm:$0xf]
  %v273 = vld [vmem:[%s1 + $0x354] sm:$0xf]
  %v274 = vld [vmem:[%s1 + $0x358] sm:$0xf]
  %v275 = vld [vmem:[%s1 + $0x35c] sm:$0xf]
  %v276 = vld [vmem:[%s1 + $0x360] sm:$0xf]
  %v277 = vld [vmem:[%s1 + $0x364] sm:$0xf]
  %v278 = vld [vmem:[%s1 + $0x368] sm:$0xf]
  %v279 = vld [vmem:[%s1 + $0x36c] sm:$0xf]
  %v280 = vld [vmem:[%s1 + $0x370] sm:$0xf]
  %v281 = vld [vmem:[%s1 + $0x374] sm:$0xf]
  %v282 = vld [vmem:[%s1 + $0x378] sm:$0xf]
  %v283 = vld [vmem:[%s1 + $0x37c] sm:$0xf]
  %v284 = vld [vmem:[%s1 + $0x380] sm:$0xf]
  %v285 = vld [vmem:[%s1 + $0x384] sm:$0xf]
  %v286 = vld [vmem:[%s1 + $0x388] sm:$0xf]
  %v287 = vld [vmem:[%s1 + $0x38c] sm:$0xf]
  %v288 = vld [vmem:[%s1 + $0x390] sm:$0xf]
  %v289 = vld [vmem:[%s1 + $0x394] sm:$0xf]
  %v290 = vld [vmem:[%s1 + $0x398] sm:$0xf]
  %v291 = vld [vmem:[%s1 + $0x39c] sm:$0xf]
  %v292 = vld [vmem:[%s1 + $0x3a0] sm:$0xf]
  %v293 = vld [vmem:[%s1 + $0x3a4] sm:$0xf]
  %v294 = vld [vmem:[%s1 + $0x3a8] sm:$0xf]
  %v295 = vld [vmem:[%s1 + $0x3ac] sm:$0xf]
  %v296 = vld [vmem:[%s1 + $0x3b0] sm:$0xf]
  %v297 = vld [vmem:[%s1 + $0x3b4] sm:$0xf]
  %v298 = vld [vmem:[%s1 + $0x3b8] sm:$0xf]
  %v299 = vld [vmem:[%s1 + $0x3bc] sm:$0xf]
  %v300 = vld [vmem:[%s1 + $0x3c0] sm:$0xf]
  %v301 = vld [vmem:[%s1 + $0x3c4] sm:$0xf]
  %v302 = vld [vmem:[%s1 + $0x3c8] sm:$0xf]
  %v303 = vld [vmem:[%s1 + $0x3cc] sm:$0xf]
  %v304 = vld [vmem:[%s1 + $0x3d0] sm:$0xf]
  %v305 = vld [vmem:[%s1 + $0x3d4] sm:$0xf]
  %v306 = vld [vmem:[%s1 + $0x3d8] sm:$0xf]
  %v307 = vld [vmem:[%s1 + $0x3dc] sm:$0xf]
  %v308 = vld [vmem:[%s1 + $0x3e0] sm:$0xf]
  %v309 = vld [vmem:[%s1 + $0x3e4] sm:$0xf]
  %v310 = vld [vmem:[%s1 + $0x3e8] sm:$0xf]
  %v311 = vld [vmem:[%s1 + $0x3ec] sm:$0xf]
  %v312 = vld [vmem:[%s1 + $0x3f0] sm:$0xf]
  %v313 = vld [vmem:[%s1 + $0x3f4] sm:$0xf]
  %v314 = vld [vmem:[%s1 + $0x3f8] sm:$0xf]
  %v315 = vld [vmem:[%s1 + $0x3fc] sm:$0xf]
  %v316 = vld [vmem:[%s1 + $0x400] sm:$0xf]
  %v317 = vld [vmem:[%s1 + $0x404] sm:$0xf]
  %v318 = vld [vmem:[%s1 + $0x408] sm:$0xf]
  %v319 = vld [vmem:[%s1 + $0x40c] sm:$0xf]
  %v320 = vld [vmem:[%s1 + $0x410] sm:$0xf]
  %v321 = vld [vmem:[%s1 + $0x414] sm:$0xf]
  %v322 = vld [vmem:[%s1 + $0x418] sm:$0xf]
  %v323 = vld [vmem:[%s1 + $0x41c] sm:$0xf]
  %v324 = vld [vmem:[%s1 + $0x420] sm:$0xf]
  %v325 = vld [vmem:[%s1 + $0x424] sm:$0xf]
  %v326 = vld [vmem:[%s1 + $0x428] sm:$0xf]
  %v327 = vld [vmem:[%s1 + $0x42c] sm:$0xf]
  %v328 = vld [vmem:[%s1 + $0x430] sm:$0xf]
  %v329 = vld [vmem:[%s1 + $0x434] sm:$0xf]
  %v330 = vld [vmem:[%s1 + $0x438] sm:$0xf]
  %v331 = vld [vmem:[%s1 + $0x43c] sm:$0xf]
  %v332 = vld [vmem:[%s1 + $0x440] sm:$0xf]
  %v333 = vld [vmem:[%s1 + $0x444] sm:$0xf]
  %v334 = vld [vmem:[%s1 + $0x448] sm:$0xf]
  %v335 = vld [vmem:[%s1 + $0x44c] sm:$0xf]
  %v336 = vld [vmem:[%s1 + $0x450] sm:$0xf]
  %v337 = vld [vmem:[%s1 + $0x454] sm:$0xf]
  %v338 = vld [vmem:[%s1 + $0x458] sm:$0xf]
  %v339 = vld [vmem:[%s1 + $0x45c] sm:$0xf]
  %v340 = vld [vmem:[%s1 + $0x460] sm:$0xf]
  %v341 = vld [vmem:[%s1 + $0x464] sm:$0xf]
  %v342 = vld [vmem:[%s1 + $0x468] sm:$0xf]
  %v343 = vld [vmem:[%s1 + $0x46c] sm:$0xf]
  %v344 = vld [vmem:[%s1 + $0x470] sm:$0xf]
  %v345 = vld [vmem:[%s1 + $0x474] sm:$0xf]
  %v346 = vld [vmem:[%s1 + $0x478] sm:$0xf]
  %v347 = vld [vmem:[%s1 + $0x47c] sm:$0xf]
  %v348 = vld [vmem:[%s1 + $0x480] sm:$0xf]
  %v349 = vld [vmem:[%s1 + $0x484] sm:$0xf]
  %v350 = vld [vmem:[%s1 + $0x488] sm:$0xf]
  %v351 = vld [vmem:[%s1 + $0x48c] sm:$0xf]
  %v352 = vld [vmem:[%s1 + $0x490] sm:$0xf]
  %v353 = vld [vmem:[%s1 + $0x494] sm:$0xf]
  %v354 = vld [vmem:[%s1 + $0x498] sm:$0xf]
  %v355 = vld [vmem:[%s1 + $0x49c] sm:$0xf]
  %v356 = vld [vmem:[%s1 + $0x4a0] sm:$0xf]
  %v357 = vld [vmem:[%s1 + $0x4a4] sm:$0xf]
  %v358 = vld [vmem:[%s1 + $0x4a8] sm:$0xf]
  %v359 = vld [vmem:[%s1 + $0x4ac] sm:$0xf]
  %v360 = vld [vmem:[%s1 + $0x4b0] sm:$0xf]
  %v361 = vld [vmem:[%s1 + $0x4b4] sm:$0xf]
  %v362 = vld [vmem:[%s1 + $0x4b8] sm:$0xf]
  %v363 = vld [vmem:[%s1 + $0x4bc] sm:$0xf]
  %v364 = vld [vmem:[%s1 + $0x4c0] sm:$0xf]
  %v365 = vld [vmem:[%s1 + $0x4c4] sm:$0xf]
  %v366 = vld [vmem:[%s1 + $0x4c8] sm:$0xf]
  %v367 = vld [vmem:[%s1 + $0x4cc] sm:$0xf]
  %v368 = vld [vmem:[%s1 + $0x4d0] sm:$0xf]
  %v369 = vld [vmem:[%s1 + $0x4d4] sm:$0xf]
  %v370 = vld [vmem:[%s1 + $0x4d8] sm:$0xf]
  %v371 = vld [vmem:[%s1 + $0x4dc] sm:$0xf]
  %v372 = vld [vmem:[%s1 + $0x4e0] sm:$0xf]
  %v373 = vld [vmem:[%s1 + $0x4e4] sm:$0xf]
  %v374 = vld [vmem:[%s1 + $0x4e8] sm:$0xf]
  %v375 = vld [vmem:[%s1 + $0x4ec] sm:$0xf]
  %v376 = vld [vmem:[%s1 + $0x4f0] sm:$0xf]
  %v377 = vld [vmem:[%s1 + $0x4f4] sm:$0xf]
  %v378 = vld [vmem:[%s1 + $0x4f8] sm:$0xf]
  %v379 = vld [vmem:[%s1 + $0x4fc] sm:$0xf]
  %v380 = vld [vmem:[%s1 + $0x500] sm:$0xf]
  %v381 = vld [vmem:[%s1 + $0x504] sm:$0xf]
  %v382 = vld [vmem:[%s1 + $0x508] sm:$0xf]
  %v383 = vld [vmem:[%s1 + $0x50c] sm:$0xf]
  %v384 = vld [vmem:[%s1 + $0x510] sm:$0xf]
  %v385 = vld [vmem:[%s1 + $0x514] sm:$0xf]
  %v386 = vld [vmem:[%s1 + $0x518] sm:$0xf]
  %v387 = vld [vmem:[%s1 + $0x51c] sm:$0xf]
  %v388 = vld [vmem:[%s1 + $0x520] sm:$0xf]
  %v389 = vld [vmem:[%s1 + $0x524] sm:$0xf]
  %v390 = vld [vmem:[%s1 + $0x528] sm:$0xf]
  %v391 = vld [vmem:[%s1 + $0x52c] sm:$0xf]
  %v392 = vld [vmem:[%s1 + $0x530] sm:$0xf]
  %v393 = vld [vmem:[%s1 + $0x534] sm:$0xf]
  %v394 = vld [vmem:[%s1 + $0x538] sm:$0xf]
  %v395 = vld [vmem:[%s1 + $0x53c] sm:$0xf]
  %v396 = vld [vmem:[%s1 + $0x540] sm:$0xf]
  %v397 = vld [vmem:[%s1 + $0x544] sm:$0xf]
  %v398 = vld [vmem:[%s1 + $0x548] sm:$0xf]
  %v399 = vld [vmem:[%s1 + $0x54c] sm:$0xf]
  %v400 = vld [vmem:[%s1 + $0x550] sm:$0xf]
  %v401 = vld [vmem:[%s1 + $0x554] sm:$0xf]
  %v402 = vld [vmem:[%s1 + $0x558] sm:$0xf]
  %v403 = vld [vmem:[%s1 + $0x55c] sm:$0xf]
  %v404 = vld [vmem:[%s1 + $0x560] sm:$0xf]
  %v405 = vld [vmem:[%s1 + $0x564] sm:$0xf]
  %v406 = vld [vmem:[%s1 + $0x568] sm:$0xf]
  %v407 = vld [vmem:[%s1 + $0x56c] sm:$0xf]
  %v408 = vld [vmem:[%s1 + $0x570] sm:$0xf]
  %v409 = vld [vmem:[%s1 + $0x574] sm:$0xf]
  %v410 = vld [vmem:[%s1 + $0x578] sm:$0xf]
  %v411 = vld [vmem:[%s1 + $0x57c] sm:$0xf]
  %v412 = vld [vmem:[%s1 + $0x580] sm:$0xf]
  %v413 = vld [vmem:[%s1 + $0x584] sm:$0xf]
  %v414 = vld [vmem:[%s1 + $0x588] sm:$0xf]
  %v415 = vld [vmem:[%s1 + $0x58c] sm:$0xf]
  %v416 = vld [vmem:[%s1 + $0x590] sm:$0xf]
  %v417 = vld [vmem:[%s1 + $0x594] sm:$0xf]
  %v418 = vld [vmem:[%s1 + $0x598] sm:$0xf]
  %v419 = vld [vmem:[%s1 + $0x59c] sm:$0xf]
  %v420 = vld [vmem:[%s1 + $0x5a0] sm:$0xf]
  %v421 = vld [vmem:[%s1 + $0x5a4] sm:$0xf]
  %v422 = vld [vmem:[%s1 + $0x5a8] sm:$0xf]
  %v423 = vld [vmem:[%s1 + $0x5ac] sm:$0xf]
  %v424 = vld [vmem:[%s1 + $0x5b0] sm:$0xf]
  %v425 = vld [vmem:[%s1 + $0x5b4] sm:$0xf]
  %v426 = vld [vmem:[%s1 + $0x5b8] sm:$0xf]
  %v427 = vld [vmem:[%s1 + $0x5bc] sm:$0xf]
  %v428 = vld [vmem:[%s1 + $0x5c0] sm:$0xf]
  %v429 = vld [vmem:[%s1 + $0x5c4] sm:$0xf]
  %v430 = vld [vmem:[%s1 + $0x5c8] sm:$0xf]
  %v431 = vld [vmem:[%s1 + $0x5cc] sm:$0xf]
  %v432 = vld [vmem:[%s1 + $0x5d0] sm:$0xf]
  %v433 = vld [vmem:[%s1 + $0x5d4] sm:$0xf]
  %v434 = vld [vmem:[%s1 + $0x5d8] sm:$0xf]
  %v435 = vld [vmem:[%s1 + $0x5dc] sm:$0xf]
  %v436 = vld [vmem:[%s1 + $0x5e0] sm:$0xf]
  %v437 = vld [vmem:[%s1 + $0x5e4] sm:$0xf]
  %v438 = vld [vmem:[%s1 + $0x5e8] sm:$0xf]
  %v439 = vld [vmem:[%s1 + $0x5ec] sm:$0xf]
  %v440 = vld [vmem:[%s1 + $0x5f0] sm:$0xf]
  %v441 = vld [vmem:[%s1 + $0x5f4] sm:$0xf]
  %v442 = vld [vmem:[%s1 + $0x5f8] sm:$0xf]
  %v443 = vld [vmem:[%s1 + $0x5fc] sm:$0xf]
  %v444 = vld [vmem:[%s1 + $0x600] sm:$0xf]
  %v445 = vld [vmem:[%s1 + $0x604] sm:$0xf]
  %v446 = vld [vmem:[%s1 + $0x608] sm:$0xf]
  %v447 = vld [vmem:[%s1 + $0x60c] sm:$0xf]
  %v448 = vld [vmem:[%s1 + $0x610] sm:$0xf]
  %v449 = vld [vmem:[%s1 + $0x614] sm:$0xf]
  %v450 = vld [vmem:[%s1 + $0x618] sm:$0xf]
  %v451 = vld [vmem:[%s1 + $0x61c] sm:$0xf]
  %v452 = vld [vmem:[%s3] sm:$0x1]
  %v454 = vlaneseq
  %v455 = vshrl.u32 %v454, 7
  %v456 = vsub.s32 0, %v455
  %v457 = vrot.slane %v452, %v456
  %v472 = vunpack.c.l.b16 %v47
  %v473 = vunpack.c.h.b16 %v47
  %v474 = vunpack.c.l.b16 %v48
  %v475 = vunpack.c.h.b16 %v48
  %v476 = vunpack.c.l.b16 %v49
  %v477 = vunpack.c.h.b16 %v49
  %v478 = vunpack.c.l.b16 %v50
  %v479 = vunpack.c.h.b16 %v50
  %v480 = vunpack.c.l.b16 %v51
  %v481 = vunpack.c.h.b16 %v51
  %v482 = vunpack.c.l.b16 %v52
  %v483 = vunpack.c.h.b16 %v52
  %v484 = vunpack.c.l.b16 %v53
  %v485 = vunpack.c.h.b16 %v53
  %v486 = vunpack.c.l.b16 %v54
  %v487 = vunpack.c.h.b16 %v54
  %v488 = vunpack.c.l.b16 %v55
  %v489 = vunpack.c.h.b16 %v55
  %v490 = vunpack.c.l.b16 %v56
  %v491 = vunpack.c.h.b16 %v56
  %v492 = vunpack.c.l.b16 %v57
  %v493 = vunpack.c.h.b16 %v57
  %v494 = vunpack.c.l.b16 %v58
  %v495 = vunpack.c.h.b16 %v58
  %v496 = vunpack.c.l.b16 %v59
  %v497 = vpack.c.b16 %v472, %v472
  %v498 = vpack.c.b16 %v473, %v473
  %v499 = vpack.c.b16 %v474, %v474
  %v500 = vpack.c.b16 %v475, %v475
  %v501 = vpack.c.b16 %v476, %v476
  %v502 = vpack.c.b16 %v477, %v477
  %v503 = vpack.c.b16 %v478, %v478
  %v504 = vpack.c.b16 %v479, %v479
  %v505 = vpack.c.b16 %v480, %v480
  %v506 = vpack.c.b16 %v481, %v481
  %v507 = vpack.c.b16 %v482, %v482
  %v508 = vpack.c.b16 %v483, %v483
  %v509 = vpack.c.b16 %v484, %v484
  %v510 = vpack.c.b16 %v485, %v485
  %v511 = vpack.c.b16 %v486, %v486
  %v512 = vpack.c.b16 %v487, %v487
  %v513 = vpack.c.b16 %v488, %v488
  %v514 = vpack.c.b16 %v489, %v489
  %v515 = vpack.c.b16 %v490, %v490
  %v516 = vpack.c.b16 %v491, %v491
  %v517 = vpack.c.b16 %v492, %v492
  %v518 = vpack.c.b16 %v493, %v493
  %v519 = vpack.c.b16 %v494, %v494
  %v520 = vpack.c.b16 %v495, %v495
  %v521 = vpack.c.b16 %v496, %v496
  %v938 = vunpack.c.l.b16 %v60
  %v939 = vunpack.c.l.b16 %v61
  %v940 = vunpack.c.l.b16 %v62
  %v941 = vunpack.c.l.b16 %v63
  %v942 = vunpack.c.l.b16 %v64
  %v943 = vunpack.c.l.b16 %v65
  %v944 = vunpack.c.l.b16 %v66
  %v945 = vunpack.c.l.b16 %v67
  %v946 = vunpack.c.l.b16 %v68
  %v947 = vunpack.c.l.b16 %v69
  %v948 = vunpack.c.l.b16 %v70
  %v949 = vunpack.c.l.b16 %v71
  %v950 = vunpack.c.l.b16 %v72
  %v951 = vunpack.c.l.b16 %v73
  %v952 = vunpack.c.l.b16 %v74
  %v953 = vunpack.c.l.b16 %v75
  %v954 = vunpack.c.l.b16 %v76
  %v955 = vunpack.c.l.b16 %v77
  %v956 = vunpack.c.l.b16 %v78
  %v957 = vunpack.c.l.b16 %v79
  %v958 = vunpack.c.l.b16 %v80
  %v959 = vunpack.c.l.b16 %v81
  %v960 = vunpack.c.l.b16 %v82
  %v961 = vunpack.c.l.b16 %v83
  %v962 = vunpack.c.l.b16 %v84
  %v963 = vunpack.c.l.b16 %v85
  %v964 = vunpack.c.l.b16 %v86
  %v965 = vunpack.c.l.b16 %v87
  %v966 = vunpack.c.l.b16 %v88
  %v967 = vunpack.c.l.b16 %v89
  %v968 = vunpack.c.l.b16 %v90
  %v969 = vunpack.c.l.b16 %v91
  %v970 = vunpack.c.l.b16 %v92
  %v971 = vunpack.c.l.b16 %v93
  %v972 = vunpack.c.l.b16 %v94
  %v973 = vunpack.c.l.b16 %v95
  %v974 = vunpack.c.l.b16 %v96
  %v975 = vunpack.c.l.b16 %v97
  %v976 = vunpack.c.l.b16 %v98
  %v977 = vunpack.c.l.b16 %v99
  %v978 = vunpack.c.l.b16 %v100
  %v979 = vunpack.c.l.b16 %v101
  %v980 = vunpack.c.l.b16 %v102
  %v981 = vunpack.c.l.b16 %v103
  %v982 = vunpack.c.l.b16 %v104
  %v983 = vunpack.c.l.b16 %v105
  %v984 = vunpack.c.l.b16 %v106
  %v985 = vunpack.c.l.b16 %v107
  %v986 = vunpack.c.l.b16 %v108
  %v987 = vunpack.c.l.b16 %v109
  %v988 = vunpack.c.l.b16 %v110
  %v989 = vunpack.c.l.b16 %v111
  %v990 = vunpack.c.l.b16 %v112
  %v991 = vunpack.c.l.b16 %v113
  %v992 = vunpack.c.l.b16 %v114
  %v993 = vunpack.c.l.b16 %v115
  %v994 = vunpack.c.l.b16 %v116
  %v995 = vunpack.c.l.b16 %v117
  %v996 = vunpack.c.l.b16 %v118
  %v997 = vunpack.c.l.b16 %v119
  %v998 = vunpack.c.l.b16 %v120
  %v999 = vunpack.c.l.b16 %v121
  %v1000 = vunpack.c.l.b16 %v122
  %v1001 = vunpack.c.l.b16 %v123
  %v1002 = vunpack.c.l.b16 %v124
  %v1003 = vunpack.c.l.b16 %v125
  %v1004 = vunpack.c.l.b16 %v126
  %v1005 = vunpack.c.l.b16 %v127
  %v1006 = vunpack.c.l.b16 %v128
  %v1007 = vunpack.c.l.b16 %v129
  %v1008 = vunpack.c.l.b16 %v130
  %v1009 = vunpack.c.l.b16 %v131
  %v1010 = vunpack.c.l.b16 %v132
  %v1011 = vunpack.c.l.b16 %v133
  %v1012 = vunpack.c.l.b16 %v134
  %v1013 = vunpack.c.l.b16 %v135
  %v1014 = vunpack.c.l.b16 %v136
  %v1015 = vunpack.c.l.b16 %v137
  %v1016 = vunpack.c.l.b16 %v138
  %v1017 = vunpack.c.l.b16 %v139
  %v1018 = vunpack.c.l.b16 %v140
  %v1019 = vunpack.c.l.b16 %v141
  %v1020 = vunpack.c.l.b16 %v142
  %v1021 = vunpack.c.l.b16 %v143
  %v1022 = vunpack.c.l.b16 %v144
  %v1023 = vunpack.c.l.b16 %v145
  %v1024 = vunpack.c.l.b16 %v146
  %v1025 = vunpack.c.l.b16 %v147
  %v1026 = vunpack.c.l.b16 %v148
  %v1027 = vunpack.c.l.b16 %v149
  %v1028 = vunpack.c.l.b16 %v150
  %v1029 = vunpack.c.l.b16 %v151
  %v1030 = vunpack.c.l.b16 %v152
  %v1031 = vunpack.c.l.b16 %v153
  %v1032 = vunpack.c.l.b16 %v154
  %v1033 = vunpack.c.l.b16 %v155
  %v1034 = vunpack.c.l.b16 %v156
  %v1035 = vunpack.c.l.b16 %v157
  %v1036 = vunpack.c.l.b16 %v158
  %v1037 = vunpack.c.l.b16 %v159
  %v1038 = vunpack.c.l.b16 %v160
  %v1039 = vunpack.c.l.b16 %v161
  %v1040 = vunpack.c.l.b16 %v162
  %v1041 = vunpack.c.l.b16 %v163
  %v1042 = vunpack.c.l.b16 %v164
  %v1043 = vunpack.c.l.b16 %v165
  %v1044 = vunpack.c.l.b16 %v166
  %v1045 = vunpack.c.l.b16 %v167
  %v1046 = vunpack.c.l.b16 %v168
  %v1047 = vunpack.c.l.b16 %v169
  %v1048 = vunpack.c.l.b16 %v170
  %v1049 = vunpack.c.l.b16 %v171
  %v1050 = vunpack.c.l.b16 %v172
  %v1051 = vunpack.c.l.b16 %v173
  %v1052 = vunpack.c.l.b16 %v174
  %v1053 = vunpack.c.l.b16 %v175
  %v1054 = vunpack.c.l.b16 %v176
  %v1055 = vunpack.c.l.b16 %v177
  %v1056 = vunpack.c.l.b16 %v178
  %v1057 = vunpack.c.l.b16 %v179
  %v1058 = vunpack.c.l.b16 %v180
  %v1059 = vunpack.c.l.b16 %v181
  %v1060 = vunpack.c.l.b16 %v182
  %v1061 = vunpack.c.l.b16 %v183
  %v1062 = vunpack.c.l.b16 %v184
  %v1063 = vunpack.c.l.b16 %v185
  %v1064 = vunpack.c.l.b16 %v186
  %v1065 = vunpack.c.l.b16 %v187
  %v1066 = vunpack.c.l.b16 %v188
  %v1067 = vunpack.c.l.b16 %v189
  %v1068 = vunpack.c.l.b16 %v190
  %v1069 = vunpack.c.l.b16 %v191
  %v1070 = vunpack.c.l.b16 %v192
  %v1071 = vunpack.c.l.b16 %v193
  %v1072 = vunpack.c.l.b16 %v194
  %v1073 = vunpack.c.l.b16 %v195
  %v1074 = vunpack.c.l.b16 %v196
  %v1075 = vunpack.c.l.b16 %v197
  %v1076 = vunpack.c.l.b16 %v198
  %v1077 = vunpack.c.l.b16 %v199
  %v1078 = vunpack.c.l.b16 %v200
  %v1079 = vunpack.c.l.b16 %v201
  %v1080 = vunpack.c.l.b16 %v202
  %v1081 = vunpack.c.l.b16 %v203
  %v1082 = vunpack.c.l.b16 %v204
  %v1083 = vunpack.c.l.b16 %v205
  %v1084 = vunpack.c.l.b16 %v206
  %v1085 = vunpack.c.l.b16 %v207
  %v1086 = vunpack.c.l.b16 %v208
  %v1087 = vunpack.c.l.b16 %v209
  %v1088 = vunpack.c.l.b16 %v210
  %v1089 = vunpack.c.l.b16 %v211
  %v1090 = vunpack.c.l.b16 %v212
  %v1091 = vunpack.c.l.b16 %v213
  %v1092 = vunpack.c.l.b16 %v214
  %v1093 = vunpack.c.l.b16 %v215
  %v1094 = vunpack.c.l.b16 %v216
  %v1095 = vunpack.c.l.b16 %v217
  %v1096 = vunpack.c.l.b16 %v218
  %v1097 = vunpack.c.l.b16 %v219
  %v1098 = vunpack.c.l.b16 %v220
  %v1099 = vunpack.c.l.b16 %v221
  %v1100 = vunpack.c.l.b16 %v222
  %v1101 = vunpack.c.l.b16 %v223
  %v1102 = vunpack.c.l.b16 %v224
  %v1103 = vunpack.c.l.b16 %v225
  %v1104 = vunpack.c.l.b16 %v226
  %v1105 = vunpack.c.l.b16 %v227
  %v1106 = vunpack.c.l.b16 %v228
  %v1107 = vunpack.c.l.b16 %v229
  %v1108 = vunpack.c.l.b16 %v230
  %v1109 = vunpack.c.l.b16 %v231
  %v1110 = vunpack.c.l.b16 %v232
  %v1111 = vunpack.c.l.b16 %v233
  %v1112 = vunpack.c.l.b16 %v234
  %v1113 = vunpack.c.l.b16 %v235
  %v1114 = vunpack.c.l.b16 %v236
  %v1115 = vunpack.c.l.b16 %v237
  %v1116 = vunpack.c.l.b16 %v238
  %v1117 = vunpack.c.l.b16 %v239
  %v1118 = vunpack.c.l.b16 %v240
  %v1119 = vunpack.c.l.b16 %v241
  %v1120 = vunpack.c.l.b16 %v242
  %v1121 = vunpack.c.l.b16 %v243
  %v1122 = vunpack.c.l.b16 %v244
  %v1123 = vunpack.c.l.b16 %v245
  %v1124 = vunpack.c.l.b16 %v246
  %v1125 = vunpack.c.l.b16 %v247
  %v1126 = vunpack.c.l.b16 %v248
  %v1127 = vunpack.c.l.b16 %v249
  %v1128 = vunpack.c.l.b16 %v250
  %v1129 = vunpack.c.l.b16 %v251
  %v1130 = vunpack.c.l.b16 %v252
  %v1131 = vunpack.c.l.b16 %v253
  %v1132 = vunpack.c.l.b16 %v254
  %v1133 = vunpack.c.l.b16 %v255
  %v1134 = vunpack.c.l.b16 %v256
  %v1135 = vunpack.c.l.b16 %v257
  %v1136 = vunpack.c.l.b16 %v258
  %v1137 = vunpack.c.l.b16 %v259
  %v1138 = vunpack.c.l.b16 %v260
  %v1139 = vunpack.c.l.b16 %v261
  %v1140 = vunpack.c.l.b16 %v262
  %v1141 = vunpack.c.l.b16 %v263
  %v1142 = vunpack.c.l.b16 %v264
  %v1143 = vunpack.c.l.b16 %v265
  %v1144 = vunpack.c.l.b16 %v266
  %v1145 = vunpack.c.l.b16 %v267
  %v1146 = vunpack.c.l.b16 %v268
  %v1147 = vunpack.c.l.b16 %v269
  %v1148 = vunpack.c.l.b16 %v270
  %v1149 = vunpack.c.l.b16 %v271
  %v1150 = vunpack.c.l.b16 %v272
  %v1151 = vunpack.c.l.b16 %v273
  %v1152 = vunpack.c.l.b16 %v274
  %v1153 = vunpack.c.l.b16 %v275
  %v1154 = vunpack.c.l.b16 %v276
  %v1155 = vunpack.c.l.b16 %v277
  %v1156 = vunpack.c.l.b16 %v278
  %v1157 = vunpack.c.l.b16 %v279
  %v1158 = vunpack.c.l.b16 %v280
  %v1159 = vunpack.c.l.b16 %v281
  %v1160 = vunpack.c.l.b16 %v282
  %v1161 = vunpack.c.l.b16 %v283
  %v1162 = vunpack.c.l.b16 %v284
  %v1163 = vunpack.c.l.b16 %v285
  %v1164 = vunpack.c.l.b16 %v286
  %v1165 = vunpack.c.l.b16 %v287
  %v1166 = vunpack.c.l.b16 %v288
  %v1167 = vunpack.c.l.b16 %v289
  %v1168 = vunpack.c.l.b16 %v290
  %v1169 = vunpack.c.l.b16 %v291
  %v1170 = vunpack.c.l.b16 %v292
  %v1171 = vunpack.c.l.b16 %v293
  %v1172 = vunpack.c.l.b16 %v294
  %v1173 = vunpack.c.l.b16 %v295
  %v1174 = vunpack.c.l.b16 %v296
  %v1175 = vunpack.c.l.b16 %v297
  %v1176 = vunpack.c.l.b16 %v298
  %v1177 = vunpack.c.l.b16 %v299
  %v1178 = vunpack.c.l.b16 %v300
  %v1179 = vunpack.c.l.b16 %v301
  %v1180 = vunpack.c.l.b16 %v302
  %v1181 = vunpack.c.l.b16 %v303
  %v1182 = vunpack.c.l.b16 %v304
  %v1183 = vunpack.c.l.b16 %v305
  %v1184 = vunpack.c.l.b16 %v306
  %v1185 = vunpack.c.l.b16 %v307
  %v1186 = vunpack.c.l.b16 %v308
  %v1187 = vunpack.c.l.b16 %v309
  %v1188 = vunpack.c.l.b16 %v310
  %v1189 = vunpack.c.l.b16 %v311
  %v1190 = vunpack.c.l.b16 %v312
  %v1191 = vunpack.c.l.b16 %v313
  %v1192 = vunpack.c.l.b16 %v314
  %v1193 = vunpack.c.l.b16 %v315
  %v1194 = vunpack.c.l.b16 %v316
  %v1195 = vunpack.c.l.b16 %v317
  %v1196 = vunpack.c.l.b16 %v318
  %v1197 = vunpack.c.l.b16 %v319
  %v1198 = vunpack.c.l.b16 %v320
  %v1199 = vunpack.c.l.b16 %v321
  %v1200 = vunpack.c.l.b16 %v322
  %v1201 = vunpack.c.l.b16 %v323
  %v1202 = vunpack.c.l.b16 %v324
  %v1203 = vunpack.c.l.b16 %v325
  %v1204 = vunpack.c.l.b16 %v326
  %v1205 = vunpack.c.l.b16 %v327
  %v1206 = vunpack.c.l.b16 %v328
  %v1207 = vunpack.c.l.b16 %v329
  %v1208 = vunpack.c.l.b16 %v330
  %v1209 = vunpack.c.l.b16 %v331
  %v1210 = vunpack.c.l.b16 %v332
  %v1211 = vunpack.c.l.b16 %v333
  %v1212 = vunpack.c.l.b16 %v334
  %v1213 = vunpack.c.l.b16 %v335
  %v1214 = vunpack.c.l.b16 %v336
  %v1215 = vunpack.c.l.b16 %v337
  %v1216 = vunpack.c.l.b16 %v338
  %v1217 = vunpack.c.l.b16 %v339
  %v1218 = vunpack.c.l.b16 %v340
  %v1219 = vunpack.c.l.b16 %v341
  %v1220 = vunpack.c.l.b16 %v342
  %v1221 = vunpack.c.l.b16 %v343
  %v1222 = vunpack.c.l.b16 %v344
  %v1223 = vunpack.c.l.b16 %v345
  %v1224 = vunpack.c.l.b16 %v346
  %v1225 = vunpack.c.l.b16 %v347
  %v1226 = vunpack.c.l.b16 %v348
  %v1227 = vunpack.c.l.b16 %v349
  %v1228 = vunpack.c.l.b16 %v350
  %v1229 = vunpack.c.l.b16 %v351
  %v1230 = vunpack.c.l.b16 %v352
  %v1231 = vunpack.c.l.b16 %v353
  %v1232 = vunpack.c.l.b16 %v354
  %v1233 = vunpack.c.l.b16 %v355
  %v1234 = vunpack.c.l.b16 %v356
  %v1235 = vunpack.c.l.b16 %v357
  %v1236 = vunpack.c.l.b16 %v358
  %v1237 = vunpack.c.l.b16 %v359
  %v1238 = vunpack.c.l.b16 %v360
  %v1239 = vunpack.c.l.b16 %v361
  %v1240 = vunpack.c.l.b16 %v362
  %v1241 = vunpack.c.l.b16 %v363
  %v1242 = vunpack.c.l.b16 %v364
  %v1243 = vunpack.c.l.b16 %v365
  %v1244 = vunpack.c.l.b16 %v366
  %v1245 = vunpack.c.l.b16 %v367
  %v1246 = vunpack.c.l.b16 %v368
  %v1247 = vunpack.c.l.b16 %v369
  %v1248 = vunpack.c.l.b16 %v370
  %v1249 = vunpack.c.l.b16 %v371
  %v1250 = vunpack.c.l.b16 %v372
  %v1251 = vunpack.c.l.b16 %v373
  %v1252 = vunpack.c.l.b16 %v374
  %v1253 = vunpack.c.l.b16 %v375
  %v1254 = vunpack.c.l.b16 %v376
  %v1255 = vunpack.c.l.b16 %v377
  %v1256 = vunpack.c.l.b16 %v378
  %v1257 = vunpack.c.l.b16 %v379
  %v1258 = vunpack.c.l.b16 %v380
  %v1259 = vunpack.c.l.b16 %v381
  %v1260 = vunpack.c.l.b16 %v382
  %v1261 = vunpack.c.l.b16 %v383
  %v1262 = vunpack.c.l.b16 %v384
  %v1263 = vunpack.c.l.b16 %v385
  %v1264 = vunpack.c.l.b16 %v386
  %v1265 = vunpack.c.l.b16 %v387
  %v1266 = vunpack.c.l.b16 %v388
  %v1267 = vunpack.c.l.b16 %v389
  %v1268 = vunpack.c.l.b16 %v390
  %v1269 = vunpack.c.l.b16 %v391
  %v1270 = vunpack.c.l.b16 %v392
  %v1271 = vunpack.c.l.b16 %v393
  %v1272 = vunpack.c.l.b16 %v394
  %v1273 = vunpack.c.l.b16 %v395
  %v1274 = vunpack.c.l.b16 %v396
  %v1275 = vunpack.c.l.b16 %v397
  %v1276 = vunpack.c.l.b16 %v398
  %v1277 = vunpack.c.l.b16 %v399
  %v1278 = vunpack.c.l.b16 %v400
  %v1279 = vunpack.c.l.b16 %v401
  %v1280 = vunpack.c.l.b16 %v402
  %v1281 = vunpack.c.l.b16 %v403
  %v1282 = vunpack.c.l.b16 %v404
  %v1283 = vunpack.c.l.b16 %v405
  %v1284 = vunpack.c.l.b16 %v406
  %v1285 = vunpack.c.l.b16 %v407
  %v1286 = vunpack.c.l.b16 %v408
  %v1287 = vunpack.c.l.b16 %v409
  %v1288 = vunpack.c.l.b16 %v410
  %v1289 = vunpack.c.l.b16 %v411
  %v1290 = vunpack.c.l.b16 %v412
  %v1291 = vunpack.c.l.b16 %v413
  %v1292 = vunpack.c.l.b16 %v414
  %v1293 = vunpack.c.l.b16 %v415
  %v1294 = vunpack.c.l.b16 %v416
  %v1295 = vunpack.c.l.b16 %v417
  %v1296 = vunpack.c.l.b16 %v418
  %v1297 = vunpack.c.l.b16 %v419
  %v1298 = vunpack.c.l.b16 %v420
  %v1299 = vunpack.c.l.b16 %v421
  %v1300 = vunpack.c.l.b16 %v422
  %v1301 = vunpack.c.l.b16 %v423
  %v1302 = vunpack.c.l.b16 %v424
  %v1303 = vunpack.c.l.b16 %v425
  %v1304 = vunpack.c.l.b16 %v426
  %v1305 = vunpack.c.l.b16 %v427
  %v1306 = vunpack.c.l.b16 %v428
  %v1307 = vunpack.c.l.b16 %v429
  %v1308 = vunpack.c.l.b16 %v430
  %v1309 = vunpack.c.l.b16 %v431
  %v1310 = vunpack.c.l.b16 %v432
  %v1311 = vunpack.c.l.b16 %v433
  %v1312 = vunpack.c.l.b16 %v434
  %v1313 = vunpack.c.l.b16 %v435
  %v1314 = vunpack.c.l.b16 %v436
  %v1315 = vunpack.c.l.b16 %v437
  %v1316 = vunpack.c.l.b16 %v438
  %v1317 = vunpack.c.l.b16 %v439
  %v1318 = vunpack.c.l.b16 %v440
  %v1319 = vunpack.c.l.b16 %v441
  %v1320 = vunpack.c.l.b16 %v442
  %v1321 = vunpack.c.l.b16 %v443
  %v1322 = vunpack.c.l.b16 %v444
  %v1323 = vunpack.c.l.b16 %v445
  %v1324 = vunpack.c.l.b16 %v446
  %v1325 = vunpack.c.l.b16 %v447
  %v1326 = vunpack.c.l.b16 %v448
  %v1327 = vunpack.c.l.b16 %v449
  %v1328 = vunpack.c.l.b16 %v450
  %v1329 = vunpack.c.l.b16 %v451
  %v1330 = vpack.c.b16 %v939, %v938
  %v1331 = vpack.c.b16 %v941, %v940
  %v1332 = vpack.c.b16 %v943, %v942
  %v1333 = vpack.c.b16 %v945, %v944
  %v1334 = vpack.c.b16 %v947, %v946
  %v1335 = vpack.c.b16 %v949, %v948
  %v1336 = vpack.c.b16 %v951, %v950
  %v1337 = vpack.c.b16 %v953, %v952
  %v1338 = vpack.c.b16 %v955, %v954
  %v1339 = vpack.c.b16 %v957, %v956
  %v1340 = vpack.c.b16 %v959, %v958
  %v1341 = vpack.c.b16 %v961, %v960
  %v1342 = vpack.c.b16 %v963, %v962
  %v1343 = vpack.c.b16 %v965, %v964
  %v1344 = vpack.c.b16 %v967, %v966
  %v1345 = vpack.c.b16 %v969, %v968
  %v1346 = vpack.c.b16 %v971, %v970
  %v1347 = vpack.c.b16 %v973, %v972
  %v1348 = vpack.c.b16 %v975, %v974
  %v1349 = vpack.c.b16 %v977, %v976
  %v1350 = vpack.c.b16 %v979, %v978
  %v1351 = vpack.c.b16 %v981, %v980
  %v1352 = vpack.c.b16 %v983, %v982
  %v1353 = vpack.c.b16 %v985, %v984
  %v1354 = vpack.c.b16 %v987, %v986
  %v1355 = vpack.c.b16 %v989, %v988
  %v1356 = vpack.c.b16 %v991, %v990
  %v1357 = vpack.c.b16 %v993, %v992
  %v1358 = vpack.c.b16 %v995, %v994
  %v1359 = vpack.c.b16 %v997, %v996
  %v1360 = vpack.c.b16 %v999, %v998
  %v1361 = vpack.c.b16 %v1001, %v1000
  %v1362 = vpack.c.b16 %v1003, %v1002
  %v1363 = vpack.c.b16 %v1005, %v1004
  %v1364 = vpack.c.b16 %v1007, %v1006
  %v1365 = vpack.c.b16 %v1009, %v1008
  %v1366 = vpack.c.b16 %v1011, %v1010
  %v1367 = vpack.c.b16 %v1013, %v1012
  %v1368 = vpack.c.b16 %v1015, %v1014
  %v1369 = vpack.c.b16 %v1017, %v1016
  %v1370 = vpack.c.b16 %v1019, %v1018
  %v1371 = vpack.c.b16 %v1021, %v1020
  %v1372 = vpack.c.b16 %v1023, %v1022
  %v1373 = vpack.c.b16 %v1025, %v1024
  %v1374 = vpack.c.b16 %v1027, %v1026
  %v1375 = vpack.c.b16 %v1029, %v1028
  %v1376 = vpack.c.b16 %v1031, %v1030
  %v1377 = vpack.c.b16 %v1033, %v1032
  %v1378 = vpack.c.b16 %v1035, %v1034
  %v1379 = vpack.c.b16 %v1037, %v1036
  %v1380 = vpack.c.b16 %v1039, %v1038
  %v1381 = vpack.c.b16 %v1041, %v1040
  %v1382 = vpack.c.b16 %v1043, %v1042
  %v1383 = vpack.c.b16 %v1045, %v1044
  %v1384 = vpack.c.b16 %v1047, %v1046
  %v1385 = vpack.c.b16 %v1049, %v1048
  %v1386 = vpack.c.b16 %v1051, %v1050
  %v1387 = vpack.c.b16 %v1053, %v1052
  %v1388 = vpack.c.b16 %v1055, %v1054
  %v1389 = vpack.c.b16 %v1057, %v1056
  %v1390 = vpack.c.b16 %v1059, %v1058
  %v1391 = vpack.c.b16 %v1061, %v1060
  %v1392 = vpack.c.b16 %v1063, %v1062
  %v1393 = vpack.c.b16 %v1065, %v1064
  %v1394 = vpack.c.b16 %v1067, %v1066
  %v1395 = vpack.c.b16 %v1069, %v1068
  %v1396 = vpack.c.b16 %v1071, %v1070
  %v1397 = vpack.c.b16 %v1073, %v1072
  %v1398 = vpack.c.b16 %v1075, %v1074
  %v1399 = vpack.c.b16 %v1077, %v1076
  %v1400 = vpack.c.b16 %v1079, %v1078
  %v1401 = vpack.c.b16 %v1081, %v1080
  %v1402 = vpack.c.b16 %v1083, %v1082
  %v1403 = vpack.c.b16 %v1085, %v1084
  %v1404 = vpack.c.b16 %v1087, %v1086
  %v1405 = vpack.c.b16 %v1089, %v1088
  %v1406 = vpack.c.b16 %v1091, %v1090
  %v1407 = vpack.c.b16 %v1093, %v1092
  %v1408 = vpack.c.b16 %v1095, %v1094
  %v1409 = vpack.c.b16 %v1097, %v1096
  %v1410 = vpack.c.b16 %v1099, %v1098
  %v1411 = vpack.c.b16 %v1101, %v1100
  %v1412 = vpack.c.b16 %v1103, %v1102
  %v1413 = vpack.c.b16 %v1105, %v1104
  %v1414 = vpack.c.b16 %v1107, %v1106
  %v1415 = vpack.c.b16 %v1109, %v1108
  %v1416 = vpack.c.b16 %v1111, %v1110
  %v1417 = vpack.c.b16 %v1113, %v1112
  %v1418 = vpack.c.b16 %v1115, %v1114
  %v1419 = vpack.c.b16 %v1117, %v1116
  %v1420 = vpack.c.b16 %v1119, %v1118
  %v1421 = vpack.c.b16 %v1121, %v1120
  %v1422 = vpack.c.b16 %v1123, %v1122
  %v1423 = vpack.c.b16 %v1125, %v1124
  %v1424 = vpack.c.b16 %v1127, %v1126
  %v1425 = vpack.c.b16 %v1129, %v1128
  %v1426 = vpack.c.b16 %v1131, %v1130
  %v1427 = vpack.c.b16 %v1133, %v1132
  %v1428 = vpack.c.b16 %v1135, %v1134
  %v1429 = vpack.c.b16 %v1137, %v1136
  %v1430 = vpack.c.b16 %v1139, %v1138
  %v1431 = vpack.c.b16 %v1141, %v1140
  %v1432 = vpack.c.b16 %v1143, %v1142
  %v1433 = vpack.c.b16 %v1145, %v1144
  %v1434 = vpack.c.b16 %v1147, %v1146
  %v1435 = vpack.c.b16 %v1149, %v1148
  %v1436 = vpack.c.b16 %v1151, %v1150
  %v1437 = vpack.c.b16 %v1153, %v1152
  %v1438 = vpack.c.b16 %v1155, %v1154
  %v1439 = vpack.c.b16 %v1157, %v1156
  %v1440 = vpack.c.b16 %v1159, %v1158
  %v1441 = vpack.c.b16 %v1161, %v1160
  %v1442 = vpack.c.b16 %v1163, %v1162
  %v1443 = vpack.c.b16 %v1165, %v1164
  %v1444 = vpack.c.b16 %v1167, %v1166
  %v1445 = vpack.c.b16 %v1169, %v1168
  %v1446 = vpack.c.b16 %v1171, %v1170
  %v1447 = vpack.c.b16 %v1173, %v1172
  %v1448 = vpack.c.b16 %v1175, %v1174
  %v1449 = vpack.c.b16 %v1177, %v1176
  %v1450 = vpack.c.b16 %v1179, %v1178
  %v1451 = vpack.c.b16 %v1181, %v1180
  %v1452 = vpack.c.b16 %v1183, %v1182
  %v1453 = vpack.c.b16 %v1185, %v1184
  %v1454 = vpack.c.b16 %v1187, %v1186
  %v1455 = vpack.c.b16 %v1189, %v1188
  %v1456 = vpack.c.b16 %v1191, %v1190
  %v1457 = vpack.c.b16 %v1193, %v1192
  %v1458 = vpack.c.b16 %v1195, %v1194
  %v1459 = vpack.c.b16 %v1197, %v1196
  %v1460 = vpack.c.b16 %v1199, %v1198
  %v1461 = vpack.c.b16 %v1201, %v1200
  %v1462 = vpack.c.b16 %v1203, %v1202
  %v1463 = vpack.c.b16 %v1205, %v1204
  %v1464 = vpack.c.b16 %v1207, %v1206
  %v1465 = vpack.c.b16 %v1209, %v1208
  %v1466 = vpack.c.b16 %v1211, %v1210
  %v1467 = vpack.c.b16 %v1213, %v1212
  %v1468 = vpack.c.b16 %v1215, %v1214
  %v1469 = vpack.c.b16 %v1217, %v1216
  %v1470 = vpack.c.b16 %v1219, %v1218
  %v1471 = vpack.c.b16 %v1221, %v1220
  %v1472 = vpack.c.b16 %v1223, %v1222
  %v1473 = vpack.c.b16 %v1225, %v1224
  %v1474 = vpack.c.b16 %v1227, %v1226
  %v1475 = vpack.c.b16 %v1229, %v1228
  %v1476 = vpack.c.b16 %v1231, %v1230
  %v1477 = vpack.c.b16 %v1233, %v1232
  %v1478 = vpack.c.b16 %v1235, %v1234
  %v1479 = vpack.c.b16 %v1237, %v1236
  %v1480 = vpack.c.b16 %v1239, %v1238
  %v1481 = vpack.c.b16 %v1241, %v1240
  %v1482 = vpack.c.b16 %v1243, %v1242
  %v1483 = vpack.c.b16 %v1245, %v1244
  %v1484 = vpack.c.b16 %v1247, %v1246
  %v1485 = vpack.c.b16 %v1249, %v1248
  %v1486 = vpack.c.b16 %v1251, %v1250
  %v1487 = vpack.c.b16 %v1253, %v1252
  %v1488 = vpack.c.b16 %v1255, %v1254
  %v1489 = vpack.c.b16 %v1257, %v1256
  %v1490 = vpack.c.b16 %v1259, %v1258
  %v1491 = vpack.c.b16 %v1261, %v1260
  %v1492 = vpack.c.b16 %v1263, %v1262
  %v1493 = vpack.c.b16 %v1265, %v1264
  %v1494 = vpack.c.b16 %v1267, %v1266
  %v1495 = vpack.c.b16 %v1269, %v1268
  %v1496 = vpack.c.b16 %v1271, %v1270
  %v1497 = vpack.c.b16 %v1273, %v1272
  %v1498 = vpack.c.b16 %v1275, %v1274
  %v1499 = vpack.c.b16 %v1277, %v1276
  %v1500 = vpack.c.b16 %v1279, %v1278
  %v1501 = vpack.c.b16 %v1281, %v1280
  %v1502 = vpack.c.b16 %v1283, %v1282
  %v1503 = vpack.c.b16 %v1285, %v1284
  %v1504 = vpack.c.b16 %v1287, %v1286
  %v1505 = vpack.c.b16 %v1289, %v1288
  %v1506 = vpack.c.b16 %v1291, %v1290
  %v1507 = vpack.c.b16 %v1293, %v1292
  %v1508 = vpack.c.b16 %v1295, %v1294
  %v1509 = vpack.c.b16 %v1297, %v1296
  %v1510 = vpack.c.b16 %v1299, %v1298
  %v1511 = vpack.c.b16 %v1301, %v1300
  %v1512 = vpack.c.b16 %v1303, %v1302
  %v1513 = vpack.c.b16 %v1305, %v1304
  %v1514 = vpack.c.b16 %v1307, %v1306
  %v1515 = vpack.c.b16 %v1309, %v1308
  %v1516 = vpack.c.b16 %v1311, %v1310
  %v1517 = vpack.c.b16 %v1313, %v1312
  %v1518 = vpack.c.b16 %v1315, %v1314
  %v1519 = vpack.c.b16 %v1317, %v1316
  %v1520 = vpack.c.b16 %v1319, %v1318
  %v1521 = vpack.c.b16 %v1321, %v1320
  %v1522 = vpack.c.b16 %v1323, %v1322
  %v1523 = vpack.c.b16 %v1325, %v1324
  %v1524 = vpack.c.b16 %v1327, %v1326
  %v1525 = vpack.c.b16 %v1329, %v1328
  %vm1722 = vcmask 523264
  %v1724 = vsel %vm1722, %v521, 0
  %1726 = vmatprep.subr.bf16.mxu0 0
  %1727 = vmatpush1.bf16.msra.mxu0 %v1337
  %1728 = vmatprep.subr.bf16.mxu0 0
  %1729 = vmatpush1.bf16.msra.mxu0 %v1336
  %1730 = vmatprep.subr.bf16.mxu0 0
  %1731 = vmatpush1.bf16.msra.mxu0 %v1335
  %1732 = vmatprep.subr.bf16.mxu0 0
  %1733 = vmatpush1.bf16.msra.mxu0 %v1334
  %1734 = vmatprep.subr.bf16.mxu0 0
  %1735 = vmatpush1.bf16.msra.mxu0 %v1333
  %1736 = vmatprep.subr.bf16.mxu0 0
  %1737 = vmatpush1.bf16.msra.mxu0 %v1332
  %1738 = vmatprep.subr.bf16.mxu0 0
  %1739 = vmatpush1.bf16.msra.mxu0 %v1331
  %1740 = vmatprep.subr.bf16.mxu0 0
  %1741 = vmatpush1.bf16.msra.mxu0 %v1330
  %1742 = vmatprep.subr.bf16.mxu0 0
  %1743 = vmatpush2.bf16.msra.mxu0 %v1345
  %1744 = vmatprep.subr.bf16.mxu0 0
  %1745 = vmatpush2.bf16.msra.mxu0 %v1344
  %1746 = vmatprep.subr.bf16.mxu0 0
  %1747 = vmatpush2.bf16.msra.mxu0 %v1343
  %1748 = vmatprep.subr.bf16.mxu0 0
  %1749 = vmatpush2.bf16.msra.mxu0 %v1342
  %1750 = vmatprep.subr.bf16.mxu0 0
  %1751 = vmatpush2.bf16.msra.mxu0 %v1341
  %1752 = vmatprep.subr.bf16.mxu0 0
  %1753 = vmatpush2.bf16.msra.mxu0 %v1340
  %1754 = vmatprep.subr.bf16.mxu0 0
  %1755 = vmatpush2.bf16.msra.mxu0 %v1339
  %1756 = vmatprep.subr.bf16.mxu0 0
  %1757 = vmatpush2.bf16.msra.mxu0 %v1338
  %1758 = vmatprep.mubr.bf16.mxu0 %v498
  %1759 = vmatmul.mubr.bf16.gmra.mxu0 %v497
  %v1760 = vpop.f32.mrf.mxu0
  %v1761 = vadd.f32 %v457, %v1760
  %v1762 = vpop.f32.mrf.mxu0
  %v1763 = vpop.f32.mrf.mxu0
  %v1764 = vpop.f32.mrf.mxu0
  %1765 = vdwg.mxu0
  %1766 = vmatprep.subr.bf16.mxu0 0
  %1767 = vmatpush1.bf16.msra.mxu0 %v1353
  %1768 = vmatprep.subr.bf16.mxu0 0
  %1769 = vmatpush1.bf16.msra.mxu0 %v1352
  %1770 = vmatprep.subr.bf16.mxu0 0
  %1771 = vmatpush1.bf16.msra.mxu0 %v1351
  %1772 = vmatprep.subr.bf16.mxu0 0
  %1773 = vmatpush1.bf16.msra.mxu0 %v1350
  %1774 = vmatprep.subr.bf16.mxu0 0
  %1775 = vmatpush1.bf16.msra.mxu0 %v1349
  %1776 = vmatprep.subr.bf16.mxu0 0
  %1777 = vmatpush1.bf16.msra.mxu0 %v1348
  %1778 = vmatprep.subr.bf16.mxu0 0
  %1779 = vmatpush1.bf16.msra.mxu0 %v1347
  %1780 = vmatprep.subr.bf16.mxu0 0
  %1781 = vmatpush1.bf16.msra.mxu0 %v1346
  %1782 = vmatprep.subr.bf16.mxu0 0
  %1783 = vmatpush2.bf16.msra.mxu0 %v1361
  %1784 = vmatprep.subr.bf16.mxu0 0
  %1785 = vmatpush2.bf16.msra.mxu0 %v1360
  %1786 = vmatprep.subr.bf16.mxu0 0
  %1787 = vmatpush2.bf16.msra.mxu0 %v1359
  %1788 = vmatprep.subr.bf16.mxu0 0
  %1789 = vmatpush2.bf16.msra.mxu0 %v1358
  %1790 = vmatprep.subr.bf16.mxu0 0
  %1791 = vmatpush2.bf16.msra.mxu0 %v1357
  %1792 = vmatprep.subr.bf16.mxu0 0
  %1793 = vmatpush2.bf16.msra.mxu0 %v1356
  %1794 = vmatprep.subr.bf16.mxu0 0
  %1795 = vmatpush2.bf16.msra.mxu0 %v1355
  %1796 = vmatprep.subr.bf16.mxu0 0
  %1797 = vmatpush2.bf16.msra.mxu0 %v1354
  %1798 = vmatprep.mubr.bf16.mxu0 %v500
  %1799 = vmatmul.mubr.bf16.gmra.mxu0 %v499
  %v1800 = vpop.f32.mrf.mxu0
  %v1801 = vadd.f32 %v1761, %v1800
  %v1802 = vpop.f32.mrf.mxu0
  %v1803 = vpop.f32.mrf.mxu0
  %v1804 = vpop.f32.mrf.mxu0
  %1805 = vdwg.mxu0
  %1806 = vmatprep.subr.bf16.mxu0 0
  %1807 = vmatpush1.bf16.msra.mxu0 %v1369
  %1808 = vmatprep.subr.bf16.mxu0 0
  %1809 = vmatpush1.bf16.msra.mxu0 %v1368
  %1810 = vmatprep.subr.bf16.mxu0 0
  %1811 = vmatpush1.bf16.msra.mxu0 %v1367
  %1812 = vmatprep.subr.bf16.mxu0 0
  %1813 = vmatpush1.bf16.msra.mxu0 %v1366
  %1814 = vmatprep.subr.bf16.mxu0 0
  %1815 = vmatpush1.bf16.msra.mxu0 %v1365
  %1816 = vmatprep.subr.bf16.mxu0 0
  %1817 = vmatpush1.bf16.msra.mxu0 %v1364
  %1818 = vmatprep.subr.bf16.mxu0 0
  %1819 = vmatpush1.bf16.msra.mxu0 %v1363
  %1820 = vmatprep.subr.bf16.mxu0 0
  %1821 = vmatpush1.bf16.msra.mxu0 %v1362
  %1822 = vmatprep.subr.bf16.mxu0 0
  %1823 = vmatpush2.bf16.msra.mxu0 %v1377
  %1824 = vmatprep.subr.bf16.mxu0 0
  %1825 = vmatpush2.bf16.msra.mxu0 %v1376
  %1826 = vmatprep.subr.bf16.mxu0 0
  %1827 = vmatpush2.bf16.msra.mxu0 %v1375
  %1828 = vmatprep.subr.bf16.mxu0 0
  %1829 = vmatpush2.bf16.msra.mxu0 %v1374
  %1830 = vmatprep.subr.bf16.mxu0 0
  %1831 = vmatpush2.bf16.msra.mxu0 %v1373
  %1832 = vmatprep.subr.bf16.mxu0 0
  %1833 = vmatpush2.bf16.msra.mxu0 %v1372
  %1834 = vmatprep.subr.bf16.mxu0 0
  %1835 = vmatpush2.bf16.msra.mxu0 %v1371
  %1836 = vmatprep.subr.bf16.mxu0 0
  %1837 = vmatpush2.bf16.msra.mxu0 %v1370
  %1838 = vmatprep.mubr.bf16.mxu0 %v502
  %1839 = vmatmul.mubr.bf16.gmra.mxu0 %v501
  %v1840 = vpop.f32.mrf.mxu0
  %v1841 = vadd.f32 %v1801, %v1840
  %v1842 = vpop.f32.mrf.mxu0
  %v1843 = vpop.f32.mrf.mxu0
  %v1844 = vpop.f32.mrf.mxu0
  %1845 = vdwg.mxu0
  %1846 = vmatprep.subr.bf16.mxu0 0
  %1847 = vmatpush1.bf16.msra.mxu0 %v1385
  %1848 = vmatprep.subr.bf16.mxu0 0
  %1849 = vmatpush1.bf16.msra.mxu0 %v1384
  %1850 = vmatprep.subr.bf16.mxu0 0
  %1851 = vmatpush1.bf16.msra.mxu0 %v1383
  %1852 = vmatprep.subr.bf16.mxu0 0
  %1853 = vmatpush1.bf16.msra.mxu0 %v1382
  %1854 = vmatprep.subr.bf16.mxu0 0
  %1855 = vmatpush1.bf16.msra.mxu0 %v1381
  %1856 = vmatprep.subr.bf16.mxu0 0
  %1857 = vmatpush1.bf16.msra.mxu0 %v1380
  %1858 = vmatprep.subr.bf16.mxu0 0
  %1859 = vmatpush1.bf16.msra.mxu0 %v1379
  %1860 = vmatprep.subr.bf16.mxu0 0
  %1861 = vmatpush1.bf16.msra.mxu0 %v1378
  %1862 = vmatprep.subr.bf16.mxu0 0
  %1863 = vmatpush2.bf16.msra.mxu0 %v1393
  %1864 = vmatprep.subr.bf16.mxu0 0
  %1865 = vmatpush2.bf16.msra.mxu0 %v1392
  %1866 = vmatprep.subr.bf16.mxu0 0
  %1867 = vmatpush2.bf16.msra.mxu0 %v1391
  %1868 = vmatprep.subr.bf16.mxu0 0
  %1869 = vmatpush2.bf16.msra.mxu0 %v1390
  %1870 = vmatprep.subr.bf16.mxu0 0
  %1871 = vmatpush2.bf16.msra.mxu0 %v1389
  %1872 = vmatprep.subr.bf16.mxu0 0
  %1873 = vmatpush2.bf16.msra.mxu0 %v1388
  %1874 = vmatprep.subr.bf16.mxu0 0
  %1875 = vmatpush2.bf16.msra.mxu0 %v1387
  %1876 = vmatprep.subr.bf16.mxu0 0
  %1877 = vmatpush2.bf16.msra.mxu0 %v1386
  %1878 = vmatprep.mubr.bf16.mxu0 %v504
  %1879 = vmatmul.mubr.bf16.gmra.mxu0 %v503
  %v1880 = vpop.f32.mrf.mxu0
  %v1881 = vadd.f32 %v1841, %v1880
  %v1882 = vpop.f32.mrf.mxu0
  %v1883 = vpop.f32.mrf.mxu0
  %v1884 = vpop.f32.mrf.mxu0
  %1885 = vdwg.mxu0
  %1886 = vmatprep.subr.bf16.mxu0 0
  %1887 = vmatpush1.bf16.msra.mxu0 %v1401
  %1888 = vmatprep.subr.bf16.mxu0 0
  %1889 = vmatpush1.bf16.msra.mxu0 %v1400
  %1890 = vmatprep.subr.bf16.mxu0 0
  %1891 = vmatpush1.bf16.msra.mxu0 %v1399
  %1892 = vmatprep.subr.bf16.mxu0 0
  %1893 = vmatpush1.bf16.msra.mxu0 %v1398
  %1894 = vmatprep.subr.bf16.mxu0 0
  %1895 = vmatpush1.bf16.msra.mxu0 %v1397
  %1896 = vmatprep.subr.bf16.mxu0 0
  %1897 = vmatpush1.bf16.msra.mxu0 %v1396
  %1898 = vmatprep.subr.bf16.mxu0 0
  %1899 = vmatpush1.bf16.msra.mxu0 %v1395
  %1900 = vmatprep.subr.bf16.mxu0 0
  %1901 = vmatpush1.bf16.msra.mxu0 %v1394
  %1902 = vmatprep.subr.bf16.mxu0 0
  %1903 = vmatpush2.bf16.msra.mxu0 %v1409
  %1904 = vmatprep.subr.bf16.mxu0 0
  %1905 = vmatpush2.bf16.msra.mxu0 %v1408
  %1906 = vmatprep.subr.bf16.mxu0 0
  %1907 = vmatpush2.bf16.msra.mxu0 %v1407
  %1908 = vmatprep.subr.bf16.mxu0 0
  %1909 = vmatpush2.bf16.msra.mxu0 %v1406
  %1910 = vmatprep.subr.bf16.mxu0 0
  %1911 = vmatpush2.bf16.msra.mxu0 %v1405
  %1912 = vmatprep.subr.bf16.mxu0 0
  %1913 = vmatpush2.bf16.msra.mxu0 %v1404
  %1914 = vmatprep.subr.bf16.mxu0 0
  %1915 = vmatpush2.bf16.msra.mxu0 %v1403
  %1916 = vmatprep.subr.bf16.mxu0 0
  %1917 = vmatpush2.bf16.msra.mxu0 %v1402
  %1918 = vmatprep.mubr.bf16.mxu0 %v506
  %1919 = vmatmul.mubr.bf16.gmra.mxu0 %v505
  %v1920 = vpop.f32.mrf.mxu0
  %v1921 = vadd.f32 %v1881, %v1920
  %v1922 = vpop.f32.mrf.mxu0
  %v1923 = vpop.f32.mrf.mxu0
  %v1924 = vpop.f32.mrf.mxu0
  %1925 = vdwg.mxu0
  %1926 = vmatprep.subr.bf16.mxu0 0
  %1927 = vmatpush1.bf16.msra.mxu0 %v1417
  %1928 = vmatprep.subr.bf16.mxu0 0
  %1929 = vmatpush1.bf16.msra.mxu0 %v1416
  %1930 = vmatprep.subr.bf16.mxu0 0
  %1931 = vmatpush1.bf16.msra.mxu0 %v1415
  %1932 = vmatprep.subr.bf16.mxu0 0
  %1933 = vmatpush1.bf16.msra.mxu0 %v1414
  %1934 = vmatprep.subr.bf16.mxu0 0
  %1935 = vmatpush1.bf16.msra.mxu0 %v1413
  %1936 = vmatprep.subr.bf16.mxu0 0
  %1937 = vmatpush1.bf16.msra.mxu0 %v1412
  %1938 = vmatprep.subr.bf16.mxu0 0
  %1939 = vmatpush1.bf16.msra.mxu0 %v1411
  %1940 = vmatprep.subr.bf16.mxu0 0
  %1941 = vmatpush1.bf16.msra.mxu0 %v1410
  %1942 = vmatprep.subr.bf16.mxu0 0
  %1943 = vmatpush2.bf16.msra.mxu0 %v1425
  %1944 = vmatprep.subr.bf16.mxu0 0
  %1945 = vmatpush2.bf16.msra.mxu0 %v1424
  %1946 = vmatprep.subr.bf16.mxu0 0
  %1947 = vmatpush2.bf16.msra.mxu0 %v1423
  %1948 = vmatprep.subr.bf16.mxu0 0
  %1949 = vmatpush2.bf16.msra.mxu0 %v1422
  %1950 = vmatprep.subr.bf16.mxu0 0
  %1951 = vmatpush2.bf16.msra.mxu0 %v1421
  %1952 = vmatprep.subr.bf16.mxu0 0
  %1953 = vmatpush2.bf16.msra.mxu0 %v1420
  %1954 = vmatprep.subr.bf16.mxu0 0
  %1955 = vmatpush2.bf16.msra.mxu0 %v1419
  %1956 = vmatprep.subr.bf16.mxu0 0
  %1957 = vmatpush2.bf16.msra.mxu0 %v1418
  %1958 = vmatprep.mubr.bf16.mxu0 %v508
  %1959 = vmatmul.mubr.bf16.gmra.mxu0 %v507
  %v1960 = vpop.f32.mrf.mxu0
  %v1961 = vadd.f32 %v1921, %v1960
  %v1962 = vpop.f32.mrf.mxu0
  %v1963 = vpop.f32.mrf.mxu0
  %v1964 = vpop.f32.mrf.mxu0
  %1965 = vdwg.mxu0
  %1966 = vmatprep.subr.bf16.mxu0 0
  %1967 = vmatpush1.bf16.msra.mxu0 %v1433
  %1968 = vmatprep.subr.bf16.mxu0 0
  %1969 = vmatpush1.bf16.msra.mxu0 %v1432
  %1970 = vmatprep.subr.bf16.mxu0 0
  %1971 = vmatpush1.bf16.msra.mxu0 %v1431
  %1972 = vmatprep.subr.bf16.mxu0 0
  %1973 = vmatpush1.bf16.msra.mxu0 %v1430
  %1974 = vmatprep.subr.bf16.mxu0 0
  %1975 = vmatpush1.bf16.msra.mxu0 %v1429
  %1976 = vmatprep.subr.bf16.mxu0 0
  %1977 = vmatpush1.bf16.msra.mxu0 %v1428
  %1978 = vmatprep.subr.bf16.mxu0 0
  %1979 = vmatpush1.bf16.msra.mxu0 %v1427
  %1980 = vmatprep.subr.bf16.mxu0 0
  %1981 = vmatpush1.bf16.msra.mxu0 %v1426
  %1982 = vmatprep.subr.bf16.mxu0 0
  %1983 = vmatpush2.bf16.msra.mxu0 %v1441
  %1984 = vmatprep.subr.bf16.mxu0 0
  %1985 = vmatpush2.bf16.msra.mxu0 %v1440
  %1986 = vmatprep.subr.bf16.mxu0 0
  %1987 = vmatpush2.bf16.msra.mxu0 %v1439
  %1988 = vmatprep.subr.bf16.mxu0 0
  %1989 = vmatpush2.bf16.msra.mxu0 %v1438
  %1990 = vmatprep.subr.bf16.mxu0 0
  %1991 = vmatpush2.bf16.msra.mxu0 %v1437
  %1992 = vmatprep.subr.bf16.mxu0 0
  %1993 = vmatpush2.bf16.msra.mxu0 %v1436
  %1994 = vmatprep.subr.bf16.mxu0 0
  %1995 = vmatpush2.bf16.msra.mxu0 %v1435
  %1996 = vmatprep.subr.bf16.mxu0 0
  %1997 = vmatpush2.bf16.msra.mxu0 %v1434
  %1998 = vmatprep.mubr.bf16.mxu0 %v510
  %1999 = vmatmul.mubr.bf16.gmra.mxu0 %v509
  %v2000 = vpop.f32.mrf.mxu0
  %v2001 = vadd.f32 %v1961, %v2000
  %v2002 = vpop.f32.mrf.mxu0
  %v2003 = vpop.f32.mrf.mxu0
  %v2004 = vpop.f32.mrf.mxu0
  %2005 = vdwg.mxu0
  %2006 = vmatprep.subr.bf16.mxu0 0
  %2007 = vmatpush1.bf16.msra.mxu0 %v1449
  %2008 = vmatprep.subr.bf16.mxu0 0
  %2009 = vmatpush1.bf16.msra.mxu0 %v1448
  %2010 = vmatprep.subr.bf16.mxu0 0
  %2011 = vmatpush1.bf16.msra.mxu0 %v1447
  %2012 = vmatprep.subr.bf16.mxu0 0
  %2013 = vmatpush1.bf16.msra.mxu0 %v1446
  %2014 = vmatprep.subr.bf16.mxu0 0
  %2015 = vmatpush1.bf16.msra.mxu0 %v1445
  %2016 = vmatprep.subr.bf16.mxu0 0
  %2017 = vmatpush1.bf16.msra.mxu0 %v1444
  %2018 = vmatprep.subr.bf16.mxu0 0
  %2019 = vmatpush1.bf16.msra.mxu0 %v1443
  %2020 = vmatprep.subr.bf16.mxu0 0
  %2021 = vmatpush1.bf16.msra.mxu0 %v1442
  %2022 = vmatprep.subr.bf16.mxu0 0
  %2023 = vmatpush2.bf16.msra.mxu0 %v1457
  %2024 = vmatprep.subr.bf16.mxu0 0
  %2025 = vmatpush2.bf16.msra.mxu0 %v1456
  %2026 = vmatprep.subr.bf16.mxu0 0
  %2027 = vmatpush2.bf16.msra.mxu0 %v1455
  %2028 = vmatprep.subr.bf16.mxu0 0
  %2029 = vmatpush2.bf16.msra.mxu0 %v1454
  %2030 = vmatprep.subr.bf16.mxu0 0
  %2031 = vmatpush2.bf16.msra.mxu0 %v1453
  %2032 = vmatprep.subr.bf16.mxu0 0
  %2033 = vmatpush2.bf16.msra.mxu0 %v1452
  %2034 = vmatprep.subr.bf16.mxu0 0
  %2035 = vmatpush2.bf16.msra.mxu0 %v1451
  %2036 = vmatprep.subr.bf16.mxu0 0
  %2037 = vmatpush2.bf16.msra.mxu0 %v1450
  %2038 = vmatprep.mubr.bf16.mxu0 %v512
  %2039 = vmatmul.mubr.bf16.gmra.mxu0 %v511
  %v2040 = vpop.f32.mrf.mxu0
  %v2041 = vadd.f32 %v2001, %v2040
  %v2042 = vpop.f32.mrf.mxu0
  %v2043 = vpop.f32.mrf.mxu0
  %v2044 = vpop.f32.mrf.mxu0
  %2045 = vdwg.mxu0
  %2046 = vmatprep.subr.bf16.mxu0 0
  %2047 = vmatpush1.bf16.msra.mxu0 %v1465
  %2048 = vmatprep.subr.bf16.mxu0 0
  %2049 = vmatpush1.bf16.msra.mxu0 %v1464
  %2050 = vmatprep.subr.bf16.mxu0 0
  %2051 = vmatpush1.bf16.msra.mxu0 %v1463
  %2052 = vmatprep.subr.bf16.mxu0 0
  %2053 = vmatpush1.bf16.msra.mxu0 %v1462
  %2054 = vmatprep.subr.bf16.mxu0 0
  %2055 = vmatpush1.bf16.msra.mxu0 %v1461
  %2056 = vmatprep.subr.bf16.mxu0 0
  %2057 = vmatpush1.bf16.msra.mxu0 %v1460
  %2058 = vmatprep.subr.bf16.mxu0 0
  %2059 = vmatpush1.bf16.msra.mxu0 %v1459
  %2060 = vmatprep.subr.bf16.mxu0 0
  %2061 = vmatpush1.bf16.msra.mxu0 %v1458
  %2062 = vmatprep.subr.bf16.mxu0 0
  %2063 = vmatpush2.bf16.msra.mxu0 %v1473
  %2064 = vmatprep.subr.bf16.mxu0 0
  %2065 = vmatpush2.bf16.msra.mxu0 %v1472
  %2066 = vmatprep.subr.bf16.mxu0 0
  %2067 = vmatpush2.bf16.msra.mxu0 %v1471
  %2068 = vmatprep.subr.bf16.mxu0 0
  %2069 = vmatpush2.bf16.msra.mxu0 %v1470
  %2070 = vmatprep.subr.bf16.mxu0 0
  %2071 = vmatpush2.bf16.msra.mxu0 %v1469
  %2072 = vmatprep.subr.bf16.mxu0 0
  %2073 = vmatpush2.bf16.msra.mxu0 %v1468
  %2074 = vmatprep.subr.bf16.mxu0 0
  %2075 = vmatpush2.bf16.msra.mxu0 %v1467
  %2076 = vmatprep.subr.bf16.mxu0 0
  %2077 = vmatpush2.bf16.msra.mxu0 %v1466
  %2078 = vmatprep.mubr.bf16.mxu0 %v514
  %2079 = vmatmul.mubr.bf16.gmra.mxu0 %v513
  %v2080 = vpop.f32.mrf.mxu0
  %v2081 = vadd.f32 %v2041, %v2080
  %v2082 = vpop.f32.mrf.mxu0
  %v2083 = vpop.f32.mrf.mxu0
  %v2084 = vpop.f32.mrf.mxu0
  %2085 = vdwg.mxu0
  %2086 = vmatprep.subr.bf16.mxu0 0
  %2087 = vmatpush1.bf16.msra.mxu0 %v1481
  %2088 = vmatprep.subr.bf16.mxu0 0
  %2089 = vmatpush1.bf16.msra.mxu0 %v1480
  %2090 = vmatprep.subr.bf16.mxu0 0
  %2091 = vmatpush1.bf16.msra.mxu0 %v1479
  %2092 = vmatprep.subr.bf16.mxu0 0
  %2093 = vmatpush1.bf16.msra.mxu0 %v1478
  %2094 = vmatprep.subr.bf16.mxu0 0
  %2095 = vmatpush1.bf16.msra.mxu0 %v1477
  %2096 = vmatprep.subr.bf16.mxu0 0
  %2097 = vmatpush1.bf16.msra.mxu0 %v1476
  %2098 = vmatprep.subr.bf16.mxu0 0
  %2099 = vmatpush1.bf16.msra.mxu0 %v1475
  %2100 = vmatprep.subr.bf16.mxu0 0
  %2101 = vmatpush1.bf16.msra.mxu0 %v1474
  %2102 = vmatprep.subr.bf16.mxu0 0
  %2103 = vmatpush2.bf16.msra.mxu0 %v1489
  %2104 = vmatprep.subr.bf16.mxu0 0
  %2105 = vmatpush2.bf16.msra.mxu0 %v1488
  %2106 = vmatprep.subr.bf16.mxu0 0
  %2107 = vmatpush2.bf16.msra.mxu0 %v1487
  %2108 = vmatprep.subr.bf16.mxu0 0
  %2109 = vmatpush2.bf16.msra.mxu0 %v1486
  %2110 = vmatprep.subr.bf16.mxu0 0
  %2111 = vmatpush2.bf16.msra.mxu0 %v1485
  %2112 = vmatprep.subr.bf16.mxu0 0
  %2113 = vmatpush2.bf16.msra.mxu0 %v1484
  %2114 = vmatprep.subr.bf16.mxu0 0
  %2115 = vmatpush2.bf16.msra.mxu0 %v1483
  %2116 = vmatprep.subr.bf16.mxu0 0
  %2117 = vmatpush2.bf16.msra.mxu0 %v1482
  %2118 = vmatprep.mubr.bf16.mxu0 %v516
  %2119 = vmatmul.mubr.bf16.gmra.mxu0 %v515
  %v2120 = vpop.f32.mrf.mxu0
  %v2121 = vadd.f32 %v2081, %v2120
  %v2122 = vpop.f32.mrf.mxu0
  %v2123 = vpop.f32.mrf.mxu0
  %v2124 = vpop.f32.mrf.mxu0
  %2125 = vdwg.mxu0
  %2126 = vmatprep.subr.bf16.mxu0 0
  %2127 = vmatpush1.bf16.msra.mxu0 %v1497
  %2128 = vmatprep.subr.bf16.mxu0 0
  %2129 = vmatpush1.bf16.msra.mxu0 %v1496
  %2130 = vmatprep.subr.bf16.mxu0 0
  %2131 = vmatpush1.bf16.msra.mxu0 %v1495
  %2132 = vmatprep.subr.bf16.mxu0 0
  %2133 = vmatpush1.bf16.msra.mxu0 %v1494
  %2134 = vmatprep.subr.bf16.mxu0 0
  %2135 = vmatpush1.bf16.msra.mxu0 %v1493
  %2136 = vmatprep.subr.bf16.mxu0 0
  %2137 = vmatpush1.bf16.msra.mxu0 %v1492
  %2138 = vmatprep.subr.bf16.mxu0 0
  %2139 = vmatpush1.bf16.msra.mxu0 %v1491
  %2140 = vmatprep.subr.bf16.mxu0 0
  %2141 = vmatpush1.bf16.msra.mxu0 %v1490
  %2142 = vmatprep.subr.bf16.mxu0 0
  %2143 = vmatpush2.bf16.msra.mxu0 %v1505
  %2144 = vmatprep.subr.bf16.mxu0 0
  %2145 = vmatpush2.bf16.msra.mxu0 %v1504
  %2146 = vmatprep.subr.bf16.mxu0 0
  %2147 = vmatpush2.bf16.msra.mxu0 %v1503
  %2148 = vmatprep.subr.bf16.mxu0 0
  %2149 = vmatpush2.bf16.msra.mxu0 %v1502
  %2150 = vmatprep.subr.bf16.mxu0 0
  %2151 = vmatpush2.bf16.msra.mxu0 %v1501
  %2152 = vmatprep.subr.bf16.mxu0 0
  %2153 = vmatpush2.bf16.msra.mxu0 %v1500
  %2154 = vmatprep.subr.bf16.mxu0 0
  %2155 = vmatpush2.bf16.msra.mxu0 %v1499
  %2156 = vmatprep.subr.bf16.mxu0 0
  %2157 = vmatpush2.bf16.msra.mxu0 %v1498
  %2158 = vmatprep.mubr.bf16.mxu0 %v518
  %2159 = vmatmul.mubr.bf16.gmra.mxu0 %v517
  %v2160 = vpop.f32.mrf.mxu0
  %v2161 = vadd.f32 %v2121, %v2160
  %v2162 = vpop.f32.mrf.mxu0
  %v2163 = vpop.f32.mrf.mxu0
  %v2164 = vpop.f32.mrf.mxu0
  %2165 = vdwg.mxu0
  %2166 = vmatprep.subr.bf16.mxu0 0
  %2167 = vmatpush1.bf16.msra.mxu0 %v1513
  %2168 = vmatprep.subr.bf16.mxu0 0
  %2169 = vmatpush1.bf16.msra.mxu0 %v1512
  %2170 = vmatprep.subr.bf16.mxu0 0
  %2171 = vmatpush1.bf16.msra.mxu0 %v1511
  %2172 = vmatprep.subr.bf16.mxu0 0
  %2173 = vmatpush1.bf16.msra.mxu0 %v1510
  %2174 = vmatprep.subr.bf16.mxu0 0
  %2175 = vmatpush1.bf16.msra.mxu0 %v1509
  %2176 = vmatprep.subr.bf16.mxu0 0
  %2177 = vmatpush1.bf16.msra.mxu0 %v1508
  %2178 = vmatprep.subr.bf16.mxu0 0
  %2179 = vmatpush1.bf16.msra.mxu0 %v1507
  %2180 = vmatprep.subr.bf16.mxu0 0
  %2181 = vmatpush1.bf16.msra.mxu0 %v1506
  %2182 = vmatprep.subr.bf16.mxu0 0
  %2183 = vmatpush2.bf16.msra.mxu0 %v1521
  %2184 = vmatprep.subr.bf16.mxu0 0
  %2185 = vmatpush2.bf16.msra.mxu0 %v1520
  %2186 = vmatprep.subr.bf16.mxu0 0
  %2187 = vmatpush2.bf16.msra.mxu0 %v1519
  %2188 = vmatprep.subr.bf16.mxu0 0
  %2189 = vmatpush2.bf16.msra.mxu0 %v1518
  %2190 = vmatprep.subr.bf16.mxu0 0
  %2191 = vmatpush2.bf16.msra.mxu0 %v1517
  %2192 = vmatprep.subr.bf16.mxu0 0
  %2193 = vmatpush2.bf16.msra.mxu0 %v1516
  %2194 = vmatprep.subr.bf16.mxu0 0
  %2195 = vmatpush2.bf16.msra.mxu0 %v1515
  %2196 = vmatprep.subr.bf16.mxu0 0
  %2197 = vmatpush2.bf16.msra.mxu0 %v1514
  %2198 = vmatprep.mubr.bf16.mxu0 %v520
  %2199 = vmatmul.mubr.bf16.gmra.mxu0 %v519
  %v2200 = vpop.f32.mrf.mxu0
  %v2201 = vadd.f32 %v2161, %v2200
  %v2202 = vpop.f32.mrf.mxu0
  %v2203 = vpop.f32.mrf.mxu0
  %v2204 = vpop.f32.mrf.mxu0
  %2205 = vdwg.mxu0
  %2206 = vmatprep.subr.bf16.mxu0 0
  %2207 = vmatpush1.bf16.msra.mxu0 0
  %2208 = vmatprep.subr.bf16.mxu0 0
  %2209 = vmatpush1.bf16.msra.mxu0 0
  %2210 = vmatprep.subr.bf16.mxu0 0
  %2211 = vmatpush1.bf16.msra.mxu0 0
  %2212 = vmatprep.subr.bf16.mxu0 0
  %2213 = vmatpush1.bf16.msra.mxu0 0
  %2214 = vmatprep.subr.bf16.mxu0 0
  %2215 = vmatpush1.bf16.msra.mxu0 %v1525
  %2216 = vmatprep.subr.bf16.mxu0 0
  %2217 = vmatpush1.bf16.msra.mxu0 %v1524
  %2218 = vmatprep.subr.bf16.mxu0 0
  %2219 = vmatpush1.bf16.msra.mxu0 %v1523
  %2220 = vmatprep.subr.bf16.mxu0 0
  %2221 = vmatpush1.bf16.msra.mxu0 %v1522
  %2222 = vmatprep.subr.bf16.mxu0 0
  %2223 = vmatpush2.bf16.msra.mxu0 0
  %2224 = vmatprep.subr.bf16.mxu0 0
  %2225 = vmatpush2.bf16.msra.mxu0 0
  %2226 = vmatprep.subr.bf16.mxu0 0
  %2227 = vmatpush2.bf16.msra.mxu0 0
  %2228 = vmatprep.subr.bf16.mxu0 0
  %2229 = vmatpush2.bf16.msra.mxu0 0
  %2230 = vmatprep.subr.bf16.mxu0 0
  %2231 = vmatpush2.bf16.msra.mxu0 0
  %2232 = vmatprep.subr.bf16.mxu0 0
  %2233 = vmatpush2.bf16.msra.mxu0 0
  %2234 = vmatprep.subr.bf16.mxu0 0
  %2235 = vmatpush2.bf16.msra.mxu0 0
  %2236 = vmatprep.subr.bf16.mxu0 0
  %2237 = vmatpush2.bf16.msra.mxu0 0
  %2238 = vmatprep.mubr.bf16.mxu0 0
  %2239 = vmatmul.mubr.bf16.gmra.mxu0 %v1724
  %v2240 = vpop.f32.mrf.mxu0
  %v2241 = vadd.f32 %v2201, %v2240
  %v2242 = vpop.f32.mrf.mxu0
  %v2243 = vpop.f32.mrf.mxu0
  %v2244 = vpop.f32.mrf.mxu0
  %2245 = vdwg.mxu0
  %v2246 = vld [vmem:[%s2] sm:$0xf]
  %v2247 = vld [vmem:[%s2 + $0x4] sm:$0xf]
  %v2248 = vld [vmem:[%s2 + $0x8] sm:$0xf]
  %v2249 = vld [vmem:[%s2 + $0xc] sm:$0xf]
  %v2250 = vld [vmem:[%s2 + $0x10] sm:$0xf]
  %v2251 = vld [vmem:[%s2 + $0x14] sm:$0xf]
  %v2252 = vld [vmem:[%s2 + $0x18] sm:$0xf]
  %v2253 = vld [vmem:[%s2 + $0x1c] sm:$0xf]
  %v2254 = vld [vmem:[%s2 + $0x20] sm:$0xf]
  %v2255 = vld [vmem:[%s2 + $0x24] sm:$0xf]
  %v2256 = vld [vmem:[%s2 + $0x28] sm:$0xf]
  %v2257 = vld [vmem:[%s2 + $0x2c] sm:$0xf]
  %v2258 = vld [vmem:[%s2 + $0x30] sm:$0xf]
  %v2259 = vld [vmem:[%s2 + $0x34] sm:$0xf]
  %v2260 = vld [vmem:[%s2 + $0x38] sm:$0xf]
  %v2261 = vld [vmem:[%s2 + $0x3c] sm:$0xf]
  %v2262 = vld [vmem:[%s2 + $0x40] sm:$0xf]
  %v2263 = vld [vmem:[%s2 + $0x44] sm:$0xf]
  %v2264 = vld [vmem:[%s2 + $0x48] sm:$0xf]
  %v2265 = vld [vmem:[%s2 + $0x4c] sm:$0xf]
  %v2266 = vld [vmem:[%s2 + $0x50] sm:$0xf]
  %v2267 = vld [vmem:[%s2 + $0x54] sm:$0xf]
  %v2268 = vld [vmem:[%s2 + $0x58] sm:$0xf]
  %v2269 = vld [vmem:[%s2 + $0x5c] sm:$0xf]
  %v2270 = vld [vmem:[%s2 + $0x60] sm:$0xf]
  %v2271 = vld [vmem:[%s2 + $0x64] sm:$0xf]
  %v2272 = vld [vmem:[%s2 + $0x68] sm:$0xf]
  %v2273 = vld [vmem:[%s2 + $0x6c] sm:$0xf]
  %v2274 = vld [vmem:[%s2 + $0x70] sm:$0xf]
  %v2275 = vld [vmem:[%s2 + $0x74] sm:$0xf]
  %v2276 = vld [vmem:[%s2 + $0x78] sm:$0xf]
  %v2277 = vld [vmem:[%s2 + $0x7c] sm:$0xf]
  %v2278 = vld [vmem:[%s2 + $0x80] sm:$0xf]
  %v2279 = vld [vmem:[%s2 + $0x84] sm:$0xf]
  %v2280 = vld [vmem:[%s2 + $0x88] sm:$0xf]
  %v2281 = vld [vmem:[%s2 + $0x8c] sm:$0xf]
  %v2282 = vld [vmem:[%s2 + $0x90] sm:$0xf]
  %v2283 = vld [vmem:[%s2 + $0x94] sm:$0xf]
  %v2284 = vld [vmem:[%s2 + $0x98] sm:$0xf]
  %v2285 = vld [vmem:[%s2 + $0x9c] sm:$0xf]
  %v2286 = vld [vmem:[%s2 + $0xa0] sm:$0xf]
  %v2287 = vld [vmem:[%s2 + $0xa4] sm:$0xf]
  %v2288 = vld [vmem:[%s2 + $0xa8] sm:$0xf]
  %v2289 = vld [vmem:[%s2 + $0xac] sm:$0xf]
  %v2290 = vld [vmem:[%s2 + $0xb0] sm:$0xf]
  %v2291 = vld [vmem:[%s2 + $0xb4] sm:$0xf]
  %v2292 = vld [vmem:[%s2 + $0xb8] sm:$0xf]
  %v2293 = vld [vmem:[%s2 + $0xbc] sm:$0xf]
  %v2294 = vld [vmem:[%s2 + $0xc0] sm:$0xf]
  %v2295 = vld [vmem:[%s2 + $0xc4] sm:$0xf]
  %v2296 = vld [vmem:[%s2 + $0xc8] sm:$0xf]
  %v2297 = vld [vmem:[%s2 + $0xcc] sm:$0xf]
  %v2298 = vld [vmem:[%s2 + $0xd0] sm:$0xf]
  %v2299 = vld [vmem:[%s2 + $0xd4] sm:$0xf]
  %v2300 = vld [vmem:[%s2 + $0xd8] sm:$0xf]
  %v2301 = vld [vmem:[%s2 + $0xdc] sm:$0xf]
  %v2302 = vld [vmem:[%s2 + $0xe0] sm:$0xf]
  %v2303 = vld [vmem:[%s2 + $0xe4] sm:$0xf]
  %v2304 = vld [vmem:[%s2 + $0xe8] sm:$0xf]
  %v2305 = vld [vmem:[%s2 + $0xec] sm:$0xf]
  %v2306 = vld [vmem:[%s2 + $0xf0] sm:$0xf]
  %v2307 = vld [vmem:[%s2 + $0xf4] sm:$0xf]
  %v2308 = vld [vmem:[%s2 + $0xf8] sm:$0xf]
  %v2309 = vld [vmem:[%s2 + $0xfc] sm:$0xf]
  %v2310 = vld [vmem:[%s2 + $0x100] sm:$0xf]
  %v2311 = vld [vmem:[%s2 + $0x104] sm:$0xf]
  %v2312 = vld [vmem:[%s2 + $0x108] sm:$0xf]
  %v2313 = vld [vmem:[%s2 + $0x10c] sm:$0xf]
  %v2314 = vld [vmem:[%s2 + $0x110] sm:$0xf]
  %v2315 = vld [vmem:[%s2 + $0x114] sm:$0xf]
  %v2316 = vld [vmem:[%s2 + $0x118] sm:$0xf]
  %v2317 = vld [vmem:[%s2 + $0x11c] sm:$0xf]
  %v2318 = vld [vmem:[%s2 + $0x120] sm:$0xf]
  %v2319 = vld [vmem:[%s2 + $0x124] sm:$0xf]
  %v2320 = vld [vmem:[%s2 + $0x128] sm:$0xf]
  %v2321 = vld [vmem:[%s2 + $0x12c] sm:$0xf]
  %v2322 = vld [vmem:[%s2 + $0x130] sm:$0xf]
  %v2323 = vld [vmem:[%s2 + $0x134] sm:$0xf]
  %v2324 = vld [vmem:[%s2 + $0x138] sm:$0xf]
  %v2325 = vld [vmem:[%s2 + $0x13c] sm:$0xf]
  %v2326 = vld [vmem:[%s2 + $0x140] sm:$0xf]
  %v2327 = vld [vmem:[%s2 + $0x144] sm:$0xf]
  %v2328 = vld [vmem:[%s2 + $0x148] sm:$0xf]
  %v2329 = vld [vmem:[%s2 + $0x14c] sm:$0xf]
  %v2330 = vld [vmem:[%s2 + $0x150] sm:$0xf]
  %v2331 = vld [vmem:[%s2 + $0x154] sm:$0xf]
  %v2332 = vld [vmem:[%s2 + $0x158] sm:$0xf]
  %v2333 = vld [vmem:[%s2 + $0x15c] sm:$0xf]
  %v2334 = vld [vmem:[%s2 + $0x160] sm:$0xf]
  %v2335 = vld [vmem:[%s2 + $0x164] sm:$0xf]
  %v2336 = vld [vmem:[%s2 + $0x168] sm:$0xf]
  %v2337 = vld [vmem:[%s2 + $0x16c] sm:$0xf]
  %v2338 = vld [vmem:[%s2 + $0x170] sm:$0xf]
  %v2339 = vld [vmem:[%s2 + $0x174] sm:$0xf]
  %v2340 = vld [vmem:[%s2 + $0x178] sm:$0xf]
  %v2341 = vld [vmem:[%s2 + $0x17c] sm:$0xf]
  %v2342 = vld [vmem:[%s2 + $0x180] sm:$0xf]
  %v2343 = vld [vmem:[%s2 + $0x184] sm:$0xf]
  %v2344 = vld [vmem:[%s2 + $0x188] sm:$0xf]
  %v2345 = vld [vmem:[%s2 + $0x18c] sm:$0xf]
  %v2346 = vld [vmem:[%s2 + $0x190] sm:$0xf]
  %v2347 = vld [vmem:[%s2 + $0x194] sm:$0xf]
  %v2348 = vld [vmem:[%s2 + $0x198] sm:$0xf]
  %v2349 = vld [vmem:[%s2 + $0x19c] sm:$0xf]
  %v2350 = vld [vmem:[%s2 + $0x1a0] sm:$0xf]
  %v2351 = vld [vmem:[%s2 + $0x1a4] sm:$0xf]
  %v2352 = vld [vmem:[%s2 + $0x1a8] sm:$0xf]
  %v2353 = vld [vmem:[%s2 + $0x1ac] sm:$0xf]
  %v2354 = vld [vmem:[%s2 + $0x1b0] sm:$0xf]
  %v2355 = vld [vmem:[%s2 + $0x1b4] sm:$0xf]
  %v2356 = vld [vmem:[%s2 + $0x1b8] sm:$0xf]
  %v2357 = vld [vmem:[%s2 + $0x1bc] sm:$0xf]
  %v2358 = vld [vmem:[%s2 + $0x1c0] sm:$0xf]
  %v2359 = vld [vmem:[%s2 + $0x1c4] sm:$0xf]
  %v2360 = vld [vmem:[%s2 + $0x1c8] sm:$0xf]
  %v2361 = vld [vmem:[%s2 + $0x1cc] sm:$0xf]
  %v2362 = vld [vmem:[%s2 + $0x1d0] sm:$0xf]
  %v2363 = vld [vmem:[%s2 + $0x1d4] sm:$0xf]
  %v2364 = vld [vmem:[%s2 + $0x1d8] sm:$0xf]
  %v2365 = vld [vmem:[%s2 + $0x1dc] sm:$0xf]
  %v2366 = vld [vmem:[%s2 + $0x1e0] sm:$0xf]
  %v2367 = vld [vmem:[%s2 + $0x1e4] sm:$0xf]
  %v2368 = vld [vmem:[%s2 + $0x1e8] sm:$0xf]
  %v2369 = vld [vmem:[%s2 + $0x1ec] sm:$0xf]
  %v2370 = vld [vmem:[%s2 + $0x1f0] sm:$0xf]
  %v2371 = vld [vmem:[%s2 + $0x1f4] sm:$0xf]
  %v2372 = vld [vmem:[%s2 + $0x1f8] sm:$0xf]
  %v2373 = vld [vmem:[%s2 + $0x1fc] sm:$0xf]
  %v2374 = vld [vmem:[%s2 + $0x200] sm:$0xf]
  %v2375 = vld [vmem:[%s2 + $0x204] sm:$0xf]
  %v2376 = vld [vmem:[%s2 + $0x208] sm:$0xf]
  %v2377 = vld [vmem:[%s2 + $0x20c] sm:$0xf]
  %v2378 = vld [vmem:[%s2 + $0x210] sm:$0xf]
  %v2379 = vld [vmem:[%s2 + $0x214] sm:$0xf]
  %v2380 = vld [vmem:[%s2 + $0x218] sm:$0xf]
  %v2381 = vld [vmem:[%s2 + $0x21c] sm:$0xf]
  %v2382 = vld [vmem:[%s2 + $0x220] sm:$0xf]
  %v2383 = vld [vmem:[%s2 + $0x224] sm:$0xf]
  %v2384 = vld [vmem:[%s2 + $0x228] sm:$0xf]
  %v2385 = vld [vmem:[%s2 + $0x22c] sm:$0xf]
  %v2386 = vld [vmem:[%s2 + $0x230] sm:$0xf]
  %v2387 = vld [vmem:[%s2 + $0x234] sm:$0xf]
  %v2388 = vld [vmem:[%s2 + $0x238] sm:$0xf]
  %v2389 = vld [vmem:[%s2 + $0x23c] sm:$0xf]
  %v2390 = vld [vmem:[%s2 + $0x240] sm:$0xf]
  %v2391 = vld [vmem:[%s2 + $0x244] sm:$0xf]
  %v2392 = vld [vmem:[%s2 + $0x248] sm:$0xf]
  %v2393 = vld [vmem:[%s2 + $0x24c] sm:$0xf]
  %v2394 = vld [vmem:[%s2 + $0x250] sm:$0xf]
  %v2395 = vld [vmem:[%s2 + $0x254] sm:$0xf]
  %v2396 = vld [vmem:[%s2 + $0x258] sm:$0xf]
  %v2397 = vld [vmem:[%s2 + $0x25c] sm:$0xf]
  %v2398 = vld [vmem:[%s2 + $0x260] sm:$0xf]
  %v2399 = vld [vmem:[%s2 + $0x264] sm:$0xf]
  %v2400 = vld [vmem:[%s2 + $0x268] sm:$0xf]
  %v2401 = vld [vmem:[%s2 + $0x26c] sm:$0xf]
  %v2402 = vld [vmem:[%s2 + $0x270] sm:$0xf]
  %v2403 = vld [vmem:[%s2 + $0x274] sm:$0xf]
  %v2404 = vld [vmem:[%s2 + $0x278] sm:$0xf]
  %v2405 = vld [vmem:[%s2 + $0x27c] sm:$0xf]
  %v2406 = vld [vmem:[%s2 + $0x280] sm:$0xf]
  %v2407 = vld [vmem:[%s2 + $0x284] sm:$0xf]
  %v2408 = vld [vmem:[%s2 + $0x288] sm:$0xf]
  %v2409 = vld [vmem:[%s2 + $0x28c] sm:$0xf]
  %v2410 = vld [vmem:[%s2 + $0x290] sm:$0xf]
  %v2411 = vld [vmem:[%s2 + $0x294] sm:$0xf]
  %v2412 = vld [vmem:[%s2 + $0x298] sm:$0xf]
  %v2413 = vld [vmem:[%s2 + $0x29c] sm:$0xf]
  %v2414 = vld [vmem:[%s2 + $0x2a0] sm:$0xf]
  %v2415 = vld [vmem:[%s2 + $0x2a4] sm:$0xf]
  %v2416 = vld [vmem:[%s2 + $0x2a8] sm:$0xf]
  %v2417 = vld [vmem:[%s2 + $0x2ac] sm:$0xf]
  %v2418 = vld [vmem:[%s2 + $0x2b0] sm:$0xf]
  %v2419 = vld [vmem:[%s2 + $0x2b4] sm:$0xf]
  %v2420 = vld [vmem:[%s2 + $0x2b8] sm:$0xf]
  %v2421 = vld [vmem:[%s2 + $0x2bc] sm:$0xf]
  %v2422 = vld [vmem:[%s2 + $0x2c0] sm:$0xf]
  %v2423 = vld [vmem:[%s2 + $0x2c4] sm:$0xf]
  %v2424 = vld [vmem:[%s2 + $0x2c8] sm:$0xf]
  %v2425 = vld [vmem:[%s2 + $0x2cc] sm:$0xf]
  %v2426 = vld [vmem:[%s2 + $0x2d0] sm:$0xf]
  %v2427 = vld [vmem:[%s2 + $0x2d4] sm:$0xf]
  %v2428 = vld [vmem:[%s2 + $0x2d8] sm:$0xf]
  %v2429 = vld [vmem:[%s2 + $0x2dc] sm:$0xf]
  %v2430 = vld [vmem:[%s2 + $0x2e0] sm:$0xf]
  %v2431 = vld [vmem:[%s2 + $0x2e4] sm:$0xf]
  %v2432 = vld [vmem:[%s2 + $0x2e8] sm:$0xf]
  %v2433 = vld [vmem:[%s2 + $0x2ec] sm:$0xf]
  %v2434 = vld [vmem:[%s2 + $0x2f0] sm:$0xf]
  %v2435 = vld [vmem:[%s2 + $0x2f4] sm:$0xf]
  %v2436 = vld [vmem:[%s2 + $0x2f8] sm:$0xf]
  %v2437 = vld [vmem:[%s2 + $0x2fc] sm:$0xf]
  %v2438 = vld [vmem:[%s2 + $0x300] sm:$0xf]
  %v2439 = vld [vmem:[%s2 + $0x304] sm:$0xf]
  %v2440 = vld [vmem:[%s2 + $0x308] sm:$0xf]
  %v2441 = vld [vmem:[%s2 + $0x30c] sm:$0xf]
  %v2442 = vld [vmem:[%s2 + $0x310] sm:$0xf]
  %v2443 = vld [vmem:[%s2 + $0x314] sm:$0xf]
  %v2444 = vld [vmem:[%s2 + $0x318] sm:$0xf]
  %v2445 = vld [vmem:[%s2 + $0x31c] sm:$0xf]
  %v2446 = vld [vmem:[%s2 + $0x320] sm:$0xf]
  %v2447 = vld [vmem:[%s2 + $0x324] sm:$0xf]
  %v2448 = vld [vmem:[%s2 + $0x328] sm:$0xf]
  %v2449 = vld [vmem:[%s2 + $0x32c] sm:$0xf]
  %v2450 = vld [vmem:[%s2 + $0x330] sm:$0xf]
  %v2451 = vld [vmem:[%s2 + $0x334] sm:$0xf]
  %v2452 = vld [vmem:[%s2 + $0x338] sm:$0xf]
  %v2453 = vld [vmem:[%s2 + $0x33c] sm:$0xf]
  %v2454 = vld [vmem:[%s2 + $0x340] sm:$0xf]
  %v2455 = vld [vmem:[%s2 + $0x344] sm:$0xf]
  %v2456 = vld [vmem:[%s2 + $0x348] sm:$0xf]
  %v2457 = vld [vmem:[%s2 + $0x34c] sm:$0xf]
  %v2458 = vld [vmem:[%s2 + $0x350] sm:$0xf]
  %v2459 = vld [vmem:[%s2 + $0x354] sm:$0xf]
  %v2460 = vld [vmem:[%s2 + $0x358] sm:$0xf]
  %v2461 = vld [vmem:[%s2 + $0x35c] sm:$0xf]
  %v2462 = vld [vmem:[%s2 + $0x360] sm:$0xf]
  %v2463 = vld [vmem:[%s2 + $0x364] sm:$0xf]
  %v2464 = vld [vmem:[%s2 + $0x368] sm:$0xf]
  %v2465 = vld [vmem:[%s2 + $0x36c] sm:$0xf]
  %v2466 = vld [vmem:[%s2 + $0x370] sm:$0xf]
  %v2467 = vld [vmem:[%s2 + $0x374] sm:$0xf]
  %v2468 = vld [vmem:[%s2 + $0x378] sm:$0xf]
  %v2469 = vld [vmem:[%s2 + $0x37c] sm:$0xf]
  %v2470 = vld [vmem:[%s2 + $0x380] sm:$0xf]
  %v2471 = vld [vmem:[%s2 + $0x384] sm:$0xf]
  %v2472 = vld [vmem:[%s2 + $0x388] sm:$0xf]
  %v2473 = vld [vmem:[%s2 + $0x38c] sm:$0xf]
  %v2474 = vld [vmem:[%s2 + $0x390] sm:$0xf]
  %v2475 = vld [vmem:[%s2 + $0x394] sm:$0xf]
  %v2476 = vld [vmem:[%s2 + $0x398] sm:$0xf]
  %v2477 = vld [vmem:[%s2 + $0x39c] sm:$0xf]
  %v2478 = vld [vmem:[%s2 + $0x3a0] sm:$0xf]
  %v2479 = vld [vmem:[%s2 + $0x3a4] sm:$0xf]
  %v2480 = vld [vmem:[%s2 + $0x3a8] sm:$0xf]
  %v2481 = vld [vmem:[%s2 + $0x3ac] sm:$0xf]
  %v2482 = vld [vmem:[%s2 + $0x3b0] sm:$0xf]
  %v2483 = vld [vmem:[%s2 + $0x3b4] sm:$0xf]
  %v2484 = vld [vmem:[%s2 + $0x3b8] sm:$0xf]
  %v2485 = vld [vmem:[%s2 + $0x3bc] sm:$0xf]
  %v2486 = vld [vmem:[%s2 + $0x3c0] sm:$0xf]
  %v2487 = vld [vmem:[%s2 + $0x3c4] sm:$0xf]
  %v2488 = vld [vmem:[%s2 + $0x3c8] sm:$0xf]
  %v2489 = vld [vmem:[%s2 + $0x3cc] sm:$0xf]
  %v2490 = vld [vmem:[%s2 + $0x3d0] sm:$0xf]
  %v2491 = vld [vmem:[%s2 + $0x3d4] sm:$0xf]
  %v2492 = vld [vmem:[%s2 + $0x3d8] sm:$0xf]
  %v2493 = vld [vmem:[%s2 + $0x3dc] sm:$0xf]
  %v2494 = vld [vmem:[%s2 + $0x3e0] sm:$0xf]
  %v2495 = vld [vmem:[%s2 + $0x3e4] sm:$0xf]
  %v2496 = vld [vmem:[%s2 + $0x3e8] sm:$0xf]
  %v2497 = vld [vmem:[%s2 + $0x3ec] sm:$0xf]
  %v2498 = vld [vmem:[%s2 + $0x3f0] sm:$0xf]
  %v2499 = vld [vmem:[%s2 + $0x3f4] sm:$0xf]
  %v2500 = vld [vmem:[%s2 + $0x3f8] sm:$0xf]
  %v2501 = vld [vmem:[%s2 + $0x3fc] sm:$0xf]
  %v2502 = vld [vmem:[%s2 + $0x400] sm:$0xf]
  %v2503 = vld [vmem:[%s2 + $0x404] sm:$0xf]
  %v2504 = vld [vmem:[%s2 + $0x408] sm:$0xf]
  %v2505 = vld [vmem:[%s2 + $0x40c] sm:$0xf]
  %v2506 = vld [vmem:[%s2 + $0x410] sm:$0xf]
  %v2507 = vld [vmem:[%s2 + $0x414] sm:$0xf]
  %v2508 = vld [vmem:[%s2 + $0x418] sm:$0xf]
  %v2509 = vld [vmem:[%s2 + $0x41c] sm:$0xf]
  %v2510 = vld [vmem:[%s2 + $0x420] sm:$0xf]
  %v2511 = vld [vmem:[%s2 + $0x424] sm:$0xf]
  %v2512 = vld [vmem:[%s2 + $0x428] sm:$0xf]
  %v2513 = vld [vmem:[%s2 + $0x42c] sm:$0xf]
  %v2514 = vld [vmem:[%s2 + $0x430] sm:$0xf]
  %v2515 = vld [vmem:[%s2 + $0x434] sm:$0xf]
  %v2516 = vld [vmem:[%s2 + $0x438] sm:$0xf]
  %v2517 = vld [vmem:[%s2 + $0x43c] sm:$0xf]
  %v2518 = vld [vmem:[%s2 + $0x440] sm:$0xf]
  %v2519 = vld [vmem:[%s2 + $0x444] sm:$0xf]
  %v2520 = vld [vmem:[%s2 + $0x448] sm:$0xf]
  %v2521 = vld [vmem:[%s2 + $0x44c] sm:$0xf]
  %v2522 = vld [vmem:[%s2 + $0x450] sm:$0xf]
  %v2523 = vld [vmem:[%s2 + $0x454] sm:$0xf]
  %v2524 = vld [vmem:[%s2 + $0x458] sm:$0xf]
  %v2525 = vld [vmem:[%s2 + $0x45c] sm:$0xf]
  %v2526 = vld [vmem:[%s2 + $0x460] sm:$0xf]
  %v2527 = vld [vmem:[%s2 + $0x464] sm:$0xf]
  %v2528 = vld [vmem:[%s2 + $0x468] sm:$0xf]
  %v2529 = vld [vmem:[%s2 + $0x46c] sm:$0xf]
  %v2530 = vld [vmem:[%s2 + $0x470] sm:$0xf]
  %v2531 = vld [vmem:[%s2 + $0x474] sm:$0xf]
  %v2532 = vld [vmem:[%s2 + $0x478] sm:$0xf]
  %v2533 = vld [vmem:[%s2 + $0x47c] sm:$0xf]
  %v2534 = vld [vmem:[%s2 + $0x480] sm:$0xf]
  %v2535 = vld [vmem:[%s2 + $0x484] sm:$0xf]
  %v2536 = vld [vmem:[%s2 + $0x488] sm:$0xf]
  %v2537 = vld [vmem:[%s2 + $0x48c] sm:$0xf]
  %v2538 = vld [vmem:[%s2 + $0x490] sm:$0xf]
  %v2539 = vld [vmem:[%s2 + $0x494] sm:$0xf]
  %v2540 = vld [vmem:[%s2 + $0x498] sm:$0xf]
  %v2541 = vld [vmem:[%s2 + $0x49c] sm:$0xf]
  %v2542 = vld [vmem:[%s2 + $0x4a0] sm:$0xf]
  %v2543 = vld [vmem:[%s2 + $0x4a4] sm:$0xf]
  %v2544 = vld [vmem:[%s2 + $0x4a8] sm:$0xf]
  %v2545 = vld [vmem:[%s2 + $0x4ac] sm:$0xf]
  %v2546 = vld [vmem:[%s2 + $0x4b0] sm:$0xf]
  %v2547 = vld [vmem:[%s2 + $0x4b4] sm:$0xf]
  %v2548 = vld [vmem:[%s2 + $0x4b8] sm:$0xf]
  %v2549 = vld [vmem:[%s2 + $0x4bc] sm:$0xf]
  %v2550 = vld [vmem:[%s2 + $0x4c0] sm:$0xf]
  %v2551 = vld [vmem:[%s2 + $0x4c4] sm:$0xf]
  %v2552 = vld [vmem:[%s2 + $0x4c8] sm:$0xf]
  %v2553 = vld [vmem:[%s2 + $0x4cc] sm:$0xf]
  %v2554 = vld [vmem:[%s2 + $0x4d0] sm:$0xf]
  %v2555 = vld [vmem:[%s2 + $0x4d4] sm:$0xf]
  %v2556 = vld [vmem:[%s2 + $0x4d8] sm:$0xf]
  %v2557 = vld [vmem:[%s2 + $0x4dc] sm:$0xf]
  %v2558 = vld [vmem:[%s2 + $0x4e0] sm:$0xf]
  %v2559 = vld [vmem:[%s2 + $0x4e4] sm:$0xf]
  %v2560 = vld [vmem:[%s2 + $0x4e8] sm:$0xf]
  %v2561 = vld [vmem:[%s2 + $0x4ec] sm:$0xf]
  %v2562 = vld [vmem:[%s2 + $0x4f0] sm:$0xf]
  %v2563 = vld [vmem:[%s2 + $0x4f4] sm:$0xf]
  %v2564 = vld [vmem:[%s2 + $0x4f8] sm:$0xf]
  %v2565 = vld [vmem:[%s2 + $0x4fc] sm:$0xf]
  %v2566 = vld [vmem:[%s2 + $0x500] sm:$0xf]
  %v2567 = vld [vmem:[%s2 + $0x504] sm:$0xf]
  %v2568 = vld [vmem:[%s2 + $0x508] sm:$0xf]
  %v2569 = vld [vmem:[%s2 + $0x50c] sm:$0xf]
  %v2570 = vld [vmem:[%s2 + $0x510] sm:$0xf]
  %v2571 = vld [vmem:[%s2 + $0x514] sm:$0xf]
  %v2572 = vld [vmem:[%s2 + $0x518] sm:$0xf]
  %v2573 = vld [vmem:[%s2 + $0x51c] sm:$0xf]
  %v2574 = vld [vmem:[%s2 + $0x520] sm:$0xf]
  %v2575 = vld [vmem:[%s2 + $0x524] sm:$0xf]
  %v2576 = vld [vmem:[%s2 + $0x528] sm:$0xf]
  %v2577 = vld [vmem:[%s2 + $0x52c] sm:$0xf]
  %v2578 = vld [vmem:[%s2 + $0x530] sm:$0xf]
  %v2579 = vld [vmem:[%s2 + $0x534] sm:$0xf]
  %v2580 = vld [vmem:[%s2 + $0x538] sm:$0xf]
  %v2581 = vld [vmem:[%s2 + $0x53c] sm:$0xf]
  %v2582 = vld [vmem:[%s2 + $0x540] sm:$0xf]
  %v2583 = vld [vmem:[%s2 + $0x544] sm:$0xf]
  %v2584 = vld [vmem:[%s2 + $0x548] sm:$0xf]
  %v2585 = vld [vmem:[%s2 + $0x54c] sm:$0xf]
  %v2586 = vld [vmem:[%s2 + $0x550] sm:$0xf]
  %v2587 = vld [vmem:[%s2 + $0x554] sm:$0xf]
  %v2588 = vld [vmem:[%s2 + $0x558] sm:$0xf]
  %v2589 = vld [vmem:[%s2 + $0x55c] sm:$0xf]
  %v2590 = vld [vmem:[%s2 + $0x560] sm:$0xf]
  %v2591 = vld [vmem:[%s2 + $0x564] sm:$0xf]
  %v2592 = vld [vmem:[%s2 + $0x568] sm:$0xf]
  %v2593 = vld [vmem:[%s2 + $0x56c] sm:$0xf]
  %v2594 = vld [vmem:[%s2 + $0x570] sm:$0xf]
  %v2595 = vld [vmem:[%s2 + $0x574] sm:$0xf]
  %v2596 = vld [vmem:[%s2 + $0x578] sm:$0xf]
  %v2597 = vld [vmem:[%s2 + $0x57c] sm:$0xf]
  %v2598 = vld [vmem:[%s2 + $0x580] sm:$0xf]
  %v2599 = vld [vmem:[%s2 + $0x584] sm:$0xf]
  %v2600 = vld [vmem:[%s2 + $0x588] sm:$0xf]
  %v2601 = vld [vmem:[%s2 + $0x58c] sm:$0xf]
  %v2602 = vld [vmem:[%s2 + $0x590] sm:$0xf]
  %v2603 = vld [vmem:[%s2 + $0x594] sm:$0xf]
  %v2604 = vld [vmem:[%s2 + $0x598] sm:$0xf]
  %v2605 = vld [vmem:[%s2 + $0x59c] sm:$0xf]
  %v2606 = vld [vmem:[%s2 + $0x5a0] sm:$0xf]
  %v2607 = vld [vmem:[%s2 + $0x5a4] sm:$0xf]
  %v2608 = vld [vmem:[%s2 + $0x5a8] sm:$0xf]
  %v2609 = vld [vmem:[%s2 + $0x5ac] sm:$0xf]
  %v2610 = vld [vmem:[%s2 + $0x5b0] sm:$0xf]
  %v2611 = vld [vmem:[%s2 + $0x5b4] sm:$0xf]
  %v2612 = vld [vmem:[%s2 + $0x5b8] sm:$0xf]
  %v2613 = vld [vmem:[%s2 + $0x5bc] sm:$0xf]
  %v2614 = vld [vmem:[%s2 + $0x5c0] sm:$0xf]
  %v2615 = vld [vmem:[%s2 + $0x5c4] sm:$0xf]
  %v2616 = vld [vmem:[%s2 + $0x5c8] sm:$0xf]
  %v2617 = vld [vmem:[%s2 + $0x5cc] sm:$0xf]
  %v2618 = vld [vmem:[%s2 + $0x5d0] sm:$0xf]
  %v2619 = vld [vmem:[%s2 + $0x5d4] sm:$0xf]
  %v2620 = vld [vmem:[%s2 + $0x5d8] sm:$0xf]
  %v2621 = vld [vmem:[%s2 + $0x5dc] sm:$0xf]
  %v2622 = vld [vmem:[%s2 + $0x5e0] sm:$0xf]
  %v2623 = vld [vmem:[%s2 + $0x5e4] sm:$0xf]
  %v2624 = vld [vmem:[%s2 + $0x5e8] sm:$0xf]
  %v2625 = vld [vmem:[%s2 + $0x5ec] sm:$0xf]
  %v2626 = vld [vmem:[%s2 + $0x5f0] sm:$0xf]
  %v2627 = vld [vmem:[%s2 + $0x5f4] sm:$0xf]
  %v2628 = vld [vmem:[%s2 + $0x5f8] sm:$0xf]
  %v2629 = vld [vmem:[%s2 + $0x5fc] sm:$0xf]
  %v2630 = vld [vmem:[%s2 + $0x600] sm:$0xf]
  %v2631 = vld [vmem:[%s2 + $0x604] sm:$0xf]
  %v2632 = vld [vmem:[%s2 + $0x608] sm:$0xf]
  %v2633 = vld [vmem:[%s2 + $0x60c] sm:$0xf]
  %v2634 = vld [vmem:[%s2 + $0x610] sm:$0xf]
  %v2635 = vld [vmem:[%s2 + $0x614] sm:$0xf]
  %v2636 = vld [vmem:[%s2 + $0x618] sm:$0xf]
  %v2637 = vld [vmem:[%s2 + $0x61c] sm:$0xf]
  %v2638 = vld [vmem:[%s4] sm:$0x1]
  %v2640 = vlaneseq
  %v2641 = vshrl.u32 %v2640, 7
  %v2642 = vsub.s32 0, %v2641
  %v2643 = vrot.slane %v2638, %v2642
  %v3037 = vunpack.c.l.b16 %v2246
  %v3038 = vunpack.c.l.b16 %v2247
  %v3039 = vunpack.c.l.b16 %v2248
  %v3040 = vunpack.c.l.b16 %v2249
  %v3041 = vunpack.c.l.b16 %v2250
  %v3042 = vunpack.c.l.b16 %v2251
  %v3043 = vunpack.c.l.b16 %v2252
  %v3044 = vunpack.c.l.b16 %v2253
  %v3045 = vunpack.c.l.b16 %v2254
  %v3046 = vunpack.c.l.b16 %v2255
  %v3047 = vunpack.c.l.b16 %v2256
  %v3048 = vunpack.c.l.b16 %v2257
  %v3049 = vunpack.c.l.b16 %v2258
  %v3050 = vunpack.c.l.b16 %v2259
  %v3051 = vunpack.c.l.b16 %v2260
  %v3052 = vunpack.c.l.b16 %v2261
  %v3053 = vunpack.c.l.b16 %v2262
  %v3054 = vunpack.c.l.b16 %v2263
  %v3055 = vunpack.c.l.b16 %v2264
  %v3056 = vunpack.c.l.b16 %v2265
  %v3057 = vunpack.c.l.b16 %v2266
  %v3058 = vunpack.c.l.b16 %v2267
  %v3059 = vunpack.c.l.b16 %v2268
  %v3060 = vunpack.c.l.b16 %v2269
  %v3061 = vunpack.c.l.b16 %v2270
  %v3062 = vunpack.c.l.b16 %v2271
  %v3063 = vunpack.c.l.b16 %v2272
  %v3064 = vunpack.c.l.b16 %v2273
  %v3065 = vunpack.c.l.b16 %v2274
  %v3066 = vunpack.c.l.b16 %v2275
  %v3067 = vunpack.c.l.b16 %v2276
  %v3068 = vunpack.c.l.b16 %v2277
  %v3069 = vunpack.c.l.b16 %v2278
  %v3070 = vunpack.c.l.b16 %v2279
  %v3071 = vunpack.c.l.b16 %v2280
  %v3072 = vunpack.c.l.b16 %v2281
  %v3073 = vunpack.c.l.b16 %v2282
  %v3074 = vunpack.c.l.b16 %v2283
  %v3075 = vunpack.c.l.b16 %v2284
  %v3076 = vunpack.c.l.b16 %v2285
  %v3077 = vunpack.c.l.b16 %v2286
  %v3078 = vunpack.c.l.b16 %v2287
  %v3079 = vunpack.c.l.b16 %v2288
  %v3080 = vunpack.c.l.b16 %v2289
  %v3081 = vunpack.c.l.b16 %v2290
  %v3082 = vunpack.c.l.b16 %v2291
  %v3083 = vunpack.c.l.b16 %v2292
  %v3084 = vunpack.c.l.b16 %v2293
  %v3085 = vunpack.c.l.b16 %v2294
  %v3086 = vunpack.c.l.b16 %v2295
  %v3087 = vunpack.c.l.b16 %v2296
  %v3088 = vunpack.c.l.b16 %v2297
  %v3089 = vunpack.c.l.b16 %v2298
  %v3090 = vunpack.c.l.b16 %v2299
  %v3091 = vunpack.c.l.b16 %v2300
  %v3092 = vunpack.c.l.b16 %v2301
  %v3093 = vunpack.c.l.b16 %v2302
  %v3094 = vunpack.c.l.b16 %v2303
  %v3095 = vunpack.c.l.b16 %v2304
  %v3096 = vunpack.c.l.b16 %v2305
  %v3097 = vunpack.c.l.b16 %v2306
  %v3098 = vunpack.c.l.b16 %v2307
  %v3099 = vunpack.c.l.b16 %v2308
  %v3100 = vunpack.c.l.b16 %v2309
  %v3101 = vunpack.c.l.b16 %v2310
  %v3102 = vunpack.c.l.b16 %v2311
  %v3103 = vunpack.c.l.b16 %v2312
  %v3104 = vunpack.c.l.b16 %v2313
  %v3105 = vunpack.c.l.b16 %v2314
  %v3106 = vunpack.c.l.b16 %v2315
  %v3107 = vunpack.c.l.b16 %v2316
  %v3108 = vunpack.c.l.b16 %v2317
  %v3109 = vunpack.c.l.b16 %v2318
  %v3110 = vunpack.c.l.b16 %v2319
  %v3111 = vunpack.c.l.b16 %v2320
  %v3112 = vunpack.c.l.b16 %v2321
  %v3113 = vunpack.c.l.b16 %v2322
  %v3114 = vunpack.c.l.b16 %v2323
  %v3115 = vunpack.c.l.b16 %v2324
  %v3116 = vunpack.c.l.b16 %v2325
  %v3117 = vunpack.c.l.b16 %v2326
  %v3118 = vunpack.c.l.b16 %v2327
  %v3119 = vunpack.c.l.b16 %v2328
  %v3120 = vunpack.c.l.b16 %v2329
  %v3121 = vunpack.c.l.b16 %v2330
  %v3122 = vunpack.c.l.b16 %v2331
  %v3123 = vunpack.c.l.b16 %v2332
  %v3124 = vunpack.c.l.b16 %v2333
  %v3125 = vunpack.c.l.b16 %v2334
  %v3126 = vunpack.c.l.b16 %v2335
  %v3127 = vunpack.c.l.b16 %v2336
  %v3128 = vunpack.c.l.b16 %v2337
  %v3129 = vunpack.c.l.b16 %v2338
  %v3130 = vunpack.c.l.b16 %v2339
  %v3131 = vunpack.c.l.b16 %v2340
  %v3132 = vunpack.c.l.b16 %v2341
  %v3133 = vunpack.c.l.b16 %v2342
  %v3134 = vunpack.c.l.b16 %v2343
  %v3135 = vunpack.c.l.b16 %v2344
  %v3136 = vunpack.c.l.b16 %v2345
  %v3137 = vunpack.c.l.b16 %v2346
  %v3138 = vunpack.c.l.b16 %v2347
  %v3139 = vunpack.c.l.b16 %v2348
  %v3140 = vunpack.c.l.b16 %v2349
  %v3141 = vunpack.c.l.b16 %v2350
  %v3142 = vunpack.c.l.b16 %v2351
  %v3143 = vunpack.c.l.b16 %v2352
  %v3144 = vunpack.c.l.b16 %v2353
  %v3145 = vunpack.c.l.b16 %v2354
  %v3146 = vunpack.c.l.b16 %v2355
  %v3147 = vunpack.c.l.b16 %v2356
  %v3148 = vunpack.c.l.b16 %v2357
  %v3149 = vunpack.c.l.b16 %v2358
  %v3150 = vunpack.c.l.b16 %v2359
  %v3151 = vunpack.c.l.b16 %v2360
  %v3152 = vunpack.c.l.b16 %v2361
  %v3153 = vunpack.c.l.b16 %v2362
  %v3154 = vunpack.c.l.b16 %v2363
  %v3155 = vunpack.c.l.b16 %v2364
  %v3156 = vunpack.c.l.b16 %v2365
  %v3157 = vunpack.c.l.b16 %v2366
  %v3158 = vunpack.c.l.b16 %v2367
  %v3159 = vunpack.c.l.b16 %v2368
  %v3160 = vunpack.c.l.b16 %v2369
  %v3161 = vunpack.c.l.b16 %v2370
  %v3162 = vunpack.c.l.b16 %v2371
  %v3163 = vunpack.c.l.b16 %v2372
  %v3164 = vunpack.c.l.b16 %v2373
  %v3165 = vunpack.c.l.b16 %v2374
  %v3166 = vunpack.c.l.b16 %v2375
  %v3167 = vunpack.c.l.b16 %v2376
  %v3168 = vunpack.c.l.b16 %v2377
  %v3169 = vunpack.c.l.b16 %v2378
  %v3170 = vunpack.c.l.b16 %v2379
  %v3171 = vunpack.c.l.b16 %v2380
  %v3172 = vunpack.c.l.b16 %v2381
  %v3173 = vunpack.c.l.b16 %v2382
  %v3174 = vunpack.c.l.b16 %v2383
  %v3175 = vunpack.c.l.b16 %v2384
  %v3176 = vunpack.c.l.b16 %v2385
  %v3177 = vunpack.c.l.b16 %v2386
  %v3178 = vunpack.c.l.b16 %v2387
  %v3179 = vunpack.c.l.b16 %v2388
  %v3180 = vunpack.c.l.b16 %v2389
  %v3181 = vunpack.c.l.b16 %v2390
  %v3182 = vunpack.c.l.b16 %v2391
  %v3183 = vunpack.c.l.b16 %v2392
  %v3184 = vunpack.c.l.b16 %v2393
  %v3185 = vunpack.c.l.b16 %v2394
  %v3186 = vunpack.c.l.b16 %v2395
  %v3187 = vunpack.c.l.b16 %v2396
  %v3188 = vunpack.c.l.b16 %v2397
  %v3189 = vunpack.c.l.b16 %v2398
  %v3190 = vunpack.c.l.b16 %v2399
  %v3191 = vunpack.c.l.b16 %v2400
  %v3192 = vunpack.c.l.b16 %v2401
  %v3193 = vunpack.c.l.b16 %v2402
  %v3194 = vunpack.c.l.b16 %v2403
  %v3195 = vunpack.c.l.b16 %v2404
  %v3196 = vunpack.c.l.b16 %v2405
  %v3197 = vunpack.c.l.b16 %v2406
  %v3198 = vunpack.c.l.b16 %v2407
  %v3199 = vunpack.c.l.b16 %v2408
  %v3200 = vunpack.c.l.b16 %v2409
  %v3201 = vunpack.c.l.b16 %v2410
  %v3202 = vunpack.c.l.b16 %v2411
  %v3203 = vunpack.c.l.b16 %v2412
  %v3204 = vunpack.c.l.b16 %v2413
  %v3205 = vunpack.c.l.b16 %v2414
  %v3206 = vunpack.c.l.b16 %v2415
  %v3207 = vunpack.c.l.b16 %v2416
  %v3208 = vunpack.c.l.b16 %v2417
  %v3209 = vunpack.c.l.b16 %v2418
  %v3210 = vunpack.c.l.b16 %v2419
  %v3211 = vunpack.c.l.b16 %v2420
  %v3212 = vunpack.c.l.b16 %v2421
  %v3213 = vunpack.c.l.b16 %v2422
  %v3214 = vunpack.c.l.b16 %v2423
  %v3215 = vunpack.c.l.b16 %v2424
  %v3216 = vunpack.c.l.b16 %v2425
  %v3217 = vunpack.c.l.b16 %v2426
  %v3218 = vunpack.c.l.b16 %v2427
  %v3219 = vunpack.c.l.b16 %v2428
  %v3220 = vunpack.c.l.b16 %v2429
  %v3221 = vunpack.c.l.b16 %v2430
  %v3222 = vunpack.c.l.b16 %v2431
  %v3223 = vunpack.c.l.b16 %v2432
  %v3224 = vunpack.c.l.b16 %v2433
  %v3225 = vunpack.c.l.b16 %v2434
  %v3226 = vunpack.c.l.b16 %v2435
  %v3227 = vunpack.c.l.b16 %v2436
  %v3228 = vunpack.c.l.b16 %v2437
  %v3229 = vunpack.c.l.b16 %v2438
  %v3230 = vunpack.c.l.b16 %v2439
  %v3231 = vunpack.c.l.b16 %v2440
  %v3232 = vunpack.c.l.b16 %v2441
  %v3233 = vunpack.c.l.b16 %v2442
  %v3234 = vunpack.c.l.b16 %v2443
  %v3235 = vunpack.c.l.b16 %v2444
  %v3236 = vunpack.c.l.b16 %v2445
  %v3237 = vunpack.c.l.b16 %v2446
  %v3238 = vunpack.c.l.b16 %v2447
  %v3239 = vunpack.c.l.b16 %v2448
  %v3240 = vunpack.c.l.b16 %v2449
  %v3241 = vunpack.c.l.b16 %v2450
  %v3242 = vunpack.c.l.b16 %v2451
  %v3243 = vunpack.c.l.b16 %v2452
  %v3244 = vunpack.c.l.b16 %v2453
  %v3245 = vunpack.c.l.b16 %v2454
  %v3246 = vunpack.c.l.b16 %v2455
  %v3247 = vunpack.c.l.b16 %v2456
  %v3248 = vunpack.c.l.b16 %v2457
  %v3249 = vunpack.c.l.b16 %v2458
  %v3250 = vunpack.c.l.b16 %v2459
  %v3251 = vunpack.c.l.b16 %v2460
  %v3252 = vunpack.c.l.b16 %v2461
  %v3253 = vunpack.c.l.b16 %v2462
  %v3254 = vunpack.c.l.b16 %v2463
  %v3255 = vunpack.c.l.b16 %v2464
  %v3256 = vunpack.c.l.b16 %v2465
  %v3257 = vunpack.c.l.b16 %v2466
  %v3258 = vunpack.c.l.b16 %v2467
  %v3259 = vunpack.c.l.b16 %v2468
  %v3260 = vunpack.c.l.b16 %v2469
  %v3261 = vunpack.c.l.b16 %v2470
  %v3262 = vunpack.c.l.b16 %v2471
  %v3263 = vunpack.c.l.b16 %v2472
  %v3264 = vunpack.c.l.b16 %v2473
  %v3265 = vunpack.c.l.b16 %v2474
  %v3266 = vunpack.c.l.b16 %v2475
  %v3267 = vunpack.c.l.b16 %v2476
  %v3268 = vunpack.c.l.b16 %v2477
  %v3269 = vunpack.c.l.b16 %v2478
  %v3270 = vunpack.c.l.b16 %v2479
  %v3271 = vunpack.c.l.b16 %v2480
  %v3272 = vunpack.c.l.b16 %v2481
  %v3273 = vunpack.c.l.b16 %v2482
  %v3274 = vunpack.c.l.b16 %v2483
  %v3275 = vunpack.c.l.b16 %v2484
  %v3276 = vunpack.c.l.b16 %v2485
  %v3277 = vunpack.c.l.b16 %v2486
  %v3278 = vunpack.c.l.b16 %v2487
  %v3279 = vunpack.c.l.b16 %v2488
  %v3280 = vunpack.c.l.b16 %v2489
  %v3281 = vunpack.c.l.b16 %v2490
  %v3282 = vunpack.c.l.b16 %v2491
  %v3283 = vunpack.c.l.b16 %v2492
  %v3284 = vunpack.c.l.b16 %v2493
  %v3285 = vunpack.c.l.b16 %v2494
  %v3286 = vunpack.c.l.b16 %v2495
  %v3287 = vunpack.c.l.b16 %v2496
  %v3288 = vunpack.c.l.b16 %v2497
  %v3289 = vunpack.c.l.b16 %v2498
  %v3290 = vunpack.c.l.b16 %v2499
  %v3291 = vunpack.c.l.b16 %v2500
  %v3292 = vunpack.c.l.b16 %v2501
  %v3293 = vunpack.c.l.b16 %v2502
  %v3294 = vunpack.c.l.b16 %v2503
  %v3295 = vunpack.c.l.b16 %v2504
  %v3296 = vunpack.c.l.b16 %v2505
  %v3297 = vunpack.c.l.b16 %v2506
  %v3298 = vunpack.c.l.b16 %v2507
  %v3299 = vunpack.c.l.b16 %v2508
  %v3300 = vunpack.c.l.b16 %v2509
  %v3301 = vunpack.c.l.b16 %v2510
  %v3302 = vunpack.c.l.b16 %v2511
  %v3303 = vunpack.c.l.b16 %v2512
  %v3304 = vunpack.c.l.b16 %v2513
  %v3305 = vunpack.c.l.b16 %v2514
  %v3306 = vunpack.c.l.b16 %v2515
  %v3307 = vunpack.c.l.b16 %v2516
  %v3308 = vunpack.c.l.b16 %v2517
  %v3309 = vunpack.c.l.b16 %v2518
  %v3310 = vunpack.c.l.b16 %v2519
  %v3311 = vunpack.c.l.b16 %v2520
  %v3312 = vunpack.c.l.b16 %v2521
  %v3313 = vunpack.c.l.b16 %v2522
  %v3314 = vunpack.c.l.b16 %v2523
  %v3315 = vunpack.c.l.b16 %v2524
  %v3316 = vunpack.c.l.b16 %v2525
  %v3317 = vunpack.c.l.b16 %v2526
  %v3318 = vunpack.c.l.b16 %v2527
  %v3319 = vunpack.c.l.b16 %v2528
  %v3320 = vunpack.c.l.b16 %v2529
  %v3321 = vunpack.c.l.b16 %v2530
  %v3322 = vunpack.c.l.b16 %v2531
  %v3323 = vunpack.c.l.b16 %v2532
  %v3324 = vunpack.c.l.b16 %v2533
  %v3325 = vunpack.c.l.b16 %v2534
  %v3326 = vunpack.c.l.b16 %v2535
  %v3327 = vunpack.c.l.b16 %v2536
  %v3328 = vunpack.c.l.b16 %v2537
  %v3329 = vunpack.c.l.b16 %v2538
  %v3330 = vunpack.c.l.b16 %v2539
  %v3331 = vunpack.c.l.b16 %v2540
  %v3332 = vunpack.c.l.b16 %v2541
  %v3333 = vunpack.c.l.b16 %v2542
  %v3334 = vunpack.c.l.b16 %v2543
  %v3335 = vunpack.c.l.b16 %v2544
  %v3336 = vunpack.c.l.b16 %v2545
  %v3337 = vunpack.c.l.b16 %v2546
  %v3338 = vunpack.c.l.b16 %v2547
  %v3339 = vunpack.c.l.b16 %v2548
  %v3340 = vunpack.c.l.b16 %v2549
  %v3341 = vunpack.c.l.b16 %v2550
  %v3342 = vunpack.c.l.b16 %v2551
  %v3343 = vunpack.c.l.b16 %v2552
  %v3344 = vunpack.c.l.b16 %v2553
  %v3345 = vunpack.c.l.b16 %v2554
  %v3346 = vunpack.c.l.b16 %v2555
  %v3347 = vunpack.c.l.b16 %v2556
  %v3348 = vunpack.c.l.b16 %v2557
  %v3349 = vunpack.c.l.b16 %v2558
  %v3350 = vunpack.c.l.b16 %v2559
  %v3351 = vunpack.c.l.b16 %v2560
  %v3352 = vunpack.c.l.b16 %v2561
  %v3353 = vunpack.c.l.b16 %v2562
  %v3354 = vunpack.c.l.b16 %v2563
  %v3355 = vunpack.c.l.b16 %v2564
  %v3356 = vunpack.c.l.b16 %v2565
  %v3357 = vunpack.c.l.b16 %v2566
  %v3358 = vunpack.c.l.b16 %v2567
  %v3359 = vunpack.c.l.b16 %v2568
  %v3360 = vunpack.c.l.b16 %v2569
  %v3361 = vunpack.c.l.b16 %v2570
  %v3362 = vunpack.c.l.b16 %v2571
  %v3363 = vunpack.c.l.b16 %v2572
  %v3364 = vunpack.c.l.b16 %v2573
  %v3365 = vunpack.c.l.b16 %v2574
  %v3366 = vunpack.c.l.b16 %v2575
  %v3367 = vunpack.c.l.b16 %v2576
  %v3368 = vunpack.c.l.b16 %v2577
  %v3369 = vunpack.c.l.b16 %v2578
  %v3370 = vunpack.c.l.b16 %v2579
  %v3371 = vunpack.c.l.b16 %v2580
  %v3372 = vunpack.c.l.b16 %v2581
  %v3373 = vunpack.c.l.b16 %v2582
  %v3374 = vunpack.c.l.b16 %v2583
  %v3375 = vunpack.c.l.b16 %v2584
  %v3376 = vunpack.c.l.b16 %v2585
  %v3377 = vunpack.c.l.b16 %v2586
  %v3378 = vunpack.c.l.b16 %v2587
  %v3379 = vunpack.c.l.b16 %v2588
  %v3380 = vunpack.c.l.b16 %v2589
  %v3381 = vunpack.c.l.b16 %v2590
  %v3382 = vunpack.c.l.b16 %v2591
  %v3383 = vunpack.c.l.b16 %v2592
  %v3384 = vunpack.c.l.b16 %v2593
  %v3385 = vunpack.c.l.b16 %v2594
  %v3386 = vunpack.c.l.b16 %v2595
  %v3387 = vunpack.c.l.b16 %v2596
  %v3388 = vunpack.c.l.b16 %v2597
  %v3389 = vunpack.c.l.b16 %v2598
  %v3390 = vunpack.c.l.b16 %v2599
  %v3391 = vunpack.c.l.b16 %v2600
  %v3392 = vunpack.c.l.b16 %v2601
  %v3393 = vunpack.c.l.b16 %v2602
  %v3394 = vunpack.c.l.b16 %v2603
  %v3395 = vunpack.c.l.b16 %v2604
  %v3396 = vunpack.c.l.b16 %v2605
  %v3397 = vunpack.c.l.b16 %v2606
  %v3398 = vunpack.c.l.b16 %v2607
  %v3399 = vunpack.c.l.b16 %v2608
  %v3400 = vunpack.c.l.b16 %v2609
  %v3401 = vunpack.c.l.b16 %v2610
  %v3402 = vunpack.c.l.b16 %v2611
  %v3403 = vunpack.c.l.b16 %v2612
  %v3404 = vunpack.c.l.b16 %v2613
  %v3405 = vunpack.c.l.b16 %v2614
  %v3406 = vunpack.c.l.b16 %v2615
  %v3407 = vunpack.c.l.b16 %v2616
  %v3408 = vunpack.c.l.b16 %v2617
  %v3409 = vunpack.c.l.b16 %v2618
  %v3410 = vunpack.c.l.b16 %v2619
  %v3411 = vunpack.c.l.b16 %v2620
  %v3412 = vunpack.c.l.b16 %v2621
  %v3413 = vunpack.c.l.b16 %v2622
  %v3414 = vunpack.c.l.b16 %v2623
  %v3415 = vunpack.c.l.b16 %v2624
  %v3416 = vunpack.c.l.b16 %v2625
  %v3417 = vunpack.c.l.b16 %v2626
  %v3418 = vunpack.c.l.b16 %v2627
  %v3419 = vunpack.c.l.b16 %v2628
  %v3420 = vunpack.c.l.b16 %v2629
  %v3421 = vunpack.c.l.b16 %v2630
  %v3422 = vunpack.c.l.b16 %v2631
  %v3423 = vunpack.c.l.b16 %v2632
  %v3424 = vunpack.c.l.b16 %v2633
  %v3425 = vunpack.c.l.b16 %v2634
  %v3426 = vunpack.c.l.b16 %v2635
  %v3427 = vunpack.c.l.b16 %v2636
  %v3428 = vunpack.c.l.b16 %v2637
  %v3429 = vpack.c.b16 %v3038, %v3037
  %v3430 = vpack.c.b16 %v3040, %v3039
  %v3431 = vpack.c.b16 %v3042, %v3041
  %v3432 = vpack.c.b16 %v3044, %v3043
  %v3433 = vpack.c.b16 %v3046, %v3045
  %v3434 = vpack.c.b16 %v3048, %v3047
  %v3435 = vpack.c.b16 %v3050, %v3049
  %v3436 = vpack.c.b16 %v3052, %v3051
  %v3437 = vpack.c.b16 %v3054, %v3053
  %v3438 = vpack.c.b16 %v3056, %v3055
  %v3439 = vpack.c.b16 %v3058, %v3057
  %v3440 = vpack.c.b16 %v3060, %v3059
  %v3441 = vpack.c.b16 %v3062, %v3061
  %v3442 = vpack.c.b16 %v3064, %v3063
  %v3443 = vpack.c.b16 %v3066, %v3065
  %v3444 = vpack.c.b16 %v3068, %v3067
  %v3445 = vpack.c.b16 %v3070, %v3069
  %v3446 = vpack.c.b16 %v3072, %v3071
  %v3447 = vpack.c.b16 %v3074, %v3073
  %v3448 = vpack.c.b16 %v3076, %v3075
  %v3449 = vpack.c.b16 %v3078, %v3077
  %v3450 = vpack.c.b16 %v3080, %v3079
  %v3451 = vpack.c.b16 %v3082, %v3081
  %v3452 = vpack.c.b16 %v3084, %v3083
  %v3453 = vpack.c.b16 %v3086, %v3085
  %v3454 = vpack.c.b16 %v3088, %v3087
  %v3455 = vpack.c.b16 %v3090, %v3089
  %v3456 = vpack.c.b16 %v3092, %v3091
  %v3457 = vpack.c.b16 %v3094, %v3093
  %v3458 = vpack.c.b16 %v3096, %v3095
  %v3459 = vpack.c.b16 %v3098, %v3097
  %v3460 = vpack.c.b16 %v3100, %v3099
  %v3461 = vpack.c.b16 %v3102, %v3101
  %v3462 = vpack.c.b16 %v3104, %v3103
  %v3463 = vpack.c.b16 %v3106, %v3105
  %v3464 = vpack.c.b16 %v3108, %v3107
  %v3465 = vpack.c.b16 %v3110, %v3109
  %v3466 = vpack.c.b16 %v3112, %v3111
  %v3467 = vpack.c.b16 %v3114, %v3113
  %v3468 = vpack.c.b16 %v3116, %v3115
  %v3469 = vpack.c.b16 %v3118, %v3117
  %v3470 = vpack.c.b16 %v3120, %v3119
  %v3471 = vpack.c.b16 %v3122, %v3121
  %v3472 = vpack.c.b16 %v3124, %v3123
  %v3473 = vpack.c.b16 %v3126, %v3125
  %v3474 = vpack.c.b16 %v3128, %v3127
  %v3475 = vpack.c.b16 %v3130, %v3129
  %v3476 = vpack.c.b16 %v3132, %v3131
  %v3477 = vpack.c.b16 %v3134, %v3133
  %v3478 = vpack.c.b16 %v3136, %v3135
  %v3479 = vpack.c.b16 %v3138, %v3137
  %v3480 = vpack.c.b16 %v3140, %v3139
  %v3481 = vpack.c.b16 %v3142, %v3141
  %v3482 = vpack.c.b16 %v3144, %v3143
  %v3483 = vpack.c.b16 %v3146, %v3145
  %v3484 = vpack.c.b16 %v3148, %v3147
  %v3485 = vpack.c.b16 %v3150, %v3149
  %v3486 = vpack.c.b16 %v3152, %v3151
  %v3487 = vpack.c.b16 %v3154, %v3153
  %v3488 = vpack.c.b16 %v3156, %v3155
  %v3489 = vpack.c.b16 %v3158, %v3157
  %v3490 = vpack.c.b16 %v3160, %v3159
  %v3491 = vpack.c.b16 %v3162, %v3161
  %v3492 = vpack.c.b16 %v3164, %v3163
  %v3493 = vpack.c.b16 %v3166, %v3165
  %v3494 = vpack.c.b16 %v3168, %v3167
  %v3495 = vpack.c.b16 %v3170, %v3169
  %v3496 = vpack.c.b16 %v3172, %v3171
  %v3497 = vpack.c.b16 %v3174, %v3173
  %v3498 = vpack.c.b16 %v3176, %v3175
  %v3499 = vpack.c.b16 %v3178, %v3177
  %v3500 = vpack.c.b16 %v3180, %v3179
  %v3501 = vpack.c.b16 %v3182, %v3181
  %v3502 = vpack.c.b16 %v3184, %v3183
  %v3503 = vpack.c.b16 %v3186, %v3185
  %v3504 = vpack.c.b16 %v3188, %v3187
  %v3505 = vpack.c.b16 %v3190, %v3189
  %v3506 = vpack.c.b16 %v3192, %v3191
  %v3507 = vpack.c.b16 %v3194, %v3193
  %v3508 = vpack.c.b16 %v3196, %v3195
  %v3509 = vpack.c.b16 %v3198, %v3197
  %v3510 = vpack.c.b16 %v3200, %v3199
  %v3511 = vpack.c.b16 %v3202, %v3201
  %v3512 = vpack.c.b16 %v3204, %v3203
  %v3513 = vpack.c.b16 %v3206, %v3205
  %v3514 = vpack.c.b16 %v3208, %v3207
  %v3515 = vpack.c.b16 %v3210, %v3209
  %v3516 = vpack.c.b16 %v3212, %v3211
  %v3517 = vpack.c.b16 %v3214, %v3213
  %v3518 = vpack.c.b16 %v3216, %v3215
  %v3519 = vpack.c.b16 %v3218, %v3217
  %v3520 = vpack.c.b16 %v3220, %v3219
  %v3521 = vpack.c.b16 %v3222, %v3221
  %v3522 = vpack.c.b16 %v3224, %v3223
  %v3523 = vpack.c.b16 %v3226, %v3225
  %v3524 = vpack.c.b16 %v3228, %v3227
  %v3525 = vpack.c.b16 %v3230, %v3229
  %v3526 = vpack.c.b16 %v3232, %v3231
  %v3527 = vpack.c.b16 %v3234, %v3233
  %v3528 = vpack.c.b16 %v3236, %v3235
  %v3529 = vpack.c.b16 %v3238, %v3237
  %v3530 = vpack.c.b16 %v3240, %v3239
  %v3531 = vpack.c.b16 %v3242, %v3241
  %v3532 = vpack.c.b16 %v3244, %v3243
  %v3533 = vpack.c.b16 %v3246, %v3245
  %v3534 = vpack.c.b16 %v3248, %v3247
  %v3535 = vpack.c.b16 %v3250, %v3249
  %v3536 = vpack.c.b16 %v3252, %v3251
  %v3537 = vpack.c.b16 %v3254, %v3253
  %v3538 = vpack.c.b16 %v3256, %v3255
  %v3539 = vpack.c.b16 %v3258, %v3257
  %v3540 = vpack.c.b16 %v3260, %v3259
  %v3541 = vpack.c.b16 %v3262, %v3261
  %v3542 = vpack.c.b16 %v3264, %v3263
  %v3543 = vpack.c.b16 %v3266, %v3265
  %v3544 = vpack.c.b16 %v3268, %v3267
  %v3545 = vpack.c.b16 %v3270, %v3269
  %v3546 = vpack.c.b16 %v3272, %v3271
  %v3547 = vpack.c.b16 %v3274, %v3273
  %v3548 = vpack.c.b16 %v3276, %v3275
  %v3549 = vpack.c.b16 %v3278, %v3277
  %v3550 = vpack.c.b16 %v3280, %v3279
  %v3551 = vpack.c.b16 %v3282, %v3281
  %v3552 = vpack.c.b16 %v3284, %v3283
  %v3553 = vpack.c.b16 %v3286, %v3285
  %v3554 = vpack.c.b16 %v3288, %v3287
  %v3555 = vpack.c.b16 %v3290, %v3289
  %v3556 = vpack.c.b16 %v3292, %v3291
  %v3557 = vpack.c.b16 %v3294, %v3293
  %v3558 = vpack.c.b16 %v3296, %v3295
  %v3559 = vpack.c.b16 %v3298, %v3297
  %v3560 = vpack.c.b16 %v3300, %v3299
  %v3561 = vpack.c.b16 %v3302, %v3301
  %v3562 = vpack.c.b16 %v3304, %v3303
  %v3563 = vpack.c.b16 %v3306, %v3305
  %v3564 = vpack.c.b16 %v3308, %v3307
  %v3565 = vpack.c.b16 %v3310, %v3309
  %v3566 = vpack.c.b16 %v3312, %v3311
  %v3567 = vpack.c.b16 %v3314, %v3313
  %v3568 = vpack.c.b16 %v3316, %v3315
  %v3569 = vpack.c.b16 %v3318, %v3317
  %v3570 = vpack.c.b16 %v3320, %v3319
  %v3571 = vpack.c.b16 %v3322, %v3321
  %v3572 = vpack.c.b16 %v3324, %v3323
  %v3573 = vpack.c.b16 %v3326, %v3325
  %v3574 = vpack.c.b16 %v3328, %v3327
  %v3575 = vpack.c.b16 %v3330, %v3329
  %v3576 = vpack.c.b16 %v3332, %v3331
  %v3577 = vpack.c.b16 %v3334, %v3333
  %v3578 = vpack.c.b16 %v3336, %v3335
  %v3579 = vpack.c.b16 %v3338, %v3337
  %v3580 = vpack.c.b16 %v3340, %v3339
  %v3581 = vpack.c.b16 %v3342, %v3341
  %v3582 = vpack.c.b16 %v3344, %v3343
  %v3583 = vpack.c.b16 %v3346, %v3345
  %v3584 = vpack.c.b16 %v3348, %v3347
  %v3585 = vpack.c.b16 %v3350, %v3349
  %v3586 = vpack.c.b16 %v3352, %v3351
  %v3587 = vpack.c.b16 %v3354, %v3353
  %v3588 = vpack.c.b16 %v3356, %v3355
  %v3589 = vpack.c.b16 %v3358, %v3357
  %v3590 = vpack.c.b16 %v3360, %v3359
  %v3591 = vpack.c.b16 %v3362, %v3361
  %v3592 = vpack.c.b16 %v3364, %v3363
  %v3593 = vpack.c.b16 %v3366, %v3365
  %v3594 = vpack.c.b16 %v3368, %v3367
  %v3595 = vpack.c.b16 %v3370, %v3369
  %v3596 = vpack.c.b16 %v3372, %v3371
  %v3597 = vpack.c.b16 %v3374, %v3373
  %v3598 = vpack.c.b16 %v3376, %v3375
  %v3599 = vpack.c.b16 %v3378, %v3377
  %v3600 = vpack.c.b16 %v3380, %v3379
  %v3601 = vpack.c.b16 %v3382, %v3381
  %v3602 = vpack.c.b16 %v3384, %v3383
  %v3603 = vpack.c.b16 %v3386, %v3385
  %v3604 = vpack.c.b16 %v3388, %v3387
  %v3605 = vpack.c.b16 %v3390, %v3389
  %v3606 = vpack.c.b16 %v3392, %v3391
  %v3607 = vpack.c.b16 %v3394, %v3393
  %v3608 = vpack.c.b16 %v3396, %v3395
  %v3609 = vpack.c.b16 %v3398, %v3397
  %v3610 = vpack.c.b16 %v3400, %v3399
  %v3611 = vpack.c.b16 %v3402, %v3401
  %v3612 = vpack.c.b16 %v3404, %v3403
  %v3613 = vpack.c.b16 %v3406, %v3405
  %v3614 = vpack.c.b16 %v3408, %v3407
  %v3615 = vpack.c.b16 %v3410, %v3409
  %v3616 = vpack.c.b16 %v3412, %v3411
  %v3617 = vpack.c.b16 %v3414, %v3413
  %v3618 = vpack.c.b16 %v3416, %v3415
  %v3619 = vpack.c.b16 %v3418, %v3417
  %v3620 = vpack.c.b16 %v3420, %v3419
  %v3621 = vpack.c.b16 %v3422, %v3421
  %v3622 = vpack.c.b16 %v3424, %v3423
  %v3623 = vpack.c.b16 %v3426, %v3425
  %v3624 = vpack.c.b16 %v3428, %v3427
  %3821 = vmatprep.subr.bf16.mxu0 0
  %3822 = vmatpush1.bf16.msra.mxu0 %v3436
  %3823 = vmatprep.subr.bf16.mxu0 0
  %3824 = vmatpush1.bf16.msra.mxu0 %v3435
  %3825 = vmatprep.subr.bf16.mxu0 0
  %3826 = vmatpush1.bf16.msra.mxu0 %v3434
  %3827 = vmatprep.subr.bf16.mxu0 0
  %3828 = vmatpush1.bf16.msra.mxu0 %v3433
  %3829 = vmatprep.subr.bf16.mxu0 0
  %3830 = vmatpush1.bf16.msra.mxu0 %v3432
  %3831 = vmatprep.subr.bf16.mxu0 0
  %3832 = vmatpush1.bf16.msra.mxu0 %v3431
  %3833 = vmatprep.subr.bf16.mxu0 0
  %3834 = vmatpush1.bf16.msra.mxu0 %v3430
  %3835 = vmatprep.subr.bf16.mxu0 0
  %3836 = vmatpush1.bf16.msra.mxu0 %v3429
  %3837 = vmatprep.subr.bf16.mxu0 0
  %3838 = vmatpush2.bf16.msra.mxu0 %v3444
  %3839 = vmatprep.subr.bf16.mxu0 0
  %3840 = vmatpush2.bf16.msra.mxu0 %v3443
  %3841 = vmatprep.subr.bf16.mxu0 0
  %3842 = vmatpush2.bf16.msra.mxu0 %v3442
  %3843 = vmatprep.subr.bf16.mxu0 0
  %3844 = vmatpush2.bf16.msra.mxu0 %v3441
  %3845 = vmatprep.subr.bf16.mxu0 0
  %3846 = vmatpush2.bf16.msra.mxu0 %v3440
  %3847 = vmatprep.subr.bf16.mxu0 0
  %3848 = vmatpush2.bf16.msra.mxu0 %v3439
  %3849 = vmatprep.subr.bf16.mxu0 0
  %3850 = vmatpush2.bf16.msra.mxu0 %v3438
  %3851 = vmatprep.subr.bf16.mxu0 0
  %3852 = vmatpush2.bf16.msra.mxu0 %v3437
  %3853 = vmatprep.mubr.bf16.mxu0 %v498
  %3854 = vmatmul.mubr.bf16.gmra.mxu0 %v497
  %v3855 = vpop.f32.mrf.mxu0
  %v3856 = vadd.f32 %v2643, %v3855
  %v3857 = vpop.f32.mrf.mxu0
  %v3858 = vpop.f32.mrf.mxu0
  %v3859 = vpop.f32.mrf.mxu0
  %3860 = vdwg.mxu0
  %3861 = vmatprep.subr.bf16.mxu0 0
  %3862 = vmatpush1.bf16.msra.mxu0 %v3452
  %3863 = vmatprep.subr.bf16.mxu0 0
  %3864 = vmatpush1.bf16.msra.mxu0 %v3451
  %3865 = vmatprep.subr.bf16.mxu0 0
  %3866 = vmatpush1.bf16.msra.mxu0 %v3450
  %3867 = vmatprep.subr.bf16.mxu0 0
  %3868 = vmatpush1.bf16.msra.mxu0 %v3449
  %3869 = vmatprep.subr.bf16.mxu0 0
  %3870 = vmatpush1.bf16.msra.mxu0 %v3448
  %3871 = vmatprep.subr.bf16.mxu0 0
  %3872 = vmatpush1.bf16.msra.mxu0 %v3447
  %3873 = vmatprep.subr.bf16.mxu0 0
  %3874 = vmatpush1.bf16.msra.mxu0 %v3446
  %3875 = vmatprep.subr.bf16.mxu0 0
  %3876 = vmatpush1.bf16.msra.mxu0 %v3445
  %3877 = vmatprep.subr.bf16.mxu0 0
  %3878 = vmatpush2.bf16.msra.mxu0 %v3460
  %3879 = vmatprep.subr.bf16.mxu0 0
  %3880 = vmatpush2.bf16.msra.mxu0 %v3459
  %3881 = vmatprep.subr.bf16.mxu0 0
  %3882 = vmatpush2.bf16.msra.mxu0 %v3458
  %3883 = vmatprep.subr.bf16.mxu0 0
  %3884 = vmatpush2.bf16.msra.mxu0 %v3457
  %3885 = vmatprep.subr.bf16.mxu0 0
  %3886 = vmatpush2.bf16.msra.mxu0 %v3456
  %3887 = vmatprep.subr.bf16.mxu0 0
  %3888 = vmatpush2.bf16.msra.mxu0 %v3455
  %3889 = vmatprep.subr.bf16.mxu0 0
  %3890 = vmatpush2.bf16.msra.mxu0 %v3454
  %3891 = vmatprep.subr.bf16.mxu0 0
  %3892 = vmatpush2.bf16.msra.mxu0 %v3453
  %3893 = vmatprep.mubr.bf16.mxu0 %v500
  %3894 = vmatmul.mubr.bf16.gmra.mxu0 %v499
  %v3895 = vpop.f32.mrf.mxu0
  %v3896 = vadd.f32 %v3856, %v3895
  %v3897 = vpop.f32.mrf.mxu0
  %v3898 = vpop.f32.mrf.mxu0
  %v3899 = vpop.f32.mrf.mxu0
  %3900 = vdwg.mxu0
  %3901 = vmatprep.subr.bf16.mxu0 0
  %3902 = vmatpush1.bf16.msra.mxu0 %v3468
  %3903 = vmatprep.subr.bf16.mxu0 0
  %3904 = vmatpush1.bf16.msra.mxu0 %v3467
  %3905 = vmatprep.subr.bf16.mxu0 0
  %3906 = vmatpush1.bf16.msra.mxu0 %v3466
  %3907 = vmatprep.subr.bf16.mxu0 0
  %3908 = vmatpush1.bf16.msra.mxu0 %v3465
  %3909 = vmatprep.subr.bf16.mxu0 0
  %3910 = vmatpush1.bf16.msra.mxu0 %v3464
  %3911 = vmatprep.subr.bf16.mxu0 0
  %3912 = vmatpush1.bf16.msra.mxu0 %v3463
  %3913 = vmatprep.subr.bf16.mxu0 0
  %3914 = vmatpush1.bf16.msra.mxu0 %v3462
  %3915 = vmatprep.subr.bf16.mxu0 0
  %3916 = vmatpush1.bf16.msra.mxu0 %v3461
  %3917 = vmatprep.subr.bf16.mxu0 0
  %3918 = vmatpush2.bf16.msra.mxu0 %v3476
  %3919 = vmatprep.subr.bf16.mxu0 0
  %3920 = vmatpush2.bf16.msra.mxu0 %v3475
  %3921 = vmatprep.subr.bf16.mxu0 0
  %3922 = vmatpush2.bf16.msra.mxu0 %v3474
  %3923 = vmatprep.subr.bf16.mxu0 0
  %3924 = vmatpush2.bf16.msra.mxu0 %v3473
  %3925 = vmatprep.subr.bf16.mxu0 0
  %3926 = vmatpush2.bf16.msra.mxu0 %v3472
  %3927 = vmatprep.subr.bf16.mxu0 0
  %3928 = vmatpush2.bf16.msra.mxu0 %v3471
  %3929 = vmatprep.subr.bf16.mxu0 0
  %3930 = vmatpush2.bf16.msra.mxu0 %v3470
  %3931 = vmatprep.subr.bf16.mxu0 0
  %3932 = vmatpush2.bf16.msra.mxu0 %v3469
  %3933 = vmatprep.mubr.bf16.mxu0 %v502
  %3934 = vmatmul.mubr.bf16.gmra.mxu0 %v501
  %v3935 = vpop.f32.mrf.mxu0
  %v3936 = vadd.f32 %v3896, %v3935
  %v3937 = vpop.f32.mrf.mxu0
  %v3938 = vpop.f32.mrf.mxu0
  %v3939 = vpop.f32.mrf.mxu0
  %3940 = vdwg.mxu0
  %3941 = vmatprep.subr.bf16.mxu0 0
  %3942 = vmatpush1.bf16.msra.mxu0 %v3484
  %3943 = vmatprep.subr.bf16.mxu0 0
  %3944 = vmatpush1.bf16.msra.mxu0 %v3483
  %3945 = vmatprep.subr.bf16.mxu0 0
  %3946 = vmatpush1.bf16.msra.mxu0 %v3482
  %3947 = vmatprep.subr.bf16.mxu0 0
  %3948 = vmatpush1.bf16.msra.mxu0 %v3481
  %3949 = vmatprep.subr.bf16.mxu0 0
  %3950 = vmatpush1.bf16.msra.mxu0 %v3480
  %3951 = vmatprep.subr.bf16.mxu0 0
  %3952 = vmatpush1.bf16.msra.mxu0 %v3479
  %3953 = vmatprep.subr.bf16.mxu0 0
  %3954 = vmatpush1.bf16.msra.mxu0 %v3478
  %3955 = vmatprep.subr.bf16.mxu0 0
  %3956 = vmatpush1.bf16.msra.mxu0 %v3477
  %3957 = vmatprep.subr.bf16.mxu0 0
  %3958 = vmatpush2.bf16.msra.mxu0 %v3492
  %3959 = vmatprep.subr.bf16.mxu0 0
  %3960 = vmatpush2.bf16.msra.mxu0 %v3491
  %3961 = vmatprep.subr.bf16.mxu0 0
  %3962 = vmatpush2.bf16.msra.mxu0 %v3490
  %3963 = vmatprep.subr.bf16.mxu0 0
  %3964 = vmatpush2.bf16.msra.mxu0 %v3489
  %3965 = vmatprep.subr.bf16.mxu0 0
  %3966 = vmatpush2.bf16.msra.mxu0 %v3488
  %3967 = vmatprep.subr.bf16.mxu0 0
  %3968 = vmatpush2.bf16.msra.mxu0 %v3487
  %3969 = vmatprep.subr.bf16.mxu0 0
  %3970 = vmatpush2.bf16.msra.mxu0 %v3486
  %3971 = vmatprep.subr.bf16.mxu0 0
  %3972 = vmatpush2.bf16.msra.mxu0 %v3485
  %3973 = vmatprep.mubr.bf16.mxu0 %v504
  %3974 = vmatmul.mubr.bf16.gmra.mxu0 %v503
  %v3975 = vpop.f32.mrf.mxu0
  %v3976 = vadd.f32 %v3936, %v3975
  %v3977 = vpop.f32.mrf.mxu0
  %v3978 = vpop.f32.mrf.mxu0
  %v3979 = vpop.f32.mrf.mxu0
  %3980 = vdwg.mxu0
  %3981 = vmatprep.subr.bf16.mxu0 0
  %3982 = vmatpush1.bf16.msra.mxu0 %v3500
  %3983 = vmatprep.subr.bf16.mxu0 0
  %3984 = vmatpush1.bf16.msra.mxu0 %v3499
  %3985 = vmatprep.subr.bf16.mxu0 0
  %3986 = vmatpush1.bf16.msra.mxu0 %v3498
  %3987 = vmatprep.subr.bf16.mxu0 0
  %3988 = vmatpush1.bf16.msra.mxu0 %v3497
  %3989 = vmatprep.subr.bf16.mxu0 0
  %3990 = vmatpush1.bf16.msra.mxu0 %v3496
  %3991 = vmatprep.subr.bf16.mxu0 0
  %3992 = vmatpush1.bf16.msra.mxu0 %v3495
  %3993 = vmatprep.subr.bf16.mxu0 0
  %3994 = vmatpush1.bf16.msra.mxu0 %v3494
  %3995 = vmatprep.subr.bf16.mxu0 0
  %3996 = vmatpush1.bf16.msra.mxu0 %v3493
  %3997 = vmatprep.subr.bf16.mxu0 0
  %3998 = vmatpush2.bf16.msra.mxu0 %v3508
  %3999 = vmatprep.subr.bf16.mxu0 0
  %4000 = vmatpush2.bf16.msra.mxu0 %v3507
  %4001 = vmatprep.subr.bf16.mxu0 0
  %4002 = vmatpush2.bf16.msra.mxu0 %v3506
  %4003 = vmatprep.subr.bf16.mxu0 0
  %4004 = vmatpush2.bf16.msra.mxu0 %v3505
  %4005 = vmatprep.subr.bf16.mxu0 0
  %4006 = vmatpush2.bf16.msra.mxu0 %v3504
  %4007 = vmatprep.subr.bf16.mxu0 0
  %4008 = vmatpush2.bf16.msra.mxu0 %v3503
  %4009 = vmatprep.subr.bf16.mxu0 0
  %4010 = vmatpush2.bf16.msra.mxu0 %v3502
  %4011 = vmatprep.subr.bf16.mxu0 0
  %4012 = vmatpush2.bf16.msra.mxu0 %v3501
  %4013 = vmatprep.mubr.bf16.mxu0 %v506
  %4014 = vmatmul.mubr.bf16.gmra.mxu0 %v505
  %v4015 = vpop.f32.mrf.mxu0
  %v4016 = vadd.f32 %v3976, %v4015
  %v4017 = vpop.f32.mrf.mxu0
  %v4018 = vpop.f32.mrf.mxu0
  %v4019 = vpop.f32.mrf.mxu0
  %4020 = vdwg.mxu0
  %4021 = vmatprep.subr.bf16.mxu0 0
  %4022 = vmatpush1.bf16.msra.mxu0 %v3516
  %4023 = vmatprep.subr.bf16.mxu0 0
  %4024 = vmatpush1.bf16.msra.mxu0 %v3515
  %4025 = vmatprep.subr.bf16.mxu0 0
  %4026 = vmatpush1.bf16.msra.mxu0 %v3514
  %4027 = vmatprep.subr.bf16.mxu0 0
  %4028 = vmatpush1.bf16.msra.mxu0 %v3513
  %4029 = vmatprep.subr.bf16.mxu0 0
  %4030 = vmatpush1.bf16.msra.mxu0 %v3512
  %4031 = vmatprep.subr.bf16.mxu0 0
  %4032 = vmatpush1.bf16.msra.mxu0 %v3511
  %4033 = vmatprep.subr.bf16.mxu0 0
  %4034 = vmatpush1.bf16.msra.mxu0 %v3510
  %4035 = vmatprep.subr.bf16.mxu0 0
  %4036 = vmatpush1.bf16.msra.mxu0 %v3509
  %4037 = vmatprep.subr.bf16.mxu0 0
  %4038 = vmatpush2.bf16.msra.mxu0 %v3524
  %4039 = vmatprep.subr.bf16.mxu0 0
  %4040 = vmatpush2.bf16.msra.mxu0 %v3523
  %4041 = vmatprep.subr.bf16.mxu0 0
  %4042 = vmatpush2.bf16.msra.mxu0 %v3522
  %4043 = vmatprep.subr.bf16.mxu0 0
  %4044 = vmatpush2.bf16.msra.mxu0 %v3521
  %4045 = vmatprep.subr.bf16.mxu0 0
  %4046 = vmatpush2.bf16.msra.mxu0 %v3520
  %4047 = vmatprep.subr.bf16.mxu0 0
  %4048 = vmatpush2.bf16.msra.mxu0 %v3519
  %4049 = vmatprep.subr.bf16.mxu0 0
  %4050 = vmatpush2.bf16.msra.mxu0 %v3518
  %4051 = vmatprep.subr.bf16.mxu0 0
  %4052 = vmatpush2.bf16.msra.mxu0 %v3517
  %4053 = vmatprep.mubr.bf16.mxu0 %v508
  %4054 = vmatmul.mubr.bf16.gmra.mxu0 %v507
  %v4055 = vpop.f32.mrf.mxu0
  %v4056 = vadd.f32 %v4016, %v4055
  %v4057 = vpop.f32.mrf.mxu0
  %v4058 = vpop.f32.mrf.mxu0
  %v4059 = vpop.f32.mrf.mxu0
  %4060 = vdwg.mxu0
  %4061 = vmatprep.subr.bf16.mxu0 0
  %4062 = vmatpush1.bf16.msra.mxu0 %v3532
  %4063 = vmatprep.subr.bf16.mxu0 0
  %4064 = vmatpush1.bf16.msra.mxu0 %v3531
  %4065 = vmatprep.subr.bf16.mxu0 0
  %4066 = vmatpush1.bf16.msra.mxu0 %v3530
  %4067 = vmatprep.subr.bf16.mxu0 0
  %4068 = vmatpush1.bf16.msra.mxu0 %v3529
  %4069 = vmatprep.subr.bf16.mxu0 0
  %4070 = vmatpush1.bf16.msra.mxu0 %v3528
  %4071 = vmatprep.subr.bf16.mxu0 0
  %4072 = vmatpush1.bf16.msra.mxu0 %v3527
  %4073 = vmatprep.subr.bf16.mxu0 0
  %4074 = vmatpush1.bf16.msra.mxu0 %v3526
  %4075 = vmatprep.subr.bf16.mxu0 0
  %4076 = vmatpush1.bf16.msra.mxu0 %v3525
  %4077 = vmatprep.subr.bf16.mxu0 0
  %4078 = vmatpush2.bf16.msra.mxu0 %v3540
  %4079 = vmatprep.subr.bf16.mxu0 0
  %4080 = vmatpush2.bf16.msra.mxu0 %v3539
  %4081 = vmatprep.subr.bf16.mxu0 0
  %4082 = vmatpush2.bf16.msra.mxu0 %v3538
  %4083 = vmatprep.subr.bf16.mxu0 0
  %4084 = vmatpush2.bf16.msra.mxu0 %v3537
  %4085 = vmatprep.subr.bf16.mxu0 0
  %4086 = vmatpush2.bf16.msra.mxu0 %v3536
  %4087 = vmatprep.subr.bf16.mxu0 0
  %4088 = vmatpush2.bf16.msra.mxu0 %v3535
  %4089 = vmatprep.subr.bf16.mxu0 0
  %4090 = vmatpush2.bf16.msra.mxu0 %v3534
  %4091 = vmatprep.subr.bf16.mxu0 0
  %4092 = vmatpush2.bf16.msra.mxu0 %v3533
  %4093 = vmatprep.mubr.bf16.mxu0 %v510
  %4094 = vmatmul.mubr.bf16.gmra.mxu0 %v509
  %v4095 = vpop.f32.mrf.mxu0
  %v4096 = vadd.f32 %v4056, %v4095
  %v4097 = vpop.f32.mrf.mxu0
  %v4098 = vpop.f32.mrf.mxu0
  %v4099 = vpop.f32.mrf.mxu0
  %4100 = vdwg.mxu0
  %4101 = vmatprep.subr.bf16.mxu0 0
  %4102 = vmatpush1.bf16.msra.mxu0 %v3548
  %4103 = vmatprep.subr.bf16.mxu0 0
  %4104 = vmatpush1.bf16.msra.mxu0 %v3547
  %4105 = vmatprep.subr.bf16.mxu0 0
  %4106 = vmatpush1.bf16.msra.mxu0 %v3546
  %4107 = vmatprep.subr.bf16.mxu0 0
  %4108 = vmatpush1.bf16.msra.mxu0 %v3545
  %4109 = vmatprep.subr.bf16.mxu0 0
  %4110 = vmatpush1.bf16.msra.mxu0 %v3544
  %4111 = vmatprep.subr.bf16.mxu0 0
  %4112 = vmatpush1.bf16.msra.mxu0 %v3543
  %4113 = vmatprep.subr.bf16.mxu0 0
  %4114 = vmatpush1.bf16.msra.mxu0 %v3542
  %4115 = vmatprep.subr.bf16.mxu0 0
  %4116 = vmatpush1.bf16.msra.mxu0 %v3541
  %4117 = vmatprep.subr.bf16.mxu0 0
  %4118 = vmatpush2.bf16.msra.mxu0 %v3556
  %4119 = vmatprep.subr.bf16.mxu0 0
  %4120 = vmatpush2.bf16.msra.mxu0 %v3555
  %4121 = vmatprep.subr.bf16.mxu0 0
  %4122 = vmatpush2.bf16.msra.mxu0 %v3554
  %4123 = vmatprep.subr.bf16.mxu0 0
  %4124 = vmatpush2.bf16.msra.mxu0 %v3553
  %4125 = vmatprep.subr.bf16.mxu0 0
  %4126 = vmatpush2.bf16.msra.mxu0 %v3552
  %4127 = vmatprep.subr.bf16.mxu0 0
  %4128 = vmatpush2.bf16.msra.mxu0 %v3551
  %4129 = vmatprep.subr.bf16.mxu0 0
  %4130 = vmatpush2.bf16.msra.mxu0 %v3550
  %4131 = vmatprep.subr.bf16.mxu0 0
  %4132 = vmatpush2.bf16.msra.mxu0 %v3549
  %4133 = vmatprep.mubr.bf16.mxu0 %v512
  %4134 = vmatmul.mubr.bf16.gmra.mxu0 %v511
  %v4135 = vpop.f32.mrf.mxu0
  %v4136 = vadd.f32 %v4096, %v4135
  %v4137 = vpop.f32.mrf.mxu0
  %v4138 = vpop.f32.mrf.mxu0
  %v4139 = vpop.f32.mrf.mxu0
  %4140 = vdwg.mxu0
  %4141 = vmatprep.subr.bf16.mxu0 0
  %4142 = vmatpush1.bf16.msra.mxu0 %v3564
  %4143 = vmatprep.subr.bf16.mxu0 0
  %4144 = vmatpush1.bf16.msra.mxu0 %v3563
  %4145 = vmatprep.subr.bf16.mxu0 0
  %4146 = vmatpush1.bf16.msra.mxu0 %v3562
  %4147 = vmatprep.subr.bf16.mxu0 0
  %4148 = vmatpush1.bf16.msra.mxu0 %v3561
  %4149 = vmatprep.subr.bf16.mxu0 0
  %4150 = vmatpush1.bf16.msra.mxu0 %v3560
  %4151 = vmatprep.subr.bf16.mxu0 0
  %4152 = vmatpush1.bf16.msra.mxu0 %v3559
  %4153 = vmatprep.subr.bf16.mxu0 0
  %4154 = vmatpush1.bf16.msra.mxu0 %v3558
  %4155 = vmatprep.subr.bf16.mxu0 0
  %4156 = vmatpush1.bf16.msra.mxu0 %v3557
  %4157 = vmatprep.subr.bf16.mxu0 0
  %4158 = vmatpush2.bf16.msra.mxu0 %v3572
  %4159 = vmatprep.subr.bf16.mxu0 0
  %4160 = vmatpush2.bf16.msra.mxu0 %v3571
  %4161 = vmatprep.subr.bf16.mxu0 0
  %4162 = vmatpush2.bf16.msra.mxu0 %v3570
  %4163 = vmatprep.subr.bf16.mxu0 0
  %4164 = vmatpush2.bf16.msra.mxu0 %v3569
  %4165 = vmatprep.subr.bf16.mxu0 0
  %4166 = vmatpush2.bf16.msra.mxu0 %v3568
  %4167 = vmatprep.subr.bf16.mxu0 0
  %4168 = vmatpush2.bf16.msra.mxu0 %v3567
  %4169 = vmatprep.subr.bf16.mxu0 0
  %4170 = vmatpush2.bf16.msra.mxu0 %v3566
  %4171 = vmatprep.subr.bf16.mxu0 0
  %4172 = vmatpush2.bf16.msra.mxu0 %v3565
  %4173 = vmatprep.mubr.bf16.mxu0 %v514
  %4174 = vmatmul.mubr.bf16.gmra.mxu0 %v513
  %v4175 = vpop.f32.mrf.mxu0
  %v4176 = vadd.f32 %v4136, %v4175
  %v4177 = vpop.f32.mrf.mxu0
  %v4178 = vpop.f32.mrf.mxu0
  %v4179 = vpop.f32.mrf.mxu0
  %4180 = vdwg.mxu0
  %4181 = vmatprep.subr.bf16.mxu0 0
  %4182 = vmatpush1.bf16.msra.mxu0 %v3580
  %4183 = vmatprep.subr.bf16.mxu0 0
  %4184 = vmatpush1.bf16.msra.mxu0 %v3579
  %4185 = vmatprep.subr.bf16.mxu0 0
  %4186 = vmatpush1.bf16.msra.mxu0 %v3578
  %4187 = vmatprep.subr.bf16.mxu0 0
  %4188 = vmatpush1.bf16.msra.mxu0 %v3577
  %4189 = vmatprep.subr.bf16.mxu0 0
  %4190 = vmatpush1.bf16.msra.mxu0 %v3576
  %4191 = vmatprep.subr.bf16.mxu0 0
  %4192 = vmatpush1.bf16.msra.mxu0 %v3575
  %4193 = vmatprep.subr.bf16.mxu0 0
  %4194 = vmatpush1.bf16.msra.mxu0 %v3574
  %4195 = vmatprep.subr.bf16.mxu0 0
  %4196 = vmatpush1.bf16.msra.mxu0 %v3573
  %4197 = vmatprep.subr.bf16.mxu0 0
  %4198 = vmatpush2.bf16.msra.mxu0 %v3588
  %4199 = vmatprep.subr.bf16.mxu0 0
  %4200 = vmatpush2.bf16.msra.mxu0 %v3587
  %4201 = vmatprep.subr.bf16.mxu0 0
  %4202 = vmatpush2.bf16.msra.mxu0 %v3586
  %4203 = vmatprep.subr.bf16.mxu0 0
  %4204 = vmatpush2.bf16.msra.mxu0 %v3585
  %4205 = vmatprep.subr.bf16.mxu0 0
  %4206 = vmatpush2.bf16.msra.mxu0 %v3584
  %4207 = vmatprep.subr.bf16.mxu0 0
  %4208 = vmatpush2.bf16.msra.mxu0 %v3583
  %4209 = vmatprep.subr.bf16.mxu0 0
  %4210 = vmatpush2.bf16.msra.mxu0 %v3582
  %4211 = vmatprep.subr.bf16.mxu0 0
  %4212 = vmatpush2.bf16.msra.mxu0 %v3581
  %4213 = vmatprep.mubr.bf16.mxu0 %v516
  %4214 = vmatmul.mubr.bf16.gmra.mxu0 %v515
  %v4215 = vpop.f32.mrf.mxu0
  %v4216 = vadd.f32 %v4176, %v4215
  %v4217 = vpop.f32.mrf.mxu0
  %v4218 = vpop.f32.mrf.mxu0
  %v4219 = vpop.f32.mrf.mxu0
  %4220 = vdwg.mxu0
  %4221 = vmatprep.subr.bf16.mxu0 0
  %4222 = vmatpush1.bf16.msra.mxu0 %v3596
  %4223 = vmatprep.subr.bf16.mxu0 0
  %4224 = vmatpush1.bf16.msra.mxu0 %v3595
  %4225 = vmatprep.subr.bf16.mxu0 0
  %4226 = vmatpush1.bf16.msra.mxu0 %v3594
  %4227 = vmatprep.subr.bf16.mxu0 0
  %4228 = vmatpush1.bf16.msra.mxu0 %v3593
  %4229 = vmatprep.subr.bf16.mxu0 0
  %4230 = vmatpush1.bf16.msra.mxu0 %v3592
  %4231 = vmatprep.subr.bf16.mxu0 0
  %4232 = vmatpush1.bf16.msra.mxu0 %v3591
  %4233 = vmatprep.subr.bf16.mxu0 0
  %4234 = vmatpush1.bf16.msra.mxu0 %v3590
  %4235 = vmatprep.subr.bf16.mxu0 0
  %4236 = vmatpush1.bf16.msra.mxu0 %v3589
  %4237 = vmatprep.subr.bf16.mxu0 0
  %4238 = vmatpush2.bf16.msra.mxu0 %v3604
  %4239 = vmatprep.subr.bf16.mxu0 0
  %4240 = vmatpush2.bf16.msra.mxu0 %v3603
  %4241 = vmatprep.subr.bf16.mxu0 0
  %4242 = vmatpush2.bf16.msra.mxu0 %v3602
  %4243 = vmatprep.subr.bf16.mxu0 0
  %4244 = vmatpush2.bf16.msra.mxu0 %v3601
  %4245 = vmatprep.subr.bf16.mxu0 0
  %4246 = vmatpush2.bf16.msra.mxu0 %v3600
  %4247 = vmatprep.subr.bf16.mxu0 0
  %4248 = vmatpush2.bf16.msra.mxu0 %v3599
  %4249 = vmatprep.subr.bf16.mxu0 0
  %4250 = vmatpush2.bf16.msra.mxu0 %v3598
  %4251 = vmatprep.subr.bf16.mxu0 0
  %4252 = vmatpush2.bf16.msra.mxu0 %v3597
  %4253 = vmatprep.mubr.bf16.mxu0 %v518
  %4254 = vmatmul.mubr.bf16.gmra.mxu0 %v517
  %v4255 = vpop.f32.mrf.mxu0
  %v4256 = vadd.f32 %v4216, %v4255
  %v4257 = vpop.f32.mrf.mxu0
  %v4258 = vpop.f32.mrf.mxu0
  %v4259 = vpop.f32.mrf.mxu0
  %4260 = vdwg.mxu0
  %4261 = vmatprep.subr.bf16.mxu0 0
  %4262 = vmatpush1.bf16.msra.mxu0 %v3612
  %4263 = vmatprep.subr.bf16.mxu0 0
  %4264 = vmatpush1.bf16.msra.mxu0 %v3611
  %4265 = vmatprep.subr.bf16.mxu0 0
  %4266 = vmatpush1.bf16.msra.mxu0 %v3610
  %4267 = vmatprep.subr.bf16.mxu0 0
  %4268 = vmatpush1.bf16.msra.mxu0 %v3609
  %4269 = vmatprep.subr.bf16.mxu0 0
  %4270 = vmatpush1.bf16.msra.mxu0 %v3608
  %4271 = vmatprep.subr.bf16.mxu0 0
  %4272 = vmatpush1.bf16.msra.mxu0 %v3607
  %4273 = vmatprep.subr.bf16.mxu0 0
  %4274 = vmatpush1.bf16.msra.mxu0 %v3606
  %4275 = vmatprep.subr.bf16.mxu0 0
  %4276 = vmatpush1.bf16.msra.mxu0 %v3605
  %4277 = vmatprep.subr.bf16.mxu0 0
  %4278 = vmatpush2.bf16.msra.mxu0 %v3620
  %4279 = vmatprep.subr.bf16.mxu0 0
  %4280 = vmatpush2.bf16.msra.mxu0 %v3619
  %4281 = vmatprep.subr.bf16.mxu0 0
  %4282 = vmatpush2.bf16.msra.mxu0 %v3618
  %4283 = vmatprep.subr.bf16.mxu0 0
  %4284 = vmatpush2.bf16.msra.mxu0 %v3617
  %4285 = vmatprep.subr.bf16.mxu0 0
  %4286 = vmatpush2.bf16.msra.mxu0 %v3616
  %4287 = vmatprep.subr.bf16.mxu0 0
  %4288 = vmatpush2.bf16.msra.mxu0 %v3615
  %4289 = vmatprep.subr.bf16.mxu0 0
  %4290 = vmatpush2.bf16.msra.mxu0 %v3614
  %4291 = vmatprep.subr.bf16.mxu0 0
  %4292 = vmatpush2.bf16.msra.mxu0 %v3613
  %4293 = vmatprep.mubr.bf16.mxu0 %v520
  %4294 = vmatmul.mubr.bf16.gmra.mxu0 %v519
  %v4295 = vpop.f32.mrf.mxu0
  %v4296 = vadd.f32 %v4256, %v4295
  %v4297 = vpop.f32.mrf.mxu0
  %v4298 = vpop.f32.mrf.mxu0
  %v4299 = vpop.f32.mrf.mxu0
  %4300 = vdwg.mxu0
  %4301 = vmatprep.subr.bf16.mxu0 0
  %4302 = vmatpush1.bf16.msra.mxu0 0
  %4303 = vmatprep.subr.bf16.mxu0 0
  %4304 = vmatpush1.bf16.msra.mxu0 0
  %4305 = vmatprep.subr.bf16.mxu0 0
  %4306 = vmatpush1.bf16.msra.mxu0 0
  %4307 = vmatprep.subr.bf16.mxu0 0
  %4308 = vmatpush1.bf16.msra.mxu0 0
  %4309 = vmatprep.subr.bf16.mxu0 0
  %4310 = vmatpush1.bf16.msra.mxu0 %v3624
  %4311 = vmatprep.subr.bf16.mxu0 0
  %4312 = vmatpush1.bf16.msra.mxu0 %v3623
  %4313 = vmatprep.subr.bf16.mxu0 0
  %4314 = vmatpush1.bf16.msra.mxu0 %v3622
  %4315 = vmatprep.subr.bf16.mxu0 0
  %4316 = vmatpush1.bf16.msra.mxu0 %v3621
  %4317 = vmatprep.subr.bf16.mxu0 0
  %4318 = vmatpush2.bf16.msra.mxu0 0
  %4319 = vmatprep.subr.bf16.mxu0 0
  %4320 = vmatpush2.bf16.msra.mxu0 0
  %4321 = vmatprep.subr.bf16.mxu0 0
  %4322 = vmatpush2.bf16.msra.mxu0 0
  %4323 = vmatprep.subr.bf16.mxu0 0
  %4324 = vmatpush2.bf16.msra.mxu0 0
  %4325 = vmatprep.subr.bf16.mxu0 0
  %4326 = vmatpush2.bf16.msra.mxu0 0
  %4327 = vmatprep.subr.bf16.mxu0 0
  %4328 = vmatpush2.bf16.msra.mxu0 0
  %4329 = vmatprep.subr.bf16.mxu0 0
  %4330 = vmatpush2.bf16.msra.mxu0 0
  %4331 = vmatprep.subr.bf16.mxu0 0
  %4332 = vmatpush2.bf16.msra.mxu0 0
  %4333 = vmatprep.mubr.bf16.mxu0 0
  %4334 = vmatmul.mubr.bf16.gmra.mxu0 %v1724
  %v4335 = vpop.f32.mrf.mxu0
  %v4336 = vadd.f32 %v4296, %v4335
  %v4337 = vpop.f32.mrf.mxu0
  %v4338 = vpop.f32.mrf.mxu0
  %v4339 = vpop.f32.mrf.mxu0
  %4340 = vdwg.mxu0
  %v4341 = vld [vmem:[%s5] sm:$0xff]
  %v4342 = vmul.f32 %v4336, 0.5
  %v4343 = vmul.f32 %v4342, 1.442695
  %v4344 = vpow.pop %v4343
  %v4345 = vmul.f32 %v4341, %v4344
  %v4346 = vadd.f32 %v2241, %v4345
  %vm4347 = vcmask 162816
  %4348 = vst.msk [vmem:[%s12] sm:$0xff] %vm4347, %v2241
  %4349 = vst.msk [vmem:[%s13] sm:$0xff] %vm4347, %v4336
  %4350 = vst.msk [vmem:[%s14] sm:$0xff] %vm4347, %v4346
  %v4351 = vpack.c.bf16 %v4346, %v4346
  %v4352 = vld [vmem:[%s6] sm:$0xff]
  %v4353 = vld [vmem:[%s6 + $0x8] sm:$0xff]
  %v4354 = vld [vmem:[%s6 + $0x10] sm:$0xff]
  %v4355 = vld [vmem:[%s6 + $0x18] sm:$0xff]
  %v4356 = vld [vmem:[%s6 + $0x20] sm:$0xff]
  %v4357 = vld [vmem:[%s6 + $0x28] sm:$0xff]
  %v4358 = vld [vmem:[%s6 + $0x30] sm:$0xff]
  %v4359 = vld [vmem:[%s6 + $0x38] sm:$0xff]
  %v4360 = vld [vmem:[%s6 + $0x40] sm:$0xff]
  %v4361 = vld [vmem:[%s6 + $0x48] sm:$0xff]
  %v4362 = vld [vmem:[%s6 + $0x50] sm:$0xff]
  %v4363 = vld [vmem:[%s6 + $0x58] sm:$0xff]
  %v4364 = vld [vmem:[%s6 + $0x60] sm:$0xf]
  %v4365 = vld [vmem:[%s6 + $0x64] sm:$0xff]
  %v4366 = vld [vmem:[%s6 + $0x6c] sm:$0xff]
  %v4367 = vld [vmem:[%s6 + $0x74] sm:$0xff]
  %v4368 = vld [vmem:[%s6 + $0x7c] sm:$0xff]
  %v4369 = vld [vmem:[%s6 + $0x84] sm:$0xff]
  %v4370 = vld [vmem:[%s6 + $0x8c] sm:$0xff]
  %v4371 = vld [vmem:[%s6 + $0x94] sm:$0xff]
  %v4372 = vld [vmem:[%s6 + $0x9c] sm:$0xff]
  %v4373 = vld [vmem:[%s6 + $0xa4] sm:$0xff]
  %v4374 = vld [vmem:[%s6 + $0xac] sm:$0xff]
  %v4375 = vld [vmem:[%s6 + $0xb4] sm:$0xff]
  %v4376 = vld [vmem:[%s6 + $0xbc] sm:$0xff]
  %v4377 = vld [vmem:[%s6 + $0xc4] sm:$0xf]
  %v4378 = vld [vmem:[%s6 + $0xc8] sm:$0x33]
  %v4379 = vld [vmem:[%s6 + $0xd0] sm:$0x33]
  %v4380 = vld [vmem:[%s6 + $0xd8] sm:$0x33]
  %v4381 = vld [vmem:[%s6 + $0xe0] sm:$0x33]
  %v4382 = vld [vmem:[%s6 + $0xe8] sm:$0x33]
  %v4383 = vld [vmem:[%s6 + $0xf0] sm:$0x33]
  %v4384 = vld [vmem:[%s6 + $0xf8] sm:$0x33]
  %v4385 = vld [vmem:[%s6 + $0x100] sm:$0x33]
  %v4386 = vld [vmem:[%s6 + $0x108] sm:$0x33]
  %v4387 = vld [vmem:[%s6 + $0x110] sm:$0x33]
  %v4388 = vld [vmem:[%s6 + $0x118] sm:$0x33]
  %v4389 = vld [vmem:[%s6 + $0x120] sm:$0x33]
  %v4390 = vld [vmem:[%s6 + $0x128] sm:$0x3]
  %v4391 = vld [vmem:[%s7] sm:$0xff]
  %v4392 = vld [vmem:[%s7 + $0x8] sm:$0xff]
  %v4393 = vld [vmem:[%s7 + $0x10] sm:$0xff]
  %v4394 = vld [vmem:[%s7 + $0x18] sm:$0x1]
  %v4399 = vlaneseq
  %v4400 = vshrl.u32 %v4399, 7
  %v4401 = vsub.s32 0, %v4400
  %v4402 = vrot.slane %v4391, %v4401
  %v4403 = vlaneseq
  %v4404 = vshrl.u32 %v4403, 7
  %v4405 = vsub.s32 1, %v4404
  %v4406 = vrot.slane %v4391, %v4405
  %v4407 = vlaneseq
  %v4408 = vshrl.u32 %v4407, 7
  %v4409 = vsub.s32 2, %v4408
  %v4410 = vrot.slane %v4391, %v4409
  %v4411 = vlaneseq
  %v4412 = vshrl.u32 %v4411, 7
  %v4413 = vsub.s32 3, %v4412
  %v4414 = vrot.slane %v4391, %v4413
  %v4415 = vlaneseq
  %v4416 = vshrl.u32 %v4415, 7
  %v4417 = vsub.s32 4, %v4416
  %v4418 = vrot.slane %v4391, %v4417
  %v4419 = vlaneseq
  %v4420 = vshrl.u32 %v4419, 7
  %v4421 = vsub.s32 5, %v4420
  %v4422 = vrot.slane %v4391, %v4421
  %v4423 = vlaneseq
  %v4424 = vshrl.u32 %v4423, 7
  %v4425 = vsub.s32 6, %v4424
  %v4426 = vrot.slane %v4391, %v4425
  %v4427 = vlaneseq
  %v4428 = vshrl.u32 %v4427, 7
  %v4429 = vsub.s32 7, %v4428
  %v4430 = vrot.slane %v4391, %v4429
  %v4431 = vlaneseq
  %v4432 = vshrl.u32 %v4431, 7
  %v4433 = vsub.s32 0, %v4432
  %v4434 = vrot.slane %v4392, %v4433
  %v4435 = vlaneseq
  %v4436 = vshrl.u32 %v4435, 7
  %v4437 = vsub.s32 1, %v4436
  %v4438 = vrot.slane %v4392, %v4437
  %v4439 = vlaneseq
  %v4440 = vshrl.u32 %v4439, 7
  %v4441 = vsub.s32 2, %v4440
  %v4442 = vrot.slane %v4392, %v4441
  %v4443 = vlaneseq
  %v4444 = vshrl.u32 %v4443, 7
  %v4445 = vsub.s32 3, %v4444
  %v4446 = vrot.slane %v4392, %v4445
  %v4447 = vlaneseq
  %v4448 = vshrl.u32 %v4447, 7
  %v4449 = vsub.s32 4, %v4448
  %v4450 = vrot.slane %v4392, %v4449
  %v4451 = vlaneseq
  %v4452 = vshrl.u32 %v4451, 7
  %v4453 = vsub.s32 5, %v4452
  %v4454 = vrot.slane %v4392, %v4453
  %v4455 = vlaneseq
  %v4456 = vshrl.u32 %v4455, 7
  %v4457 = vsub.s32 6, %v4456
  %v4458 = vrot.slane %v4392, %v4457
  %v4459 = vlaneseq
  %v4460 = vshrl.u32 %v4459, 7
  %v4461 = vsub.s32 7, %v4460
  %v4462 = vrot.slane %v4392, %v4461
  %v4463 = vlaneseq
  %v4464 = vshrl.u32 %v4463, 7
  %v4465 = vsub.s32 0, %v4464
  %v4466 = vrot.slane %v4393, %v4465
  %v4467 = vlaneseq
  %v4468 = vshrl.u32 %v4467, 7
  %v4469 = vsub.s32 1, %v4468
  %v4470 = vrot.slane %v4393, %v4469
  %v4471 = vlaneseq
  %v4472 = vshrl.u32 %v4471, 7
  %v4473 = vsub.s32 2, %v4472
  %v4474 = vrot.slane %v4393, %v4473
  %v4475 = vlaneseq
  %v4476 = vshrl.u32 %v4475, 7
  %v4477 = vsub.s32 3, %v4476
  %v4478 = vrot.slane %v4393, %v4477
  %v4479 = vlaneseq
  %v4480 = vshrl.u32 %v4479, 7
  %v4481 = vsub.s32 4, %v4480
  %v4482 = vrot.slane %v4393, %v4481
  %v4483 = vlaneseq
  %v4484 = vshrl.u32 %v4483, 7
  %v4485 = vsub.s32 5, %v4484
  %v4486 = vrot.slane %v4393, %v4485
  %v4487 = vlaneseq
  %v4488 = vshrl.u32 %v4487, 7
  %v4489 = vsub.s32 6, %v4488
  %v4490 = vrot.slane %v4393, %v4489
  %v4491 = vlaneseq
  %v4492 = vshrl.u32 %v4491, 7
  %v4493 = vsub.s32 7, %v4492
  %v4494 = vrot.slane %v4393, %v4493
  %v4495 = vlaneseq
  %v4496 = vshrl.u32 %v4495, 7
  %v4497 = vsub.s32 0, %v4496
  %v4498 = vrot.slane %v4394, %v4497
  %v4563 = vunpack.c.l.b16 %v4352
  %v4564 = vunpack.c.h.b16 %v4352
  %v4565 = vunpack.c.l.b16 %v4353
  %v4566 = vunpack.c.h.b16 %v4353
  %v4567 = vunpack.c.l.b16 %v4354
  %v4568 = vunpack.c.h.b16 %v4354
  %v4569 = vunpack.c.l.b16 %v4355
  %v4570 = vunpack.c.h.b16 %v4355
  %v4571 = vunpack.c.l.b16 %v4356
  %v4572 = vunpack.c.h.b16 %v4356
  %v4573 = vunpack.c.l.b16 %v4357
  %v4574 = vunpack.c.h.b16 %v4357
  %v4575 = vunpack.c.l.b16 %v4358
  %v4576 = vunpack.c.h.b16 %v4358
  %v4577 = vunpack.c.l.b16 %v4359
  %v4578 = vunpack.c.h.b16 %v4359
  %v4579 = vunpack.c.l.b16 %v4360
  %v4580 = vunpack.c.h.b16 %v4360
  %v4581 = vunpack.c.l.b16 %v4361
  %v4582 = vunpack.c.h.b16 %v4361
  %v4583 = vunpack.c.l.b16 %v4362
  %v4584 = vunpack.c.h.b16 %v4362
  %v4585 = vunpack.c.l.b16 %v4363
  %v4586 = vunpack.c.h.b16 %v4363
  %v4587 = vunpack.c.l.b16 %v4364
  %v4588 = vunpack.c.l.b16 %v4365
  %v4589 = vunpack.c.h.b16 %v4365
  %v4590 = vunpack.c.l.b16 %v4366
  %v4591 = vunpack.c.h.b16 %v4366
  %v4592 = vunpack.c.l.b16 %v4367
  %v4593 = vunpack.c.h.b16 %v4367
  %v4594 = vunpack.c.l.b16 %v4368
  %v4595 = vunpack.c.h.b16 %v4368
  %v4596 = vunpack.c.l.b16 %v4369
  %v4597 = vunpack.c.h.b16 %v4369
  %v4598 = vunpack.c.l.b16 %v4370
  %v4599 = vunpack.c.h.b16 %v4370
  %v4600 = vunpack.c.l.b16 %v4371
  %v4601 = vunpack.c.h.b16 %v4371
  %v4602 = vunpack.c.l.b16 %v4372
  %v4603 = vunpack.c.h.b16 %v4372
  %v4604 = vunpack.c.l.b16 %v4373
  %v4605 = vunpack.c.h.b16 %v4373
  %v4606 = vunpack.c.l.b16 %v4374
  %v4607 = vunpack.c.h.b16 %v4374
  %v4608 = vunpack.c.l.b16 %v4375
  %v4609 = vunpack.c.h.b16 %v4375
  %v4610 = vunpack.c.l.b16 %v4376
  %v4611 = vunpack.c.h.b16 %v4376
  %v4612 = vunpack.c.l.b16 %v4377
  %v4613 = vunpack.c.l.b16 %v4378
  %v4614 = vunpack.c.h.b16 %v4378
  %v4615 = vunpack.c.l.b16 %v4379
  %v4616 = vunpack.c.h.b16 %v4379
  %v4617 = vunpack.c.l.b16 %v4380
  %v4618 = vunpack.c.h.b16 %v4380
  %v4619 = vunpack.c.l.b16 %v4381
  %v4620 = vunpack.c.h.b16 %v4381
  %v4621 = vunpack.c.l.b16 %v4382
  %v4622 = vunpack.c.h.b16 %v4382
  %v4623 = vunpack.c.l.b16 %v4383
  %v4624 = vunpack.c.h.b16 %v4383
  %v4625 = vunpack.c.l.b16 %v4384
  %v4626 = vunpack.c.h.b16 %v4384
  %v4627 = vunpack.c.l.b16 %v4385
  %v4628 = vunpack.c.h.b16 %v4385
  %v4629 = vunpack.c.l.b16 %v4386
  %v4630 = vunpack.c.h.b16 %v4386
  %v4631 = vunpack.c.l.b16 %v4387
  %v4632 = vunpack.c.h.b16 %v4387
  %v4633 = vunpack.c.l.b16 %v4388
  %v4634 = vunpack.c.h.b16 %v4388
  %v4635 = vunpack.c.l.b16 %v4389
  %v4636 = vunpack.c.h.b16 %v4389
  %v4637 = vunpack.c.l.b16 %v4390
  %v4638 = vpack.c.b16 %v4588, %v4563
  %v4639 = vpack.c.b16 %v4589, %v4564
  %v4640 = vpack.c.b16 %v4590, %v4565
  %v4641 = vpack.c.b16 %v4591, %v4566
  %v4642 = vpack.c.b16 %v4592, %v4567
  %v4643 = vpack.c.b16 %v4593, %v4568
  %v4644 = vpack.c.b16 %v4594, %v4569
  %v4645 = vpack.c.b16 %v4595, %v4570
  %v4646 = vpack.c.b16 %v4596, %v4571
  %v4647 = vpack.c.b16 %v4597, %v4572
  %v4648 = vpack.c.b16 %v4598, %v4573
  %v4649 = vpack.c.b16 %v4599, %v4574
  %v4650 = vpack.c.b16 %v4600, %v4575
  %v4651 = vpack.c.b16 %v4601, %v4576
  %v4652 = vpack.c.b16 %v4602, %v4577
  %v4653 = vpack.c.b16 %v4603, %v4578
  %v4654 = vpack.c.b16 %v4604, %v4579
  %v4655 = vpack.c.b16 %v4605, %v4580
  %v4656 = vpack.c.b16 %v4606, %v4581
  %v4657 = vpack.c.b16 %v4607, %v4582
  %v4658 = vpack.c.b16 %v4608, %v4583
  %v4659 = vpack.c.b16 %v4609, %v4584
  %v4660 = vpack.c.b16 %v4610, %v4585
  %v4661 = vpack.c.b16 %v4611, %v4586
  %v4662 = vpack.c.b16 %v4612, %v4587
  %v4663 = vpack.c.b16 %v4613, %v4613
  %v4664 = vpack.c.b16 %v4614, %v4614
  %v4665 = vpack.c.b16 %v4615, %v4615
  %v4666 = vpack.c.b16 %v4616, %v4616
  %v4667 = vpack.c.b16 %v4617, %v4617
  %v4668 = vpack.c.b16 %v4618, %v4618
  %v4669 = vpack.c.b16 %v4619, %v4619
  %v4670 = vpack.c.b16 %v4620, %v4620
  %v4671 = vpack.c.b16 %v4621, %v4621
  %v4672 = vpack.c.b16 %v4622, %v4622
  %v4673 = vpack.c.b16 %v4623, %v4623
  %v4674 = vpack.c.b16 %v4624, %v4624
  %v4675 = vpack.c.b16 %v4625, %v4625
  %v4676 = vpack.c.b16 %v4626, %v4626
  %v4677 = vpack.c.b16 %v4627, %v4627
  %v4678 = vpack.c.b16 %v4628, %v4628
  %v4679 = vpack.c.b16 %v4629, %v4629
  %v4680 = vpack.c.b16 %v4630, %v4630
  %v4681 = vpack.c.b16 %v4631, %v4631
  %v4682 = vpack.c.b16 %v4632, %v4632
  %v4683 = vpack.c.b16 %v4633, %v4633
  %v4684 = vpack.c.b16 %v4634, %v4634
  %v4685 = vpack.c.b16 %v4635, %v4635
  %v4686 = vpack.c.b16 %v4636, %v4636
  %v4687 = vpack.c.b16 %v4637, %v4637
  %v4714 = vsel %vm4347, %v4351, 0
  %vm4716 = vcmask 1041408
  %v4718 = vsel %vm4716, %v4663, 0
  %v4721 = vsel %vm4716, %v4664, 0
  %v4724 = vsel %vm4716, %v4665, 0
  %v4727 = vsel %vm4716, %v4666, 0
  %v4730 = vsel %vm4716, %v4667, 0
  %v4733 = vsel %vm4716, %v4668, 0
  %v4736 = vsel %vm4716, %v4669, 0
  %v4739 = vsel %vm4716, %v4670, 0
  %v4742 = vsel %vm4716, %v4671, 0
  %v4745 = vsel %vm4716, %v4672, 0
  %v4748 = vsel %vm4716, %v4673, 0
  %v4751 = vsel %vm4716, %v4674, 0
  %v4754 = vsel %vm4716, %v4675, 0
  %v4757 = vsel %vm4716, %v4676, 0
  %v4760 = vsel %vm4716, %v4677, 0
  %v4763 = vsel %vm4716, %v4678, 0
  %v4766 = vsel %vm4716, %v4679, 0
  %v4769 = vsel %vm4716, %v4680, 0
  %v4772 = vsel %vm4716, %v4681, 0
  %v4775 = vsel %vm4716, %v4682, 0
  %v4778 = vsel %vm4716, %v4683, 0
  %v4781 = vsel %vm4716, %v4684, 0
  %v4784 = vsel %vm4716, %v4685, 0
  %v4787 = vsel %vm4716, %v4686, 0
  %v4790 = vsel %vm4716, %v4687, 0
  %4792 = vmatprep.subr.bf16.mxu0 0
  %4793 = vmatpush1.bf16.msra.mxu0 0
  %4794 = vmatprep.subr.bf16.mxu0 0
  %4795 = vmatpush1.bf16.msra.mxu0 0
  %4796 = vmatprep.subr.bf16.mxu0 0
  %4797 = vmatpush1.bf16.msra.mxu0 0
  %4798 = vmatprep.subr.bf16.mxu0 0
  %4799 = vmatpush1.bf16.msra.mxu0 0
  %4800 = vmatprep.subr.bf16.mxu0 0
  %4801 = vmatpush1.bf16.msra.mxu0 0
  %4802 = vmatprep.subr.bf16.mxu0 0
  %4803 = vmatpush1.bf16.msra.mxu0 0
  %4804 = vmatprep.subr.bf16.mxu0 %v4721
  %4805 = vmatpush1.bf16.msra.mxu0 %v4718
  %4806 = vmatprep.subr.bf16.mxu0 %v4639
  %4807 = vmatpush1.bf16.msra.mxu0 %v4638
  %4808 = vmatprep.subr.bf16.mxu0 0
  %4809 = vmatpush2.bf16.msra.mxu0 0
  %4810 = vmatprep.subr.bf16.mxu0 0
  %4811 = vmatpush2.bf16.msra.mxu0 0
  %4812 = vmatprep.subr.bf16.mxu0 0
  %4813 = vmatpush2.bf16.msra.mxu0 0
  %4814 = vmatprep.subr.bf16.mxu0 0
  %4815 = vmatpush2.bf16.msra.mxu0 0
  %4816 = vmatprep.subr.bf16.mxu0 0
  %4817 = vmatpush2.bf16.msra.mxu0 0
  %4818 = vmatprep.subr.bf16.mxu0 0
  %4819 = vmatpush2.bf16.msra.mxu0 0
  %4820 = vmatprep.subr.bf16.mxu0 0
  %4821 = vmatpush2.bf16.msra.mxu0 0
  %4822 = vmatprep.subr.bf16.mxu0 0
  %4823 = vmatpush2.bf16.msra.mxu0 0
  %4824 = vmatprep.mubr.bf16.mxu0 0
  %4825 = vmatmul.mubr.bf16.gmra.mxu0 %v4714
  %v4826 = vpop.f32.mrf.mxu0
  %v4827 = vadd.f32 %v4402, %v4826
  %v4828 = vpop.f32.mrf.mxu0
  %v4829 = vadd.f32 %v4406, %v4828
  %v4830 = vpop.f32.mrf.mxu0
  %v4831 = vpop.f32.mrf.mxu0
  %4832 = vdwg.mxu0
  %4833 = vmatprep.subr.bf16.mxu0 0
  %4834 = vmatpush1.bf16.msra.mxu0 0
  %4835 = vmatprep.subr.bf16.mxu0 0
  %4836 = vmatpush1.bf16.msra.mxu0 0
  %4837 = vmatprep.subr.bf16.mxu0 0
  %4838 = vmatpush1.bf16.msra.mxu0 0
  %4839 = vmatprep.subr.bf16.mxu0 0
  %4840 = vmatpush1.bf16.msra.mxu0 0
  %4841 = vmatprep.subr.bf16.mxu0 0
  %4842 = vmatpush1.bf16.msra.mxu0 0
  %4843 = vmatprep.subr.bf16.mxu0 0
  %4844 = vmatpush1.bf16.msra.mxu0 0
  %4845 = vmatprep.subr.bf16.mxu0 %v4727
  %4846 = vmatpush1.bf16.msra.mxu0 %v4724
  %4847 = vmatprep.subr.bf16.mxu0 %v4641
  %4848 = vmatpush1.bf16.msra.mxu0 %v4640
  %4849 = vmatprep.subr.bf16.mxu0 0
  %4850 = vmatpush2.bf16.msra.mxu0 0
  %4851 = vmatprep.subr.bf16.mxu0 0
  %4852 = vmatpush2.bf16.msra.mxu0 0
  %4853 = vmatprep.subr.bf16.mxu0 0
  %4854 = vmatpush2.bf16.msra.mxu0 0
  %4855 = vmatprep.subr.bf16.mxu0 0
  %4856 = vmatpush2.bf16.msra.mxu0 0
  %4857 = vmatprep.subr.bf16.mxu0 0
  %4858 = vmatpush2.bf16.msra.mxu0 0
  %4859 = vmatprep.subr.bf16.mxu0 0
  %4860 = vmatpush2.bf16.msra.mxu0 0
  %4861 = vmatprep.subr.bf16.mxu0 0
  %4862 = vmatpush2.bf16.msra.mxu0 0
  %4863 = vmatprep.subr.bf16.mxu0 0
  %4864 = vmatpush2.bf16.msra.mxu0 0
  %4865 = vmatprep.mubr.bf16.mxu0 0
  %4866 = vmatmul.mubr.bf16.gmra.mxu0 %v4714
  %v4867 = vpop.f32.mrf.mxu0
  %v4868 = vadd.f32 %v4410, %v4867
  %v4869 = vpop.f32.mrf.mxu0
  %v4870 = vadd.f32 %v4414, %v4869
  %v4871 = vpop.f32.mrf.mxu0
  %v4872 = vpop.f32.mrf.mxu0
  %4873 = vdwg.mxu0
  %4874 = vmatprep.subr.bf16.mxu0 0
  %4875 = vmatpush1.bf16.msra.mxu0 0
  %4876 = vmatprep.subr.bf16.mxu0 0
  %4877 = vmatpush1.bf16.msra.mxu0 0
  %4878 = vmatprep.subr.bf16.mxu0 0
  %4879 = vmatpush1.bf16.msra.mxu0 0
  %4880 = vmatprep.subr.bf16.mxu0 0
  %4881 = vmatpush1.bf16.msra.mxu0 0
  %4882 = vmatprep.subr.bf16.mxu0 0
  %4883 = vmatpush1.bf16.msra.mxu0 0
  %4884 = vmatprep.subr.bf16.mxu0 0
  %4885 = vmatpush1.bf16.msra.mxu0 0
  %4886 = vmatprep.subr.bf16.mxu0 %v4733
  %4887 = vmatpush1.bf16.msra.mxu0 %v4730
  %4888 = vmatprep.subr.bf16.mxu0 %v4643
  %4889 = vmatpush1.bf16.msra.mxu0 %v4642
  %4890 = vmatprep.subr.bf16.mxu0 0
  %4891 = vmatpush2.bf16.msra.mxu0 0
  %4892 = vmatprep.subr.bf16.mxu0 0
  %4893 = vmatpush2.bf16.msra.mxu0 0
  %4894 = vmatprep.subr.bf16.mxu0 0
  %4895 = vmatpush2.bf16.msra.mxu0 0
  %4896 = vmatprep.subr.bf16.mxu0 0
  %4897 = vmatpush2.bf16.msra.mxu0 0
  %4898 = vmatprep.subr.bf16.mxu0 0
  %4899 = vmatpush2.bf16.msra.mxu0 0
  %4900 = vmatprep.subr.bf16.mxu0 0
  %4901 = vmatpush2.bf16.msra.mxu0 0
  %4902 = vmatprep.subr.bf16.mxu0 0
  %4903 = vmatpush2.bf16.msra.mxu0 0
  %4904 = vmatprep.subr.bf16.mxu0 0
  %4905 = vmatpush2.bf16.msra.mxu0 0
  %4906 = vmatprep.mubr.bf16.mxu0 0
  %4907 = vmatmul.mubr.bf16.gmra.mxu0 %v4714
  %v4908 = vpop.f32.mrf.mxu0
  %v4909 = vadd.f32 %v4418, %v4908
  %v4910 = vpop.f32.mrf.mxu0
  %v4911 = vadd.f32 %v4422, %v4910
  %v4912 = vpop.f32.mrf.mxu0
  %v4913 = vpop.f32.mrf.mxu0
  %4914 = vdwg.mxu0
  %4915 = vmatprep.subr.bf16.mxu0 0
  %4916 = vmatpush1.bf16.msra.mxu0 0
  %4917 = vmatprep.subr.bf16.mxu0 0
  %4918 = vmatpush1.bf16.msra.mxu0 0
  %4919 = vmatprep.subr.bf16.mxu0 0
  %4920 = vmatpush1.bf16.msra.mxu0 0
  %4921 = vmatprep.subr.bf16.mxu0 0
  %4922 = vmatpush1.bf16.msra.mxu0 0
  %4923 = vmatprep.subr.bf16.mxu0 0
  %4924 = vmatpush1.bf16.msra.mxu0 0
  %4925 = vmatprep.subr.bf16.mxu0 0
  %4926 = vmatpush1.bf16.msra.mxu0 0
  %4927 = vmatprep.subr.bf16.mxu0 %v4739
  %4928 = vmatpush1.bf16.msra.mxu0 %v4736
  %4929 = vmatprep.subr.bf16.mxu0 %v4645
  %4930 = vmatpush1.bf16.msra.mxu0 %v4644
  %4931 = vmatprep.subr.bf16.mxu0 0
  %4932 = vmatpush2.bf16.msra.mxu0 0
  %4933 = vmatprep.subr.bf16.mxu0 0
  %4934 = vmatpush2.bf16.msra.mxu0 0
  %4935 = vmatprep.subr.bf16.mxu0 0
  %4936 = vmatpush2.bf16.msra.mxu0 0
  %4937 = vmatprep.subr.bf16.mxu0 0
  %4938 = vmatpush2.bf16.msra.mxu0 0
  %4939 = vmatprep.subr.bf16.mxu0 0
  %4940 = vmatpush2.bf16.msra.mxu0 0
  %4941 = vmatprep.subr.bf16.mxu0 0
  %4942 = vmatpush2.bf16.msra.mxu0 0
  %4943 = vmatprep.subr.bf16.mxu0 0
  %4944 = vmatpush2.bf16.msra.mxu0 0
  %4945 = vmatprep.subr.bf16.mxu0 0
  %4946 = vmatpush2.bf16.msra.mxu0 0
  %4947 = vmatprep.mubr.bf16.mxu0 0
  %4948 = vmatmul.mubr.bf16.gmra.mxu0 %v4714
  %v4949 = vpop.f32.mrf.mxu0
  %v4950 = vadd.f32 %v4426, %v4949
  %v4951 = vpop.f32.mrf.mxu0
  %v4952 = vadd.f32 %v4430, %v4951
  %v4953 = vpop.f32.mrf.mxu0
  %v4954 = vpop.f32.mrf.mxu0
  %4955 = vdwg.mxu0
  %4956 = vmatprep.subr.bf16.mxu0 0
  %4957 = vmatpush1.bf16.msra.mxu0 0
  %4958 = vmatprep.subr.bf16.mxu0 0
  %4959 = vmatpush1.bf16.msra.mxu0 0
  %4960 = vmatprep.subr.bf16.mxu0 0
  %4961 = vmatpush1.bf16.msra.mxu0 0
  %4962 = vmatprep.subr.bf16.mxu0 0
  %4963 = vmatpush1.bf16.msra.mxu0 0
  %4964 = vmatprep.subr.bf16.mxu0 0
  %4965 = vmatpush1.bf16.msra.mxu0 0
  %4966 = vmatprep.subr.bf16.mxu0 0
  %4967 = vmatpush1.bf16.msra.mxu0 0
  %4968 = vmatprep.subr.bf16.mxu0 %v4745
  %4969 = vmatpush1.bf16.msra.mxu0 %v4742
  %4970 = vmatprep.subr.bf16.mxu0 %v4647
  %4971 = vmatpush1.bf16.msra.mxu0 %v4646
  %4972 = vmatprep.subr.bf16.mxu0 0
  %4973 = vmatpush2.bf16.msra.mxu0 0
  %4974 = vmatprep.subr.bf16.mxu0 0
  %4975 = vmatpush2.bf16.msra.mxu0 0
  %4976 = vmatprep.subr.bf16.mxu0 0
  %4977 = vmatpush2.bf16.msra.mxu0 0
  %4978 = vmatprep.subr.bf16.mxu0 0
  %4979 = vmatpush2.bf16.msra.mxu0 0
  %4980 = vmatprep.subr.bf16.mxu0 0
  %4981 = vmatpush2.bf16.msra.mxu0 0
  %4982 = vmatprep.subr.bf16.mxu0 0
  %4983 = vmatpush2.bf16.msra.mxu0 0
  %4984 = vmatprep.subr.bf16.mxu0 0
  %4985 = vmatpush2.bf16.msra.mxu0 0
  %4986 = vmatprep.subr.bf16.mxu0 0
  %4987 = vmatpush2.bf16.msra.mxu0 0
  %4988 = vmatprep.mubr.bf16.mxu0 0
  %4989 = vmatmul.mubr.bf16.gmra.mxu0 %v4714
  %v4990 = vpop.f32.mrf.mxu0
  %v4991 = vadd.f32 %v4434, %v4990
  %v4992 = vpop.f32.mrf.mxu0
  %v4993 = vadd.f32 %v4438, %v4992
  %v4994 = vpop.f32.mrf.mxu0
  %v4995 = vpop.f32.mrf.mxu0
  %4996 = vdwg.mxu0
  %4997 = vmatprep.subr.bf16.mxu0 0
  %4998 = vmatpush1.bf16.msra.mxu0 0
  %4999 = vmatprep.subr.bf16.mxu0 0
  %5000 = vmatpush1.bf16.msra.mxu0 0
  %5001 = vmatprep.subr.bf16.mxu0 0
  %5002 = vmatpush1.bf16.msra.mxu0 0
  %5003 = vmatprep.subr.bf16.mxu0 0
  %5004 = vmatpush1.bf16.msra.mxu0 0
  %5005 = vmatprep.subr.bf16.mxu0 0
  %5006 = vmatpush1.bf16.msra.mxu0 0
  %5007 = vmatprep.subr.bf16.mxu0 0
  %5008 = vmatpush1.bf16.msra.mxu0 0
  %5009 = vmatprep.subr.bf16.mxu0 %v4751
  %5010 = vmatpush1.bf16.msra.mxu0 %v4748
  %5011 = vmatprep.subr.bf16.mxu0 %v4649
  %5012 = vmatpush1.bf16.msra.mxu0 %v4648
  %5013 = vmatprep.subr.bf16.mxu0 0
  %5014 = vmatpush2.bf16.msra.mxu0 0
  %5015 = vmatprep.subr.bf16.mxu0 0
  %5016 = vmatpush2.bf16.msra.mxu0 0
  %5017 = vmatprep.subr.bf16.mxu0 0
  %5018 = vmatpush2.bf16.msra.mxu0 0
  %5019 = vmatprep.subr.bf16.mxu0 0
  %5020 = vmatpush2.bf16.msra.mxu0 0
  %5021 = vmatprep.subr.bf16.mxu0 0
  %5022 = vmatpush2.bf16.msra.mxu0 0
  %5023 = vmatprep.subr.bf16.mxu0 0
  %5024 = vmatpush2.bf16.msra.mxu0 0
  %5025 = vmatprep.subr.bf16.mxu0 0
  %5026 = vmatpush2.bf16.msra.mxu0 0
  %5027 = vmatprep.subr.bf16.mxu0 0
  %5028 = vmatpush2.bf16.msra.mxu0 0
  %5029 = vmatprep.mubr.bf16.mxu0 0
  %5030 = vmatmul.mubr.bf16.gmra.mxu0 %v4714
  %v5031 = vpop.f32.mrf.mxu0
  %v5032 = vadd.f32 %v4442, %v5031
  %v5033 = vpop.f32.mrf.mxu0
  %v5034 = vadd.f32 %v4446, %v5033
  %v5035 = vpop.f32.mrf.mxu0
  %v5036 = vpop.f32.mrf.mxu0
  %5037 = vdwg.mxu0
  %5038 = vmatprep.subr.bf16.mxu0 0
  %5039 = vmatpush1.bf16.msra.mxu0 0
  %5040 = vmatprep.subr.bf16.mxu0 0
  %5041 = vmatpush1.bf16.msra.mxu0 0
  %5042 = vmatprep.subr.bf16.mxu0 0
  %5043 = vmatpush1.bf16.msra.mxu0 0
  %5044 = vmatprep.subr.bf16.mxu0 0
  %5045 = vmatpush1.bf16.msra.mxu0 0
  %5046 = vmatprep.subr.bf16.mxu0 0
  %5047 = vmatpush1.bf16.msra.mxu0 0
  %5048 = vmatprep.subr.bf16.mxu0 0
  %5049 = vmatpush1.bf16.msra.mxu0 0
  %5050 = vmatprep.subr.bf16.mxu0 %v4757
  %5051 = vmatpush1.bf16.msra.mxu0 %v4754
  %5052 = vmatprep.subr.bf16.mxu0 %v4651
  %5053 = vmatpush1.bf16.msra.mxu0 %v4650
  %5054 = vmatprep.subr.bf16.mxu0 0
  %5055 = vmatpush2.bf16.msra.mxu0 0
  %5056 = vmatprep.subr.bf16.mxu0 0
  %5057 = vmatpush2.bf16.msra.mxu0 0
  %5058 = vmatprep.subr.bf16.mxu0 0
  %5059 = vmatpush2.bf16.msra.mxu0 0
  %5060 = vmatprep.subr.bf16.mxu0 0
  %5061 = vmatpush2.bf16.msra.mxu0 0
  %5062 = vmatprep.subr.bf16.mxu0 0
  %5063 = vmatpush2.bf16.msra.mxu0 0
  %5064 = vmatprep.subr.bf16.mxu0 0
  %5065 = vmatpush2.bf16.msra.mxu0 0
  %5066 = vmatprep.subr.bf16.mxu0 0
  %5067 = vmatpush2.bf16.msra.mxu0 0
  %5068 = vmatprep.subr.bf16.mxu0 0
  %5069 = vmatpush2.bf16.msra.mxu0 0
  %5070 = vmatprep.mubr.bf16.mxu0 0
  %5071 = vmatmul.mubr.bf16.gmra.mxu0 %v4714
  %v5072 = vpop.f32.mrf.mxu0
  %v5073 = vadd.f32 %v4450, %v5072
  %v5074 = vpop.f32.mrf.mxu0
  %v5075 = vadd.f32 %v4454, %v5074
  %v5076 = vpop.f32.mrf.mxu0
  %v5077 = vpop.f32.mrf.mxu0
  %5078 = vdwg.mxu0
  %5079 = vmatprep.subr.bf16.mxu0 0
  %5080 = vmatpush1.bf16.msra.mxu0 0
  %5081 = vmatprep.subr.bf16.mxu0 0
  %5082 = vmatpush1.bf16.msra.mxu0 0
  %5083 = vmatprep.subr.bf16.mxu0 0
  %5084 = vmatpush1.bf16.msra.mxu0 0
  %5085 = vmatprep.subr.bf16.mxu0 0
  %5086 = vmatpush1.bf16.msra.mxu0 0
  %5087 = vmatprep.subr.bf16.mxu0 0
  %5088 = vmatpush1.bf16.msra.mxu0 0
  %5089 = vmatprep.subr.bf16.mxu0 0
  %5090 = vmatpush1.bf16.msra.mxu0 0
  %5091 = vmatprep.subr.bf16.mxu0 %v4763
  %5092 = vmatpush1.bf16.msra.mxu0 %v4760
  %5093 = vmatprep.subr.bf16.mxu0 %v4653
  %5094 = vmatpush1.bf16.msra.mxu0 %v4652
  %5095 = vmatprep.subr.bf16.mxu0 0
  %5096 = vmatpush2.bf16.msra.mxu0 0
  %5097 = vmatprep.subr.bf16.mxu0 0
  %5098 = vmatpush2.bf16.msra.mxu0 0
  %5099 = vmatprep.subr.bf16.mxu0 0
  %5100 = vmatpush2.bf16.msra.mxu0 0
  %5101 = vmatprep.subr.bf16.mxu0 0
  %5102 = vmatpush2.bf16.msra.mxu0 0
  %5103 = vmatprep.subr.bf16.mxu0 0
  %5104 = vmatpush2.bf16.msra.mxu0 0
  %5105 = vmatprep.subr.bf16.mxu0 0
  %5106 = vmatpush2.bf16.msra.mxu0 0
  %5107 = vmatprep.subr.bf16.mxu0 0
  %5108 = vmatpush2.bf16.msra.mxu0 0
  %5109 = vmatprep.subr.bf16.mxu0 0
  %5110 = vmatpush2.bf16.msra.mxu0 0
  %5111 = vmatprep.mubr.bf16.mxu0 0
  %5112 = vmatmul.mubr.bf16.gmra.mxu0 %v4714
  %v5113 = vpop.f32.mrf.mxu0
  %v5114 = vadd.f32 %v4458, %v5113
  %v5115 = vpop.f32.mrf.mxu0
  %v5116 = vadd.f32 %v4462, %v5115
  %v5117 = vpop.f32.mrf.mxu0
  %v5118 = vpop.f32.mrf.mxu0
  %5119 = vdwg.mxu0
  %5120 = vmatprep.subr.bf16.mxu0 0
  %5121 = vmatpush1.bf16.msra.mxu0 0
  %5122 = vmatprep.subr.bf16.mxu0 0
  %5123 = vmatpush1.bf16.msra.mxu0 0
  %5124 = vmatprep.subr.bf16.mxu0 0
  %5125 = vmatpush1.bf16.msra.mxu0 0
  %5126 = vmatprep.subr.bf16.mxu0 0
  %5127 = vmatpush1.bf16.msra.mxu0 0
  %5128 = vmatprep.subr.bf16.mxu0 0
  %5129 = vmatpush1.bf16.msra.mxu0 0
  %5130 = vmatprep.subr.bf16.mxu0 0
  %5131 = vmatpush1.bf16.msra.mxu0 0
  %5132 = vmatprep.subr.bf16.mxu0 %v4769
  %5133 = vmatpush1.bf16.msra.mxu0 %v4766
  %5134 = vmatprep.subr.bf16.mxu0 %v4655
  %5135 = vmatpush1.bf16.msra.mxu0 %v4654
  %5136 = vmatprep.subr.bf16.mxu0 0
  %5137 = vmatpush2.bf16.msra.mxu0 0
  %5138 = vmatprep.subr.bf16.mxu0 0
  %5139 = vmatpush2.bf16.msra.mxu0 0
  %5140 = vmatprep.subr.bf16.mxu0 0
  %5141 = vmatpush2.bf16.msra.mxu0 0
  %5142 = vmatprep.subr.bf16.mxu0 0
  %5143 = vmatpush2.bf16.msra.mxu0 0
  %5144 = vmatprep.subr.bf16.mxu0 0
  %5145 = vmatpush2.bf16.msra.mxu0 0
  %5146 = vmatprep.subr.bf16.mxu0 0
  %5147 = vmatpush2.bf16.msra.mxu0 0
  %5148 = vmatprep.subr.bf16.mxu0 0
  %5149 = vmatpush2.bf16.msra.mxu0 0
  %5150 = vmatprep.subr.bf16.mxu0 0
  %5151 = vmatpush2.bf16.msra.mxu0 0
  %5152 = vmatprep.mubr.bf16.mxu0 0
  %5153 = vmatmul.mubr.bf16.gmra.mxu0 %v4714
  %v5154 = vpop.f32.mrf.mxu0
  %v5155 = vadd.f32 %v4466, %v5154
  %v5156 = vpop.f32.mrf.mxu0
  %v5157 = vadd.f32 %v4470, %v5156
  %v5158 = vpop.f32.mrf.mxu0
  %v5159 = vpop.f32.mrf.mxu0
  %5160 = vdwg.mxu0
  %5161 = vmatprep.subr.bf16.mxu0 0
  %5162 = vmatpush1.bf16.msra.mxu0 0
  %5163 = vmatprep.subr.bf16.mxu0 0
  %5164 = vmatpush1.bf16.msra.mxu0 0
  %5165 = vmatprep.subr.bf16.mxu0 0
  %5166 = vmatpush1.bf16.msra.mxu0 0
  %5167 = vmatprep.subr.bf16.mxu0 0
  %5168 = vmatpush1.bf16.msra.mxu0 0
  %5169 = vmatprep.subr.bf16.mxu0 0
  %5170 = vmatpush1.bf16.msra.mxu0 0
  %5171 = vmatprep.subr.bf16.mxu0 0
  %5172 = vmatpush1.bf16.msra.mxu0 0
  %5173 = vmatprep.subr.bf16.mxu0 %v4775
  %5174 = vmatpush1.bf16.msra.mxu0 %v4772
  %5175 = vmatprep.subr.bf16.mxu0 %v4657
  %5176 = vmatpush1.bf16.msra.mxu0 %v4656
  %5177 = vmatprep.subr.bf16.mxu0 0
  %5178 = vmatpush2.bf16.msra.mxu0 0
  %5179 = vmatprep.subr.bf16.mxu0 0
  %5180 = vmatpush2.bf16.msra.mxu0 0
  %5181 = vmatprep.subr.bf16.mxu0 0
  %5182 = vmatpush2.bf16.msra.mxu0 0
  %5183 = vmatprep.subr.bf16.mxu0 0
  %5184 = vmatpush2.bf16.msra.mxu0 0
  %5185 = vmatprep.subr.bf16.mxu0 0
  %5186 = vmatpush2.bf16.msra.mxu0 0
  %5187 = vmatprep.subr.bf16.mxu0 0
  %5188 = vmatpush2.bf16.msra.mxu0 0
  %5189 = vmatprep.subr.bf16.mxu0 0
  %5190 = vmatpush2.bf16.msra.mxu0 0
  %5191 = vmatprep.subr.bf16.mxu0 0
  %5192 = vmatpush2.bf16.msra.mxu0 0
  %5193 = vmatprep.mubr.bf16.mxu0 0
  %5194 = vmatmul.mubr.bf16.gmra.mxu0 %v4714
  %v5195 = vpop.f32.mrf.mxu0
  %v5196 = vadd.f32 %v4474, %v5195
  %v5197 = vpop.f32.mrf.mxu0
  %v5198 = vadd.f32 %v4478, %v5197
  %v5199 = vpop.f32.mrf.mxu0
  %v5200 = vpop.f32.mrf.mxu0
  %5201 = vdwg.mxu0
  %5202 = vmatprep.subr.bf16.mxu0 0
  %5203 = vmatpush1.bf16.msra.mxu0 0
  %5204 = vmatprep.subr.bf16.mxu0 0
  %5205 = vmatpush1.bf16.msra.mxu0 0
  %5206 = vmatprep.subr.bf16.mxu0 0
  %5207 = vmatpush1.bf16.msra.mxu0 0
  %5208 = vmatprep.subr.bf16.mxu0 0
  %5209 = vmatpush1.bf16.msra.mxu0 0
  %5210 = vmatprep.subr.bf16.mxu0 0
  %5211 = vmatpush1.bf16.msra.mxu0 0
  %5212 = vmatprep.subr.bf16.mxu0 0
  %5213 = vmatpush1.bf16.msra.mxu0 0
  %5214 = vmatprep.subr.bf16.mxu0 %v4781
  %5215 = vmatpush1.bf16.msra.mxu0 %v4778
  %5216 = vmatprep.subr.bf16.mxu0 %v4659
  %5217 = vmatpush1.bf16.msra.mxu0 %v4658
  %5218 = vmatprep.subr.bf16.mxu0 0
  %5219 = vmatpush2.bf16.msra.mxu0 0
  %5220 = vmatprep.subr.bf16.mxu0 0
  %5221 = vmatpush2.bf16.msra.mxu0 0
  %5222 = vmatprep.subr.bf16.mxu0 0
  %5223 = vmatpush2.bf16.msra.mxu0 0
  %5224 = vmatprep.subr.bf16.mxu0 0
  %5225 = vmatpush2.bf16.msra.mxu0 0
  %5226 = vmatprep.subr.bf16.mxu0 0
  %5227 = vmatpush2.bf16.msra.mxu0 0
  %5228 = vmatprep.subr.bf16.mxu0 0
  %5229 = vmatpush2.bf16.msra.mxu0 0
  %5230 = vmatprep.subr.bf16.mxu0 0
  %5231 = vmatpush2.bf16.msra.mxu0 0
  %5232 = vmatprep.subr.bf16.mxu0 0
  %5233 = vmatpush2.bf16.msra.mxu0 0
  %5234 = vmatprep.mubr.bf16.mxu0 0
  %5235 = vmatmul.mubr.bf16.gmra.mxu0 %v4714
  %v5236 = vpop.f32.mrf.mxu0
  %v5237 = vadd.f32 %v4482, %v5236
  %v5238 = vpop.f32.mrf.mxu0
  %v5239 = vadd.f32 %v4486, %v5238
  %v5240 = vpop.f32.mrf.mxu0
  %v5241 = vpop.f32.mrf.mxu0
  %5242 = vdwg.mxu0
  %5243 = vmatprep.subr.bf16.mxu0 0
  %5244 = vmatpush1.bf16.msra.mxu0 0
  %5245 = vmatprep.subr.bf16.mxu0 0
  %5246 = vmatpush1.bf16.msra.mxu0 0
  %5247 = vmatprep.subr.bf16.mxu0 0
  %5248 = vmatpush1.bf16.msra.mxu0 0
  %5249 = vmatprep.subr.bf16.mxu0 0
  %5250 = vmatpush1.bf16.msra.mxu0 0
  %5251 = vmatprep.subr.bf16.mxu0 0
  %5252 = vmatpush1.bf16.msra.mxu0 0
  %5253 = vmatprep.subr.bf16.mxu0 0
  %5254 = vmatpush1.bf16.msra.mxu0 0
  %5255 = vmatprep.subr.bf16.mxu0 %v4787
  %5256 = vmatpush1.bf16.msra.mxu0 %v4784
  %5257 = vmatprep.subr.bf16.mxu0 %v4661
  %5258 = vmatpush1.bf16.msra.mxu0 %v4660
  %5259 = vmatprep.subr.bf16.mxu0 0
  %5260 = vmatpush2.bf16.msra.mxu0 0
  %5261 = vmatprep.subr.bf16.mxu0 0
  %5262 = vmatpush2.bf16.msra.mxu0 0
  %5263 = vmatprep.subr.bf16.mxu0 0
  %5264 = vmatpush2.bf16.msra.mxu0 0
  %5265 = vmatprep.subr.bf16.mxu0 0
  %5266 = vmatpush2.bf16.msra.mxu0 0
  %5267 = vmatprep.subr.bf16.mxu0 0
  %5268 = vmatpush2.bf16.msra.mxu0 0
  %5269 = vmatprep.subr.bf16.mxu0 0
  %5270 = vmatpush2.bf16.msra.mxu0 0
  %5271 = vmatprep.subr.bf16.mxu0 0
  %5272 = vmatpush2.bf16.msra.mxu0 0
  %5273 = vmatprep.subr.bf16.mxu0 0
  %5274 = vmatpush2.bf16.msra.mxu0 0
  %5275 = vmatprep.mubr.bf16.mxu0 0
  %5276 = vmatmul.mubr.bf16.gmra.mxu0 %v4714
  %v5277 = vpop.f32.mrf.mxu0
  %v5278 = vadd.f32 %v4490, %v5277
  %v5279 = vpop.f32.mrf.mxu0
  %v5280 = vadd.f32 %v4494, %v5279
  %v5281 = vpop.f32.mrf.mxu0
  %v5282 = vpop.f32.mrf.mxu0
  %5283 = vdwg.mxu0
  %5284 = vmatprep.subr.bf16.mxu0 0
  %5285 = vmatpush1.bf16.msra.mxu0 0
  %5286 = vmatprep.subr.bf16.mxu0 0
  %5287 = vmatpush1.bf16.msra.mxu0 0
  %5288 = vmatprep.subr.bf16.mxu0 0
  %5289 = vmatpush1.bf16.msra.mxu0 0
  %5290 = vmatprep.subr.bf16.mxu0 0
  %5291 = vmatpush1.bf16.msra.mxu0 0
  %5292 = vmatprep.subr.bf16.mxu0 0
  %5293 = vmatpush1.bf16.msra.mxu0 0
  %5294 = vmatprep.subr.bf16.mxu0 0
  %5295 = vmatpush1.bf16.msra.mxu0 0
  %5296 = vmatprep.subr.bf16.mxu0 0
  %5297 = vmatpush1.bf16.msra.mxu0 %v4790
  %5298 = vmatprep.subr.bf16.mxu0 0
  %5299 = vmatpush1.bf16.msra.mxu0 %v4662
  %5300 = vmatprep.subr.bf16.mxu0 0
  %5301 = vmatpush2.bf16.msra.mxu0 0
  %5302 = vmatprep.subr.bf16.mxu0 0
  %5303 = vmatpush2.bf16.msra.mxu0 0
  %5304 = vmatprep.subr.bf16.mxu0 0
  %5305 = vmatpush2.bf16.msra.mxu0 0
  %5306 = vmatprep.subr.bf16.mxu0 0
  %5307 = vmatpush2.bf16.msra.mxu0 0
  %5308 = vmatprep.subr.bf16.mxu0 0
  %5309 = vmatpush2.bf16.msra.mxu0 0
  %5310 = vmatprep.subr.bf16.mxu0 0
  %5311 = vmatpush2.bf16.msra.mxu0 0
  %5312 = vmatprep.subr.bf16.mxu0 0
  %5313 = vmatpush2.bf16.msra.mxu0 0
  %5314 = vmatprep.subr.bf16.mxu0 0
  %5315 = vmatpush2.bf16.msra.mxu0 0
  %5316 = vmatprep.mubr.bf16.mxu0 0
  %5317 = vmatmul.mubr.bf16.gmra.mxu0 %v4714
  %v5318 = vpop.f32.mrf.mxu0
  %v5319 = vadd.f32 %v4498, %v5318
  %v5320 = vpop.f32.mrf.mxu0
  %v5321 = vpop.f32.mrf.mxu0
  %v5322 = vpop.f32.mrf.mxu0
  %5323 = vdwg.mxu0
  %v5324 = vpack.c.bf16 %v4827, %v4827
  %v5325 = vpack.c.bf16 %v4829, %v4829
  %v5326 = vpack.c.bf16 %v4868, %v4868
  %v5327 = vpack.c.bf16 %v4870, %v4870
  %v5328 = vpack.c.bf16 %v4909, %v4909
  %v5329 = vpack.c.bf16 %v4911, %v4911
  %v5330 = vpack.c.bf16 %v4950, %v4950
  %v5331 = vpack.c.bf16 %v4952, %v4952
  %v5332 = vpack.c.bf16 %v4991, %v4991
  %v5333 = vpack.c.bf16 %v4993, %v4993
  %v5334 = vpack.c.bf16 %v5032, %v5032
  %v5335 = vpack.c.bf16 %v5034, %v5034
  %v5336 = vpack.c.bf16 %v5073, %v5073
  %v5337 = vpack.c.bf16 %v5075, %v5075
  %v5338 = vpack.c.bf16 %v5114, %v5114
  %v5339 = vpack.c.bf16 %v5116, %v5116
  %v5340 = vpack.c.bf16 %v5155, %v5155
  %v5341 = vpack.c.bf16 %v5157, %v5157
  %v5342 = vpack.c.bf16 %v5196, %v5196
  %v5343 = vpack.c.bf16 %v5198, %v5198
  %v5344 = vpack.c.bf16 %v5237, %v5237
  %v5345 = vpack.c.bf16 %v5239, %v5239
  %v5346 = vpack.c.bf16 %v5278, %v5278
  %v5347 = vpack.c.bf16 %v5280, %v5280
  %v5348 = vpack.c.bf16 %v5319, %v5319
  %v5374 = vunpack.c.l.b16 %v5324
  %v5375 = vunpack.c.l.b16 %v5325
  %v5376 = vunpack.c.l.b16 %v5326
  %v5377 = vunpack.c.l.b16 %v5327
  %v5378 = vunpack.c.l.b16 %v5328
  %v5379 = vunpack.c.l.b16 %v5329
  %v5380 = vunpack.c.l.b16 %v5330
  %v5381 = vunpack.c.l.b16 %v5331
  %v5382 = vunpack.c.l.b16 %v5332
  %v5383 = vunpack.c.l.b16 %v5333
  %v5384 = vunpack.c.l.b16 %v5334
  %v5385 = vunpack.c.l.b16 %v5335
  %v5386 = vunpack.c.l.b16 %v5336
  %v5387 = vunpack.c.l.b16 %v5337
  %v5388 = vunpack.c.l.b16 %v5338
  %v5389 = vunpack.c.l.b16 %v5339
  %v5390 = vunpack.c.l.b16 %v5340
  %v5391 = vunpack.c.l.b16 %v5341
  %v5392 = vunpack.c.l.b16 %v5342
  %v5393 = vunpack.c.l.b16 %v5343
  %v5394 = vunpack.c.l.b16 %v5344
  %v5395 = vunpack.c.l.b16 %v5345
  %v5396 = vunpack.c.l.b16 %v5346
  %v5397 = vunpack.c.l.b16 %v5347
  %v5398 = vunpack.c.l.b16 %v5348
  %v5399 = vpack.c.b16 %v5375, %v5374
  %v5400 = vpack.c.b16 %v5377, %v5376
  %v5401 = vpack.c.b16 %v5379, %v5378
  %v5402 = vpack.c.b16 %v5381, %v5380
  %v5403 = vpack.c.b16 %v5383, %v5382
  %v5404 = vpack.c.b16 %v5385, %v5384
  %v5405 = vpack.c.b16 %v5387, %v5386
  %v5406 = vpack.c.b16 %v5389, %v5388
  %v5407 = vpack.c.b16 %v5391, %v5390
  %v5408 = vpack.c.b16 %v5393, %v5392
  %v5409 = vpack.c.b16 %v5395, %v5394
  %v5410 = vpack.c.b16 %v5397, %v5396
  %v5411 = vpack.c.b16 %v5398, %v5398
  %5425 = vst [vmem:[%s15] sm:$0xff] %v5399
  %5426 = vst [vmem:[%s15 + $0x8] sm:$0xff] %v5400
  %5427 = vst [vmem:[%s15 + $0x10] sm:$0xff] %v5401
  %5428 = vst [vmem:[%s15 + $0x18] sm:$0xff] %v5402
  %5429 = vst [vmem:[%s15 + $0x20] sm:$0xff] %v5403
  %5430 = vst [vmem:[%s15 + $0x28] sm:$0xff] %v5404
  %5431 = vst [vmem:[%s15 + $0x30] sm:$0xff] %v5405
  %5432 = vst [vmem:[%s15 + $0x38] sm:$0xff] %v5406
  %5433 = vst [vmem:[%s15 + $0x40] sm:$0xff] %v5407
  %5434 = vst [vmem:[%s15 + $0x48] sm:$0xff] %v5408
  %5435 = vst [vmem:[%s15 + $0x50] sm:$0xff] %v5409
  %5436 = vst [vmem:[%s15 + $0x58] sm:$0xff] %v5410
  %vm5437 = vcmask 519168
  %5438 = vst.msk [vmem:[%s15 + $0x60] sm:$0xf] %vm5437, %v5411
  %v5439 = vld [vmem:[%s8] sm:$0xff]
  %v5440 = vld [vmem:[%s8 + $0x8] sm:$0xff]
  %v5441 = vld [vmem:[%s8 + $0x10] sm:$0x33]
  %v5442 = vld [vmem:[%s9] sm:$0x3]
  %v5444 = vlaneseq
  %v5445 = vshrl.u32 %v5444, 7
  %v5446 = vsub.s32 0, %v5445
  %v5447 = vrot.slane %v5442, %v5446
  %v5448 = vlaneseq
  %v5449 = vshrl.u32 %v5448, 7
  %v5450 = vsub.s32 1, %v5449
  %v5451 = vrot.slane %v5442, %v5450
  %v5457 = vunpack.c.l.b16 %v5439
  %v5458 = vunpack.c.h.b16 %v5439
  %v5459 = vunpack.c.l.b16 %v5440
  %v5460 = vunpack.c.h.b16 %v5440
  %v5461 = vunpack.c.l.b16 %v5441
  %v5462 = vunpack.c.h.b16 %v5441
  %v5463 = vpack.c.b16 %v5459, %v5457
  %v5464 = vpack.c.b16 %v5460, %v5458
  %v5465 = vpack.c.b16 %v5461, %v5461
  %v5466 = vpack.c.b16 %v5462, %v5462
  %v5470 = vsel %vm4716, %v5465, 0
  %v5473 = vsel %vm4716, %v5466, 0
  %5475 = vmatprep.subr.bf16.mxu0 0
  %5476 = vmatpush1.bf16.msra.mxu0 0
  %5477 = vmatprep.subr.bf16.mxu0 0
  %5478 = vmatpush1.bf16.msra.mxu0 0
  %5479 = vmatprep.subr.bf16.mxu0 0
  %5480 = vmatpush1.bf16.msra.mxu0 0
  %5481 = vmatprep.subr.bf16.mxu0 0
  %5482 = vmatpush1.bf16.msra.mxu0 0
  %5483 = vmatprep.subr.bf16.mxu0 0
  %5484 = vmatpush1.bf16.msra.mxu0 0
  %5485 = vmatprep.subr.bf16.mxu0 0
  %5486 = vmatpush1.bf16.msra.mxu0 0
  %5487 = vmatprep.subr.bf16.mxu0 %v5473
  %5488 = vmatpush1.bf16.msra.mxu0 %v5470
  %5489 = vmatprep.subr.bf16.mxu0 %v5464
  %5490 = vmatpush1.bf16.msra.mxu0 %v5463
  %5491 = vmatprep.subr.bf16.mxu0 0
  %5492 = vmatpush2.bf16.msra.mxu0 0
  %5493 = vmatprep.subr.bf16.mxu0 0
  %5494 = vmatpush2.bf16.msra.mxu0 0
  %5495 = vmatprep.subr.bf16.mxu0 0
  %5496 = vmatpush2.bf16.msra.mxu0 0
  %5497 = vmatprep.subr.bf16.mxu0 0
  %5498 = vmatpush2.bf16.msra.mxu0 0
  %5499 = vmatprep.subr.bf16.mxu0 0
  %5500 = vmatpush2.bf16.msra.mxu0 0
  %5501 = vmatprep.subr.bf16.mxu0 0
  %5502 = vmatpush2.bf16.msra.mxu0 0
  %5503 = vmatprep.subr.bf16.mxu0 0
  %5504 = vmatpush2.bf16.msra.mxu0 0
  %5505 = vmatprep.subr.bf16.mxu0 0
  %5506 = vmatpush2.bf16.msra.mxu0 0
  %5507 = vmatprep.mubr.bf16.mxu0 0
  %5508 = vmatmul.mubr.bf16.gmra.mxu0 %v4714
  %v5509 = vpop.f32.mrf.mxu0
  %v5510 = vadd.f32 %v5447, %v5509
  %v5511 = vpop.f32.mrf.mxu0
  %v5512 = vadd.f32 %v5451, %v5511
  %v5513 = vpop.f32.mrf.mxu0
  %v5514 = vpop.f32.mrf.mxu0
  %5515 = vdwg.mxu0
  %v5516 = vmax.f32 %v5510, 0.0
  %v5517 = vmax.f32 %v5512, 0.0
  %v5518 = vpack.c.bf16 %v5516, %v5516
  %v5519 = vpack.c.bf16 %v5517, %v5517
  %v5520 = vld [vmem:[%s10] sm:$0xf]
  %v5521 = vld [vmem:[%s10 + $0x4] sm:$0xf]
  %v5522 = vld [vmem:[%s10 + $0x8] sm:$0xf]
  %v5523 = vld [vmem:[%s10 + $0xc] sm:$0xf]
  %v5524 = vld [vmem:[%s10 + $0x10] sm:$0xf]
  %v5525 = vld [vmem:[%s10 + $0x14] sm:$0xf]
  %v5526 = vld [vmem:[%s10 + $0x18] sm:$0xf]
  %v5527 = vld [vmem:[%s10 + $0x1c] sm:$0xf]
  %v5528 = vld [vmem:[%s10 + $0x20] sm:$0xf]
  %v5529 = vld [vmem:[%s10 + $0x24] sm:$0xf]
  %v5530 = vld [vmem:[%s10 + $0x28] sm:$0xf]
  %v5531 = vld [vmem:[%s10 + $0x2c] sm:$0xf]
  %v5532 = vld [vmem:[%s10 + $0x30] sm:$0xf]
  %v5533 = vld [vmem:[%s10 + $0x34] sm:$0xf]
  %v5534 = vld [vmem:[%s10 + $0x38] sm:$0xf]
  %v5535 = vld [vmem:[%s10 + $0x3c] sm:$0xf]
  %v5536 = vld [vmem:[%s10 + $0x40] sm:$0xf]
  %v5537 = vld [vmem:[%s10 + $0x44] sm:$0xf]
  %v5538 = vld [vmem:[%s10 + $0x48] sm:$0xf]
  %v5539 = vld [vmem:[%s10 + $0x4c] sm:$0xf]
  %v5540 = vld [vmem:[%s10 + $0x50] sm:$0xf]
  %v5541 = vld [vmem:[%s10 + $0x54] sm:$0xf]
  %v5542 = vld [vmem:[%s10 + $0x58] sm:$0xf]
  %v5543 = vld [vmem:[%s10 + $0x5c] sm:$0xf]
  %v5544 = vld [vmem:[%s10 + $0x60] sm:$0xf]
  %v5545 = vld [vmem:[%s10 + $0x64] sm:$0xf]
  %v5546 = vld [vmem:[%s10 + $0x68] sm:$0xf]
  %v5547 = vld [vmem:[%s10 + $0x6c] sm:$0xf]
  %v5548 = vld [vmem:[%s10 + $0x70] sm:$0xf]
  %v5549 = vld [vmem:[%s10 + $0x74] sm:$0xf]
  %v5550 = vld [vmem:[%s10 + $0x78] sm:$0xf]
  %v5551 = vld [vmem:[%s10 + $0x7c] sm:$0xf]
  %v5552 = vld [vmem:[%s11] sm:$0x1]
  %v5554 = vlaneseq
  %v5555 = vshrl.u32 %v5554, 7
  %v5556 = vsub.s32 0, %v5555
  %v5557 = vrot.slane %v5552, %v5556
  %v5591 = vunpack.c.l.b16 %v5520
  %v5592 = vunpack.c.l.b16 %v5521
  %v5593 = vunpack.c.l.b16 %v5522
  %v5594 = vunpack.c.l.b16 %v5523
  %v5595 = vunpack.c.l.b16 %v5524
  %v5596 = vunpack.c.l.b16 %v5525
  %v5597 = vunpack.c.l.b16 %v5526
  %v5598 = vunpack.c.l.b16 %v5527
  %v5599 = vunpack.c.l.b16 %v5528
  %v5600 = vunpack.c.l.b16 %v5529
  %v5601 = vunpack.c.l.b16 %v5530
  %v5602 = vunpack.c.l.b16 %v5531
  %v5603 = vunpack.c.l.b16 %v5532
  %v5604 = vunpack.c.l.b16 %v5533
  %v5605 = vunpack.c.l.b16 %v5534
  %v5606 = vunpack.c.l.b16 %v5535
  %v5607 = vunpack.c.l.b16 %v5536
  %v5608 = vunpack.c.l.b16 %v5537
  %v5609 = vunpack.c.l.b16 %v5538
  %v5610 = vunpack.c.l.b16 %v5539
  %v5611 = vunpack.c.l.b16 %v5540
  %v5612 = vunpack.c.l.b16 %v5541
  %v5613 = vunpack.c.l.b16 %v5542
  %v5614 = vunpack.c.l.b16 %v5543
  %v5615 = vunpack.c.l.b16 %v5544
  %v5616 = vunpack.c.l.b16 %v5545
  %v5617 = vunpack.c.l.b16 %v5546
  %v5618 = vunpack.c.l.b16 %v5547
  %v5619 = vunpack.c.l.b16 %v5548
  %v5620 = vunpack.c.l.b16 %v5549
  %v5621 = vunpack.c.l.b16 %v5550
  %v5622 = vunpack.c.l.b16 %v5551
  %v5623 = vpack.c.b16 %v5592, %v5591
  %v5624 = vpack.c.b16 %v5594, %v5593
  %v5625 = vpack.c.b16 %v5596, %v5595
  %v5626 = vpack.c.b16 %v5598, %v5597
  %v5627 = vpack.c.b16 %v5600, %v5599
  %v5628 = vpack.c.b16 %v5602, %v5601
  %v5629 = vpack.c.b16 %v5604, %v5603
  %v5630 = vpack.c.b16 %v5606, %v5605
  %v5631 = vpack.c.b16 %v5608, %v5607
  %v5632 = vpack.c.b16 %v5610, %v5609
  %v5633 = vpack.c.b16 %v5612, %v5611
  %v5634 = vpack.c.b16 %v5614, %v5613
  %v5635 = vpack.c.b16 %v5616, %v5615
  %v5636 = vpack.c.b16 %v5618, %v5617
  %v5637 = vpack.c.b16 %v5620, %v5619
  %v5638 = vpack.c.b16 %v5622, %v5621
  %5655 = vmatprep.subr.bf16.mxu0 0
  %5656 = vmatpush1.bf16.msra.mxu0 %v5630
  %5657 = vmatprep.subr.bf16.mxu0 0
  %5658 = vmatpush1.bf16.msra.mxu0 %v5629
  %5659 = vmatprep.subr.bf16.mxu0 0
  %5660 = vmatpush1.bf16.msra.mxu0 %v5628
  %5661 = vmatprep.subr.bf16.mxu0 0
  %5662 = vmatpush1.bf16.msra.mxu0 %v5627
  %5663 = vmatprep.subr.bf16.mxu0 0
  %5664 = vmatpush1.bf16.msra.mxu0 %v5626
  %5665 = vmatprep.subr.bf16.mxu0 0
  %5666 = vmatpush1.bf16.msra.mxu0 %v5625
  %5667 = vmatprep.subr.bf16.mxu0 0
  %5668 = vmatpush1.bf16.msra.mxu0 %v5624
  %5669 = vmatprep.subr.bf16.mxu0 0
  %5670 = vmatpush1.bf16.msra.mxu0 %v5623
  %5671 = vmatprep.subr.bf16.mxu0 0
  %5672 = vmatpush2.bf16.msra.mxu0 %v5638
  %5673 = vmatprep.subr.bf16.mxu0 0
  %5674 = vmatpush2.bf16.msra.mxu0 %v5637
  %5675 = vmatprep.subr.bf16.mxu0 0
  %5676 = vmatpush2.bf16.msra.mxu0 %v5636
  %5677 = vmatprep.subr.bf16.mxu0 0
  %5678 = vmatpush2.bf16.msra.mxu0 %v5635
  %5679 = vmatprep.subr.bf16.mxu0 0
  %5680 = vmatpush2.bf16.msra.mxu0 %v5634
  %5681 = vmatprep.subr.bf16.mxu0 0
  %5682 = vmatpush2.bf16.msra.mxu0 %v5633
  %5683 = vmatprep.subr.bf16.mxu0 0
  %5684 = vmatpush2.bf16.msra.mxu0 %v5632
  %5685 = vmatprep.subr.bf16.mxu0 0
  %5686 = vmatpush2.bf16.msra.mxu0 %v5631
  %5687 = vmatprep.mubr.bf16.mxu0 %v5519
  %5688 = vmatmul.mubr.bf16.gmra.mxu0 %v5518
  %v5689 = vpop.f32.mrf.mxu0
  %v5690 = vadd.f32 %v5557, %v5689
  %v5691 = vpop.f32.mrf.mxu0
  %v5692 = vpop.f32.mrf.mxu0
  %v5693 = vpop.f32.mrf.mxu0
  %5694 = vdwg.mxu0
  %vm5695 = vcmask 80896
  %v5696 = vsel %vm5695, %v5690, -inf
  %5697 = vmax.xlane.f32.xlu0 %v5696
  %v5698 = vpop.xlane.xlu0 %5697
  %v5699 = vsub.f32 %v5690, %v5698
  %v5700 = vmul.f32 %v5699, 1.442695
  %v5701 = vpow.pop %v5700
  %v5702 = vsel %vm5695, %v5701, 0.0
  %5703 = vadd.xlane.f32.xlu0 %v5702
  %v5704 = vpop.xlane.xlu0 %5703
  %v5705 = vrcp.pop %v5704
  %v5706 = vmul.f32 %v5701, %v5705
  %5707 = vst.msk [vmem:[%s16] sm:$0xff] %vm5695, %v5706
  // Predicated region
  $region50: #{cluster_vae_forward.13} parent=0 // pred_check
    _
  $region51: #{cluster_vae_forward.13} parent=0 // pred_check_branch
    %5709 = sbr.rel (0) target = $region53
  $region52: #{cluster_vae_forward.13} parent=0 // pred_region
    _
  $region53: #{cluster_vae_forward.13} parent=0 // pred_fallthru
    _
  // Predicated region
  $region54: #{cluster_vae_forward.13} parent=0 // pred_check
    _
  $region55: #{cluster_vae_forward.13} parent=0 // pred_check_branch
    %5711 = sbr.rel (0) target = $region57
  $region56: #{cluster_vae_forward.13} parent=0 // pred_region
    _
  $region57: #{cluster_vae_forward.13} parent=0 // pred_fallthru
    _
  // Predicated region
  $region58: #{cluster_vae_forward.13} parent=0 // pred_check
    _
  $region59: #{cluster_vae_forward.13} parent=0 // pred_check_branch
    %5713 = sbr.rel (0) target = $region61
  $region60: #{cluster_vae_forward.13} parent=0 // pred_region
    _
  $region61: #{cluster_vae_forward.13} parent=0 // pred_fallthru
    _
  // Predicated region
  $region62: #{cluster_vae_forward.13} parent=0 // pred_check
    _
  $region63: #{cluster_vae_forward.13} parent=0 // pred_check_branch
    %5715 = sbr.rel (0) target = $region65
  $region64: #{cluster_vae_forward.13} parent=0 // pred_region
    _
  $region65: #{cluster_vae_forward.13} parent=0 // pred_fallthru
    _
  // Predicated region
  $region66: #{cluster_vae_forward.13} parent=0 // pred_check
    _
  $region67: #{cluster_vae_forward.13} parent=0 // pred_check_branch
    %5717 = sbr.rel (0) target = $region69
  $region68: #{cluster_vae_forward.13} parent=0 // pred_region
    _
  $region69: #{cluster_vae_forward.13} parent=0 // pred_fallthru
    _
  // Predicated region
  $region70: #{cluster_vae_forward.13} parent=0 // pred_check
    _
  $region71: #{cluster_vae_forward.13} parent=0 // pred_check_branch
    %5719 = sbr.rel (0) target = $region73
  $region72: #{cluster_vae_forward.13} parent=0 // pred_region
    _
  $region73: #{cluster_vae_forward.13} parent=0 // pred_fallthru
    _
  // Predicated region
  $region74: #{cluster_vae_forward.13} parent=0 // pred_check
    _
  $region75: #{cluster_vae_forward.13} parent=0 // pred_check_branch
    %5721 = sbr.rel (0) target = $region77
  $region76: #{cluster_vae_forward.13} parent=0 // pred_region
    _
  $region77: #{cluster_vae_forward.13} parent=0 // pred_fallthru
    _
  // Predicated region
  $region78: #{cluster_vae_forward.13} parent=0 // pred_check
    _
  $region79: #{cluster_vae_forward.13} parent=0 // pred_check_branch
    %5723 = sbr.rel (0) target = $region81
  $region80: #{cluster_vae_forward.13} parent=0 // pred_region
    _
  $region81: #{cluster_vae_forward.13} parent=0 // pred_fallthru
    _
  // Predicated region
  $region82: #{cluster_vae_forward.13} parent=0 // pred_check
    _
  $region83: #{cluster_vae_forward.13} parent=0 // pred_check_branch
    %5725 = sbr.rel (0) target = $region85
  $region84: #{cluster_vae_forward.13} parent=0 // pred_region
    _
  $region85: #{cluster_vae_forward.13} parent=0 // pred_fallthru
    _
  // Predicated region
  $region86: #{cluster_vae_forward.13} parent=0 // pred_check
    _
  $region87: #{cluster_vae_forward.13} parent=0 // pred_check_branch
    %5727 = sbr.rel (0) target = $region89
  $region88: #{cluster_vae_forward.13} parent=0 // pred_region
    _
  $region89: #{cluster_vae_forward.13} parent=0 // pred_fallthru
    _

// kernel: cluster_vae_forward.15
$region0: #{cluster_vae_forward.15}
  #allocation0 [shape = 'u32[]', space=smem, size = 0x4, offset = 0x4, fixed_abs, tag = 'smem constant byte address 0x4 - core index']
  #allocation1 [shape = 'u32[144,128]{1,0:T(1,128)}', space=vmem, size = 0x12000, scoped, tag = 'internal scratch']
  %s0 = inlined_call_operand.vmem [shape: bf16[400,576], index: 0, kind: input, shape index: {}]
  %s1 = inlined_call_operand.vmem [shape: bf16[576,32], index: 1, kind: input, shape index: {}]
  %s2 = inlined_call_operand.vmem [shape: f32[1,32], index: 2, kind: input, shape index: {}]
  %s3 = inlined_call_operand.vmem [shape: bf16[400,32], index: 3, kind: output, shape index: {}]
  %s4 = sld [smem:[#allocation0]]
  $region22: #{cluster_vae_forward.15} parent=0
    _
  %s6 = ssub.s32 1, %s4
  %s7 = scalar_select 0, %s6, %s4
  // Predicated region
  $region2: #{cluster_vae_forward.15} parent=0 // pred_check
    _
  $region3: #{cluster_vae_forward.15} parent=0 // pred_check_branch
    %9 = sbr.rel (0) target = $region5
  $region4: #{cluster_vae_forward.15} parent=0 // pred_region
    _
  $region5: #{cluster_vae_forward.15} parent=0 // pred_fallthru
    _
  // Predicated region
  $region6: #{cluster_vae_forward.15} parent=0 // pred_check
    _
  $region7: #{cluster_vae_forward.15} parent=0 // pred_check_branch
    %11 = sbr.rel (0) target = $region9
  $region8: #{cluster_vae_forward.15} parent=0 // pred_region
    _
  $region9: #{cluster_vae_forward.15} parent=0 // pred_fallthru
    _
  // Predicated region
  $region10: #{cluster_vae_forward.15} parent=0 // pred_check
    _
  $region11: #{cluster_vae_forward.15} parent=0 // pred_check_branch
    %13 = sbr.rel (0) target = $region13
  $region12: #{cluster_vae_forward.15} parent=0 // pred_region
    _
  $region13: #{cluster_vae_forward.15} parent=0 // pred_fallthru
    _
  %v15 = vld [vmem:[%s0] sm:$0xff]
  %v16 = vld [vmem:[%s0 + $0x8] sm:$0xff]
  %v17 = vld [vmem:[%s0 + $0x10] sm:$0xf]
  %v18 = vld [vmem:[%s0 + $0x14] sm:$0xff]
  %v19 = vld [vmem:[%s0 + $0x1c] sm:$0xff]
  %v20 = vld [vmem:[%s0 + $0x24] sm:$0xf]
  %v21 = vld [vmem:[%s0 + $0x28] sm:$0xff]
  %v22 = vld [vmem:[%s0 + $0x30] sm:$0xff]
  %v23 = vld [vmem:[%s0 + $0x38] sm:$0xf]
  %v24 = vld [vmem:[%s0 + $0x3c] sm:$0xff]
  %v25 = vld [vmem:[%s0 + $0x44] sm:$0xff]
  %v26 = vld [vmem:[%s0 + $0x4c] sm:$0xf]
  %v27 = vld [vmem:[%s0 + $0x50] sm:$0xff]
  %v28 = vld [vmem:[%s0 + $0x58] sm:$0xff]
  %v29 = vld [vmem:[%s0 + $0x60] sm:$0xf]
  %v30 = vld [vmem:[%s0 + $0x64] sm:$0xff]
  %v31 = vld [vmem:[%s0 + $0x6c] sm:$0xff]
  %v32 = vld [vmem:[%s0 + $0x74] sm:$0xf]
  %v33 = vld [vmem:[%s0 + $0x78] sm:$0xff]
  %v34 = vld [vmem:[%s0 + $0x80] sm:$0xff]
  %v35 = vld [vmem:[%s0 + $0x88] sm:$0xf]
  %v36 = vld [vmem:[%s0 + $0x8c] sm:$0xff]
  %v37 = vld [vmem:[%s0 + $0x94] sm:$0xff]
  %v38 = vld [vmem:[%s0 + $0x9c] sm:$0xf]
  %v39 = vld [vmem:[%s0 + $0xa0] sm:$0xff]
  %v40 = vld [vmem:[%s0 + $0xa8] sm:$0xff]
  %v41 = vld [vmem:[%s0 + $0xb0] sm:$0xf]
  %v42 = vld [vmem:[%s0 + $0xb4] sm:$0xff]
  %v43 = vld [vmem:[%s0 + $0xbc] sm:$0xff]
  %v44 = vld [vmem:[%s0 + $0xc4] sm:$0xf]
  %v45 = vld [vmem:[%s0 + $0xc8] sm:$0xff]
  %v46 = vld [vmem:[%s0 + $0xd0] sm:$0xff]
  %v47 = vld [vmem:[%s0 + $0xd8] sm:$0xf]
  %v48 = vld [vmem:[%s0 + $0xdc] sm:$0xff]
  %v49 = vld [vmem:[%s0 + $0xe4] sm:$0xff]
  %v50 = vld [vmem:[%s0 + $0xec] sm:$0xf]
  %v51 = vld [vmem:[%s0 + $0xf0] sm:$0xff]
  %v52 = vld [vmem:[%s0 + $0xf8] sm:$0xff]
  %v53 = vld [vmem:[%s0 + $0x100] sm:$0xf]
  %v54 = vld [vmem:[%s0 + $0x104] sm:$0xff]
  %v55 = vld [vmem:[%s0 + $0x10c] sm:$0xff]
  %v56 = vld [vmem:[%s0 + $0x114] sm:$0xf]
  %v57 = vld [vmem:[%s0 + $0x118] sm:$0xff]
  %v58 = vld [vmem:[%s0 + $0x120] sm:$0xff]
  %v59 = vld [vmem:[%s0 + $0x128] sm:$0xf]
  %v60 = vld [vmem:[%s0 + $0x12c] sm:$0xff]
  %v61 = vld [vmem:[%s0 + $0x134] sm:$0xff]
  %v62 = vld [vmem:[%s0 + $0x13c] sm:$0xf]
  %v63 = vld [vmem:[%s0 + $0x140] sm:$0xff]
  %v64 = vld [vmem:[%s0 + $0x148] sm:$0xff]
  %v65 = vld [vmem:[%s0 + $0x150] sm:$0xf]
  %v66 = vld [vmem:[%s0 + $0x154] sm:$0xff]
  %v67 = vld [vmem:[%s0 + $0x15c] sm:$0xff]
  %v68 = vld [vmem:[%s0 + $0x164] sm:$0xf]
  %v69 = vld [vmem:[%s0 + $0x168] sm:$0xff]
  %v70 = vld [vmem:[%s0 + $0x170] sm:$0xff]
  %v71 = vld [vmem:[%s0 + $0x178] sm:$0xf]
  %v72 = vld [vmem:[%s0 + $0x17c] sm:$0xff]
  %v73 = vld [vmem:[%s0 + $0x184] sm:$0xff]
  %v74 = vld [vmem:[%s0 + $0x18c] sm:$0xf]
  %v75 = vld [vmem:[%s0 + $0x190] sm:$0xff]
  %v76 = vld [vmem:[%s0 + $0x198] sm:$0xff]
  %v77 = vld [vmem:[%s0 + $0x1a0] sm:$0xf]
  %v78 = vld [vmem:[%s0 + $0x1a4] sm:$0xff]
  %v79 = vld [vmem:[%s0 + $0x1ac] sm:$0xff]
  %v80 = vld [vmem:[%s0 + $0x1b4] sm:$0xf]
  %v81 = vld [vmem:[%s0 + $0x1b8] sm:$0xff]
  %v82 = vld [vmem:[%s0 + $0x1c0] sm:$0xff]
  %v83 = vld [vmem:[%s0 + $0x1c8] sm:$0xf]
  %v84 = vld [vmem:[%s0 + $0x1cc] sm:$0xff]
  %v85 = vld [vmem:[%s0 + $0x1d4] sm:$0xff]
  %v86 = vld [vmem:[%s0 + $0x1dc] sm:$0xf]
  %v87 = vld [vmem:[%s0 + $0x1e0] sm:$0xff]
  %v88 = vld [vmem:[%s0 + $0x1e8] sm:$0xff]
  %v89 = vld [vmem:[%s0 + $0x1f0] sm:$0xf]
  %v90 = vld [vmem:[%s0 + $0x1f4] sm:$0xff]
  %v91 = vld [vmem:[%s0 + $0x1fc] sm:$0xff]
  %v92 = vld [vmem:[%s0 + $0x204] sm:$0xf]
  %v93 = vld [vmem:[%s0 + $0x208] sm:$0xff]
  %v94 = vld [vmem:[%s0 + $0x210] sm:$0xff]
  %v95 = vld [vmem:[%s0 + $0x218] sm:$0xf]
  %v96 = vld [vmem:[%s0 + $0x21c] sm:$0xff]
  %v97 = vld [vmem:[%s0 + $0x224] sm:$0xff]
  %v98 = vld [vmem:[%s0 + $0x22c] sm:$0xf]
  %v99 = vld [vmem:[%s0 + $0x230] sm:$0xff]
  %v100 = vld [vmem:[%s0 + $0x238] sm:$0xff]
  %v101 = vld [vmem:[%s0 + $0x240] sm:$0xf]
  %v102 = vld [vmem:[%s0 + $0x244] sm:$0xff]
  %v103 = vld [vmem:[%s0 + $0x24c] sm:$0xff]
  %v104 = vld [vmem:[%s0 + $0x254] sm:$0xf]
  %v105 = vld [vmem:[%s0 + $0x258] sm:$0xff]
  %v106 = vld [vmem:[%s0 + $0x260] sm:$0xff]
  %v107 = vld [vmem:[%s0 + $0x268] sm:$0xf]
  %v108 = vld [vmem:[%s0 + $0x26c] sm:$0xff]
  %v109 = vld [vmem:[%s0 + $0x274] sm:$0xff]
  %v110 = vld [vmem:[%s0 + $0x27c] sm:$0xf]
  %v111 = vld [vmem:[%s0 + $0x280] sm:$0xff]
  %v112 = vld [vmem:[%s0 + $0x288] sm:$0xff]
  %v113 = vld [vmem:[%s0 + $0x290] sm:$0xf]
  %v114 = vld [vmem:[%s0 + $0x294] sm:$0xff]
  %v115 = vld [vmem:[%s0 + $0x29c] sm:$0xff]
  %v116 = vld [vmem:[%s0 + $0x2a4] sm:$0xf]
  %v117 = vld [vmem:[%s0 + $0x2a8] sm:$0xff]
  %v118 = vld [vmem:[%s0 + $0x2b0] sm:$0xff]
  %v119 = vld [vmem:[%s0 + $0x2b8] sm:$0xf]
  %v120 = vld [vmem:[%s0 + $0x2bc] sm:$0xff]
  %v121 = vld [vmem:[%s0 + $0x2c4] sm:$0xff]
  %v122 = vld [vmem:[%s0 + $0x2cc] sm:$0xf]
  %v123 = vld [vmem:[%s0 + $0x2d0] sm:$0xff]
  %v124 = vld [vmem:[%s0 + $0x2d8] sm:$0xff]
  %v125 = vld [vmem:[%s0 + $0x2e0] sm:$0xf]
  %v126 = vld [vmem:[%s0 + $0x2e4] sm:$0xff]
  %v127 = vld [vmem:[%s0 + $0x2ec] sm:$0xff]
  %v128 = vld [vmem:[%s0 + $0x2f4] sm:$0xf]
  %v129 = vld [vmem:[%s0 + $0x2f8] sm:$0xff]
  %v130 = vld [vmem:[%s0 + $0x300] sm:$0xff]
  %v131 = vld [vmem:[%s0 + $0x308] sm:$0xf]
  %v132 = vld [vmem:[%s0 + $0x30c] sm:$0xff]
  %v133 = vld [vmem:[%s0 + $0x314] sm:$0xff]
  %v134 = vld [vmem:[%s0 + $0x31c] sm:$0xf]
  %v135 = vld [vmem:[%s0 + $0x320] sm:$0xff]
  %v136 = vld [vmem:[%s0 + $0x328] sm:$0xff]
  %v137 = vld [vmem:[%s0 + $0x330] sm:$0xf]
  %v138 = vld [vmem:[%s0 + $0x334] sm:$0xff]
  %v139 = vld [vmem:[%s0 + $0x33c] sm:$0xff]
  %v140 = vld [vmem:[%s0 + $0x344] sm:$0xf]
  %v141 = vld [vmem:[%s0 + $0x348] sm:$0xff]
  %v142 = vld [vmem:[%s0 + $0x350] sm:$0xff]
  %v143 = vld [vmem:[%s0 + $0x358] sm:$0xf]
  %v144 = vld [vmem:[%s0 + $0x35c] sm:$0xff]
  %v145 = vld [vmem:[%s0 + $0x364] sm:$0xff]
  %v146 = vld [vmem:[%s0 + $0x36c] sm:$0xf]
  %v147 = vld [vmem:[%s0 + $0x370] sm:$0xff]
  %v148 = vld [vmem:[%s0 + $0x378] sm:$0xff]
  %v149 = vld [vmem:[%s0 + $0x380] sm:$0xf]
  %v150 = vld [vmem:[%s0 + $0x384] sm:$0xff]
  %v151 = vld [vmem:[%s0 + $0x38c] sm:$0xff]
  %v152 = vld [vmem:[%s0 + $0x394] sm:$0xf]
  %v153 = vld [vmem:[%s0 + $0x398] sm:$0xff]
  %v154 = vld [vmem:[%s0 + $0x3a0] sm:$0xff]
  %v155 = vld [vmem:[%s0 + $0x3a8] sm:$0xf]
  %v156 = vld [vmem:[%s0 + $0x3ac] sm:$0xff]
  %v157 = vld [vmem:[%s0 + $0x3b4] sm:$0xff]
  %v158 = vld [vmem:[%s0 + $0x3bc] sm:$0xf]
  %v159 = vld [vmem:[%s0 + $0x3c0] sm:$0xff]
  %v160 = vld [vmem:[%s0 + $0x3c8] sm:$0xff]
  %v161 = vld [vmem:[%s0 + $0x3d0] sm:$0xf]
  %v162 = vld [vmem:[%s0 + $0x3d4] sm:$0xff]
  %v163 = vld [vmem:[%s0 + $0x3dc] sm:$0xff]
  %v164 = vld [vmem:[%s0 + $0x3e4] sm:$0xf]
  %v165 = vld [vmem:[%s1] sm:$0xf]
  %v166 = vld [vmem:[%s1 + $0x4] sm:$0xf]
  %v167 = vld [vmem:[%s1 + $0x8] sm:$0xf]
  %v168 = vld [vmem:[%s1 + $0xc] sm:$0xf]
  %v169 = vld [vmem:[%s1 + $0x10] sm:$0xf]
  %v170 = vld [vmem:[%s1 + $0x14] sm:$0xf]
  %v171 = vld [vmem:[%s1 + $0x18] sm:$0xf]
  %v172 = vld [vmem:[%s1 + $0x1c] sm:$0xf]
  %v173 = vld [vmem:[%s1 + $0x20] sm:$0xf]
  %v174 = vld [vmem:[%s1 + $0x24] sm:$0xf]
  %v175 = vld [vmem:[%s1 + $0x28] sm:$0xf]
  %v176 = vld [vmem:[%s1 + $0x2c] sm:$0xf]
  %v177 = vld [vmem:[%s1 + $0x30] sm:$0xf]
  %v178 = vld [vmem:[%s1 + $0x34] sm:$0xf]
  %v179 = vld [vmem:[%s1 + $0x38] sm:$0xf]
  %v180 = vld [vmem:[%s1 + $0x3c] sm:$0xf]
  %v181 = vld [vmem:[%s1 + $0x40] sm:$0xf]
  %v182 = vld [vmem:[%s1 + $0x44] sm:$0xf]
  %v183 = vld [vmem:[%s1 + $0x48] sm:$0xf]
  %v184 = vld [vmem:[%s1 + $0x4c] sm:$0xf]
  %v185 = vld [vmem:[%s1 + $0x50] sm:$0xf]
  %v186 = vld [vmem:[%s1 + $0x54] sm:$0xf]
  %v187 = vld [vmem:[%s1 + $0x58] sm:$0xf]
  %v188 = vld [vmem:[%s1 + $0x5c] sm:$0xf]
  %v189 = vld [vmem:[%s1 + $0x60] sm:$0xf]
  %v190 = vld [vmem:[%s1 + $0x64] sm:$0xf]
  %v191 = vld [vmem:[%s1 + $0x68] sm:$0xf]
  %v192 = vld [vmem:[%s1 + $0x6c] sm:$0xf]
  %v193 = vld [vmem:[%s1 + $0x70] sm:$0xf]
  %v194 = vld [vmem:[%s1 + $0x74] sm:$0xf]
  %v195 = vld [vmem:[%s1 + $0x78] sm:$0xf]
  %v196 = vld [vmem:[%s1 + $0x7c] sm:$0xf]
  %v197 = vld [vmem:[%s1 + $0x80] sm:$0xf]
  %v198 = vld [vmem:[%s1 + $0x84] sm:$0xf]
  %v199 = vld [vmem:[%s1 + $0x88] sm:$0xf]
  %v200 = vld [vmem:[%s1 + $0x8c] sm:$0xf]
  %v201 = vld [vmem:[%s1 + $0x90] sm:$0xf]
  %v202 = vld [vmem:[%s1 + $0x94] sm:$0xf]
  %v203 = vld [vmem:[%s1 + $0x98] sm:$0xf]
  %v204 = vld [vmem:[%s1 + $0x9c] sm:$0xf]
  %v205 = vld [vmem:[%s1 + $0xa0] sm:$0xf]
  %v206 = vld [vmem:[%s1 + $0xa4] sm:$0xf]
  %v207 = vld [vmem:[%s1 + $0xa8] sm:$0xf]
  %v208 = vld [vmem:[%s1 + $0xac] sm:$0xf]
  %v209 = vld [vmem:[%s1 + $0xb0] sm:$0xf]
  %v210 = vld [vmem:[%s1 + $0xb4] sm:$0xf]
  %v211 = vld [vmem:[%s1 + $0xb8] sm:$0xf]
  %v212 = vld [vmem:[%s1 + $0xbc] sm:$0xf]
  %v213 = vld [vmem:[%s1 + $0xc0] sm:$0xf]
  %v214 = vld [vmem:[%s1 + $0xc4] sm:$0xf]
  %v215 = vld [vmem:[%s1 + $0xc8] sm:$0xf]
  %v216 = vld [vmem:[%s1 + $0xcc] sm:$0xf]
  %v217 = vld [vmem:[%s1 + $0xd0] sm:$0xf]
  %v218 = vld [vmem:[%s1 + $0xd4] sm:$0xf]
  %v219 = vld [vmem:[%s1 + $0xd8] sm:$0xf]
  %v220 = vld [vmem:[%s1 + $0xdc] sm:$0xf]
  %v221 = vld [vmem:[%s1 + $0xe0] sm:$0xf]
  %v222 = vld [vmem:[%s1 + $0xe4] sm:$0xf]
  %v223 = vld [vmem:[%s1 + $0xe8] sm:$0xf]
  %v224 = vld [vmem:[%s1 + $0xec] sm:$0xf]
  %v225 = vld [vmem:[%s1 + $0xf0] sm:$0xf]
  %v226 = vld [vmem:[%s1 + $0xf4] sm:$0xf]
  %v227 = vld [vmem:[%s1 + $0xf8] sm:$0xf]
  %v228 = vld [vmem:[%s1 + $0xfc] sm:$0xf]
  %v229 = vld [vmem:[%s1 + $0x100] sm:$0xf]
  %v230 = vld [vmem:[%s1 + $0x104] sm:$0xf]
  %v231 = vld [vmem:[%s1 + $0x108] sm:$0xf]
  %v232 = vld [vmem:[%s1 + $0x10c] sm:$0xf]
  %v233 = vld [vmem:[%s1 + $0x110] sm:$0xf]
  %v234 = vld [vmem:[%s1 + $0x114] sm:$0xf]
  %v235 = vld [vmem:[%s1 + $0x118] sm:$0xf]
  %v236 = vld [vmem:[%s1 + $0x11c] sm:$0xf]
  %v237 = vld [vmem:[%s2] sm:$0x1]
  %v239 = vlaneseq
  %v240 = vshrl.u32 %v239, 7
  %v241 = vsub.s32 0, %v240
  %v242 = vrot.slane %v237, %v241
  %v394 = vunpack.c.l.b16 %v15
  %v395 = vunpack.c.h.b16 %v15
  %v396 = vunpack.c.l.b16 %v16
  %v397 = vunpack.c.h.b16 %v16
  %v398 = vunpack.c.l.b16 %v17
  %v399 = vunpack.c.l.b16 %v18
  %v400 = vunpack.c.h.b16 %v18
  %v401 = vunpack.c.l.b16 %v19
  %v402 = vunpack.c.h.b16 %v19
  %v403 = vunpack.c.l.b16 %v20
  %v404 = vunpack.c.l.b16 %v21
  %v405 = vunpack.c.h.b16 %v21
  %v406 = vunpack.c.l.b16 %v22
  %v407 = vunpack.c.h.b16 %v22
  %v408 = vunpack.c.l.b16 %v23
  %v409 = vunpack.c.l.b16 %v24
  %v410 = vunpack.c.h.b16 %v24
  %v411 = vunpack.c.l.b16 %v25
  %v412 = vunpack.c.h.b16 %v25
  %v413 = vunpack.c.l.b16 %v26
  %v414 = vunpack.c.l.b16 %v27
  %v415 = vunpack.c.h.b16 %v27
  %v416 = vunpack.c.l.b16 %v28
  %v417 = vunpack.c.h.b16 %v28
  %v418 = vunpack.c.l.b16 %v29
  %v419 = vunpack.c.l.b16 %v30
  %v420 = vunpack.c.h.b16 %v30
  %v421 = vunpack.c.l.b16 %v31
  %v422 = vunpack.c.h.b16 %v31
  %v423 = vunpack.c.l.b16 %v32
  %v424 = vunpack.c.l.b16 %v33
  %v425 = vunpack.c.h.b16 %v33
  %v426 = vunpack.c.l.b16 %v34
  %v427 = vunpack.c.h.b16 %v34
  %v428 = vunpack.c.l.b16 %v35
  %v429 = vunpack.c.l.b16 %v36
  %v430 = vunpack.c.h.b16 %v36
  %v431 = vunpack.c.l.b16 %v37
  %v432 = vunpack.c.h.b16 %v37
  %v433 = vunpack.c.l.b16 %v38
  %v434 = vunpack.c.l.b16 %v39
  %v435 = vunpack.c.h.b16 %v39
  %v436 = vunpack.c.l.b16 %v40
  %v437 = vunpack.c.h.b16 %v40
  %v438 = vunpack.c.l.b16 %v41
  %v439 = vunpack.c.l.b16 %v42
  %v440 = vunpack.c.h.b16 %v42
  %v441 = vunpack.c.l.b16 %v43
  %v442 = vunpack.c.h.b16 %v43
  %v443 = vunpack.c.l.b16 %v44
  %v444 = vunpack.c.l.b16 %v45
  %v445 = vunpack.c.h.b16 %v45
  %v446 = vunpack.c.l.b16 %v46
  %v447 = vunpack.c.h.b16 %v46
  %v448 = vunpack.c.l.b16 %v47
  %v449 = vunpack.c.l.b16 %v48
  %v450 = vunpack.c.h.b16 %v48
  %v451 = vunpack.c.l.b16 %v49
  %v452 = vunpack.c.h.b16 %v49
  %v453 = vunpack.c.l.b16 %v50
  %v454 = vunpack.c.l.b16 %v51
  %v455 = vunpack.c.h.b16 %v51
  %v456 = vunpack.c.l.b16 %v52
  %v457 = vunpack.c.h.b16 %v52
  %v458 = vunpack.c.l.b16 %v53
  %v459 = vunpack.c.l.b16 %v54
  %v460 = vunpack.c.h.b16 %v54
  %v461 = vunpack.c.l.b16 %v55
  %v462 = vunpack.c.h.b16 %v55
  %v463 = vunpack.c.l.b16 %v56
  %v464 = vunpack.c.l.b16 %v57
  %v465 = vunpack.c.h.b16 %v57
  %v466 = vunpack.c.l.b16 %v58
  %v467 = vunpack.c.h.b16 %v58
  %v468 = vunpack.c.l.b16 %v59
  %v469 = vunpack.c.l.b16 %v60
  %v470 = vunpack.c.h.b16 %v60
  %v471 = vunpack.c.l.b16 %v61
  %v472 = vunpack.c.h.b16 %v61
  %v473 = vunpack.c.l.b16 %v62
  %v474 = vunpack.c.l.b16 %v63
  %v475 = vunpack.c.h.b16 %v63
  %v476 = vunpack.c.l.b16 %v64
  %v477 = vunpack.c.h.b16 %v64
  %v478 = vunpack.c.l.b16 %v65
  %v479 = vunpack.c.l.b16 %v66
  %v480 = vunpack.c.h.b16 %v66
  %v481 = vunpack.c.l.b16 %v67
  %v482 = vunpack.c.h.b16 %v67
  %v483 = vunpack.c.l.b16 %v68
  %v484 = vunpack.c.l.b16 %v69
  %v485 = vunpack.c.h.b16 %v69
  %v486 = vunpack.c.l.b16 %v70
  %v487 = vunpack.c.h.b16 %v70
  %v488 = vunpack.c.l.b16 %v71
  %v489 = vunpack.c.l.b16 %v72
  %v490 = vunpack.c.h.b16 %v72
  %v491 = vunpack.c.l.b16 %v73
  %v492 = vunpack.c.h.b16 %v73
  %v493 = vunpack.c.l.b16 %v74
  %v494 = vunpack.c.l.b16 %v75
  %v495 = vunpack.c.h.b16 %v75
  %v496 = vunpack.c.l.b16 %v76
  %v497 = vunpack.c.h.b16 %v76
  %v498 = vunpack.c.l.b16 %v77
  %v499 = vunpack.c.l.b16 %v78
  %v500 = vunpack.c.h.b16 %v78
  %v501 = vunpack.c.l.b16 %v79
  %v502 = vunpack.c.h.b16 %v79
  %v503 = vunpack.c.l.b16 %v80
  %v504 = vunpack.c.l.b16 %v81
  %v505 = vunpack.c.h.b16 %v81
  %v506 = vunpack.c.l.b16 %v82
  %v507 = vunpack.c.h.b16 %v82
  %v508 = vunpack.c.l.b16 %v83
  %v509 = vunpack.c.l.b16 %v84
  %v510 = vunpack.c.h.b16 %v84
  %v511 = vunpack.c.l.b16 %v85
  %v512 = vunpack.c.h.b16 %v85
  %v513 = vunpack.c.l.b16 %v86
  %v514 = vunpack.c.l.b16 %v87
  %v515 = vunpack.c.h.b16 %v87
  %v516 = vunpack.c.l.b16 %v88
  %v517 = vunpack.c.h.b16 %v88
  %v518 = vunpack.c.l.b16 %v89
  %v519 = vunpack.c.l.b16 %v90
  %v520 = vunpack.c.h.b16 %v90
  %v521 = vunpack.c.l.b16 %v91
  %v522 = vunpack.c.h.b16 %v91
  %v523 = vunpack.c.l.b16 %v92
  %v524 = vunpack.c.l.b16 %v93
  %v525 = vunpack.c.h.b16 %v93
  %v526 = vunpack.c.l.b16 %v94
  %v527 = vunpack.c.h.b16 %v94
  %v528 = vunpack.c.l.b16 %v95
  %v529 = vunpack.c.l.b16 %v96
  %v530 = vunpack.c.h.b16 %v96
  %v531 = vunpack.c.l.b16 %v97
  %v532 = vunpack.c.h.b16 %v97
  %v533 = vunpack.c.l.b16 %v98
  %v534 = vunpack.c.l.b16 %v99
  %v535 = vunpack.c.h.b16 %v99
  %v536 = vunpack.c.l.b16 %v100
  %v537 = vunpack.c.h.b16 %v100
  %v538 = vunpack.c.l.b16 %v101
  %v539 = vunpack.c.l.b16 %v102
  %v540 = vunpack.c.h.b16 %v102
  %v541 = vunpack.c.l.b16 %v103
  %v542 = vunpack.c.h.b16 %v103
  %v543 = vunpack.c.l.b16 %v104
  %v544 = vunpack.c.l.b16 %v105
  %v545 = vunpack.c.h.b16 %v105
  %v546 = vunpack.c.l.b16 %v106
  %v547 = vunpack.c.h.b16 %v106
  %v548 = vunpack.c.l.b16 %v107
  %v549 = vunpack.c.l.b16 %v108
  %v550 = vunpack.c.h.b16 %v108
  %v551 = vunpack.c.l.b16 %v109
  %v552 = vunpack.c.h.b16 %v109
  %v553 = vunpack.c.l.b16 %v110
  %v554 = vunpack.c.l.b16 %v111
  %v555 = vunpack.c.h.b16 %v111
  %v556 = vunpack.c.l.b16 %v112
  %v557 = vunpack.c.h.b16 %v112
  %v558 = vunpack.c.l.b16 %v113
  %v559 = vunpack.c.l.b16 %v114
  %v560 = vunpack.c.h.b16 %v114
  %v561 = vunpack.c.l.b16 %v115
  %v562 = vunpack.c.h.b16 %v115
  %v563 = vunpack.c.l.b16 %v116
  %v564 = vunpack.c.l.b16 %v117
  %v565 = vunpack.c.h.b16 %v117
  %v566 = vunpack.c.l.b16 %v118
  %v567 = vunpack.c.h.b16 %v118
  %v568 = vunpack.c.l.b16 %v119
  %v569 = vunpack.c.l.b16 %v120
  %v570 = vunpack.c.h.b16 %v120
  %v571 = vunpack.c.l.b16 %v121
  %v572 = vunpack.c.h.b16 %v121
  %v573 = vunpack.c.l.b16 %v122
  %v574 = vunpack.c.l.b16 %v123
  %v575 = vunpack.c.h.b16 %v123
  %v576 = vunpack.c.l.b16 %v124
  %v577 = vunpack.c.h.b16 %v124
  %v578 = vunpack.c.l.b16 %v125
  %v579 = vunpack.c.l.b16 %v126
  %v580 = vunpack.c.h.b16 %v126
  %v581 = vunpack.c.l.b16 %v127
  %v582 = vunpack.c.h.b16 %v127
  %v583 = vunpack.c.l.b16 %v128
  %v584 = vunpack.c.l.b16 %v129
  %v585 = vunpack.c.h.b16 %v129
  %v586 = vunpack.c.l.b16 %v130
  %v587 = vunpack.c.h.b16 %v130
  %v588 = vunpack.c.l.b16 %v131
  %v589 = vunpack.c.l.b16 %v132
  %v590 = vunpack.c.h.b16 %v132
  %v591 = vunpack.c.l.b16 %v133
  %v592 = vunpack.c.h.b16 %v133
  %v593 = vunpack.c.l.b16 %v134
  %v594 = vunpack.c.l.b16 %v135
  %v595 = vunpack.c.h.b16 %v135
  %v596 = vunpack.c.l.b16 %v136
  %v597 = vunpack.c.h.b16 %v136
  %v598 = vunpack.c.l.b16 %v137
  %v599 = vunpack.c.l.b16 %v138
  %v600 = vunpack.c.h.b16 %v138
  %v601 = vunpack.c.l.b16 %v139
  %v602 = vunpack.c.h.b16 %v139
  %v603 = vunpack.c.l.b16 %v140
  %v604 = vunpack.c.l.b16 %v141
  %v605 = vunpack.c.h.b16 %v141
  %v606 = vunpack.c.l.b16 %v142
  %v607 = vunpack.c.h.b16 %v142
  %v608 = vunpack.c.l.b16 %v143
  %v609 = vunpack.c.l.b16 %v144
  %v610 = vunpack.c.h.b16 %v144
  %v611 = vunpack.c.l.b16 %v145
  %v612 = vunpack.c.h.b16 %v145
  %v613 = vunpack.c.l.b16 %v146
  %v614 = vunpack.c.l.b16 %v147
  %v615 = vunpack.c.h.b16 %v147
  %v616 = vunpack.c.l.b16 %v148
  %v617 = vunpack.c.h.b16 %v148
  %v618 = vunpack.c.l.b16 %v149
  %v619 = vunpack.c.l.b16 %v150
  %v620 = vunpack.c.h.b16 %v150
  %v621 = vunpack.c.l.b16 %v151
  %v622 = vunpack.c.h.b16 %v151
  %v623 = vunpack.c.l.b16 %v152
  %v624 = vunpack.c.l.b16 %v153
  %v625 = vunpack.c.h.b16 %v153
  %v626 = vunpack.c.l.b16 %v154
  %v627 = vunpack.c.h.b16 %v154
  %v628 = vunpack.c.l.b16 %v155
  %v629 = vunpack.c.l.b16 %v156
  %v630 = vunpack.c.h.b16 %v156
  %v631 = vunpack.c.l.b16 %v157
  %v632 = vunpack.c.h.b16 %v157
  %v633 = vunpack.c.l.b16 %v158
  %v634 = vunpack.c.l.b16 %v159
  %v635 = vunpack.c.h.b16 %v159
  %v636 = vunpack.c.l.b16 %v160
  %v637 = vunpack.c.h.b16 %v160
  %v638 = vunpack.c.l.b16 %v161
  %v639 = vunpack.c.l.b16 %v162
  %v640 = vunpack.c.h.b16 %v162
  %v641 = vunpack.c.l.b16 %v163
  %v642 = vunpack.c.h.b16 %v163
  %v643 = vunpack.c.l.b16 %v164
  %v644 = vpack.c.b16 %v399, %v394
  %v645 = vpack.c.b16 %v400, %v395
  %v646 = vpack.c.b16 %v401, %v396
  %v647 = vpack.c.b16 %v402, %v397
  %v648 = vpack.c.b16 %v403, %v398
  %v649 = vpack.c.b16 %v409, %v404
  %v650 = vpack.c.b16 %v410, %v405
  %v651 = vpack.c.b16 %v411, %v406
  %v652 = vpack.c.b16 %v412, %v407
  %v653 = vpack.c.b16 %v413, %v408
  %v654 = vpack.c.b16 %v419, %v414
  %v655 = vpack.c.b16 %v420, %v415
  %v656 = vpack.c.b16 %v421, %v416
  %v657 = vpack.c.b16 %v422, %v417
  %v658 = vpack.c.b16 %v423, %v418
  %v659 = vpack.c.b16 %v429, %v424
  %v660 = vpack.c.b16 %v430, %v425
  %v661 = vpack.c.b16 %v431, %v426
  %v662 = vpack.c.b16 %v432, %v427
  %v663 = vpack.c.b16 %v433, %v428
  %v664 = vpack.c.b16 %v439, %v434
  %v665 = vpack.c.b16 %v440, %v435
  %v666 = vpack.c.b16 %v441, %v436
  %v667 = vpack.c.b16 %v442, %v437
  %v668 = vpack.c.b16 %v443, %v438
  %v669 = vpack.c.b16 %v449, %v444
  %v670 = vpack.c.b16 %v450, %v445
  %v671 = vpack.c.b16 %v451, %v446
  %v672 = vpack.c.b16 %v452, %v447
  %v673 = vpack.c.b16 %v453, %v448
  %v674 = vpack.c.b16 %v459, %v454
  %v675 = vpack.c.b16 %v460, %v455
  %v676 = vpack.c.b16 %v461, %v456
  %v677 = vpack.c.b16 %v462, %v457
  %v678 = vpack.c.b16 %v463, %v458
  %v679 = vpack.c.b16 %v469, %v464
  %v680 = vpack.c.b16 %v470, %v465
  %v681 = vpack.c.b16 %v471, %v466
  %v682 = vpack.c.b16 %v472, %v467
  %v683 = vpack.c.b16 %v473, %v468
  %v684 = vpack.c.b16 %v479, %v474
  %v685 = vpack.c.b16 %v480, %v475
  %v686 = vpack.c.b16 %v481, %v476
  %v687 = vpack.c.b16 %v482, %v477
  %v688 = vpack.c.b16 %v483, %v478
  %v689 = vpack.c.b16 %v489, %v484
  %v690 = vpack.c.b16 %v490, %v485
  %v691 = vpack.c.b16 %v491, %v486
  %v692 = vpack.c.b16 %v492, %v487
  %v693 = vpack.c.b16 %v493, %v488
  %v694 = vpack.c.b16 %v499, %v494
  %v695 = vpack.c.b16 %v500, %v495
  %v696 = vpack.c.b16 %v501, %v496
  %v697 = vpack.c.b16 %v502, %v497
  %v698 = vpack.c.b16 %v503, %v498
  %v699 = vpack.c.b16 %v509, %v504
  %v700 = vpack.c.b16 %v510, %v505
  %v701 = vpack.c.b16 %v511, %v506
  %v702 = vpack.c.b16 %v512, %v507
  %v703 = vpack.c.b16 %v513, %v508
  %v704 = vpack.c.b16 %v519, %v514
  %v705 = vpack.c.b16 %v520, %v515
  %v706 = vpack.c.b16 %v521, %v516
  %v707 = vpack.c.b16 %v522, %v517
  %v708 = vpack.c.b16 %v523, %v518
  %v709 = vpack.c.b16 %v529, %v524
  %v710 = vpack.c.b16 %v530, %v525
  %v711 = vpack.c.b16 %v531, %v526
  %v712 = vpack.c.b16 %v532, %v527
  %v713 = vpack.c.b16 %v533, %v528
  %v714 = vpack.c.b16 %v539, %v534
  %v715 = vpack.c.b16 %v540, %v535
  %v716 = vpack.c.b16 %v541, %v536
  %v717 = vpack.c.b16 %v542, %v537
  %v718 = vpack.c.b16 %v543, %v538
  %v719 = vpack.c.b16 %v549, %v544
  %v720 = vpack.c.b16 %v550, %v545
  %v721 = vpack.c.b16 %v551, %v546
  %v722 = vpack.c.b16 %v552, %v547
  %v723 = vpack.c.b16 %v553, %v548
  %v724 = vpack.c.b16 %v559, %v554
  %v725 = vpack.c.b16 %v560, %v555
  %v726 = vpack.c.b16 %v561, %v556
  %v727 = vpack.c.b16 %v562, %v557
  %v728 = vpack.c.b16 %v563, %v558
  %v729 = vpack.c.b16 %v569, %v564
  %v730 = vpack.c.b16 %v570, %v565
  %v731 = vpack.c.b16 %v571, %v566
  %v732 = vpack.c.b16 %v572, %v567
  %v733 = vpack.c.b16 %v573, %v568
  %v734 = vpack.c.b16 %v579, %v574
  %v735 = vpack.c.b16 %v580, %v575
  %v736 = vpack.c.b16 %v581, %v576
  %v737 = vpack.c.b16 %v582, %v577
  %v738 = vpack.c.b16 %v583, %v578
  %v739 = vpack.c.b16 %v589, %v584
  %v740 = vpack.c.b16 %v590, %v585
  %v741 = vpack.c.b16 %v591, %v586
  %v742 = vpack.c.b16 %v592, %v587
  %v743 = vpack.c.b16 %v593, %v588
  %v744 = vpack.c.b16 %v599, %v594
  %v745 = vpack.c.b16 %v600, %v595
  %v746 = vpack.c.b16 %v601, %v596
  %v747 = vpack.c.b16 %v602, %v597
  %v748 = vpack.c.b16 %v603, %v598
  %v749 = vpack.c.b16 %v609, %v604
  %v750 = vpack.c.b16 %v610, %v605
  %v751 = vpack.c.b16 %v611, %v606
  %v752 = vpack.c.b16 %v612, %v607
  %v753 = vpack.c.b16 %v613, %v608
  %v754 = vpack.c.b16 %v619, %v614
  %v755 = vpack.c.b16 %v620, %v615
  %v756 = vpack.c.b16 %v621, %v616
  %v757 = vpack.c.b16 %v622, %v617
  %v758 = vpack.c.b16 %v623, %v618
  %v759 = vpack.c.b16 %v629, %v624
  %v760 = vpack.c.b16 %v630, %v625
  %v761 = vpack.c.b16 %v631, %v626
  %v762 = vpack.c.b16 %v632, %v627
  %v763 = vpack.c.b16 %v633, %v628
  %v764 = vpack.c.b16 %v639, %v634
  %v765 = vpack.c.b16 %v640, %v635
  %v766 = vpack.c.b16 %v641, %v636
  %v767 = vpack.c.b16 %v642, %v637
  %v768 = vpack.c.b16 %v643, %v638
  %v941 = vunpack.c.l.b16 %v165
  %v942 = vunpack.c.l.b16 %v166
  %v943 = vunpack.c.l.b16 %v167
  %v944 = vunpack.c.l.b16 %v168
  %v945 = vunpack.c.l.b16 %v169
  %v946 = vunpack.c.l.b16 %v170
  %v947 = vunpack.c.l.b16 %v171
  %v948 = vunpack.c.l.b16 %v172
  %v949 = vunpack.c.l.b16 %v173
  %v950 = vunpack.c.l.b16 %v174
  %v951 = vunpack.c.l.b16 %v175
  %v952 = vunpack.c.l.b16 %v176
  %v953 = vunpack.c.l.b16 %v177
  %v954 = vunpack.c.l.b16 %v178
  %v955 = vunpack.c.l.b16 %v179
  %v956 = vunpack.c.l.b16 %v180
  %v957 = vunpack.c.l.b16 %v181
  %v958 = vunpack.c.l.b16 %v182
  %v959 = vunpack.c.l.b16 %v183
  %v960 = vunpack.c.l.b16 %v184
  %v961 = vunpack.c.l.b16 %v185
  %v962 = vunpack.c.l.b16 %v186
  %v963 = vunpack.c.l.b16 %v187
  %v964 = vunpack.c.l.b16 %v188
  %v965 = vunpack.c.l.b16 %v189
  %v966 = vunpack.c.l.b16 %v190
  %v967 = vunpack.c.l.b16 %v191
  %v968 = vunpack.c.l.b16 %v192
  %v969 = vunpack.c.l.b16 %v193
  %v970 = vunpack.c.l.b16 %v194
  %v971 = vunpack.c.l.b16 %v195
  %v972 = vunpack.c.l.b16 %v196
  %v973 = vunpack.c.l.b16 %v197
  %v974 = vunpack.c.l.b16 %v198
  %v975 = vunpack.c.l.b16 %v199
  %v976 = vunpack.c.l.b16 %v200
  %v977 = vunpack.c.l.b16 %v201
  %v978 = vunpack.c.l.b16 %v202
  %v979 = vunpack.c.l.b16 %v203
  %v980 = vunpack.c.l.b16 %v204
  %v981 = vunpack.c.l.b16 %v205
  %v982 = vunpack.c.l.b16 %v206
  %v983 = vunpack.c.l.b16 %v207
  %v984 = vunpack.c.l.b16 %v208
  %v985 = vunpack.c.l.b16 %v209
  %v986 = vunpack.c.l.b16 %v210
  %v987 = vunpack.c.l.b16 %v211
  %v988 = vunpack.c.l.b16 %v212
  %v989 = vunpack.c.l.b16 %v213
  %v990 = vunpack.c.l.b16 %v214
  %v991 = vunpack.c.l.b16 %v215
  %v992 = vunpack.c.l.b16 %v216
  %v993 = vunpack.c.l.b16 %v217
  %v994 = vunpack.c.l.b16 %v218
  %v995 = vunpack.c.l.b16 %v219
  %v996 = vunpack.c.l.b16 %v220
  %v997 = vunpack.c.l.b16 %v221
  %v998 = vunpack.c.l.b16 %v222
  %v999 = vunpack.c.l.b16 %v223
  %v1000 = vunpack.c.l.b16 %v224
  %v1001 = vunpack.c.l.b16 %v225
  %v1002 = vunpack.c.l.b16 %v226
  %v1003 = vunpack.c.l.b16 %v227
  %v1004 = vunpack.c.l.b16 %v228
  %v1005 = vunpack.c.l.b16 %v229
  %v1006 = vunpack.c.l.b16 %v230
  %v1007 = vunpack.c.l.b16 %v231
  %v1008 = vunpack.c.l.b16 %v232
  %v1009 = vunpack.c.l.b16 %v233
  %v1010 = vunpack.c.l.b16 %v234
  %v1011 = vunpack.c.l.b16 %v235
  %v1012 = vunpack.c.l.b16 %v236
  %v1013 = vpack.c.b16 %v942, %v941
  %v1014 = vpack.c.b16 %v944, %v943
  %v1015 = vpack.c.b16 %v946, %v945
  %v1016 = vpack.c.b16 %v948, %v947
  %v1017 = vpack.c.b16 %v950, %v949
  %v1018 = vpack.c.b16 %v952, %v951
  %v1019 = vpack.c.b16 %v954, %v953
  %v1020 = vpack.c.b16 %v956, %v955
  %v1021 = vpack.c.b16 %v958, %v957
  %v1022 = vpack.c.b16 %v960, %v959
  %v1023 = vpack.c.b16 %v962, %v961
  %v1024 = vpack.c.b16 %v964, %v963
  %v1025 = vpack.c.b16 %v966, %v965
  %v1026 = vpack.c.b16 %v968, %v967
  %v1027 = vpack.c.b16 %v970, %v969
  %v1028 = vpack.c.b16 %v972, %v971
  %v1029 = vpack.c.b16 %v974, %v973
  %v1030 = vpack.c.b16 %v976, %v975
  %v1031 = vpack.c.b16 %v978, %v977
  %v1032 = vpack.c.b16 %v980, %v979
  %v1033 = vpack.c.b16 %v982, %v981
  %v1034 = vpack.c.b16 %v984, %v983
  %v1035 = vpack.c.b16 %v986, %v985
  %v1036 = vpack.c.b16 %v988, %v987
  %v1037 = vpack.c.b16 %v990, %v989
  %v1038 = vpack.c.b16 %v992, %v991
  %v1039 = vpack.c.b16 %v994, %v993
  %v1040 = vpack.c.b16 %v996, %v995
  %v1041 = vpack.c.b16 %v998, %v997
  %v1042 = vpack.c.b16 %v1000, %v999
  %v1043 = vpack.c.b16 %v1002, %v1001
  %v1044 = vpack.c.b16 %v1004, %v1003
  %v1045 = vpack.c.b16 %v1006, %v1005
  %v1046 = vpack.c.b16 %v1008, %v1007
  %v1047 = vpack.c.b16 %v1010, %v1009
  %v1048 = vpack.c.b16 %v1012, %v1011
  %vm1085 = vcmask 523264
  %v1087 = vsel %vm1085, %v648, 0
  %v1090 = vsel %vm1085, %v653, 0
  %v1093 = vsel %vm1085, %v658, 0
  %v1096 = vsel %vm1085, %v663, 0
  %v1099 = vsel %vm1085, %v668, 0
  %v1102 = vsel %vm1085, %v673, 0
  %v1105 = vsel %vm1085, %v678, 0
  %v1108 = vsel %vm1085, %v683, 0
  %v1111 = vsel %vm1085, %v688, 0
  %v1114 = vsel %vm1085, %v693, 0
  %v1117 = vsel %vm1085, %v698, 0
  %v1120 = vsel %vm1085, %v703, 0
  %v1123 = vsel %vm1085, %v708, 0
  %v1126 = vsel %vm1085, %v713, 0
  %v1129 = vsel %vm1085, %v718, 0
  %v1132 = vsel %vm1085, %v723, 0
  %v1135 = vsel %vm1085, %v728, 0
  %v1138 = vsel %vm1085, %v733, 0
  %v1141 = vsel %vm1085, %v738, 0
  %v1144 = vsel %vm1085, %v743, 0
  %v1147 = vsel %vm1085, %v748, 0
  %v1150 = vsel %vm1085, %v753, 0
  %v1153 = vsel %vm1085, %v758, 0
  %v1156 = vsel %vm1085, %v763, 0
  %v1159 = vsel %vm1085, %v768, 0
  %1161 = vmatprep.subr.bf16.mxu0 0
  %1162 = vmatpush1.bf16.msra.mxu0 %v1020
  %1163 = vmatprep.subr.bf16.mxu0 0
  %1164 = vmatpush1.bf16.msra.mxu0 %v1019
  %1165 = vmatprep.subr.bf16.mxu0 0
  %1166 = vmatpush1.bf16.msra.mxu0 %v1018
  %1167 = vmatprep.subr.bf16.mxu0 0
  %1168 = vmatpush1.bf16.msra.mxu0 %v1017
  %1169 = vmatprep.subr.bf16.mxu0 0
  %1170 = vmatpush1.bf16.msra.mxu0 %v1016
  %1171 = vmatprep.subr.bf16.mxu0 0
  %1172 = vmatpush1.bf16.msra.mxu0 %v1015
  %1173 = vmatprep.subr.bf16.mxu0 0
  %1174 = vmatpush1.bf16.msra.mxu0 %v1014
  %1175 = vmatprep.subr.bf16.mxu0 0
  %1176 = vmatpush1.bf16.msra.mxu0 %v1013
  %1177 = vmatprep.subr.bf16.mxu0 0
  %1178 = vmatpush2.bf16.msra.mxu0 %v1028
  %1179 = vmatprep.subr.bf16.mxu0 0
  %1180 = vmatpush2.bf16.msra.mxu0 %v1027
  %1181 = vmatprep.subr.bf16.mxu0 0
  %1182 = vmatpush2.bf16.msra.mxu0 %v1026
  %1183 = vmatprep.subr.bf16.mxu0 0
  %1184 = vmatpush2.bf16.msra.mxu0 %v1025
  %1185 = vmatprep.subr.bf16.mxu0 0
  %1186 = vmatpush2.bf16.msra.mxu0 %v1024
  %1187 = vmatprep.subr.bf16.mxu0 0
  %1188 = vmatpush2.bf16.msra.mxu0 %v1023
  %1189 = vmatprep.subr.bf16.mxu0 0
  %1190 = vmatpush2.bf16.msra.mxu0 %v1022
  %1191 = vmatprep.subr.bf16.mxu0 0
  %1192 = vmatpush2.bf16.msra.mxu0 %v1021
  %1193 = vmatprep.mubr.bf16.mxu0 %v645
  %1194 = vmatmul.mubr.bf16.gmra.mxu0 %v644
  %v1195 = vpop.f32.mrf.mxu0
  %v1196 = vadd.f32 %v242, %v1195
  %v1197 = vpop.f32.mrf.mxu0
  %v1198 = vpop.f32.mrf.mxu0
  %v1199 = vadd.f32 %v242, %v1198
  %v1200 = vpop.f32.mrf.mxu0
  %1201 = vmatprep.mubr.bf16.mxu0 %v650
  %1202 = vmatmul.mubr.bf16.gmra.mxu0 %v649
  %v1203 = vpop.f32.mrf.mxu0
  %v1204 = vadd.f32 %v242, %v1203
  %v1205 = vpop.f32.mrf.mxu0
  %v1206 = vpop.f32.mrf.mxu0
  %v1207 = vadd.f32 %v242, %v1206
  %v1208 = vpop.f32.mrf.mxu0
  %1209 = vmatprep.mubr.bf16.mxu0 %v655
  %1210 = vmatmul.mubr.bf16.gmra.mxu0 %v654
  %v1211 = vpop.f32.mrf.mxu0
  %v1212 = vadd.f32 %v242, %v1211
  %v1213 = vpop.f32.mrf.mxu0
  %v1214 = vpop.f32.mrf.mxu0
  %v1215 = vadd.f32 %v242, %v1214
  %v1216 = vpop.f32.mrf.mxu0
  %1217 = vmatprep.mubr.bf16.mxu0 %v660
  %1218 = vmatmul.mubr.bf16.gmra.mxu0 %v659
  %v1219 = vpop.f32.mrf.mxu0
  %v1220 = vadd.f32 %v242, %v1219
  %v1221 = vpop.f32.mrf.mxu0
  %v1222 = vpop.f32.mrf.mxu0
  %v1223 = vadd.f32 %v242, %v1222
  %v1224 = vpop.f32.mrf.mxu0
  %1225 = vmatprep.mubr.bf16.mxu0 %v665
  %1226 = vmatmul.mubr.bf16.gmra.mxu0 %v664
  %v1227 = vpop.f32.mrf.mxu0
  %v1228 = vadd.f32 %v242, %v1227
  %v1229 = vpop.f32.mrf.mxu0
  %v1230 = vpop.f32.mrf.mxu0
  %v1231 = vadd.f32 %v242, %v1230
  %v1232 = vpop.f32.mrf.mxu0
  %1233 = vmatprep.mubr.bf16.mxu0 %v670
  %1234 = vmatmul.mubr.bf16.gmra.mxu0 %v669
  %v1235 = vpop.f32.mrf.mxu0
  %v1236 = vadd.f32 %v242, %v1235
  %v1237 = vpop.f32.mrf.mxu0
  %v1238 = vpop.f32.mrf.mxu0
  %v1239 = vadd.f32 %v242, %v1238
  %v1240 = vpop.f32.mrf.mxu0
  %1241 = vmatprep.mubr.bf16.mxu0 %v675
  %1242 = vmatmul.mubr.bf16.gmra.mxu0 %v674
  %v1243 = vpop.f32.mrf.mxu0
  %v1244 = vadd.f32 %v242, %v1243
  %v1245 = vpop.f32.mrf.mxu0
  %v1246 = vpop.f32.mrf.mxu0
  %v1247 = vadd.f32 %v242, %v1246
  %v1248 = vpop.f32.mrf.mxu0
  %1249 = vmatprep.mubr.bf16.mxu0 %v680
  %1250 = vmatmul.mubr.bf16.gmra.mxu0 %v679
  %v1251 = vpop.f32.mrf.mxu0
  %v1252 = vadd.f32 %v242, %v1251
  %v1253 = vpop.f32.mrf.mxu0
  %v1254 = vpop.f32.mrf.mxu0
  %v1255 = vadd.f32 %v242, %v1254
  %v1256 = vpop.f32.mrf.mxu0
  %1257 = vmatprep.mubr.bf16.mxu0 %v685
  %1258 = vmatmul.mubr.bf16.gmra.mxu0 %v684
  %v1259 = vpop.f32.mrf.mxu0
  %v1260 = vadd.f32 %v242, %v1259
  %v1261 = vpop.f32.mrf.mxu0
  %v1262 = vpop.f32.mrf.mxu0
  %v1263 = vadd.f32 %v242, %v1262
  %v1264 = vpop.f32.mrf.mxu0
  %1265 = vmatprep.mubr.bf16.mxu0 %v690
  %1266 = vmatmul.mubr.bf16.gmra.mxu0 %v689
  %v1267 = vpop.f32.mrf.mxu0
  %v1268 = vadd.f32 %v242, %v1267
  %v1269 = vpop.f32.mrf.mxu0
  %v1270 = vpop.f32.mrf.mxu0
  %v1271 = vadd.f32 %v242, %v1270
  %v1272 = vpop.f32.mrf.mxu0
  %1273 = vmatprep.mubr.bf16.mxu0 %v695
  %1274 = vmatmul.mubr.bf16.gmra.mxu0 %v694
  %v1275 = vpop.f32.mrf.mxu0
  %v1276 = vadd.f32 %v242, %v1275
  %v1277 = vpop.f32.mrf.mxu0
  %v1278 = vpop.f32.mrf.mxu0
  %v1279 = vadd.f32 %v242, %v1278
  %v1280 = vpop.f32.mrf.mxu0
  %1281 = vmatprep.mubr.bf16.mxu0 %v700
  %1282 = vmatmul.mubr.bf16.gmra.mxu0 %v699
  %v1283 = vpop.f32.mrf.mxu0
  %v1284 = vadd.f32 %v242, %v1283
  %v1285 = vpop.f32.mrf.mxu0
  %v1286 = vpop.f32.mrf.mxu0
  %v1287 = vadd.f32 %v242, %v1286
  %v1288 = vpop.f32.mrf.mxu0
  %1289 = vmatprep.mubr.bf16.mxu0 %v705
  %1290 = vmatmul.mubr.bf16.gmra.mxu0 %v704
  %v1291 = vpop.f32.mrf.mxu0
  %v1292 = vadd.f32 %v242, %v1291
  %v1293 = vpop.f32.mrf.mxu0
  %v1294 = vpop.f32.mrf.mxu0
  %v1295 = vadd.f32 %v242, %v1294
  %v1296 = vpop.f32.mrf.mxu0
  %1297 = vmatprep.mubr.bf16.mxu0 %v710
  %1298 = vmatmul.mubr.bf16.gmra.mxu0 %v709
  %v1299 = vpop.f32.mrf.mxu0
  %v1300 = vadd.f32 %v242, %v1299
  %v1301 = vpop.f32.mrf.mxu0
  %v1302 = vpop.f32.mrf.mxu0
  %v1303 = vadd.f32 %v242, %v1302
  %v1304 = vpop.f32.mrf.mxu0
  %1305 = vmatprep.mubr.bf16.mxu0 %v715
  %1306 = vmatmul.mubr.bf16.gmra.mxu0 %v714
  %v1307 = vpop.f32.mrf.mxu0
  %v1308 = vadd.f32 %v242, %v1307
  %v1309 = vpop.f32.mrf.mxu0
  %v1310 = vpop.f32.mrf.mxu0
  %v1311 = vadd.f32 %v242, %v1310
  %v1312 = vpop.f32.mrf.mxu0
  %1313 = vmatprep.mubr.bf16.mxu0 %v720
  %1314 = vmatmul.mubr.bf16.gmra.mxu0 %v719
  %v1315 = vpop.f32.mrf.mxu0
  %v1316 = vadd.f32 %v242, %v1315
  %v1317 = vpop.f32.mrf.mxu0
  %v1318 = vpop.f32.mrf.mxu0
  %v1319 = vadd.f32 %v242, %v1318
  %v1320 = vpop.f32.mrf.mxu0
  %1321 = vmatprep.mubr.bf16.mxu0 %v725
  %1322 = vmatmul.mubr.bf16.gmra.mxu0 %v724
  %v1323 = vpop.f32.mrf.mxu0
  %v1324 = vadd.f32 %v242, %v1323
  %v1325 = vpop.f32.mrf.mxu0
  %v1326 = vpop.f32.mrf.mxu0
  %v1327 = vadd.f32 %v242, %v1326
  %v1328 = vpop.f32.mrf.mxu0
  %1329 = vmatprep.mubr.bf16.mxu0 %v730
  %1330 = vmatmul.mubr.bf16.gmra.mxu0 %v729
  %v1331 = vpop.f32.mrf.mxu0
  %v1332 = vadd.f32 %v242, %v1331
  %v1333 = vpop.f32.mrf.mxu0
  %v1334 = vpop.f32.mrf.mxu0
  %v1335 = vadd.f32 %v242, %v1334
  %v1336 = vpop.f32.mrf.mxu0
  %1337 = vmatprep.mubr.bf16.mxu0 %v735
  %1338 = vmatmul.mubr.bf16.gmra.mxu0 %v734
  %v1339 = vpop.f32.mrf.mxu0
  %v1340 = vadd.f32 %v242, %v1339
  %v1341 = vpop.f32.mrf.mxu0
  %v1342 = vpop.f32.mrf.mxu0
  %v1343 = vadd.f32 %v242, %v1342
  %v1344 = vpop.f32.mrf.mxu0
  %1345 = vmatprep.mubr.bf16.mxu0 %v740
  %1346 = vmatmul.mubr.bf16.gmra.mxu0 %v739
  %v1347 = vpop.f32.mrf.mxu0
  %v1348 = vadd.f32 %v242, %v1347
  %v1349 = vpop.f32.mrf.mxu0
  %v1350 = vpop.f32.mrf.mxu0
  %v1351 = vadd.f32 %v242, %v1350
  %v1352 = vpop.f32.mrf.mxu0
  %1353 = vmatprep.mubr.bf16.mxu0 %v745
  %1354 = vmatmul.mubr.bf16.gmra.mxu0 %v744
  %v1355 = vpop.f32.mrf.mxu0
  %v1356 = vadd.f32 %v242, %v1355
  %v1357 = vpop.f32.mrf.mxu0
  %v1358 = vpop.f32.mrf.mxu0
  %v1359 = vadd.f32 %v242, %v1358
  %v1360 = vpop.f32.mrf.mxu0
  %1361 = vmatprep.mubr.bf16.mxu0 %v750
  %1362 = vmatmul.mubr.bf16.gmra.mxu0 %v749
  %v1363 = vpop.f32.mrf.mxu0
  %v1364 = vadd.f32 %v242, %v1363
  %v1365 = vpop.f32.mrf.mxu0
  %v1366 = vpop.f32.mrf.mxu0
  %v1367 = vadd.f32 %v242, %v1366
  %v1368 = vpop.f32.mrf.mxu0
  %1369 = vmatprep.mubr.bf16.mxu0 %v755
  %1370 = vmatmul.mubr.bf16.gmra.mxu0 %v754
  %v1371 = vpop.f32.mrf.mxu0
  %v1372 = vadd.f32 %v242, %v1371
  %v1373 = vpop.f32.mrf.mxu0
  %v1374 = vpop.f32.mrf.mxu0
  %v1375 = vadd.f32 %v242, %v1374
  %v1376 = vpop.f32.mrf.mxu0
  %1377 = vmatprep.mubr.bf16.mxu0 %v760
  %1378 = vmatmul.mubr.bf16.gmra.mxu0 %v759
  %v1379 = vpop.f32.mrf.mxu0
  %v1380 = vadd.f32 %v242, %v1379
  %v1381 = vpop.f32.mrf.mxu0
  %v1382 = vpop.f32.mrf.mxu0
  %v1383 = vadd.f32 %v242, %v1382
  %v1384 = vpop.f32.mrf.mxu0
  %1385 = vmatprep.mubr.bf16.mxu0 %v765
  %1386 = vmatmul.mubr.bf16.gmra.mxu0 %v764
  %v1387 = vpop.f32.mrf.mxu0
  %v1388 = vadd.f32 %v242, %v1387
  %v1389 = vpop.f32.mrf.mxu0
  %v1390 = vpop.f32.mrf.mxu0
  %v1391 = vadd.f32 %v242, %v1390
  %v1392 = vpop.f32.mrf.mxu0
  %1393 = vdwg.mxu0
  %1394 = vmatprep.subr.bf16.mxu0 0
  %1395 = vmatpush1.bf16.msra.mxu0 %v1036
  %1396 = vmatprep.subr.bf16.mxu0 0
  %1397 = vmatpush1.bf16.msra.mxu0 %v1035
  %1398 = vmatprep.subr.bf16.mxu0 0
  %1399 = vmatpush1.bf16.msra.mxu0 %v1034
  %1400 = vmatprep.subr.bf16.mxu0 0
  %1401 = vmatpush1.bf16.msra.mxu0 %v1033
  %1402 = vmatprep.subr.bf16.mxu0 0
  %1403 = vmatpush1.bf16.msra.mxu0 %v1032
  %1404 = vmatprep.subr.bf16.mxu0 0
  %1405 = vmatpush1.bf16.msra.mxu0 %v1031
  %1406 = vmatprep.subr.bf16.mxu0 0
  %1407 = vmatpush1.bf16.msra.mxu0 %v1030
  %1408 = vmatprep.subr.bf16.mxu0 0
  %1409 = vmatpush1.bf16.msra.mxu0 %v1029
  %1410 = vmatprep.subr.bf16.mxu0 0
  %1411 = vmatpush2.bf16.msra.mxu0 %v1044
  %1412 = vmatprep.subr.bf16.mxu0 0
  %1413 = vmatpush2.bf16.msra.mxu0 %v1043
  %1414 = vmatprep.subr.bf16.mxu0 0
  %1415 = vmatpush2.bf16.msra.mxu0 %v1042
  %1416 = vmatprep.subr.bf16.mxu0 0
  %1417 = vmatpush2.bf16.msra.mxu0 %v1041
  %1418 = vmatprep.subr.bf16.mxu0 0
  %1419 = vmatpush2.bf16.msra.mxu0 %v1040
  %1420 = vmatprep.subr.bf16.mxu0 0
  %1421 = vmatpush2.bf16.msra.mxu0 %v1039
  %1422 = vmatprep.subr.bf16.mxu0 0
  %1423 = vmatpush2.bf16.msra.mxu0 %v1038
  %1424 = vmatprep.subr.bf16.mxu0 0
  %1425 = vmatpush2.bf16.msra.mxu0 %v1037
  %1426 = vmatprep.mubr.bf16.mxu0 %v647
  %1427 = vmatmul.mubr.bf16.gmra.mxu0 %v646
  %v1428 = vpop.f32.mrf.mxu0
  %v1429 = vadd.f32 %v1196, %v1428
  %v1430 = vpop.f32.mrf.mxu0
  %v1431 = vpop.f32.mrf.mxu0
  %v1432 = vadd.f32 %v1199, %v1431
  %v1433 = vpop.f32.mrf.mxu0
  %1434 = vmatprep.mubr.bf16.mxu0 %v652
  %1435 = vmatmul.mubr.bf16.gmra.mxu0 %v651
  %v1436 = vpop.f32.mrf.mxu0
  %v1437 = vadd.f32 %v1204, %v1436
  %v1438 = vpop.f32.mrf.mxu0
  %v1439 = vpop.f32.mrf.mxu0
  %v1440 = vadd.f32 %v1207, %v1439
  %v1441 = vpop.f32.mrf.mxu0
  %1442 = vmatprep.mubr.bf16.mxu0 %v657
  %1443 = vmatmul.mubr.bf16.gmra.mxu0 %v656
  %v1444 = vpop.f32.mrf.mxu0
  %v1445 = vadd.f32 %v1212, %v1444
  %v1446 = vpop.f32.mrf.mxu0
  %v1447 = vpop.f32.mrf.mxu0
  %v1448 = vadd.f32 %v1215, %v1447
  %v1449 = vpop.f32.mrf.mxu0
  %1450 = vmatprep.mubr.bf16.mxu0 %v662
  %1451 = vmatmul.mubr.bf16.gmra.mxu0 %v661
  %v1452 = vpop.f32.mrf.mxu0
  %v1453 = vadd.f32 %v1220, %v1452
  %v1454 = vpop.f32.mrf.mxu0
  %v1455 = vpop.f32.mrf.mxu0
  %v1456 = vadd.f32 %v1223, %v1455
  %v1457 = vpop.f32.mrf.mxu0
  %1458 = vmatprep.mubr.bf16.mxu0 %v667
  %1459 = vmatmul.mubr.bf16.gmra.mxu0 %v666
  %v1460 = vpop.f32.mrf.mxu0
  %v1461 = vadd.f32 %v1228, %v1460
  %v1462 = vpop.f32.mrf.mxu0
  %v1463 = vpop.f32.mrf.mxu0
  %v1464 = vadd.f32 %v1231, %v1463
  %v1465 = vpop.f32.mrf.mxu0
  %1466 = vmatprep.mubr.bf16.mxu0 %v672
  %1467 = vmatmul.mubr.bf16.gmra.mxu0 %v671
  %v1468 = vpop.f32.mrf.mxu0
  %v1469 = vadd.f32 %v1236, %v1468
  %v1470 = vpop.f32.mrf.mxu0
  %v1471 = vpop.f32.mrf.mxu0
  %v1472 = vadd.f32 %v1239, %v1471
  %v1473 = vpop.f32.mrf.mxu0
  %1474 = vmatprep.mubr.bf16.mxu0 %v677
  %1475 = vmatmul.mubr.bf16.gmra.mxu0 %v676
  %v1476 = vpop.f32.mrf.mxu0
  %v1477 = vadd.f32 %v1244, %v1476
  %v1478 = vpop.f32.mrf.mxu0
  %v1479 = vpop.f32.mrf.mxu0
  %v1480 = vadd.f32 %v1247, %v1479
  %v1481 = vpop.f32.mrf.mxu0
  %1482 = vmatprep.mubr.bf16.mxu0 %v682
  %1483 = vmatmul.mubr.bf16.gmra.mxu0 %v681
  %v1484 = vpop.f32.mrf.mxu0
  %v1485 = vadd.f32 %v1252, %v1484
  %v1486 = vpop.f32.mrf.mxu0
  %v1487 = vpop.f32.mrf.mxu0
  %v1488 = vadd.f32 %v1255, %v1487
  %v1489 = vpop.f32.mrf.mxu0
  %1490 = vmatprep.mubr.bf16.mxu0 %v687
  %1491 = vmatmul.mubr.bf16.gmra.mxu0 %v686
  %v1492 = vpop.f32.mrf.mxu0
  %v1493 = vadd.f32 %v1260, %v1492
  %v1494 = vpop.f32.mrf.mxu0
  %v1495 = vpop.f32.mrf.mxu0
  %v1496 = vadd.f32 %v1263, %v1495
  %v1497 = vpop.f32.mrf.mxu0
  %1498 = vmatprep.mubr.bf16.mxu0 %v692
  %1499 = vmatmul.mubr.bf16.gmra.mxu0 %v691
  %v1500 = vpop.f32.mrf.mxu0
  %v1501 = vadd.f32 %v1268, %v1500
  %v1502 = vpop.f32.mrf.mxu0
  %v1503 = vpop.f32.mrf.mxu0
  %v1504 = vadd.f32 %v1271, %v1503
  %v1505 = vpop.f32.mrf.mxu0
  %1506 = vmatprep.mubr.bf16.mxu0 %v697
  %1507 = vmatmul.mubr.bf16.gmra.mxu0 %v696
  %v1508 = vpop.f32.mrf.mxu0
  %v1509 = vadd.f32 %v1276, %v1508
  %v1510 = vpop.f32.mrf.mxu0
  %v1511 = vpop.f32.mrf.mxu0
  %v1512 = vadd.f32 %v1279, %v1511
  %v1513 = vpop.f32.mrf.mxu0
  %1514 = vmatprep.mubr.bf16.mxu0 %v702
  %1515 = vmatmul.mubr.bf16.gmra.mxu0 %v701
  %v1516 = vpop.f32.mrf.mxu0
  %v1517 = vadd.f32 %v1284, %v1516
  %v1518 = vpop.f32.mrf.mxu0
  %v1519 = vpop.f32.mrf.mxu0
  %v1520 = vadd.f32 %v1287, %v1519
  %v1521 = vpop.f32.mrf.mxu0
  %1522 = vmatprep.mubr.bf16.mxu0 %v707
  %1523 = vmatmul.mubr.bf16.gmra.mxu0 %v706
  %v1524 = vpop.f32.mrf.mxu0
  %v1525 = vadd.f32 %v1292, %v1524
  %v1526 = vpop.f32.mrf.mxu0
  %v1527 = vpop.f32.mrf.mxu0
  %v1528 = vadd.f32 %v1295, %v1527
  %v1529 = vpop.f32.mrf.mxu0
  %1530 = vmatprep.mubr.bf16.mxu0 %v712
  %1531 = vmatmul.mubr.bf16.gmra.mxu0 %v711
  %v1532 = vpop.f32.mrf.mxu0
  %v1533 = vadd.f32 %v1300, %v1532
  %v1534 = vpop.f32.mrf.mxu0
  %v1535 = vpop.f32.mrf.mxu0
  %v1536 = vadd.f32 %v1303, %v1535
  %v1537 = vpop.f32.mrf.mxu0
  %1538 = vmatprep.mubr.bf16.mxu0 %v717
  %1539 = vmatmul.mubr.bf16.gmra.mxu0 %v716
  %v1540 = vpop.f32.mrf.mxu0
  %v1541 = vadd.f32 %v1308, %v1540
  %v1542 = vpop.f32.mrf.mxu0
  %v1543 = vpop.f32.mrf.mxu0
  %v1544 = vadd.f32 %v1311, %v1543
  %v1545 = vpop.f32.mrf.mxu0
  %1546 = vmatprep.mubr.bf16.mxu0 %v722
  %1547 = vmatmul.mubr.bf16.gmra.mxu0 %v721
  %v1548 = vpop.f32.mrf.mxu0
  %v1549 = vadd.f32 %v1316, %v1548
  %v1550 = vpop.f32.mrf.mxu0
  %v1551 = vpop.f32.mrf.mxu0
  %v1552 = vadd.f32 %v1319, %v1551
  %v1553 = vpop.f32.mrf.mxu0
  %1554 = vmatprep.mubr.bf16.mxu0 %v727
  %1555 = vmatmul.mubr.bf16.gmra.mxu0 %v726
  %v1556 = vpop.f32.mrf.mxu0
  %v1557 = vadd.f32 %v1324, %v1556
  %v1558 = vpop.f32.mrf.mxu0
  %v1559 = vpop.f32.mrf.mxu0
  %v1560 = vadd.f32 %v1327, %v1559
  %v1561 = vpop.f32.mrf.mxu0
  %1562 = vmatprep.mubr.bf16.mxu0 %v732
  %1563 = vmatmul.mubr.bf16.gmra.mxu0 %v731
  %v1564 = vpop.f32.mrf.mxu0
  %v1565 = vadd.f32 %v1332, %v1564
  %v1566 = vpop.f32.mrf.mxu0
  %v1567 = vpop.f32.mrf.mxu0
  %v1568 = vadd.f32 %v1335, %v1567
  %v1569 = vpop.f32.mrf.mxu0
  %1570 = vmatprep.mubr.bf16.mxu0 %v737
  %1571 = vmatmul.mubr.bf16.gmra.mxu0 %v736
  %v1572 = vpop.f32.mrf.mxu0
  %v1573 = vadd.f32 %v1340, %v1572
  %v1574 = vpop.f32.mrf.mxu0
  %v1575 = vpop.f32.mrf.mxu0
  %v1576 = vadd.f32 %v1343, %v1575
  %v1577 = vpop.f32.mrf.mxu0
  %1578 = vmatprep.mubr.bf16.mxu0 %v742
  %1579 = vmatmul.mubr.bf16.gmra.mxu0 %v741
  %v1580 = vpop.f32.mrf.mxu0
  %v1581 = vadd.f32 %v1348, %v1580
  %v1582 = vpop.f32.mrf.mxu0
  %v1583 = vpop.f32.mrf.mxu0
  %v1584 = vadd.f32 %v1351, %v1583
  %v1585 = vpop.f32.mrf.mxu0
  %1586 = vmatprep.mubr.bf16.mxu0 %v747
  %1587 = vmatmul.mubr.bf16.gmra.mxu0 %v746
  %v1588 = vpop.f32.mrf.mxu0
  %v1589 = vadd.f32 %v1356, %v1588
  %v1590 = vpop.f32.mrf.mxu0
  %v1591 = vpop.f32.mrf.mxu0
  %v1592 = vadd.f32 %v1359, %v1591
  %v1593 = vpop.f32.mrf.mxu0
  %1594 = vmatprep.mubr.bf16.mxu0 %v752
  %1595 = vmatmul.mubr.bf16.gmra.mxu0 %v751
  %v1596 = vpop.f32.mrf.mxu0
  %v1597 = vadd.f32 %v1364, %v1596
  %v1598 = vpop.f32.mrf.mxu0
  %v1599 = vpop.f32.mrf.mxu0
  %v1600 = vadd.f32 %v1367, %v1599
  %v1601 = vpop.f32.mrf.mxu0
  %1602 = vmatprep.mubr.bf16.mxu0 %v757
  %1603 = vmatmul.mubr.bf16.gmra.mxu0 %v756
  %v1604 = vpop.f32.mrf.mxu0
  %v1605 = vadd.f32 %v1372, %v1604
  %v1606 = vpop.f32.mrf.mxu0
  %v1607 = vpop.f32.mrf.mxu0
  %v1608 = vadd.f32 %v1375, %v1607
  %v1609 = vpop.f32.mrf.mxu0
  %1610 = vmatprep.mubr.bf16.mxu0 %v762
  %1611 = vmatmul.mubr.bf16.gmra.mxu0 %v761
  %v1612 = vpop.f32.mrf.mxu0
  %v1613 = vadd.f32 %v1380, %v1612
  %v1614 = vpop.f32.mrf.mxu0
  %v1615 = vpop.f32.mrf.mxu0
  %v1616 = vadd.f32 %v1383, %v1615
  %v1617 = vpop.f32.mrf.mxu0
  %1618 = vmatprep.mubr.bf16.mxu0 %v767
  %1619 = vmatmul.mubr.bf16.gmra.mxu0 %v766
  %v1620 = vpop.f32.mrf.mxu0
  %v1621 = vadd.f32 %v1388, %v1620
  %v1622 = vpop.f32.mrf.mxu0
  %v1623 = vpop.f32.mrf.mxu0
  %v1624 = vadd.f32 %v1391, %v1623
  %v1625 = vpop.f32.mrf.mxu0
  %1626 = vdwg.mxu0
  %1627 = vmatprep.subr.bf16.mxu0 0
  %1628 = vmatpush1.bf16.msra.mxu0 0
  %1629 = vmatprep.subr.bf16.mxu0 0
  %1630 = vmatpush1.bf16.msra.mxu0 0
  %1631 = vmatprep.subr.bf16.mxu0 0
  %1632 = vmatpush1.bf16.msra.mxu0 0
  %1633 = vmatprep.subr.bf16.mxu0 0
  %1634 = vmatpush1.bf16.msra.mxu0 0
  %1635 = vmatprep.subr.bf16.mxu0 0
  %1636 = vmatpush1.bf16.msra.mxu0 %v1048
  %1637 = vmatprep.subr.bf16.mxu0 0
  %1638 = vmatpush1.bf16.msra.mxu0 %v1047
  %1639 = vmatprep.subr.bf16.mxu0 0
  %1640 = vmatpush1.bf16.msra.mxu0 %v1046
  %1641 = vmatprep.subr.bf16.mxu0 0
  %1642 = vmatpush1.bf16.msra.mxu0 %v1045
  %1643 = vmatprep.subr.bf16.mxu0 0
  %1644 = vmatpush2.bf16.msra.mxu0 0
  %1645 = vmatprep.subr.bf16.mxu0 0
  %1646 = vmatpush2.bf16.msra.mxu0 0
  %1647 = vmatprep.subr.bf16.mxu0 0
  %1648 = vmatpush2.bf16.msra.mxu0 0
  %1649 = vmatprep.subr.bf16.mxu0 0
  %1650 = vmatpush2.bf16.msra.mxu0 0
  %1651 = vmatprep.subr.bf16.mxu0 0
  %1652 = vmatpush2.bf16.msra.mxu0 0
  %1653 = vmatprep.subr.bf16.mxu0 0
  %1654 = vmatpush2.bf16.msra.mxu0 0
  %1655 = vmatprep.subr.bf16.mxu0 0
  %1656 = vmatpush2.bf16.msra.mxu0 0
  %1657 = vmatprep.subr.bf16.mxu0 0
  %1658 = vmatpush2.bf16.msra.mxu0 0
  %1659 = vmatprep.mubr.bf16.mxu0 0
  %1660 = vmatmul.mubr.bf16.gmra.mxu0 %v1087
  %v1661 = vpop.f32.mrf.mxu0
  %v1662 = vadd.f32 %v1429, %v1661
  %v1663 = vpop.f32.mrf.mxu0
  %v1664 = vpop.f32.mrf.mxu0
  %v1665 = vadd.f32 %v1432, %v1664
  %v1666 = vpop.f32.mrf.mxu0
  %1667 = vmatprep.mubr.bf16.mxu0 0
  %1668 = vmatmul.mubr.bf16.gmra.mxu0 %v1090
  %v1669 = vpop.f32.mrf.mxu0
  %v1670 = vadd.f32 %v1437, %v1669
  %v1671 = vpop.f32.mrf.mxu0
  %v1672 = vpop.f32.mrf.mxu0
  %v1673 = vadd.f32 %v1440, %v1672
  %v1674 = vpop.f32.mrf.mxu0
  %1675 = vmatprep.mubr.bf16.mxu0 0
  %1676 = vmatmul.mubr.bf16.gmra.mxu0 %v1093
  %v1677 = vpop.f32.mrf.mxu0
  %v1678 = vadd.f32 %v1445, %v1677
  %v1679 = vpop.f32.mrf.mxu0
  %v1680 = vpop.f32.mrf.mxu0
  %v1681 = vadd.f32 %v1448, %v1680
  %v1682 = vpop.f32.mrf.mxu0
  %1683 = vmatprep.mubr.bf16.mxu0 0
  %1684 = vmatmul.mubr.bf16.gmra.mxu0 %v1096
  %v1685 = vpop.f32.mrf.mxu0
  %v1686 = vadd.f32 %v1453, %v1685
  %v1687 = vpop.f32.mrf.mxu0
  %v1688 = vpop.f32.mrf.mxu0
  %v1689 = vadd.f32 %v1456, %v1688
  %v1690 = vpop.f32.mrf.mxu0
  %1691 = vmatprep.mubr.bf16.mxu0 0
  %1692 = vmatmul.mubr.bf16.gmra.mxu0 %v1099
  %v1693 = vpop.f32.mrf.mxu0
  %v1694 = vadd.f32 %v1461, %v1693
  %v1695 = vpop.f32.mrf.mxu0
  %v1696 = vpop.f32.mrf.mxu0
  %v1697 = vadd.f32 %v1464, %v1696
  %v1698 = vpop.f32.mrf.mxu0
  %1699 = vmatprep.mubr.bf16.mxu0 0
  %1700 = vmatmul.mubr.bf16.gmra.mxu0 %v1102
  %v1701 = vpop.f32.mrf.mxu0
  %v1702 = vadd.f32 %v1469, %v1701
  %v1703 = vpop.f32.mrf.mxu0
  %v1704 = vpop.f32.mrf.mxu0
  %v1705 = vadd.f32 %v1472, %v1704
  %v1706 = vpop.f32.mrf.mxu0
  %1707 = vmatprep.mubr.bf16.mxu0 0
  %1708 = vmatmul.mubr.bf16.gmra.mxu0 %v1105
  %v1709 = vpop.f32.mrf.mxu0
  %v1710 = vadd.f32 %v1477, %v1709
  %v1711 = vpop.f32.mrf.mxu0
  %v1712 = vpop.f32.mrf.mxu0
  %v1713 = vadd.f32 %v1480, %v1712
  %v1714 = vpop.f32.mrf.mxu0
  %1715 = vmatprep.mubr.bf16.mxu0 0
  %1716 = vmatmul.mubr.bf16.gmra.mxu0 %v1108
  %v1717 = vpop.f32.mrf.mxu0
  %v1718 = vadd.f32 %v1485, %v1717
  %v1719 = vpop.f32.mrf.mxu0
  %v1720 = vpop.f32.mrf.mxu0
  %v1721 = vadd.f32 %v1488, %v1720
  %v1722 = vpop.f32.mrf.mxu0
  %1723 = vmatprep.mubr.bf16.mxu0 0
  %1724 = vmatmul.mubr.bf16.gmra.mxu0 %v1111
  %v1725 = vpop.f32.mrf.mxu0
  %v1726 = vadd.f32 %v1493, %v1725
  %v1727 = vpop.f32.mrf.mxu0
  %v1728 = vpop.f32.mrf.mxu0
  %v1729 = vadd.f32 %v1496, %v1728
  %v1730 = vpop.f32.mrf.mxu0
  %1731 = vmatprep.mubr.bf16.mxu0 0
  %1732 = vmatmul.mubr.bf16.gmra.mxu0 %v1114
  %v1733 = vpop.f32.mrf.mxu0
  %v1734 = vadd.f32 %v1501, %v1733
  %v1735 = vpop.f32.mrf.mxu0
  %v1736 = vpop.f32.mrf.mxu0
  %v1737 = vadd.f32 %v1504, %v1736
  %v1738 = vpop.f32.mrf.mxu0
  %1739 = vmatprep.mubr.bf16.mxu0 0
  %1740 = vmatmul.mubr.bf16.gmra.mxu0 %v1117
  %v1741 = vpop.f32.mrf.mxu0
  %v1742 = vadd.f32 %v1509, %v1741
  %v1743 = vpop.f32.mrf.mxu0
  %v1744 = vpop.f32.mrf.mxu0
  %v1745 = vadd.f32 %v1512, %v1744
  %v1746 = vpop.f32.mrf.mxu0
  %1747 = vmatprep.mubr.bf16.mxu0 0
  %1748 = vmatmul.mubr.bf16.gmra.mxu0 %v1120
  %v1749 = vpop.f32.mrf.mxu0
  %v1750 = vadd.f32 %v1517, %v1749
  %v1751 = vpop.f32.mrf.mxu0
  %v1752 = vpop.f32.mrf.mxu0
  %v1753 = vadd.f32 %v1520, %v1752
  %v1754 = vpop.f32.mrf.mxu0
  %1755 = vmatprep.mubr.bf16.mxu0 0
  %1756 = vmatmul.mubr.bf16.gmra.mxu0 %v1123
  %v1757 = vpop.f32.mrf.mxu0
  %v1758 = vadd.f32 %v1525, %v1757
  %v1759 = vpop.f32.mrf.mxu0
  %v1760 = vpop.f32.mrf.mxu0
  %v1761 = vadd.f32 %v1528, %v1760
  %v1762 = vpop.f32.mrf.mxu0
  %1763 = vmatprep.mubr.bf16.mxu0 0
  %1764 = vmatmul.mubr.bf16.gmra.mxu0 %v1126
  %v1765 = vpop.f32.mrf.mxu0
  %v1766 = vadd.f32 %v1533, %v1765
  %v1767 = vpop.f32.mrf.mxu0
  %v1768 = vpop.f32.mrf.mxu0
  %v1769 = vadd.f32 %v1536, %v1768
  %v1770 = vpop.f32.mrf.mxu0
  %1771 = vmatprep.mubr.bf16.mxu0 0
  %1772 = vmatmul.mubr.bf16.gmra.mxu0 %v1129
  %v1773 = vpop.f32.mrf.mxu0
  %v1774 = vadd.f32 %v1541, %v1773
  %v1775 = vpop.f32.mrf.mxu0
  %v1776 = vpop.f32.mrf.mxu0
  %v1777 = vadd.f32 %v1544, %v1776
  %v1778 = vpop.f32.mrf.mxu0
  %1779 = vmatprep.mubr.bf16.mxu0 0
  %1780 = vmatmul.mubr.bf16.gmra.mxu0 %v1132
  %v1781 = vpop.f32.mrf.mxu0
  %v1782 = vadd.f32 %v1549, %v1781
  %v1783 = vpop.f32.mrf.mxu0
  %v1784 = vpop.f32.mrf.mxu0
  %v1785 = vadd.f32 %v1552, %v1784
  %v1786 = vpop.f32.mrf.mxu0
  %1787 = vmatprep.mubr.bf16.mxu0 0
  %1788 = vmatmul.mubr.bf16.gmra.mxu0 %v1135
  %v1789 = vpop.f32.mrf.mxu0
  %v1790 = vadd.f32 %v1557, %v1789
  %v1791 = vpop.f32.mrf.mxu0
  %v1792 = vpop.f32.mrf.mxu0
  %v1793 = vadd.f32 %v1560, %v1792
  %v1794 = vpop.f32.mrf.mxu0
  %1795 = vmatprep.mubr.bf16.mxu0 0
  %1796 = vmatmul.mubr.bf16.gmra.mxu0 %v1138
  %v1797 = vpop.f32.mrf.mxu0
  %v1798 = vadd.f32 %v1565, %v1797
  %v1799 = vpop.f32.mrf.mxu0
  %v1800 = vpop.f32.mrf.mxu0
  %v1801 = vadd.f32 %v1568, %v1800
  %v1802 = vpop.f32.mrf.mxu0
  %1803 = vmatprep.mubr.bf16.mxu0 0
  %1804 = vmatmul.mubr.bf16.gmra.mxu0 %v1141
  %v1805 = vpop.f32.mrf.mxu0
  %v1806 = vadd.f32 %v1573, %v1805
  %v1807 = vpop.f32.mrf.mxu0
  %v1808 = vpop.f32.mrf.mxu0
  %v1809 = vadd.f32 %v1576, %v1808
  %v1810 = vpop.f32.mrf.mxu0
  %1811 = vmatprep.mubr.bf16.mxu0 0
  %1812 = vmatmul.mubr.bf16.gmra.mxu0 %v1144
  %v1813 = vpop.f32.mrf.mxu0
  %v1814 = vadd.f32 %v1581, %v1813
  %v1815 = vpop.f32.mrf.mxu0
  %v1816 = vpop.f32.mrf.mxu0
  %v1817 = vadd.f32 %v1584, %v1816
  %v1818 = vpop.f32.mrf.mxu0
  %1819 = vmatprep.mubr.bf16.mxu0 0
  %1820 = vmatmul.mubr.bf16.gmra.mxu0 %v1147
  %v1821 = vpop.f32.mrf.mxu0
  %v1822 = vadd.f32 %v1589, %v1821
  %v1823 = vpop.f32.mrf.mxu0
  %v1824 = vpop.f32.mrf.mxu0
  %v1825 = vadd.f32 %v1592, %v1824
  %v1826 = vpop.f32.mrf.mxu0
  %1827 = vmatprep.mubr.bf16.mxu0 0
  %1828 = vmatmul.mubr.bf16.gmra.mxu0 %v1150
  %v1829 = vpop.f32.mrf.mxu0
  %v1830 = vadd.f32 %v1597, %v1829
  %v1831 = vpop.f32.mrf.mxu0
  %v1832 = vpop.f32.mrf.mxu0
  %v1833 = vadd.f32 %v1600, %v1832
  %v1834 = vpop.f32.mrf.mxu0
  %1835 = vmatprep.mubr.bf16.mxu0 0
  %1836 = vmatmul.mubr.bf16.gmra.mxu0 %v1153
  %v1837 = vpop.f32.mrf.mxu0
  %v1838 = vadd.f32 %v1605, %v1837
  %v1839 = vpop.f32.mrf.mxu0
  %v1840 = vpop.f32.mrf.mxu0
  %v1841 = vadd.f32 %v1608, %v1840
  %v1842 = vpop.f32.mrf.mxu0
  %1843 = vmatprep.mubr.bf16.mxu0 0
  %1844 = vmatmul.mubr.bf16.gmra.mxu0 %v1156
  %v1845 = vpop.f32.mrf.mxu0
  %v1846 = vadd.f32 %v1613, %v1845
  %v1847 = vpop.f32.mrf.mxu0
  %v1848 = vpop.f32.mrf.mxu0
  %v1849 = vadd.f32 %v1616, %v1848
  %v1850 = vpop.f32.mrf.mxu0
  %1851 = vmatprep.mubr.bf16.mxu0 0
  %1852 = vmatmul.mubr.bf16.gmra.mxu0 %v1159
  %v1853 = vpop.f32.mrf.mxu0
  %v1854 = vadd.f32 %v1621, %v1853
  %v1855 = vpop.f32.mrf.mxu0
  %v1856 = vpop.f32.mrf.mxu0
  %v1857 = vadd.f32 %v1624, %v1856
  %v1858 = vpop.f32.mrf.mxu0
  %1859 = vdwg.mxu0
  %vm1860 = vcmp.gt.f32.partialorder %v1662, 0.0
  %vm1861 = vcmp.gt.f32.partialorder %v1665, 0.0
  %vm1862 = vcmp.gt.f32.partialorder %v1670, 0.0
  %vm1863 = vcmp.gt.f32.partialorder %v1673, 0.0
  %vm1864 = vcmp.gt.f32.partialorder %v1678, 0.0
  %vm1865 = vcmp.gt.f32.partialorder %v1681, 0.0
  %vm1866 = vcmp.gt.f32.partialorder %v1686, 0.0
  %vm1867 = vcmp.gt.f32.partialorder %v1689, 0.0
  %vm1868 = vcmp.gt.f32.partialorder %v1694, 0.0
  %vm1869 = vcmp.gt.f32.partialorder %v1697, 0.0
  %vm1870 = vcmp.gt.f32.partialorder %v1702, 0.0
  %vm1871 = vcmp.gt.f32.partialorder %v1705, 0.0
  %vm1872 = vcmp.gt.f32.partialorder %v1710, 0.0
  %vm1873 = vcmp.gt.f32.partialorder %v1713, 0.0
  %vm1874 = vcmp.gt.f32.partialorder %v1718, 0.0
  %vm1875 = vcmp.gt.f32.partialorder %v1721, 0.0
  %vm1876 = vcmp.gt.f32.partialorder %v1726, 0.0
  %vm1877 = vcmp.gt.f32.partialorder %v1729, 0.0
  %vm1878 = vcmp.gt.f32.partialorder %v1734, 0.0
  %vm1879 = vcmp.gt.f32.partialorder %v1737, 0.0
  %vm1880 = vcmp.gt.f32.partialorder %v1742, 0.0
  %vm1881 = vcmp.gt.f32.partialorder %v1745, 0.0
  %vm1882 = vcmp.gt.f32.partialorder %v1750, 0.0
  %vm1883 = vcmp.gt.f32.partialorder %v1753, 0.0
  %vm1884 = vcmp.gt.f32.partialorder %v1758, 0.0
  %vm1885 = vcmp.gt.f32.partialorder %v1761, 0.0
  %vm1886 = vcmp.gt.f32.partialorder %v1766, 0.0
  %vm1887 = vcmp.gt.f32.partialorder %v1769, 0.0
  %vm1888 = vcmp.gt.f32.partialorder %v1774, 0.0
  %vm1889 = vcmp.gt.f32.partialorder %v1777, 0.0
  %vm1890 = vcmp.gt.f32.partialorder %v1782, 0.0
  %vm1891 = vcmp.gt.f32.partialorder %v1785, 0.0
  %vm1892 = vcmp.gt.f32.partialorder %v1790, 0.0
  %vm1893 = vcmp.gt.f32.partialorder %v1793, 0.0
  %vm1894 = vcmp.gt.f32.partialorder %v1798, 0.0
  %vm1895 = vcmp.gt.f32.partialorder %v1801, 0.0
  %vm1896 = vcmp.gt.f32.partialorder %v1806, 0.0
  %vm1897 = vcmp.gt.f32.partialorder %v1809, 0.0
  %vm1898 = vcmp.gt.f32.partialorder %v1814, 0.0
  %vm1899 = vcmp.gt.f32.partialorder %v1817, 0.0
  %vm1900 = vcmp.gt.f32.partialorder %v1822, 0.0
  %vm1901 = vcmp.gt.f32.partialorder %v1825, 0.0
  %vm1902 = vcmp.gt.f32.partialorder %v1830, 0.0
  %vm1903 = vcmp.gt.f32.partialorder %v1833, 0.0
  %vm1904 = vcmp.gt.f32.partialorder %v1838, 0.0
  %vm1905 = vcmp.gt.f32.partialorder %v1841, 0.0
  %vm1906 = vcmp.gt.f32.partialorder %v1846, 0.0
  %vm1907 = vcmp.gt.f32.partialorder %v1849, 0.0
  %vm1908 = vcmp.gt.f32.partialorder %v1854, 0.0
  %vm1909 = vcmp.gt.f32.partialorder %v1857, 0.0
  %v1910 = vmul.f32 %v1662, 0.2
  %v1911 = vmul.f32 %v1665, 0.2
  %v1912 = vmul.f32 %v1670, 0.2
  %v1913 = vmul.f32 %v1673, 0.2
  %v1914 = vmul.f32 %v1678, 0.2
  %v1915 = vmul.f32 %v1681, 0.2
  %v1916 = vmul.f32 %v1686, 0.2
  %v1917 = vmul.f32 %v1689, 0.2
  %v1918 = vmul.f32 %v1694, 0.2
  %v1919 = vmul.f32 %v1697, 0.2
  %v1920 = vmul.f32 %v1702, 0.2
  %v1921 = vmul.f32 %v1705, 0.2
  %v1922 = vmul.f32 %v1710, 0.2
  %v1923 = vmul.f32 %v1713, 0.2
  %v1924 = vmul.f32 %v1718, 0.2
  %v1925 = vmul.f32 %v1721, 0.2
  %v1926 = vmul.f32 %v1726, 0.2
  %v1927 = vmul.f32 %v1729, 0.2
  %v1928 = vmul.f32 %v1734, 0.2
  %v1929 = vmul.f32 %v1737, 0.2
  %v1930 = vmul.f32 %v1742, 0.2
  %v1931 = vmul.f32 %v1745, 0.2
  %v1932 = vmul.f32 %v1750, 0.2
  %v1933 = vmul.f32 %v1753, 0.2
  %v1934 = vmul.f32 %v1758, 0.2
  %v1935 = vmul.f32 %v1761, 0.2
  %v1936 = vmul.f32 %v1766, 0.2
  %v1937 = vmul.f32 %v1769, 0.2
  %v1938 = vmul.f32 %v1774, 0.2
  %v1939 = vmul.f32 %v1777, 0.2
  %v1940 = vmul.f32 %v1782, 0.2
  %v1941 = vmul.f32 %v1785, 0.2
  %v1942 = vmul.f32 %v1790, 0.2
  %v1943 = vmul.f32 %v1793, 0.2
  %v1944 = vmul.f32 %v1798, 0.2
  %v1945 = vmul.f32 %v1801, 0.2
  %v1946 = vmul.f32 %v1806, 0.2
  %v1947 = vmul.f32 %v1809, 0.2
  %v1948 = vmul.f32 %v1814, 0.2
  %v1949 = vmul.f32 %v1817, 0.2
  %v1950 = vmul.f32 %v1822, 0.2
  %v1951 = vmul.f32 %v1825, 0.2
  %v1952 = vmul.f32 %v1830, 0.2
  %v1953 = vmul.f32 %v1833, 0.2
  %v1954 = vmul.f32 %v1838, 0.2
  %v1955 = vmul.f32 %v1841, 0.2
  %v1956 = vmul.f32 %v1846, 0.2
  %v1957 = vmul.f32 %v1849, 0.2
  %v1958 = vmul.f32 %v1854, 0.2
  %v1959 = vmul.f32 %v1857, 0.2
  %v1960 = vsel %vm1860, %v1662, %v1910
  %v1961 = vsel %vm1861, %v1665, %v1911
  %v1962 = vsel %vm1862, %v1670, %v1912
  %v1963 = vsel %vm1863, %v1673, %v1913
  %v1964 = vsel %vm1864, %v1678, %v1914
  %v1965 = vsel %vm1865, %v1681, %v1915
  %v1966 = vsel %vm1866, %v1686, %v1916
  %v1967 = vsel %vm1867, %v1689, %v1917
  %v1968 = vsel %vm1868, %v1694, %v1918
  %v1969 = vsel %vm1869, %v1697, %v1919
  %v1970 = vsel %vm1870, %v1702, %v1920
  %v1971 = vsel %vm1871, %v1705, %v1921
  %v1972 = vsel %vm1872, %v1710, %v1922
  %v1973 = vsel %vm1873, %v1713, %v1923
  %v1974 = vsel %vm1874, %v1718, %v1924
  %v1975 = vsel %vm1875, %v1721, %v1925
  %v1976 = vsel %vm1876, %v1726, %v1926
  %v1977 = vsel %vm1877, %v1729, %v1927
  %v1978 = vsel %vm1878, %v1734, %v1928
  %v1979 = vsel %vm1879, %v1737, %v1929
  %v1980 = vsel %vm1880, %v1742, %v1930
  %v1981 = vsel %vm1881, %v1745, %v1931
  %v1982 = vsel %vm1882, %v1750, %v1932
  %v1983 = vsel %vm1883, %v1753, %v1933
  %v1984 = vsel %vm1884, %v1758, %v1934
  %v1985 = vsel %vm1885, %v1761, %v1935
  %v1986 = vsel %vm1886, %v1766, %v1936
  %v1987 = vsel %vm1887, %v1769, %v1937
  %v1988 = vsel %vm1888, %v1774, %v1938
  %v1989 = vsel %vm1889, %v1777, %v1939
  %v1990 = vsel %vm1890, %v1782, %v1940
  %v1991 = vsel %vm1891, %v1785, %v1941
  %v1992 = vsel %vm1892, %v1790, %v1942
  %v1993 = vsel %vm1893, %v1793, %v1943
  %v1994 = vsel %vm1894, %v1798, %v1944
  %v1995 = vsel %vm1895, %v1801, %v1945
  %v1996 = vsel %vm1896, %v1806, %v1946
  %v1997 = vsel %vm1897, %v1809, %v1947
  %v1998 = vsel %vm1898, %v1814, %v1948
  %v1999 = vsel %vm1899, %v1817, %v1949
  %v2000 = vsel %vm1900, %v1822, %v1950
  %v2001 = vsel %vm1901, %v1825, %v1951
  %v2002 = vsel %vm1902, %v1830, %v1952
  %v2003 = vsel %vm1903, %v1833, %v1953
  %v2004 = vsel %vm1904, %v1838, %v1954
  %v2005 = vsel %vm1905, %v1841, %v1955
  %v2006 = vsel %vm1906, %v1846, %v1956
  %v2007 = vsel %vm1907, %v1849, %v1957
  %v2008 = vsel %vm1908, %v1854, %v1958
  %v2009 = vsel %vm1909, %v1857, %v1959
  %v2010 = vpack.c.bf16 %v1961, %v1960
  %v2011 = vpack.c.bf16 %v1963, %v1962
  %v2012 = vpack.c.bf16 %v1965, %v1964
  %v2013 = vpack.c.bf16 %v1967, %v1966
  %v2014 = vpack.c.bf16 %v1969, %v1968
  %v2015 = vpack.c.bf16 %v1971, %v1970
  %v2016 = vpack.c.bf16 %v1973, %v1972
  %v2017 = vpack.c.bf16 %v1975, %v1974
  %v2018 = vpack.c.bf16 %v1977, %v1976
  %v2019 = vpack.c.bf16 %v1979, %v1978
  %v2020 = vpack.c.bf16 %v1981, %v1980
  %v2021 = vpack.c.bf16 %v1983, %v1982
  %v2022 = vpack.c.bf16 %v1985, %v1984
  %v2023 = vpack.c.bf16 %v1987, %v1986
  %v2024 = vpack.c.bf16 %v1989, %v1988
  %v2025 = vpack.c.bf16 %v1991, %v1990
  %v2026 = vpack.c.bf16 %v1993, %v1992
  %v2027 = vpack.c.bf16 %v1995, %v1994
  %v2028 = vpack.c.bf16 %v1997, %v1996
  %v2029 = vpack.c.bf16 %v1999, %v1998
  %v2030 = vpack.c.bf16 %v2001, %v2000
  %v2031 = vpack.c.bf16 %v2003, %v2002
  %v2032 = vpack.c.bf16 %v2005, %v2004
  %v2033 = vpack.c.bf16 %v2007, %v2006
  %v2034 = vpack.c.bf16 %v2009, %v2008
  %v2060 = vunpack.c.l.b16 %v2010
  %v2061 = vunpack.c.h.b16 %v2010
  %v2062 = vunpack.c.l.b16 %v2011
  %v2063 = vunpack.c.h.b16 %v2011
  %v2064 = vunpack.c.l.b16 %v2012
  %v2065 = vunpack.c.h.b16 %v2012
  %v2066 = vunpack.c.l.b16 %v2013
  %v2067 = vunpack.c.h.b16 %v2013
  %v2068 = vunpack.c.l.b16 %v2014
  %v2069 = vunpack.c.h.b16 %v2014
  %v2070 = vunpack.c.l.b16 %v2015
  %v2071 = vunpack.c.h.b16 %v2015
  %v2072 = vunpack.c.l.b16 %v2016
  %v2073 = vunpack.c.h.b16 %v2016
  %v2074 = vunpack.c.l.b16 %v2017
  %v2075 = vunpack.c.h.b16 %v2017
  %v2076 = vunpack.c.l.b16 %v2018
  %v2077 = vunpack.c.h.b16 %v2018
  %v2078 = vunpack.c.l.b16 %v2019
  %v2079 = vunpack.c.h.b16 %v2019
  %v2080 = vunpack.c.l.b16 %v2020
  %v2081 = vunpack.c.h.b16 %v2020
  %v2082 = vunpack.c.l.b16 %v2021
  %v2083 = vunpack.c.h.b16 %v2021
  %v2084 = vunpack.c.l.b16 %v2022
  %v2085 = vunpack.c.h.b16 %v2022
  %v2086 = vunpack.c.l.b16 %v2023
  %v2087 = vunpack.c.h.b16 %v2023
  %v2088 = vunpack.c.l.b16 %v2024
  %v2089 = vunpack.c.h.b16 %v2024
  %v2090 = vunpack.c.l.b16 %v2025
  %v2091 = vunpack.c.h.b16 %v2025
  %v2092 = vunpack.c.l.b16 %v2026
  %v2093 = vunpack.c.h.b16 %v2026
  %v2094 = vunpack.c.l.b16 %v2027
  %v2095 = vunpack.c.h.b16 %v2027
  %v2096 = vunpack.c.l.b16 %v2028
  %v2097 = vunpack.c.h.b16 %v2028
  %v2098 = vunpack.c.l.b16 %v2029
  %v2099 = vunpack.c.h.b16 %v2029
  %v2100 = vunpack.c.l.b16 %v2030
  %v2101 = vunpack.c.h.b16 %v2030
  %v2102 = vunpack.c.l.b16 %v2031
  %v2103 = vunpack.c.h.b16 %v2031
  %v2104 = vunpack.c.l.b16 %v2032
  %v2105 = vunpack.c.h.b16 %v2032
  %v2106 = vunpack.c.l.b16 %v2033
  %v2107 = vunpack.c.h.b16 %v2033
  %v2108 = vunpack.c.l.b16 %v2034
  %v2109 = vunpack.c.h.b16 %v2034
  %v2110 = vpack.c.b16 %v2060, %v2060
  %v2111 = vpack.c.b16 %v2061, %v2061
  %v2112 = vpack.c.b16 %v2062, %v2062
  %v2113 = vpack.c.b16 %v2063, %v2063
  %v2114 = vpack.c.b16 %v2064, %v2064
  %v2115 = vpack.c.b16 %v2065, %v2065
  %v2116 = vpack.c.b16 %v2066, %v2066
  %v2117 = vpack.c.b16 %v2067, %v2067
  %v2118 = vpack.c.b16 %v2068, %v2068
  %v2119 = vpack.c.b16 %v2069, %v2069
  %v2120 = vpack.c.b16 %v2070, %v2070
  %v2121 = vpack.c.b16 %v2071, %v2071
  %v2122 = vpack.c.b16 %v2072, %v2072
  %v2123 = vpack.c.b16 %v2073, %v2073
  %v2124 = vpack.c.b16 %v2074, %v2074
  %v2125 = vpack.c.b16 %v2075, %v2075
  %v2126 = vpack.c.b16 %v2076, %v2076
  %v2127 = vpack.c.b16 %v2077, %v2077
  %v2128 = vpack.c.b16 %v2078, %v2078
  %v2129 = vpack.c.b16 %v2079, %v2079
  %v2130 = vpack.c.b16 %v2080, %v2080
  %v2131 = vpack.c.b16 %v2081, %v2081
  %v2132 = vpack.c.b16 %v2082, %v2082
  %v2133 = vpack.c.b16 %v2083, %v2083
  %v2134 = vpack.c.b16 %v2084, %v2084
  %v2135 = vpack.c.b16 %v2085, %v2085
  %v2136 = vpack.c.b16 %v2086, %v2086
  %v2137 = vpack.c.b16 %v2087, %v2087
  %v2138 = vpack.c.b16 %v2088, %v2088
  %v2139 = vpack.c.b16 %v2089, %v2089
  %v2140 = vpack.c.b16 %v2090, %v2090
  %v2141 = vpack.c.b16 %v2091, %v2091
  %v2142 = vpack.c.b16 %v2092, %v2092
  %v2143 = vpack.c.b16 %v2093, %v2093
  %v2144 = vpack.c.b16 %v2094, %v2094
  %v2145 = vpack.c.b16 %v2095, %v2095
  %v2146 = vpack.c.b16 %v2096, %v2096
  %v2147 = vpack.c.b16 %v2097, %v2097
  %v2148 = vpack.c.b16 %v2098, %v2098
  %v2149 = vpack.c.b16 %v2099, %v2099
  %v2150 = vpack.c.b16 %v2100, %v2100
  %v2151 = vpack.c.b16 %v2101, %v2101
  %v2152 = vpack.c.b16 %v2102, %v2102
  %v2153 = vpack.c.b16 %v2103, %v2103
  %v2154 = vpack.c.b16 %v2104, %v2104
  %v2155 = vpack.c.b16 %v2105, %v2105
  %v2156 = vpack.c.b16 %v2106, %v2106
  %v2157 = vpack.c.b16 %v2107, %v2107
  %v2158 = vpack.c.b16 %v2108, %v2108
  %v2159 = vpack.c.b16 %v2109, %v2109
  %vm2210 = vcmask 257024
  %2211 = vst.msk [vmem:[%s3] sm:$0xf] %vm2210, %v2110
  %2212 = vst.msk [vmem:[%s3 + $0x4] sm:$0xf] %vm2210, %v2111
  %2213 = vst.msk [vmem:[%s3 + $0x8] sm:$0xf] %vm2210, %v2112
  %2214 = vst.msk [vmem:[%s3 + $0xc] sm:$0xf] %vm2210, %v2113
  %2215 = vst.msk [vmem:[%s3 + $0x10] sm:$0xf] %vm2210, %v2114
  %2216 = vst.msk [vmem:[%s3 + $0x14] sm:$0xf] %vm2210, %v2115
  %2217 = vst.msk [vmem:[%s3 + $0x18] sm:$0xf] %vm2210, %v2116
  %2218 = vst.msk [vmem:[%s3 + $0x1c] sm:$0xf] %vm2210, %v2117
  %2219 = vst.msk [vmem:[%s3 + $0x20] sm:$0xf] %vm2210, %v2118
  %2220 = vst.msk [vmem:[%s3 + $0x24] sm:$0xf] %vm2210, %v2119
  %2221 = vst.msk [vmem:[%s3 + $0x28] sm:$0xf] %vm2210, %v2120
  %2222 = vst.msk [vmem:[%s3 + $0x2c] sm:$0xf] %vm2210, %v2121
  %2223 = vst.msk [vmem:[%s3 + $0x30] sm:$0xf] %vm2210, %v2122
  %2224 = vst.msk [vmem:[%s3 + $0x34] sm:$0xf] %vm2210, %v2123
  %2225 = vst.msk [vmem:[%s3 + $0x38] sm:$0xf] %vm2210, %v2124
  %2226 = vst.msk [vmem:[%s3 + $0x3c] sm:$0xf] %vm2210, %v2125
  %2227 = vst.msk [vmem:[%s3 + $0x40] sm:$0xf] %vm2210, %v2126
  %2228 = vst.msk [vmem:[%s3 + $0x44] sm:$0xf] %vm2210, %v2127
  %2229 = vst.msk [vmem:[%s3 + $0x48] sm:$0xf] %vm2210, %v2128
  %2230 = vst.msk [vmem:[%s3 + $0x4c] sm:$0xf] %vm2210, %v2129
  %2231 = vst.msk [vmem:[%s3 + $0x50] sm:$0xf] %vm2210, %v2130
  %2232 = vst.msk [vmem:[%s3 + $0x54] sm:$0xf] %vm2210, %v2131
  %2233 = vst.msk [vmem:[%s3 + $0x58] sm:$0xf] %vm2210, %v2132
  %2234 = vst.msk [vmem:[%s3 + $0x5c] sm:$0xf] %vm2210, %v2133
  %2235 = vst.msk [vmem:[%s3 + $0x60] sm:$0xf] %vm2210, %v2134
  %2236 = vst.msk [vmem:[%s3 + $0x64] sm:$0xf] %vm2210, %v2135
  %2237 = vst.msk [vmem:[%s3 + $0x68] sm:$0xf] %vm2210, %v2136
  %2238 = vst.msk [vmem:[%s3 + $0x6c] sm:$0xf] %vm2210, %v2137
  %2239 = vst.msk [vmem:[%s3 + $0x70] sm:$0xf] %vm2210, %v2138
  %2240 = vst.msk [vmem:[%s3 + $0x74] sm:$0xf] %vm2210, %v2139
  %2241 = vst.msk [vmem:[%s3 + $0x78] sm:$0xf] %vm2210, %v2140
  %2242 = vst.msk [vmem:[%s3 + $0x7c] sm:$0xf] %vm2210, %v2141
  %2243 = vst.msk [vmem:[%s3 + $0x80] sm:$0xf] %vm2210, %v2142
  %2244 = vst.msk [vmem:[%s3 + $0x84] sm:$0xf] %vm2210, %v2143
  %2245 = vst.msk [vmem:[%s3 + $0x88] sm:$0xf] %vm2210, %v2144
  %2246 = vst.msk [vmem:[%s3 + $0x8c] sm:$0xf] %vm2210, %v2145
  %2247 = vst.msk [vmem:[%s3 + $0x90] sm:$0xf] %vm2210, %v2146
  %2248 = vst.msk [vmem:[%s3 + $0x94] sm:$0xf] %vm2210, %v2147
  %2249 = vst.msk [vmem:[%s3 + $0x98] sm:$0xf] %vm2210, %v2148
  %2250 = vst.msk [vmem:[%s3 + $0x9c] sm:$0xf] %vm2210, %v2149
  %2251 = vst.msk [vmem:[%s3 + $0xa0] sm:$0xf] %vm2210, %v2150
  %2252 = vst.msk [vmem:[%s3 + $0xa4] sm:$0xf] %vm2210, %v2151
  %2253 = vst.msk [vmem:[%s3 + $0xa8] sm:$0xf] %vm2210, %v2152
  %2254 = vst.msk [vmem:[%s3 + $0xac] sm:$0xf] %vm2210, %v2153
  %2255 = vst.msk [vmem:[%s3 + $0xb0] sm:$0xf] %vm2210, %v2154
  %2256 = vst.msk [vmem:[%s3 + $0xb4] sm:$0xf] %vm2210, %v2155
  %2257 = vst.msk [vmem:[%s3 + $0xb8] sm:$0xf] %vm2210, %v2156
  %2258 = vst.msk [vmem:[%s3 + $0xbc] sm:$0xf] %vm2210, %v2157
  %2259 = vst.msk [vmem:[%s3 + $0xc0] sm:$0xf] %vm2210, %v2158
  %2260 = vst.msk [vmem:[%s3 + $0xc4] sm:$0xf] %vm2210, %v2159
  // Predicated region
  $region14: #{cluster_vae_forward.15} parent=0 // pred_check
    _
  $region15: #{cluster_vae_forward.15} parent=0 // pred_check_branch
    %2262 = sbr.rel (0) target = $region17
  $region16: #{cluster_vae_forward.15} parent=0 // pred_region
    _
  $region17: #{cluster_vae_forward.15} parent=0 // pred_fallthru
    _
  // Predicated region
  $region18: #{cluster_vae_forward.15} parent=0 // pred_check
    _
  $region19: #{cluster_vae_forward.15} parent=0 // pred_check_branch
    %2264 = sbr.rel (0) target = $region21
  $region20: #{cluster_vae_forward.15} parent=0 // pred_region
    _
  $region21: #{cluster_vae_forward.15} parent=0 // pred_fallthru
    _

// kernel: cluster_vae_forward.17
$region0: #{cluster_vae_forward.17}
  #allocation0 [shape = 'u32[]', space=smem, size = 0x4, offset = 0x4, fixed_abs, tag = 'smem constant byte address 0x4 - core index']
  #allocation1 [shape = 'u32[144,128]{1,0:T(1,128)}', space=vmem, size = 0x12000, scoped, tag = 'internal scratch']
  #allocation2 [shape = 'f32[1,1]{1,0:T(1,128)S(1)}', space=vmem, size = 0x200, scoped, tag = 'scoped memory for cluster_vae_forward.17']
  %s0 = inlined_call_operand.vmem [shape: bf16[1568,288], index: 0, kind: input, shape index: {}]
  %s1 = inlined_call_operand.vmem [shape: bf16[288,1], index: 1, kind: input, shape index: {}]
  %s2 = inlined_call_operand.<no memory space> [shape: f32[1,1], index: 2, kind: input, shape index: {}]
  %s3 = inlined_call_operand.vmem [shape: f32[1568,1], index: 3, kind: output, shape index: {}]
  %s4 = sld [smem:[#allocation0]]
  $region45: #{cluster_vae_forward.17} parent=0
    _
  %s6 = ssub.s32 1, %s4
  %s7 = scalar_select 0, %s6, %s4
  %v8 = vstv %s2
  %9 = vst [vmem:[#allocation2] sm:$0x1] %v8
  loop: start=0, step=1, limit=9
  $region2: #{cluster_vae_forward.17} parent=0 // loop_pre_header
    _
  $region3: #{cluster_vae_forward.17} parent=0 // loop_header
    %s11 = sphi 0, %s15
    %p12 = scmp.ge.s32.totalorder %s11, 9
    %s21 = sphi 0, %s23
    %s24 = sphi 0, %s21
    %s25 = sphi 0, %s24
    %s41 = sphi 0, %s25
    %s45 = sphi 0, %s45
    %s47 = sphi 0, %s45
    %s48 = sphi 0, %s47
    %s62 = sphi 0, %s48
    %s66 = sphi 0, %s66
    %s68 = sphi 0, %s66
    %s69 = sphi 0, %s68
    %s83 = sphi 0, %s69
    %s89 = sphi 0, %s91
    %s92 = sphi 0, %s89
    %s93 = sphi 0, %s92
    %s109 = sphi 0, %s93
  $region4: #{cluster_vae_forward.17} parent=0 // loop_header_branch
    %14 = sbr.rel (%p12) target = $region8
  $region5: #{cluster_vae_forward.17} parent=0 // loop_body
    %s16 = ssub.s32 %s11, 1
    %s17 = ssub.s32 %s11, 2
    %s18 = sadd.s32 %s11, 1
    %s19 = ssub.s32 %s11, %s18
    %p20 = scmp.eq.s32.totalorder %s19, 0
    %s22 = sadd.s32 %s21, 1
    %s23 = scalar_select %p20, %s21, %s22
    %p26 = pneg %p20
    %p27 = scmp.eq.s32.totalorder %s11, 6
    %p28 = por %p26, %p27
    %p29 = scmp.ne.s32.totalorder %s21, %s24
    %p30 = scmp.eq.s32.totalorder %s11, 0
    %p31 = por %p29, %p30
    %p32 = scmp.ne.s32.totalorder %s21, %s24
    %p33 = scmp.eq.s32.totalorder %s16, 6
    %p34 = por %p32, %p33
    %p35 = scmp.ne.s32.totalorder %s24, %s25
    %p36 = scmp.eq.s32.totalorder %s16, 0
    %p37 = por %p35, %p36
    %p38 = scmp.ne.s32.totalorder %s24, %s25
    %p39 = scmp.eq.s32.totalorder %s17, 6
    %p40 = por %p38, %p39
    %p42 = scmp.ne.s32.totalorder %s25, %s41
    %p43 = scmp.eq.s32.totalorder %s17, 0
    %p44 = por %p42, %p43
    %s46 = sadd.s32 %s45, 1
    %p49 = scmp.eq.s32.totalorder %s11, 6
    %p50 = scmp.ne.s32.totalorder %s45, %s47
    %p51 = scmp.eq.s32.totalorder %s11, 0
    %p52 = por %p50, %p51
    %p53 = scmp.ne.s32.totalorder %s45, %s47
    %p54 = scmp.eq.s32.totalorder %s16, 6
    %p55 = por %p53, %p54
    %p56 = scmp.ne.s32.totalorder %s47, %s48
    %p57 = scmp.eq.s32.totalorder %s16, 0
    %p58 = por %p56, %p57
    %p59 = scmp.ne.s32.totalorder %s47, %s48
    %p60 = scmp.eq.s32.totalorder %s17, 6
    %p61 = por %p59, %p60
    %p63 = scmp.ne.s32.totalorder %s48, %s62
    %p64 = scmp.eq.s32.totalorder %s17, 0
    %p65 = por %p63, %p64
    %s67 = sadd.s32 %s66, 1
    %p70 = scmp.eq.s32.totalorder %s11, 6
    %p71 = scmp.ne.s32.totalorder %s66, %s68
    %p72 = scmp.eq.s32.totalorder %s11, 0
    %p73 = por %p71, %p72
    %p74 = scmp.ne.s32.totalorder %s66, %s68
    %p75 = scmp.eq.s32.totalorder %s16, 6
    %p76 = por %p74, %p75
    %p77 = scmp.ne.s32.totalorder %s68, %s69
    %p78 = scmp.eq.s32.totalorder %s16, 0
    %p79 = por %p77, %p78
    %p80 = scmp.ne.s32.totalorder %s68, %s69
    %p81 = scmp.eq.s32.totalorder %s17, 6
    %p82 = por %p80, %p81
    %p84 = scmp.ne.s32.totalorder %s69, %s83
    %p85 = scmp.eq.s32.totalorder %s17, 0
    %p86 = por %p84, %p85
    %s87 = ssub.s32 %s11, %s18
    %p88 = scmp.eq.s32.totalorder %s87, 0
    %s90 = sadd.s32 %s89, 1
    %s91 = scalar_select %p88, %s89, %s90
    %p94 = pneg %p88
    %p95 = scmp.eq.s32.totalorder %s11, 6
    %p96 = por %p94, %p95
    %p97 = scmp.ne.s32.totalorder %s89, %s92
    %p98 = scmp.eq.s32.totalorder %s11, 0
    %p99 = por %p97, %p98
    %p100 = scmp.ne.s32.totalorder %s89, %s92
    %p101 = scmp.eq.s32.totalorder %s16, 6
    %p102 = por %p100, %p101
    %p103 = scmp.ne.s32.totalorder %s92, %s93
    %p104 = scmp.eq.s32.totalorder %s16, 0
    %p105 = por %p103, %p104
    %p106 = scmp.ne.s32.totalorder %s92, %s93
    %p107 = scmp.eq.s32.totalorder %s17, 6
    %p108 = por %p106, %p107
    %p110 = scmp.ne.s32.totalorder %s93, %s109
    %p111 = scmp.eq.s32.totalorder %s17, 0
    %p112 = por %p110, %p111
    %p113 = scmp.le.s32.totalorder 1, %s11
    %p114 = scmp.lt.s32.totalorder %s11, 8
    %p115 = pnand %p113, %p114
    %p116 = pneg %p115
    // Predicated region
    $region9: #{cluster_vae_forward.17} parent=5 // pred_check
      _
    $region10: #{cluster_vae_forward.17} parent=5 // pred_check_branch
      %118 = sbr.rel (%p115) target = $region12
    $region11: #{cluster_vae_forward.17} parent=5 // pred_region
      %s119 = ssub.s32 %s11, 1
      // Predicated region
      $region13: #{cluster_vae_forward.17} parent=11 // pred_check
        %p120 = pneg %p58
      $region14: #{cluster_vae_forward.17} parent=11 // pred_check_branch
        %122 = sbr.rel (%p120) target = $region16
      $region15: #{cluster_vae_forward.17} parent=11 // pred_region
        _
      $region16: #{cluster_vae_forward.17} parent=11 // pred_fallthru
        _
      // Predicated region
      $region17: #{cluster_vae_forward.17} parent=11 // pred_check
        %p123 = pneg %p79
      $region18: #{cluster_vae_forward.17} parent=11 // pred_check_branch
        %125 = sbr.rel (%p123) target = $region20
      $region19: #{cluster_vae_forward.17} parent=11 // pred_region
        _
      $region20: #{cluster_vae_forward.17} parent=11 // pred_fallthru
        _
    $region12: #{cluster_vae_forward.17} parent=5 // pred_fallthru
      _
    %p126 = scmp.lt.s32.totalorder %s11, 7
    // Predicated region
    $region21: #{cluster_vae_forward.17} parent=5 // pred_check
      %p127 = pneg %p126
    $region22: #{cluster_vae_forward.17} parent=5 // pred_check_branch
      %129 = sbr.rel (%p127) target = $region24
    $region23: #{cluster_vae_forward.17} parent=5 // pred_region
      // Predicated region
      $region25: #{cluster_vae_forward.17} parent=23 // pred_check
        %p130 = pneg %p31
      $region26: #{cluster_vae_forward.17} parent=23 // pred_check_branch
        %132 = sbr.rel (%p130) target = $region28
      $region27: #{cluster_vae_forward.17} parent=23 // pred_region
        %s133 = smul.u32 28, %s11
        %p134 = scmp.lt.s32.totalorder %s133, 195
        %s135 = scalar_select %p134, %s133, 195
        %s136 = smul.addr %s135, 3
        %s137 = smul.addr %s136, 4
        %s138 = scalar_lea.vmem %s0, %s137
        %s139 = smul.u32 28, %s11
      $region28: #{cluster_vae_forward.17} parent=23 // pred_fallthru
        _
    $region24: #{cluster_vae_forward.17} parent=5 // pred_fallthru
      _
    %p140 = scmp.le.s32.totalorder 1, %s11
    %p141 = scmp.lt.s32.totalorder %s11, 8
    %p142 = pnand %p140, %p141
    %p143 = pneg %p142
    // Predicated region
    $region29: #{cluster_vae_forward.17} parent=5 // pred_check
      _
    $region30: #{cluster_vae_forward.17} parent=5 // pred_check_branch
      %145 = sbr.rel (%p142) target = $region32
    $region31: #{cluster_vae_forward.17} parent=5 // pred_region
      %s146 = ssub.s32 %s11, 1
      %s147 = smul.u32 28, %s16
      %p148 = scmp.lt.s32.totalorder %s147, 195
      %s149 = scalar_select %p148, %s147, 195
      %s150 = smul.addr %s149, 3
      %s151 = smul.addr %s150, 4
      %s152 = scalar_lea.vmem %s0, %s151
      %p153 = pneg %p37
      %p154 = pneg %p34
      %p155 = pneg %p58
      %p156 = pneg %p55
      %p157 = pneg %p79
      %p158 = pneg %p76
      %p159 = pneg %p105
      %p160 = pneg %p102
      %s161 = smul.u32 28, %s16
      %p162 = scmp.lt.s32.totalorder %s161, 195
      %s163 = scalar_select %p162, %s161, 195
      %s164 = smul.addr %s163, 8
      %s165 = scalar_lea.vmem %s3, %s164
      %s166 = smul.u32 28, %s16
      %p167 = scmp.lt.s32.totalorder %s166, 195
      %s168 = scalar_select %p167, %s166, 195
      %s169 = smul.addr %s168, 3
      %s170 = smul.addr %s169, 4
      %s171 = scalar_lea.vmem %s0, %s170
      %s172 = smul.u32 28, %s16
      %s173 = smul.u32 28, %s16
      %p174 = scmp.lt.s32.totalorder %s173, 195
      %s175 = scalar_select %p174, %s173, 195
      %s176 = smul.addr %s175, 8
      %s177 = scalar_lea.vmem %s3, %s176
      %s178 = smul.u32 28, %s16
      %v180 = vld [vmem:[%s171] sm:$0xff]
      %v181 = vld [vmem:[%s171 + $0x8] sm:$0xf]
      %v182 = vld [vmem:[%s171 + $0xc] sm:$0xff]
      %v183 = vld [vmem:[%s171 + $0x14] sm:$0xf]
      %v184 = vld [vmem:[%s171 + $0x18] sm:$0xff]
      %v185 = vld [vmem:[%s171 + $0x20] sm:$0xf]
      %v186 = vld [vmem:[%s171 + $0x24] sm:$0xff]
      %v187 = vld [vmem:[%s171 + $0x2c] sm:$0xf]
      %v188 = vld [vmem:[%s171 + $0x30] sm:$0xff]
      %v189 = vld [vmem:[%s171 + $0x38] sm:$0xf]
      %v190 = vld [vmem:[%s171 + $0x3c] sm:$0xff]
      %v191 = vld [vmem:[%s171 + $0x44] sm:$0xf]
      %v192 = vld [vmem:[%s171 + $0x48] sm:$0xff]
      %v193 = vld [vmem:[%s171 + $0x50] sm:$0xf]
      %v194 = vld [vmem:[%s171 + $0x54] sm:$0xff]
      %v195 = vld [vmem:[%s171 + $0x5c] sm:$0xf]
      %v196 = vld [vmem:[%s171 + $0x60] sm:$0xff]
      %v197 = vld [vmem:[%s171 + $0x68] sm:$0xf]
      %v198 = vld [vmem:[%s171 + $0x6c] sm:$0xff]
      %v199 = vld [vmem:[%s171 + $0x74] sm:$0xf]
      %v200 = vld [vmem:[%s171 + $0x78] sm:$0xff]
      %v201 = vld [vmem:[%s171 + $0x80] sm:$0xf]
      %v202 = vld [vmem:[%s171 + $0x84] sm:$0xff]
      %v203 = vld [vmem:[%s171 + $0x8c] sm:$0xf]
      %v204 = vld [vmem:[%s171 + $0x90] sm:$0xff]
      %v205 = vld [vmem:[%s171 + $0x98] sm:$0xf]
      %v206 = vld [vmem:[%s171 + $0x9c] sm:$0xff]
      %v207 = vld [vmem:[%s171 + $0xa4] sm:$0xf]
      %v208 = vld [vmem:[%s171 + $0xa8] sm:$0xff]
      %v209 = vld [vmem:[%s171 + $0xb0] sm:$0xf]
      %v210 = vld [vmem:[%s171 + $0xb4] sm:$0xff]
      %v211 = vld [vmem:[%s171 + $0xbc] sm:$0xf]
      %v212 = vld [vmem:[%s171 + $0xc0] sm:$0xff]
      %v213 = vld [vmem:[%s171 + $0xc8] sm:$0xf]
      %v214 = vld [vmem:[%s171 + $0xcc] sm:$0xff]
      %v215 = vld [vmem:[%s171 + $0xd4] sm:$0xf]
      %v216 = vld [vmem:[%s171 + $0xd8] sm:$0xff]
      %v217 = vld [vmem:[%s171 + $0xe0] sm:$0xf]
      %v218 = vld [vmem:[%s171 + $0xe4] sm:$0xff]
      %v219 = vld [vmem:[%s171 + $0xec] sm:$0xf]
      %v220 = vld [vmem:[%s171 + $0xf0] sm:$0xff]
      %v221 = vld [vmem:[%s171 + $0xf8] sm:$0xf]
      %v222 = vld [vmem:[%s171 + $0xfc] sm:$0xff]
      %v223 = vld [vmem:[%s171 + $0x104] sm:$0xf]
      %v224 = vld [vmem:[%s171 + $0x108] sm:$0xff]
      %v225 = vld [vmem:[%s171 + $0x110] sm:$0xf]
      %v226 = vld [vmem:[%s171 + $0x114] sm:$0xff]
      %v227 = vld [vmem:[%s171 + $0x11c] sm:$0xf]
      %v228 = vld [vmem:[%s171 + $0x120] sm:$0xff]
      %v229 = vld [vmem:[%s171 + $0x128] sm:$0xf]
      %v230 = vld [vmem:[%s171 + $0x12c] sm:$0xff]
      %v231 = vld [vmem:[%s171 + $0x134] sm:$0xf]
      %v232 = vld [vmem:[%s171 + $0x138] sm:$0xff]
      %v233 = vld [vmem:[%s171 + $0x140] sm:$0xf]
      %v234 = vld [vmem:[%s171 + $0x144] sm:$0xff]
      %v235 = vld [vmem:[%s171 + $0x14c] sm:$0xf]
      %v236 = vld [vmem:[%s1] sm:$0xf]
      %v237 = vld [vmem:[%s1 + $0x4] sm:$0xf]
      %v238 = vld [vmem:[%s1 + $0x8] sm:$0xf]
      %v239 = vld [vmem:[%s1 + $0xc] sm:$0xf]
      %v240 = vld [vmem:[%s1 + $0x10] sm:$0xf]
      %v241 = vld [vmem:[%s1 + $0x14] sm:$0xf]
      %v242 = vld [vmem:[%s1 + $0x18] sm:$0xf]
      %v243 = vld [vmem:[%s1 + $0x1c] sm:$0xf]
      %v244 = vld [vmem:[%s1 + $0x20] sm:$0xf]
      %v245 = vld [vmem:[%s1 + $0x24] sm:$0xf]
      %v246 = vld [vmem:[%s1 + $0x28] sm:$0xf]
      %v247 = vld [vmem:[%s1 + $0x2c] sm:$0xf]
      %v248 = vld [vmem:[%s1 + $0x30] sm:$0xf]
      %v249 = vld [vmem:[%s1 + $0x34] sm:$0xf]
      %v250 = vld [vmem:[%s1 + $0x38] sm:$0xf]
      %v251 = vld [vmem:[%s1 + $0x3c] sm:$0xf]
      %v252 = vld [vmem:[%s1 + $0x40] sm:$0xf]
      %v253 = vld [vmem:[%s1 + $0x44] sm:$0xf]
      %v254 = vld [vmem:[%s1 + $0x48] sm:$0xf]
      %v255 = vld [vmem:[%s1 + $0x4c] sm:$0xf]
      %v256 = vld [vmem:[%s1 + $0x50] sm:$0xf]
      %v257 = vld [vmem:[%s1 + $0x54] sm:$0xf]
      %v258 = vld [vmem:[%s1 + $0x58] sm:$0xf]
      %v259 = vld [vmem:[%s1 + $0x5c] sm:$0xf]
      %v260 = vld [vmem:[%s1 + $0x60] sm:$0xf]
      %v261 = vld [vmem:[%s1 + $0x64] sm:$0xf]
      %v262 = vld [vmem:[%s1 + $0x68] sm:$0xf]
      %v263 = vld [vmem:[%s1 + $0x6c] sm:$0xf]
      %v264 = vld [vmem:[%s1 + $0x70] sm:$0xf]
      %v265 = vld [vmem:[%s1 + $0x74] sm:$0xf]
      %v266 = vld [vmem:[%s1 + $0x78] sm:$0xf]
      %v267 = vld [vmem:[%s1 + $0x7c] sm:$0xf]
      %v268 = vld [vmem:[%s1 + $0x80] sm:$0xf]
      %v269 = vld [vmem:[%s1 + $0x84] sm:$0xf]
      %v270 = vld [vmem:[%s1 + $0x88] sm:$0xf]
      %v271 = vld [vmem:[%s1 + $0x8c] sm:$0xf]
      %v272 = vld [vmem:[#allocation2] sm:$0x1]
      %v274 = vlaneseq
      %v275 = vshrl.u32 %v274, 7
      %v276 = vsub.s32 0, %v275
      %v277 = vrot.slane %v272, %v276
      %v335 = vunpack.c.l.b16 %v180
      %v336 = vunpack.c.h.b16 %v180
      %v337 = vunpack.c.l.b16 %v181
      %v338 = vunpack.c.l.b16 %v182
      %v339 = vunpack.c.h.b16 %v182
      %v340 = vunpack.c.l.b16 %v183
      %v341 = vunpack.c.l.b16 %v184
      %v342 = vunpack.c.h.b16 %v184
      %v343 = vunpack.c.l.b16 %v185
      %v344 = vunpack.c.l.b16 %v186
      %v345 = vunpack.c.h.b16 %v186
      %v346 = vunpack.c.l.b16 %v187
      %v347 = vunpack.c.l.b16 %v188
      %v348 = vunpack.c.h.b16 %v188
      %v349 = vunpack.c.l.b16 %v189
      %v350 = vunpack.c.l.b16 %v190
      %v351 = vunpack.c.h.b16 %v190
      %v352 = vunpack.c.l.b16 %v191
      %v353 = vunpack.c.l.b16 %v192
      %v354 = vunpack.c.h.b16 %v192
      %v355 = vunpack.c.l.b16 %v193
      %v356 = vunpack.c.l.b16 %v194
      %v357 = vunpack.c.h.b16 %v194
      %v358 = vunpack.c.l.b16 %v195
      %v359 = vunpack.c.l.b16 %v196
      %v360 = vunpack.c.h.b16 %v196
      %v361 = vunpack.c.l.b16 %v197
      %v362 = vunpack.c.l.b16 %v198
      %v363 = vunpack.c.h.b16 %v198
      %v364 = vunpack.c.l.b16 %v199
      %v365 = vunpack.c.l.b16 %v200
      %v366 = vunpack.c.h.b16 %v200
      %v367 = vunpack.c.l.b16 %v201
      %v368 = vunpack.c.l.b16 %v202
      %v369 = vunpack.c.h.b16 %v202
      %v370 = vunpack.c.l.b16 %v203
      %v371 = vunpack.c.l.b16 %v204
      %v372 = vunpack.c.h.b16 %v204
      %v373 = vunpack.c.l.b16 %v205
      %v374 = vunpack.c.l.b16 %v206
      %v375 = vunpack.c.h.b16 %v206
      %v376 = vunpack.c.l.b16 %v207
      %v377 = vunpack.c.l.b16 %v208
      %v378 = vunpack.c.h.b16 %v208
      %v379 = vunpack.c.l.b16 %v209
      %v380 = vunpack.c.l.b16 %v210
      %v381 = vunpack.c.h.b16 %v210
      %v382 = vunpack.c.l.b16 %v211
      %v383 = vunpack.c.l.b16 %v212
      %v384 = vunpack.c.h.b16 %v212
      %v385 = vunpack.c.l.b16 %v213
      %v386 = vunpack.c.l.b16 %v214
      %v387 = vunpack.c.h.b16 %v214
      %v388 = vunpack.c.l.b16 %v215
      %v389 = vunpack.c.l.b16 %v216
      %v390 = vunpack.c.h.b16 %v216
      %v391 = vunpack.c.l.b16 %v217
      %v392 = vunpack.c.l.b16 %v218
      %v393 = vunpack.c.h.b16 %v218
      %v394 = vunpack.c.l.b16 %v219
      %v395 = vunpack.c.l.b16 %v220
      %v396 = vunpack.c.h.b16 %v220
      %v397 = vunpack.c.l.b16 %v221
      %v398 = vunpack.c.l.b16 %v222
      %v399 = vunpack.c.h.b16 %v222
      %v400 = vunpack.c.l.b16 %v223
      %v401 = vunpack.c.l.b16 %v224
      %v402 = vunpack.c.h.b16 %v224
      %v403 = vunpack.c.l.b16 %v225
      %v404 = vunpack.c.l.b16 %v226
      %v405 = vunpack.c.h.b16 %v226
      %v406 = vunpack.c.l.b16 %v227
      %v407 = vunpack.c.l.b16 %v228
      %v408 = vunpack.c.h.b16 %v228
      %v409 = vunpack.c.l.b16 %v229
      %v410 = vunpack.c.l.b16 %v230
      %v411 = vunpack.c.h.b16 %v230
      %v412 = vunpack.c.l.b16 %v231
      %v413 = vunpack.c.l.b16 %v232
      %v414 = vunpack.c.h.b16 %v232
      %v415 = vunpack.c.l.b16 %v233
      %v416 = vunpack.c.l.b16 %v234
      %v417 = vunpack.c.h.b16 %v234
      %v418 = vunpack.c.l.b16 %v235
      %v419 = vpack.c.b16 %v338, %v335
      %v420 = vpack.c.b16 %v339, %v336
      %v421 = vpack.c.b16 %v340, %v337
      %v422 = vpack.c.b16 %v344, %v341
      %v423 = vpack.c.b16 %v345, %v342
      %v424 = vpack.c.b16 %v346, %v343
      %v425 = vpack.c.b16 %v350, %v347
      %v426 = vpack.c.b16 %v351, %v348
      %v427 = vpack.c.b16 %v352, %v349
      %v428 = vpack.c.b16 %v356, %v353
      %v429 = vpack.c.b16 %v357, %v354
      %v430 = vpack.c.b16 %v358, %v355
      %v431 = vpack.c.b16 %v362, %v359
      %v432 = vpack.c.b16 %v363, %v360
      %v433 = vpack.c.b16 %v364, %v361
      %v434 = vpack.c.b16 %v368, %v365
      %v435 = vpack.c.b16 %v369, %v366
      %v436 = vpack.c.b16 %v370, %v367
      %v437 = vpack.c.b16 %v374, %v371
      %v438 = vpack.c.b16 %v375, %v372
      %v439 = vpack.c.b16 %v376, %v373
      %v440 = vpack.c.b16 %v380, %v377
      %v441 = vpack.c.b16 %v381, %v378
      %v442 = vpack.c.b16 %v382, %v379
      %v443 = vpack.c.b16 %v386, %v383
      %v444 = vpack.c.b16 %v387, %v384
      %v445 = vpack.c.b16 %v388, %v385
      %v446 = vpack.c.b16 %v392, %v389
      %v447 = vpack.c.b16 %v393, %v390
      %v448 = vpack.c.b16 %v394, %v391
      %v449 = vpack.c.b16 %v398, %v395
      %v450 = vpack.c.b16 %v399, %v396
      %v451 = vpack.c.b16 %v400, %v397
      %v452 = vpack.c.b16 %v404, %v401
      %v453 = vpack.c.b16 %v405, %v402
      %v454 = vpack.c.b16 %v406, %v403
      %v455 = vpack.c.b16 %v410, %v407
      %v456 = vpack.c.b16 %v411, %v408
      %v457 = vpack.c.b16 %v412, %v409
      %v458 = vpack.c.b16 %v416, %v413
      %v459 = vpack.c.b16 %v417, %v414
      %v460 = vpack.c.b16 %v418, %v415
      %v525 = vunpack.c.l.b16 %v236
      %v526 = vunpack.c.l.b16 %v237
      %v527 = vunpack.c.l.b16 %v238
      %v528 = vunpack.c.l.b16 %v239
      %v529 = vunpack.c.l.b16 %v240
      %v530 = vunpack.c.l.b16 %v241
      %v531 = vunpack.c.l.b16 %v242
      %v532 = vunpack.c.l.b16 %v243
      %v533 = vunpack.c.l.b16 %v244
      %v534 = vunpack.c.l.b16 %v245
      %v535 = vunpack.c.l.b16 %v246
      %v536 = vunpack.c.l.b16 %v247
      %v537 = vunpack.c.l.b16 %v248
      %v538 = vunpack.c.l.b16 %v249
      %v539 = vunpack.c.l.b16 %v250
      %v540 = vunpack.c.l.b16 %v251
      %v541 = vunpack.c.l.b16 %v252
      %v542 = vunpack.c.l.b16 %v253
      %v543 = vunpack.c.l.b16 %v254
      %v544 = vunpack.c.l.b16 %v255
      %v545 = vunpack.c.l.b16 %v256
      %v546 = vunpack.c.l.b16 %v257
      %v547 = vunpack.c.l.b16 %v258
      %v548 = vunpack.c.l.b16 %v259
      %v549 = vunpack.c.l.b16 %v260
      %v550 = vunpack.c.l.b16 %v261
      %v551 = vunpack.c.l.b16 %v262
      %v552 = vunpack.c.l.b16 %v263
      %v553 = vunpack.c.l.b16 %v264
      %v554 = vunpack.c.l.b16 %v265
      %v555 = vunpack.c.l.b16 %v266
      %v556 = vunpack.c.l.b16 %v267
      %v557 = vunpack.c.l.b16 %v268
      %v558 = vunpack.c.l.b16 %v269
      %v559 = vunpack.c.l.b16 %v270
      %v560 = vunpack.c.l.b16 %v271
      %v561 = vpack.c.b16 %v526, %v525
      %v562 = vpack.c.b16 %v528, %v527
      %v563 = vpack.c.b16 %v530, %v529
      %v564 = vpack.c.b16 %v532, %v531
      %v565 = vpack.c.b16 %v534, %v533
      %v566 = vpack.c.b16 %v536, %v535
      %v567 = vpack.c.b16 %v538, %v537
      %v568 = vpack.c.b16 %v540, %v539
      %v569 = vpack.c.b16 %v542, %v541
      %v570 = vpack.c.b16 %v544, %v543
      %v571 = vpack.c.b16 %v546, %v545
      %v572 = vpack.c.b16 %v548, %v547
      %v573 = vpack.c.b16 %v550, %v549
      %v574 = vpack.c.b16 %v552, %v551
      %v575 = vpack.c.b16 %v554, %v553
      %v576 = vpack.c.b16 %v556, %v555
      %v577 = vpack.c.b16 %v558, %v557
      %v578 = vpack.c.b16 %v560, %v559
      %vm597 = vcmask 261120
      %v599 = vsel %vm597, %v421, 0
      %v602 = vsel %vm597, %v424, 0
      %v605 = vsel %vm597, %v427, 0
      %v608 = vsel %vm597, %v430, 0
      %v611 = vsel %vm597, %v433, 0
      %v614 = vsel %vm597, %v436, 0
      %v617 = vsel %vm597, %v439, 0
      %v620 = vsel %vm597, %v442, 0
      %v623 = vsel %vm597, %v445, 0
      %v626 = vsel %vm597, %v448, 0
      %v629 = vsel %vm597, %v451, 0
      %v632 = vsel %vm597, %v454, 0
      %v635 = vsel %vm597, %v457, 0
      %v638 = vsel %vm597, %v460, 0
      %640 = vmatprep.subr.bf16.mxu0 0
      %641 = vmatpush1.bf16.msra.mxu0 %v568
      %642 = vmatprep.subr.bf16.mxu0 0
      %643 = vmatpush1.bf16.msra.mxu0 %v567
      %644 = vmatprep.subr.bf16.mxu0 0
      %645 = vmatpush1.bf16.msra.mxu0 %v566
      %646 = vmatprep.subr.bf16.mxu0 0
      %647 = vmatpush1.bf16.msra.mxu0 %v565
      %648 = vmatprep.subr.bf16.mxu0 0
      %649 = vmatpush1.bf16.msra.mxu0 %v564
      %650 = vmatprep.subr.bf16.mxu0 0
      %651 = vmatpush1.bf16.msra.mxu0 %v563
      %652 = vmatprep.subr.bf16.mxu0 0
      %653 = vmatpush1.bf16.msra.mxu0 %v562
      %654 = vmatprep.subr.bf16.mxu0 0
      %655 = vmatpush1.bf16.msra.mxu0 %v561
      %656 = vmatprep.subr.bf16.mxu0 0
      %657 = vmatpush2.bf16.msra.mxu0 %v576
      %658 = vmatprep.subr.bf16.mxu0 0
      %659 = vmatpush2.bf16.msra.mxu0 %v575
      %660 = vmatprep.subr.bf16.mxu0 0
      %661 = vmatpush2.bf16.msra.mxu0 %v574
      %662 = vmatprep.subr.bf16.mxu0 0
      %663 = vmatpush2.bf16.msra.mxu0 %v573
      %664 = vmatprep.subr.bf16.mxu0 0
      %665 = vmatpush2.bf16.msra.mxu0 %v572
      %666 = vmatprep.subr.bf16.mxu0 0
      %667 = vmatpush2.bf16.msra.mxu0 %v571
      %668 = vmatprep.subr.bf16.mxu0 0
      %669 = vmatpush2.bf16.msra.mxu0 %v570
      %670 = vmatprep.subr.bf16.mxu0 0
      %671 = vmatpush2.bf16.msra.mxu0 %v569
      %672 = vmatprep.mubr.bf16.mxu0 %v420
      %673 = vmatmul.mubr.bf16.gmra.mxu0 %v419
      %v674 = vpop.f32.mrf.mxu0
      %v675 = vadd.f32 %v277, %v674
      %v676 = vpop.f32.mrf.mxu0
      %v677 = vpop.f32.mrf.mxu0
      %v678 = vadd.f32 %v277, %v677
      %v679 = vpop.f32.mrf.mxu0
      %680 = vmatprep.mubr.bf16.mxu0 %v423
      %681 = vmatmul.mubr.bf16.gmra.mxu0 %v422
      %v682 = vpop.f32.mrf.mxu0
      %v683 = vadd.f32 %v277, %v682
      %v684 = vpop.f32.mrf.mxu0
      %v685 = vpop.f32.mrf.mxu0
      %v686 = vadd.f32 %v277, %v685
      %v687 = vpop.f32.mrf.mxu0
      %688 = vmatprep.mubr.bf16.mxu0 %v426
      %689 = vmatmul.mubr.bf16.gmra.mxu0 %v425
      %v690 = vpop.f32.mrf.mxu0
      %v691 = vadd.f32 %v277, %v690
      %v692 = vpop.f32.mrf.mxu0
      %v693 = vpop.f32.mrf.mxu0
      %v694 = vadd.f32 %v277, %v693
      %v695 = vpop.f32.mrf.mxu0
      %696 = vmatprep.mubr.bf16.mxu0 %v429
      %697 = vmatmul.mubr.bf16.gmra.mxu0 %v428
      %v698 = vpop.f32.mrf.mxu0
      %v699 = vadd.f32 %v277, %v698
      %v700 = vpop.f32.mrf.mxu0
      %v701 = vpop.f32.mrf.mxu0
      %v702 = vadd.f32 %v277, %v701
      %v703 = vpop.f32.mrf.mxu0
      %704 = vmatprep.mubr.bf16.mxu0 %v432
      %705 = vmatmul.mubr.bf16.gmra.mxu0 %v431
      %v706 = vpop.f32.mrf.mxu0
      %v707 = vadd.f32 %v277, %v706
      %v708 = vpop.f32.mrf.mxu0
      %v709 = vpop.f32.mrf.mxu0
      %v710 = vadd.f32 %v277, %v709
      %v711 = vpop.f32.mrf.mxu0
      %712 = vmatprep.mubr.bf16.mxu0 %v435
      %713 = vmatmul.mubr.bf16.gmra.mxu0 %v434
      %v714 = vpop.f32.mrf.mxu0
      %v715 = vadd.f32 %v277, %v714
      %v716 = vpop.f32.mrf.mxu0
      %v717 = vpop.f32.mrf.mxu0
      %v718 = vadd.f32 %v277, %v717
      %v719 = vpop.f32.mrf.mxu0
      %720 = vmatprep.mubr.bf16.mxu0 %v438
      %721 = vmatmul.mubr.bf16.gmra.mxu0 %v437
      %v722 = vpop.f32.mrf.mxu0
      %v723 = vadd.f32 %v277, %v722
      %v724 = vpop.f32.mrf.mxu0
      %v725 = vpop.f32.mrf.mxu0
      %v726 = vadd.f32 %v277, %v725
      %v727 = vpop.f32.mrf.mxu0
      %728 = vmatprep.mubr.bf16.mxu0 %v441
      %729 = vmatmul.mubr.bf16.gmra.mxu0 %v440
      %v730 = vpop.f32.mrf.mxu0
      %v731 = vadd.f32 %v277, %v730
      %v732 = vpop.f32.mrf.mxu0
      %v733 = vpop.f32.mrf.mxu0
      %v734 = vadd.f32 %v277, %v733
      %v735 = vpop.f32.mrf.mxu0
      %736 = vmatprep.mubr.bf16.mxu0 %v444
      %737 = vmatmul.mubr.bf16.gmra.mxu0 %v443
      %v738 = vpop.f32.mrf.mxu0
      %v739 = vadd.f32 %v277, %v738
      %v740 = vpop.f32.mrf.mxu0
      %v741 = vpop.f32.mrf.mxu0
      %v742 = vadd.f32 %v277, %v741
      %v743 = vpop.f32.mrf.mxu0
      %744 = vmatprep.mubr.bf16.mxu0 %v447
      %745 = vmatmul.mubr.bf16.gmra.mxu0 %v446
      %v746 = vpop.f32.mrf.mxu0
      %v747 = vadd.f32 %v277, %v746
      %v748 = vpop.f32.mrf.mxu0
      %v749 = vpop.f32.mrf.mxu0
      %v750 = vadd.f32 %v277, %v749
      %v751 = vpop.f32.mrf.mxu0
      %752 = vmatprep.mubr.bf16.mxu0 %v450
      %753 = vmatmul.mubr.bf16.gmra.mxu0 %v449
      %v754 = vpop.f32.mrf.mxu0
      %v755 = vadd.f32 %v277, %v754
      %v756 = vpop.f32.mrf.mxu0
      %v757 = vpop.f32.mrf.mxu0
      %v758 = vadd.f32 %v277, %v757
      %v759 = vpop.f32.mrf.mxu0
      %760 = vmatprep.mubr.bf16.mxu0 %v453
      %761 = vmatmul.mubr.bf16.gmra.mxu0 %v452
      %v762 = vpop.f32.mrf.mxu0
      %v763 = vadd.f32 %v277, %v762
      %v764 = vpop.f32.mrf.mxu0
      %v765 = vpop.f32.mrf.mxu0
      %v766 = vadd.f32 %v277, %v765
      %v767 = vpop.f32.mrf.mxu0
      %768 = vmatprep.mubr.bf16.mxu0 %v456
      %769 = vmatmul.mubr.bf16.gmra.mxu0 %v455
      %v770 = vpop.f32.mrf.mxu0
      %v771 = vadd.f32 %v277, %v770
      %v772 = vpop.f32.mrf.mxu0
      %v773 = vpop.f32.mrf.mxu0
      %v774 = vadd.f32 %v277, %v773
      %v775 = vpop.f32.mrf.mxu0
      %776 = vmatprep.mubr.bf16.mxu0 %v459
      %777 = vmatmul.mubr.bf16.gmra.mxu0 %v458
      %v778 = vpop.f32.mrf.mxu0
      %v779 = vadd.f32 %v277, %v778
      %v780 = vpop.f32.mrf.mxu0
      %v781 = vpop.f32.mrf.mxu0
      %v782 = vadd.f32 %v277, %v781
      %v783 = vpop.f32.mrf.mxu0
      %784 = vdwg.mxu0
      %785 = vmatprep.subr.bf16.mxu0 0
      %786 = vmatpush1.bf16.msra.mxu0 0
      %787 = vmatprep.subr.bf16.mxu0 0
      %788 = vmatpush1.bf16.msra.mxu0 0
      %789 = vmatprep.subr.bf16.mxu0 0
      %790 = vmatpush1.bf16.msra.mxu0 0
      %791 = vmatprep.subr.bf16.mxu0 0
      %792 = vmatpush1.bf16.msra.mxu0 0
      %793 = vmatprep.subr.bf16.mxu0 0
      %794 = vmatpush1.bf16.msra.mxu0 0
      %795 = vmatprep.subr.bf16.mxu0 0
      %796 = vmatpush1.bf16.msra.mxu0 0
      %797 = vmatprep.subr.bf16.mxu0 0
      %798 = vmatpush1.bf16.msra.mxu0 %v578
      %799 = vmatprep.subr.bf16.mxu0 0
      %800 = vmatpush1.bf16.msra.mxu0 %v577
      %801 = vmatprep.subr.bf16.mxu0 0
      %802 = vmatpush2.bf16.msra.mxu0 0
      %803 = vmatprep.subr.bf16.mxu0 0
      %804 = vmatpush2.bf16.msra.mxu0 0
      %805 = vmatprep.subr.bf16.mxu0 0
      %806 = vmatpush2.bf16.msra.mxu0 0
      %807 = vmatprep.subr.bf16.mxu0 0
      %808 = vmatpush2.bf16.msra.mxu0 0
      %809 = vmatprep.subr.bf16.mxu0 0
      %810 = vmatpush2.bf16.msra.mxu0 0
      %811 = vmatprep.subr.bf16.mxu0 0
      %812 = vmatpush2.bf16.msra.mxu0 0
      %813 = vmatprep.subr.bf16.mxu0 0
      %814 = vmatpush2.bf16.msra.mxu0 0
      %815 = vmatprep.subr.bf16.mxu0 0
      %816 = vmatpush2.bf16.msra.mxu0 0
      %817 = vmatprep.mubr.bf16.mxu0 0
      %818 = vmatmul.mubr.bf16.gmra.mxu0 %v599
      %v819 = vpop.f32.mrf.mxu0
      %v820 = vadd.f32 %v675, %v819
      %v821 = vpop.f32.mrf.mxu0
      %v822 = vpop.f32.mrf.mxu0
      %v823 = vadd.f32 %v678, %v822
      %v824 = vpop.f32.mrf.mxu0
      %825 = vmatprep.mubr.bf16.mxu0 0
      %826 = vmatmul.mubr.bf16.gmra.mxu0 %v602
      %v827 = vpop.f32.mrf.mxu0
      %v828 = vadd.f32 %v683, %v827
      %v829 = vpop.f32.mrf.mxu0
      %v830 = vpop.f32.mrf.mxu0
      %v831 = vadd.f32 %v686, %v830
      %v832 = vpop.f32.mrf.mxu0
      %833 = vmatprep.mubr.bf16.mxu0 0
      %834 = vmatmul.mubr.bf16.gmra.mxu0 %v605
      %v835 = vpop.f32.mrf.mxu0
      %v836 = vadd.f32 %v691, %v835
      %v837 = vpop.f32.mrf.mxu0
      %v838 = vpop.f32.mrf.mxu0
      %v839 = vadd.f32 %v694, %v838
      %v840 = vpop.f32.mrf.mxu0
      %841 = vmatprep.mubr.bf16.mxu0 0
      %842 = vmatmul.mubr.bf16.gmra.mxu0 %v608
      %v843 = vpop.f32.mrf.mxu0
      %v844 = vadd.f32 %v699, %v843
      %v845 = vpop.f32.mrf.mxu0
      %v846 = vpop.f32.mrf.mxu0
      %v847 = vadd.f32 %v702, %v846
      %v848 = vpop.f32.mrf.mxu0
      %849 = vmatprep.mubr.bf16.mxu0 0
      %850 = vmatmul.mubr.bf16.gmra.mxu0 %v611
      %v851 = vpop.f32.mrf.mxu0
      %v852 = vadd.f32 %v707, %v851
      %v853 = vpop.f32.mrf.mxu0
      %v854 = vpop.f32.mrf.mxu0
      %v855 = vadd.f32 %v710, %v854
      %v856 = vpop.f32.mrf.mxu0
      %857 = vmatprep.mubr.bf16.mxu0 0
      %858 = vmatmul.mubr.bf16.gmra.mxu0 %v614
      %v859 = vpop.f32.mrf.mxu0
      %v860 = vadd.f32 %v715, %v859
      %v861 = vpop.f32.mrf.mxu0
      %v862 = vpop.f32.mrf.mxu0
      %v863 = vadd.f32 %v718, %v862
      %v864 = vpop.f32.mrf.mxu0
      %865 = vmatprep.mubr.bf16.mxu0 0
      %866 = vmatmul.mubr.bf16.gmra.mxu0 %v617
      %v867 = vpop.f32.mrf.mxu0
      %v868 = vadd.f32 %v723, %v867
      %v869 = vpop.f32.mrf.mxu0
      %v870 = vpop.f32.mrf.mxu0
      %v871 = vadd.f32 %v726, %v870
      %v872 = vpop.f32.mrf.mxu0
      %873 = vmatprep.mubr.bf16.mxu0 0
      %874 = vmatmul.mubr.bf16.gmra.mxu0 %v620
      %v875 = vpop.f32.mrf.mxu0
      %v876 = vadd.f32 %v731, %v875
      %v877 = vpop.f32.mrf.mxu0
      %v878 = vpop.f32.mrf.mxu0
      %v879 = vadd.f32 %v734, %v878
      %v880 = vpop.f32.mrf.mxu0
      %881 = vmatprep.mubr.bf16.mxu0 0
      %882 = vmatmul.mubr.bf16.gmra.mxu0 %v623
      %v883 = vpop.f32.mrf.mxu0
      %v884 = vadd.f32 %v739, %v883
      %v885 = vpop.f32.mrf.mxu0
      %v886 = vpop.f32.mrf.mxu0
      %v887 = vadd.f32 %v742, %v886
      %v888 = vpop.f32.mrf.mxu0
      %889 = vmatprep.mubr.bf16.mxu0 0
      %890 = vmatmul.mubr.bf16.gmra.mxu0 %v626
      %v891 = vpop.f32.mrf.mxu0
      %v892 = vadd.f32 %v747, %v891
      %v893 = vpop.f32.mrf.mxu0
      %v894 = vpop.f32.mrf.mxu0
      %v895 = vadd.f32 %v750, %v894
      %v896 = vpop.f32.mrf.mxu0
      %897 = vmatprep.mubr.bf16.mxu0 0
      %898 = vmatmul.mubr.bf16.gmra.mxu0 %v629
      %v899 = vpop.f32.mrf.mxu0
      %v900 = vadd.f32 %v755, %v899
      %v901 = vpop.f32.mrf.mxu0
      %v902 = vpop.f32.mrf.mxu0
      %v903 = vadd.f32 %v758, %v902
      %v904 = vpop.f32.mrf.mxu0
      %905 = vmatprep.mubr.bf16.mxu0 0
      %906 = vmatmul.mubr.bf16.gmra.mxu0 %v632
      %v907 = vpop.f32.mrf.mxu0
      %v908 = vadd.f32 %v763, %v907
      %v909 = vpop.f32.mrf.mxu0
      %v910 = vpop.f32.mrf.mxu0
      %v911 = vadd.f32 %v766, %v910
      %v912 = vpop.f32.mrf.mxu0
      %913 = vmatprep.mubr.bf16.mxu0 0
      %914 = vmatmul.mubr.bf16.gmra.mxu0 %v635
      %v915 = vpop.f32.mrf.mxu0
      %v916 = vadd.f32 %v771, %v915
      %v917 = vpop.f32.mrf.mxu0
      %v918 = vpop.f32.mrf.mxu0
      %v919 = vadd.f32 %v774, %v918
      %v920 = vpop.f32.mrf.mxu0
      %921 = vmatprep.mubr.bf16.mxu0 0
      %922 = vmatmul.mubr.bf16.gmra.mxu0 %v638
      %v923 = vpop.f32.mrf.mxu0
      %v924 = vadd.f32 %v779, %v923
      %v925 = vpop.f32.mrf.mxu0
      %v926 = vpop.f32.mrf.mxu0
      %v927 = vadd.f32 %v782, %v926
      %v928 = vpop.f32.mrf.mxu0
      %929 = vdwg.mxu0
      %v930 = vsub.f32 0.0, %v820
      %v931 = vsub.f32 0.0, %v823
      %v932 = vsub.f32 0.0, %v828
      %v933 = vsub.f32 0.0, %v831
      %v934 = vsub.f32 0.0, %v836
      %v935 = vsub.f32 0.0, %v839
      %v936 = vsub.f32 0.0, %v844
      %v937 = vsub.f32 0.0, %v847
      %v938 = vsub.f32 0.0, %v852
      %v939 = vsub.f32 0.0, %v855
      %v940 = vsub.f32 0.0, %v860
      %v941 = vsub.f32 0.0, %v863
      %v942 = vsub.f32 0.0, %v868
      %v943 = vsub.f32 0.0, %v871
      %v944 = vsub.f32 0.0, %v876
      %v945 = vsub.f32 0.0, %v879
      %v946 = vsub.f32 0.0, %v884
      %v947 = vsub.f32 0.0, %v887
      %v948 = vsub.f32 0.0, %v892
      %v949 = vsub.f32 0.0, %v895
      %v950 = vsub.f32 0.0, %v900
      %v951 = vsub.f32 0.0, %v903
      %v952 = vsub.f32 0.0, %v908
      %v953 = vsub.f32 0.0, %v911
      %v954 = vsub.f32 0.0, %v916
      %v955 = vsub.f32 0.0, %v919
      %v956 = vsub.f32 0.0, %v924
      %v957 = vsub.f32 0.0, %v927
      %v958 = vmul.f32 %v930, 1.442695
      %v959 = vpow.pop %v958
      %v960 = vmul.f32 %v931, 1.442695
      %v961 = vpow.pop %v960
      %v962 = vmul.f32 %v932, 1.442695
      %v963 = vpow.pop %v962
      %v964 = vmul.f32 %v933, 1.442695
      %v965 = vpow.pop %v964
      %v966 = vmul.f32 %v934, 1.442695
      %v967 = vpow.pop %v966
      %v968 = vmul.f32 %v935, 1.442695
      %v969 = vpow.pop %v968
      %v970 = vmul.f32 %v936, 1.442695
      %v971 = vpow.pop %v970
      %v972 = vmul.f32 %v937, 1.442695
      %v973 = vpow.pop %v972
      %v974 = vmul.f32 %v938, 1.442695
      %v975 = vpow.pop %v974
      %v976 = vmul.f32 %v939, 1.442695
      %v977 = vpow.pop %v976
      %v978 = vmul.f32 %v940, 1.442695
      %v979 = vpow.pop %v978
      %v980 = vmul.f32 %v941, 1.442695
      %v981 = vpow.pop %v980
      %v982 = vmul.f32 %v942, 1.442695
      %v983 = vpow.pop %v982
      %v984 = vmul.f32 %v943, 1.442695
      %v985 = vpow.pop %v984
      %v986 = vmul.f32 %v944, 1.442695
      %v987 = vpow.pop %v986
      %v988 = vmul.f32 %v945, 1.442695
      %v989 = vpow.pop %v988
      %v990 = vmul.f32 %v946, 1.442695
      %v991 = vpow.pop %v990
      %v992 = vmul.f32 %v947, 1.442695
      %v993 = vpow.pop %v992
      %v994 = vmul.f32 %v948, 1.442695
      %v995 = vpow.pop %v994
      %v996 = vmul.f32 %v949, 1.442695
      %v997 = vpow.pop %v996
      %v998 = vmul.f32 %v950, 1.442695
      %v999 = vpow.pop %v998
      %v1000 = vmul.f32 %v951, 1.442695
      %v1001 = vpow.pop %v1000
      %v1002 = vmul.f32 %v952, 1.442695
      %v1003 = vpow.pop %v1002
      %v1004 = vmul.f32 %v953, 1.442695
      %v1005 = vpow.pop %v1004
      %v1006 = vmul.f32 %v954, 1.442695
      %v1007 = vpow.pop %v1006
      %v1008 = vmul.f32 %v955, 1.442695
      %v1009 = vpow.pop %v1008
      %v1010 = vmul.f32 %v956, 1.442695
      %v1011 = vpow.pop %v1010
      %v1012 = vmul.f32 %v957, 1.442695
      %v1013 = vpow.pop %v1012
      %v1014 = vadd.f32 %v959, 1.0
      %v1015 = vadd.f32 %v961, 1.0
      %v1016 = vadd.f32 %v963, 1.0
      %v1017 = vadd.f32 %v965, 1.0
      %v1018 = vadd.f32 %v967, 1.0
      %v1019 = vadd.f32 %v969, 1.0
      %v1020 = vadd.f32 %v971, 1.0
      %v1021 = vadd.f32 %v973, 1.0
      %v1022 = vadd.f32 %v975, 1.0
      %v1023 = vadd.f32 %v977, 1.0
      %v1024 = vadd.f32 %v979, 1.0
      %v1025 = vadd.f32 %v981, 1.0
      %v1026 = vadd.f32 %v983, 1.0
      %v1027 = vadd.f32 %v985, 1.0
      %v1028 = vadd.f32 %v987, 1.0
      %v1029 = vadd.f32 %v989, 1.0
      %v1030 = vadd.f32 %v991, 1.0
      %v1031 = vadd.f32 %v993, 1.0
      %v1032 = vadd.f32 %v995, 1.0
      %v1033 = vadd.f32 %v997, 1.0
      %v1034 = vadd.f32 %v999, 1.0
      %v1035 = vadd.f32 %v1001, 1.0
      %v1036 = vadd.f32 %v1003, 1.0
      %v1037 = vadd.f32 %v1005, 1.0
      %v1038 = vadd.f32 %v1007, 1.0
      %v1039 = vadd.f32 %v1009, 1.0
      %v1040 = vadd.f32 %v1011, 1.0
      %v1041 = vadd.f32 %v1013, 1.0
      %v1042 = vrcp.pop %v1014
      %v1043 = vrcp.pop %v1015
      %v1044 = vrcp.pop %v1016
      %v1045 = vrcp.pop %v1017
      %v1046 = vrcp.pop %v1018
      %v1047 = vrcp.pop %v1019
      %v1048 = vrcp.pop %v1020
      %v1049 = vrcp.pop %v1021
      %v1050 = vrcp.pop %v1022
      %v1051 = vrcp.pop %v1023
      %v1052 = vrcp.pop %v1024
      %v1053 = vrcp.pop %v1025
      %v1054 = vrcp.pop %v1026
      %v1055 = vrcp.pop %v1027
      %v1056 = vrcp.pop %v1028
      %v1057 = vrcp.pop %v1029
      %v1058 = vrcp.pop %v1030
      %v1059 = vrcp.pop %v1031
      %v1060 = vrcp.pop %v1032
      %v1061 = vrcp.pop %v1033
      %v1062 = vrcp.pop %v1034
      %v1063 = vrcp.pop %v1035
      %v1064 = vrcp.pop %v1036
      %v1065 = vrcp.pop %v1037
      %v1066 = vrcp.pop %v1038
      %v1067 = vrcp.pop %v1039
      %v1068 = vrcp.pop %v1040
      %v1069 = vrcp.pop %v1041
      %vm1070 = vcmask 7168
      %1071 = vst.msk [vmem:[%s177] sm:$0xff] %vm1070, %v1042
      %1072 = vst.msk [vmem:[%s177 + $0x8] sm:$0xff] %vm1070, %v1043
      %1073 = vst.msk [vmem:[%s177 + $0x10] sm:$0xff] %vm1070, %v1044
      %1074 = vst.msk [vmem:[%s177 + $0x18] sm:$0xff] %vm1070, %v1045
      %1075 = vst.msk [vmem:[%s177 + $0x20] sm:$0xff] %vm1070, %v1046
      %1076 = vst.msk [vmem:[%s177 + $0x28] sm:$0xff] %vm1070, %v1047
      %1077 = vst.msk [vmem:[%s177 + $0x30] sm:$0xff] %vm1070, %v1048
      %1078 = vst.msk [vmem:[%s177 + $0x38] sm:$0xff] %vm1070, %v1049
      %1079 = vst.msk [vmem:[%s177 + $0x40] sm:$0xff] %vm1070, %v1050
      %1080 = vst.msk [vmem:[%s177 + $0x48] sm:$0xff] %vm1070, %v1051
      %1081 = vst.msk [vmem:[%s177 + $0x50] sm:$0xff] %vm1070, %v1052
      %1082 = vst.msk [vmem:[%s177 + $0x58] sm:$0xff] %vm1070, %v1053
      %1083 = vst.msk [vmem:[%s177 + $0x60] sm:$0xff] %vm1070, %v1054
      %1084 = vst.msk [vmem:[%s177 + $0x68] sm:$0xff] %vm1070, %v1055
      %1085 = vst.msk [vmem:[%s177 + $0x70] sm:$0xff] %vm1070, %v1056
      %1086 = vst.msk [vmem:[%s177 + $0x78] sm:$0xff] %vm1070, %v1057
      %1087 = vst.msk [vmem:[%s177 + $0x80] sm:$0xff] %vm1070, %v1058
      %1088 = vst.msk [vmem:[%s177 + $0x88] sm:$0xff] %vm1070, %v1059
      %1089 = vst.msk [vmem:[%s177 + $0x90] sm:$0xff] %vm1070, %v1060
      %1090 = vst.msk [vmem:[%s177 + $0x98] sm:$0xff] %vm1070, %v1061
      %1091 = vst.msk [vmem:[%s177 + $0xa0] sm:$0xff] %vm1070, %v1062
      %1092 = vst.msk [vmem:[%s177 + $0xa8] sm:$0xff] %vm1070, %v1063
      %1093 = vst.msk [vmem:[%s177 + $0xb0] sm:$0xff] %vm1070, %v1064
      %1094 = vst.msk [vmem:[%s177 + $0xb8] sm:$0xff] %vm1070, %v1065
      %1095 = vst.msk [vmem:[%s177 + $0xc0] sm:$0xff] %vm1070, %v1066
      %1096 = vst.msk [vmem:[%s177 + $0xc8] sm:$0xff] %vm1070, %v1067
      %1097 = vst.msk [vmem:[%s177 + $0xd0] sm:$0xff] %vm1070, %v1068
      %1098 = vst.msk [vmem:[%s177 + $0xd8] sm:$0xff] %vm1070, %v1069
      %s1099 = smul.u32 28, %s16
      %p1100 = scmp.lt.s32.totalorder %s1099, 195
      %s1101 = scalar_select %p1100, %s1099, 195
      %s1102 = smul.addr %s1101, 8
      %s1103 = scalar_lea.vmem %s3, %s1102
      // Predicated region
      $region33: #{cluster_vae_forward.17} parent=31 // pred_check
        %p1104 = pneg %p102
      $region34: #{cluster_vae_forward.17} parent=31 // pred_check_branch
        %1106 = sbr.rel (%p1104) target = $region36
      $region35: #{cluster_vae_forward.17} parent=31 // pred_region
        %s1107 = smul.u32 28, %s16
      $region36: #{cluster_vae_forward.17} parent=31 // pred_fallthru
        _
    $region32: #{cluster_vae_forward.17} parent=5 // pred_fallthru
      _
    %p1108 = scmp.le.s32.totalorder 2, %s11
    // Predicated region
    $region37: #{cluster_vae_forward.17} parent=5 // pred_check
      %p1109 = pneg %p1108
    $region38: #{cluster_vae_forward.17} parent=5 // pred_check_branch
      %1111 = sbr.rel (%p1109) target = $region40
    $region39: #{cluster_vae_forward.17} parent=5 // pred_region
      %s1112 = ssub.s32 %s11, 2
      // Predicated region
      $region41: #{cluster_vae_forward.17} parent=39 // pred_check
        %p1113 = pneg %p108
      $region42: #{cluster_vae_forward.17} parent=39 // pred_check_branch
        %1115 = sbr.rel (%p1113) target = $region44
      $region43: #{cluster_vae_forward.17} parent=39 // pred_region
        %s1116 = smul.u32 28, %s17
        %p1117 = scmp.lt.s32.totalorder %s1116, 195
        %s1118 = scalar_select %p1117, %s1116, 195
        %s1119 = smul.addr %s1118, 8
        %s1120 = scalar_lea.vmem %s3, %s1119
      $region44: #{cluster_vae_forward.17} parent=39 // pred_fallthru
        _
    $region40: #{cluster_vae_forward.17} parent=5 // pred_fallthru
      _
  $region6: #{cluster_vae_forward.17} parent=0 // loop_footer
    %s15 = sadd.s32 1, %s11
  $region7: #{cluster_vae_forward.17} parent=0 // loop_footer_branch
    %10 = sbr.rel target = $region3
  $region8: #{cluster_vae_forward.17} parent=0 // loop_exit
    _

</llo_original>
